<compile_context>
chip_gen: v5e
topology: v5e:2x2
jax: 0.10.0
libtpu: 0.0.40
codegen_flags: <defaults>
</compile_context>

<pallas_src>
import jax
import jax.numpy as jnp
from jax import lax
from jax.experimental import pallas as pl
from jax.experimental.pallas import tpu as pltpu

EPS = 1e-5          # nn.LayerNorm default eps
KS = 5              # depthwise kernel size
PAD = 2             # padding=2

MXU_IN_DTYPE = jnp.bfloat16     # MXU feed dtype for production channel counts
_TINY_MATMUL_KN = 256           # K*N at or below this -> unrolled VPU FMAs (f32)
ONE_PASS_LN = True              # var = E[x^2]-mu^2 (one sweep); False = exact two-pass
GELU_APPROX = True              # tanh GELU on the EUP slot; False = exact erf (nn.GELU)


def _use_mxu(K, N):
    return K * N > _TINY_MATMUL_KN


def _layernorm(v, gamma, beta):
    mu = jnp.mean(v, axis=-1, keepdims=True)
    if ONE_PASS_LN:
        var = jnp.mean(v * v, axis=-1, keepdims=True) - mu * mu
    else:
        var = jnp.mean((v - mu) ** 2, axis=-1, keepdims=True)
    return (v - mu) * lax.rsqrt(var + EPS) * gamma + beta


def _gelu(v):
    if GELU_APPROX:
        c = jnp.float32(0.7978845608028654)   # sqrt(2/pi)
        return 0.5 * v * (1.0 + jnp.tanh(c * (v + 0.044715 * (v * v * v))))
    return 0.5 * v * (1.0 + lax.erf(v * jnp.float32(0.7071067811865476)))


def _matmul_1x1(x2d, w, b):
    """1x1 conv as a channel matmul.  x2d: (M, K), w: (K, N), b: (1, N) f32."""
    K, N = w.shape
    if not _use_mxu(K, N):
        # Tiny channel count: an MXU matmul would be fill/drain dominated; do
        # unrolled f32 VPU broadcast-FMAs (also keeps this test path exact-f32).
        out = jnp.zeros((x2d.shape[0], N), jnp.float32) + b
        xf = x2d.astype(jnp.float32)
        wf = w.astype(jnp.float32)
        for k in range(K):
            out = out + xf[:, k:k + 1] * wf[k:k + 1, :]
        return out
    # Production channel counts: MXU with bf16 feeds, f32 accumulation.  Weights
    # are pre-cast to bf16 in the wrapper; only cast here as a fallback.
    xw = x2d if x2d.dtype == MXU_IN_DTYPE else x2d.astype(MXU_IN_DTYPE)
    ww = w if w.dtype == MXU_IN_DTYPE else w.astype(MXU_IN_DTYPE)
    return jnp.dot(xw, ww, preferred_element_type=jnp.float32) + b


def cblock_kernel(x_ref, ln1_g_ref, ln1_b_ref, w1_ref, b1_ref,
                  wa_ref, ba_ref, w2_ref, b2_ref,
                  ln2_g_ref, ln2_b_ref, wf1_ref, bf1_ref, wf2_ref, bf2_ref,
                  out_ref, x1_ref):
    _, H, W, C = x_ref.shape
    TH = out_ref.shape[1]
    h = pl.program_id(1)

    # ---- branch 1 (once per image): LN1 -> conv1(1x1) -> depthwise 5x5 -> conv2(1x1) ----
    @pl.when(h == 0)
    def _():
        M = H * W
        x = x_ref[0]                                             # (H, W, C) f32
        xn = _layernorm(x, ln1_g_ref[...].reshape(1, 1, C),
                        ln1_b_ref[...].reshape(1, 1, C))
        y = _matmul_1x1(xn.reshape(M, C), w1_ref[...], b1_ref[...])
        y = y.reshape(H, W, C)

        # Depthwise 5x5 conv (zero padding 2, groups=C), fully in registers:
        #   rows : 5 zero-padded row-shifted views (major-axis concat, no relayout)
        #   cols : pltpu.roll along the sublane (W) axis; the column boundary
        #          mask is folded into the tap weight (no per-tap full selects).
        wa4 = wa_ref[...].reshape(KS * KS, 1, 1, C)              # hoisted tap reshape
        col = lax.broadcasted_iota(jnp.int32, (1, W, 1), 1)      # hoisted col index
        col_ok = [jnp.logical_and(col >= -(dw - PAD), col < W - (dw - PAD))
                  .astype(jnp.float32) for dw in range(KS)]      # 5 x (1, W, 1)

        acc = jnp.zeros((H, W, C), jnp.float32)
        for dh in range(KS):
            d = dh - PAD
            if d == 0:
                yh = y
            elif d > 0:   # yh[h] = y[h + d], zeros past the bottom edge
                yh = jnp.concatenate(
                    [y[d:, :, :], jnp.zeros((d, W, C), jnp.float32)], axis=0)
            else:         # yh[h] = y[h + d], zeros above the top edge
                yh = jnp.concatenate(
                    [jnp.zeros((-d, W, C), jnp.float32), y[:H + d, :, :]], axis=0)
            for dw in range(KS):
                e = dw - PAD
                shift = (-e) % W
                yw = pltpu.roll(yh, shift, axis=1) if shift else yh
                tapw = wa4[dh * KS + dw] * col_ok[dw]            # (1, W, C) masked tap
                acc = acc + yw * tapw
        acc = acc + ba_ref[...].reshape(1, 1, C)                 # conv bias (hoisted)

        z = _matmul_1x1(acc.reshape(M, C), w2_ref[...], b2_ref[...])
        x1_ref[...] = x + z.reshape(H, W, C)                     # carried across row tiles

    # ---- branch 2 (per row tile): LN2 -> fc1(1x1) -> GELU -> fc2(1x1), residual ----
    row0 = pl.multiple_of(h * TH, TH)
    x1 = x1_ref[pl.ds(row0, TH), :, :]                           # (TH, W, C)
    xn2 = _layernorm(x1, ln2_g_ref[...].reshape(1, 1, C),
                     ln2_b_ref[...].reshape(1, 1, C))
    hmid = _matmul_1x1(xn2.reshape(TH * W, C), wf1_ref[...], bf1_ref[...])
    hmid = _gelu(hmid)
    if _use_mxu(*wf2_ref.shape):
        # the (TH*W, 4C) hidden is the largest intermediate; fc2 feeds bf16 anyway
        hmid = hmid.astype(MXU_IN_DTYPE)
    o = _matmul_1x1(hmid, wf2_ref[...], bf2_ref[...])
    out_ref[0] = x1 + o.reshape(TH, W, C)


_PARAM_ORDER = ('ln1_g', 'ln1_b', 'w1', 'b1', 'wa', 'ba', 'w2', 'b2',
                'ln2_g', 'ln2_b', 'wf1', 'bf1', 'wf2', 'bf2')
_MXU_WEIGHTS = ('w1', 'w2', 'wf1', 'wf2')


def _vmem_limit_bytes():
    cap = 128 * 1024 * 1024
    try:
        cap = int(pltpu.get_tpu_info().vmem_capacity_bytes)
    except Exception:
        pass
    # ~3/4 of physical VMEM: ~48 MiB on v7x (64 MiB/TC), ~96 MiB on v5e/v6e,
    # capped at 100 MiB.
    return int(min(100 * 1024 * 1024, cap * 3 // 4))


def _pick_row_tile(H, W, hidden):
    # Keep the f32 MLP hidden tile (TH*W*hidden*4B) around <= 2 MiB, at most 8
    # rows per step (plenty of grid steps even at B=1), snapped to a divisor of
    # H so output blocks tile exactly.
    budget = 2 * 1024 * 1024
    th = max(1, budget // max(1, W * hidden * 4))
    th = min(th, H, 8)
    while H % th:
        th -= 1
    return th


def cblock_forward_nhwc(x_nhwc, params):
    """x: (B, H, W, C) f32 -> (B, H, W, C) f32.  Preferred entry point: keeping
    the network NHWC end-to-end avoids the per-block NCHW<->NHWC transposes."""
    B, H, W, C = x_nhwc.shape
    x = x_nhwc.astype(jnp.float32)
    hidden = params['wf1'].shape[1]
    TH = _pick_row_tile(H, W, hidden)
    NH = H // TH

    # Pre-cast MXU-path weights to bf16 once in the wrapper (halves weight DMA,
    # removes per-grid-step casts).  Tiny (VPU-path) weights stay f32.
    p = dict(params)
    for k in _MXU_WEIGHTS:
        if _use_mxu(*p[k].shape):
            p[k] = p[k].astype(MXU_IN_DTYPE)

    def x_map(b, hh):
        return (b, 0, 0, 0)          # whole image, resident per batch step

    def out_map(b, hh):
        return (b, hh, 0, 0)         # row-tiled, lane-dense output blocks

    def rep_map(b, hh):
        return (0, 0)                # params: same block every step -> DMA'd once

    args = (x,) + tuple(p[k] for k in _PARAM_ORDER)
    in_specs = [pl.BlockSpec((1, H, W, C), x_map)]
    in_specs += [pl.BlockSpec(p[k].shape, rep_map) for k in _PARAM_ORDER]

    return pl.pallas_call(
        cblock_kernel,
        out_shape=jax.ShapeDtypeStruct((B, H, W, C), jnp.float32),
        grid=(B, NH),
        in_specs=in_specs,
        out_specs=pl.BlockSpec((1, TH, W, C), out_map),
        scratch_shapes=[pltpu.VMEM((H, W, C), jnp.float32)],   # x1, carried across row tiles
        input_output_aliases={0: 0},                           # residual update of x
        compiler_params=pltpu.CompilerParams(
            # The row axis carries x1 in scratch (computed at h==0), so it must
            # stay "arbitrary"; batch is "parallel" (megacore / v7x 2-TC split).
            # TODO(synk): compute branch 1 per row tile with a 2-row halo so the
            # row axis can also be "parallel" (helps v7x at B=1).
            dimension_semantics=("parallel", "arbitrary"),
            vmem_limit_bytes=_vmem_limit_bytes()),
    )(*args)


def cblock_forward(x_nchw, params):
    """PyTorch-interface wrapper: (B, C, H, W) -> (B, C, H, W)."""
    x = jnp.transpose(x_nchw, (0, 2, 3, 1))                    # NCHW -> NHWC
    out = cblock_forward_nhwc(x, params)
    return jnp.transpose(out, (0, 3, 1, 2))                    # NHWC -> NCHW


cblock_forward = jax.jit(cblock_forward)


def cblock_ref(x_nchw, params):
    """Pure-JAX reference (exact erf GELU, two-pass LN, f32) for a sanity check."""
    B, C, H, W = x_nchw.shape
    x = jnp.transpose(x_nchw, (0, 2, 3, 1)).astype(jnp.float32)

    def ln(v, g, b):
        mu = jnp.mean(v, -1, keepdims=True)
        var = jnp.mean((v - mu) ** 2, -1, keepdims=True)
        return (v - mu) / jnp.sqrt(var + EPS) * g.reshape(1, 1, 1, -1) + b.reshape(1, 1, 1, -1)

    xn = ln(x, params['ln1_g'], params['ln1_b'])
    y = xn @ params['w1'] + params['b1'].reshape(1, 1, 1, -1)
    yp = jnp.pad(y, ((0, 0), (PAD, PAD), (PAD, PAD), (0, 0)))
    acc = jnp.broadcast_to(params['ba'].reshape(1, 1, 1, -1), y.shape)
    for dh in range(KS):
        for dw in range(KS):
            acc = acc + yp[:, dh:dh + H, dw:dw + W, :] * params['wa'][dh * KS + dw].reshape(1, 1, 1, -1)
    z = acc @ params['w2'] + params['b2'].reshape(1, 1, 1, -1)
    x1 = x + z
    xn2 = ln(x1, params['ln2_g'], params['ln2_b'])
    h = xn2 @ params['wf1'] + params['bf1'].reshape(1, 1, 1, -1)
    h = 0.5 * h * (1.0 + lax.erf(h / jnp.sqrt(2.0)))
    o = h @ params['wf2'] + params['bf2'].reshape(1, 1, 1, -1)
    return jnp.transpose(x1 + o, (0, 3, 1, 2))


if __name__ == "__main__":
    key = jax.random.PRNGKey(0)
    B, C, H, W = 2, 4, 16, 16          # dim=4, spatial 16x16
    mlp_ratio = 4.0
    Ch = int(C * mlp_ratio)            # mlp hidden = 16

    keys = jax.random.split(key, 12)

    def rnd(k, shape, scale=0.1):
        return (scale * jax.random.normal(k, shape)).astype(jnp.float32)

    params = {
        # LayerNorm params (fresh-init: gamma=1, beta=0)
        'ln1_g': jnp.ones((1, C), jnp.float32), 'ln1_b': jnp.zeros((1, C), jnp.float32),
        'ln2_g': jnp.ones((1, C), jnp.float32), 'ln2_b': jnp.zeros((1, C), jnp.float32),
        # conv1 / conv2 (1x1): stored as [C_in, C_out] == pytorch weight[:, :, 0, 0].T
        'w1': rnd(keys[0], (C, C)),  'b1': rnd(keys[1], (1, C)),
        'w2': rnd(keys[2], (C, C)),  'b2': rnd(keys[3], (1, C)),
        # depthwise 5x5: stored as (25, C) with row dh*5+dw == pytorch weight[c, 0, dh, dw]
        'wa': rnd(keys[4], (KS * KS, C)), 'ba': rnd(keys[5], (1, C)),
        # CMlp fc1 / fc2 (1x1 convs) as [in, out]
        'wf1': rnd(keys[6], (C, Ch)), 'bf1': rnd(keys[7], (1, Ch)),
        'wf2': rnd(keys[8], (Ch, C)), 'bf2': rnd(keys[9], (1, C)),
    }

    x = rnd(keys[10], (B, C, H, W), scale=1.0)

    ref = jax.block_until_ready(cblock_ref(x, params))
    out = jax.block_until_ready(cblock_forward(x, params))
    assert out.shape == (B, C, H, W)
    # Tolerance accounts for the (flagged) tanh-approx GELU / one-pass-LN
    # deviations vs the exact erf / two-pass reference (<~1e-4 at these
    # magnitudes); set GELU_APPROX / ONE_PASS_LN to False for bit-level parity.
    err = float(jnp.max(jnp.abs(out - ref)))
    assert jnp.allclose(out, ref, rtol=2e-3, atol=5e-4), err
    print("KERNEL_OK")
</pallas_src>

<mosaic_0001>
module attributes {stable_mosaic.version = 11 : i64} {
  func.func @cblock_kernel(%arg0: i32, %arg1: i32, %arg2: memref<1x16x16x4xf32, #tpu.memory_space<vmem>>, %arg3: memref<1x4xf32, #tpu.memory_space<vmem>>, %arg4: memref<1x4xf32, #tpu.memory_space<vmem>>, %arg5: memref<4x4xf32, #tpu.memory_space<vmem>>, %arg6: memref<1x4xf32, #tpu.memory_space<vmem>>, %arg7: memref<25x4xf32, #tpu.memory_space<vmem>>, %arg8: memref<1x4xf32, #tpu.memory_space<vmem>>, %arg9: memref<4x4xf32, #tpu.memory_space<vmem>>, %arg10: memref<1x4xf32, #tpu.memory_space<vmem>>, %arg11: memref<1x4xf32, #tpu.memory_space<vmem>>, %arg12: memref<1x4xf32, #tpu.memory_space<vmem>>, %arg13: memref<4x16xf32, #tpu.memory_space<vmem>>, %arg14: memref<1x16xf32, #tpu.memory_space<vmem>>, %arg15: memref<16x4xf32, #tpu.memory_space<vmem>>, %arg16: memref<1x4xf32, #tpu.memory_space<vmem>>, %arg17: memref<1x8x16x4xf32, #tpu.memory_space<vmem>>, %arg18: memref<16x16x4xf32, #tpu.memory_space<vmem>>) attributes {dimension_semantics = [#tpu.dimension_semantics<parallel>, #tpu.dimension_semantics<arbitrary>], iteration_bounds = array<i64: 2, 2>, scalar_prefetch = 0 : i64, scratch_operands = 1 : i64, tpu.core_type = #tpu.core_type<tc>, window_params = [{transform_indices = @transform_0, window_bounds = array<i64: 1, 16, 16, 4>}, {pipeline_mode = #tpu.pipeline_mode<synchronous>, transform_indices = @transform_1, window_bounds = array<i64: 1, 4>}, {pipeline_mode = #tpu.pipeline_mode<synchronous>, transform_indices = @transform_2, window_bounds = array<i64: 1, 4>}, {pipeline_mode = #tpu.pipeline_mode<synchronous>, transform_indices = @transform_3, window_bounds = array<i64: 4, 4>}, {pipeline_mode = #tpu.pipeline_mode<synchronous>, transform_indices = @transform_4, window_bounds = array<i64: 1, 4>}, {pipeline_mode = #tpu.pipeline_mode<synchronous>, transform_indices = @transform_5, window_bounds = array<i64: 25, 4>}, {pipeline_mode = #tpu.pipeline_mode<synchronous>, transform_indices = @transform_6, window_bounds = array<i64: 1, 4>}, {pipeline_mode = #tpu.pipeline_mode<synchronous>, transform_indices = @transform_7, window_bounds = array<i64: 4, 4>}, {pipeline_mode = #tpu.pipeline_mode<synchronous>, transform_indices = @transform_8, window_bounds = array<i64: 1, 4>}, {pipeline_mode = #tpu.pipeline_mode<synchronous>, transform_indices = @transform_9, window_bounds = array<i64: 1, 4>}, {pipeline_mode = #tpu.pipeline_mode<synchronous>, transform_indices = @transform_10, window_bounds = array<i64: 1, 4>}, {pipeline_mode = #tpu.pipeline_mode<synchronous>, transform_indices = @transform_11, window_bounds = array<i64: 4, 16>}, {pipeline_mode = #tpu.pipeline_mode<synchronous>, transform_indices = @transform_12, window_bounds = array<i64: 1, 16>}, {pipeline_mode = #tpu.pipeline_mode<synchronous>, transform_indices = @transform_13, window_bounds = array<i64: 16, 4>}, {pipeline_mode = #tpu.pipeline_mode<synchronous>, transform_indices = @transform_14, window_bounds = array<i64: 1, 4>}, {transform_indices = @transform_15, window_bounds = array<i64: 1, 8, 16, 4>}]} {
    %c0_i32 = arith.constant 0 : i32
    %0 = arith.cmpi eq, %arg1, %c0_i32 : i32
    %1 = arith.extui %0 : i1 to i32
    %c0_i32_0 = arith.constant 0 : i32
    %2 = arith.cmpi ne, %1, %c0_i32_0 : i32
    scf.if %2 {
      %c0_28 = arith.constant 0 : index
      %c0_29 = arith.constant 0 : index
      %c0_30 = arith.constant 0 : index
      %c0_31 = arith.constant 0 : index
      %182 = vector.load %arg2[%c0_28, %c0_29, %c0_30, %c0_31] : memref<1x16x16x4xf32, #tpu.memory_space<vmem>>, vector<1x16x16x4xf32>
      %183 = vector.shape_cast %182 : vector<1x16x16x4xf32> to vector<16x16x4xf32>
      %c0_32 = arith.constant 0 : index
      %c0_33 = arith.constant 0 : index
      %184 = vector.load %arg3[%c0_32, %c0_33] : memref<1x4xf32, #tpu.memory_space<vmem>>, vector<1x4xf32>
      %185 = vector.shape_cast %184 : vector<1x4xf32> to vector<1x1x4xf32>
      %c0_34 = arith.constant 0 : index
      %c0_35 = arith.constant 0 : index
      %186 = vector.load %arg4[%c0_34, %c0_35] : memref<1x4xf32, #tpu.memory_space<vmem>>, vector<1x4xf32>
      %187 = vector.shape_cast %186 : vector<1x4xf32> to vector<1x1x4xf32>
      %cst_36 = arith.constant dense<0.000000e+00> : vector<16x16xf32>
      %188 = vector.multi_reduction <add>, %183, %cst_36 [2] : vector<16x16x4xf32> to vector<16x16xf32>
      %189 = vector.shape_cast %188 : vector<16x16xf32> to vector<16x16x1xf32>
      %cst_37 = arith.constant 4.000000e+00 : f32
      %190 = vector.broadcast %cst_37 : f32 to vector<16x16x1xf32>
      %191 = arith.divf %189, %190 : vector<16x16x1xf32>
      %192 = arith.mulf %183, %183 : vector<16x16x4xf32>
      %cst_38 = arith.constant dense<0.000000e+00> : vector<16x16xf32>
      %193 = vector.multi_reduction <add>, %192, %cst_38 [2] : vector<16x16x4xf32> to vector<16x16xf32>
      %194 = vector.shape_cast %193 : vector<16x16xf32> to vector<16x16x1xf32>
      %cst_39 = arith.constant 4.000000e+00 : f32
      %195 = vector.broadcast %cst_39 : f32 to vector<16x16x1xf32>
      %196 = arith.divf %194, %195 : vector<16x16x1xf32>
      %197 = arith.mulf %191, %191 : vector<16x16x1xf32>
      %198 = arith.subf %196, %197 : vector<16x16x1xf32>
      %199 = vector.broadcast %191 : vector<16x16x1xf32> to vector<16x16x4xf32>
      %200 = arith.subf %183, %199 : vector<16x16x4xf32>
      %cst_40 = arith.constant 9.99999974E-6 : f32
      %201 = vector.broadcast %cst_40 : f32 to vector<16x16x1xf32>
      %202 = arith.addf %198, %201 : vector<16x16x1xf32>
      %203 = math.rsqrt %202 : vector<16x16x1xf32>
      %204 = vector.broadcast %203 : vector<16x16x1xf32> to vector<16x16x4xf32>
      %205 = arith.mulf %200, %204 : vector<16x16x4xf32>
      %206 = vector.broadcast %185 : vector<1x1x4xf32> to vector<16x16x4xf32>
      %207 = arith.mulf %205, %206 : vector<16x16x4xf32>
      %208 = vector.broadcast %187 : vector<1x1x4xf32> to vector<16x16x4xf32>
      %209 = arith.addf %207, %208 : vector<16x16x4xf32>
      %210 = vector.shape_cast %209 : vector<16x16x4xf32> to vector<256x4xf32>
      %c0_41 = arith.constant 0 : index
      %c0_42 = arith.constant 0 : index
      %211 = vector.load %arg5[%c0_41, %c0_42] : memref<4x4xf32, #tpu.memory_space<vmem>>, vector<4x4xf32>
      %c0_43 = arith.constant 0 : index
      %c0_44 = arith.constant 0 : index
      %212 = vector.load %arg6[%c0_43, %c0_44] : memref<1x4xf32, #tpu.memory_space<vmem>>, vector<1x4xf32>
      %cst_45 = arith.constant 0.000000e+00 : f32
      %213 = vector.broadcast %cst_45 : f32 to vector<256x4xf32>
      %214 = vector.broadcast %212 : vector<1x4xf32> to vector<256x4xf32>
      %215 = arith.addf %213, %214 : vector<256x4xf32>
      %216 = vector.extract_strided_slice %210 {offsets = [0, 0], sizes = [256, 1], strides = [1, 1]} : vector<256x4xf32> to vector<256x1xf32>
      %217 = vector.extract_strided_slice %211 {offsets = [0, 0], sizes = [1, 4], strides = [1, 1]} : vector<4x4xf32> to vector<1x4xf32>
      %218 = vector.broadcast %216 : vector<256x1xf32> to vector<256x4xf32>
      %219 = vector.broadcast %217 : vector<1x4xf32> to vector<256x4xf32>
      %220 = arith.mulf %218, %219 : vector<256x4xf32>
      %221 = arith.addf %215, %220 : vector<256x4xf32>
      %222 = vector.extract_strided_slice %210 {offsets = [0, 1], sizes = [256, 1], strides = [1, 1]} : vector<256x4xf32> to vector<256x1xf32>
      %223 = vector.extract_strided_slice %211 {offsets = [1, 0], sizes = [1, 4], strides = [1, 1]} : vector<4x4xf32> to vector<1x4xf32>
      %224 = vector.broadcast %222 : vector<256x1xf32> to vector<256x4xf32>
      %225 = vector.broadcast %223 : vector<1x4xf32> to vector<256x4xf32>
      %226 = arith.mulf %224, %225 : vector<256x4xf32>
      %227 = arith.addf %221, %226 : vector<256x4xf32>
      %228 = vector.extract_strided_slice %210 {offsets = [0, 2], sizes = [256, 1], strides = [1, 1]} : vector<256x4xf32> to vector<256x1xf32>
      %229 = vector.extract_strided_slice %211 {offsets = [2, 0], sizes = [1, 4], strides = [1, 1]} : vector<4x4xf32> to vector<1x4xf32>
      %230 = vector.broadcast %228 : vector<256x1xf32> to vector<256x4xf32>
      %231 = vector.broadcast %229 : vector<1x4xf32> to vector<256x4xf32>
      %232 = arith.mulf %230, %231 : vector<256x4xf32>
      %233 = arith.addf %227, %232 : vector<256x4xf32>
      %234 = vector.extract_strided_slice %210 {offsets = [0, 3], sizes = [256, 1], strides = [1, 1]} : vector<256x4xf32> to vector<256x1xf32>
      %235 = vector.extract_strided_slice %211 {offsets = [3, 0], sizes = [1, 4], strides = [1, 1]} : vector<4x4xf32> to vector<1x4xf32>
      %236 = vector.broadcast %234 : vector<256x1xf32> to vector<256x4xf32>
      %237 = vector.broadcast %235 : vector<1x4xf32> to vector<256x4xf32>
      %238 = arith.mulf %236, %237 : vector<256x4xf32>
      %239 = arith.addf %233, %238 : vector<256x4xf32>
      %240 = vector.shape_cast %239 : vector<256x4xf32> to vector<16x16x4xf32>
      %c0_46 = arith.constant 0 : index
      %c0_47 = arith.constant 0 : index
      %241 = vector.load %arg7[%c0_46, %c0_47] : memref<25x4xf32, #tpu.memory_space<vmem>>, vector<25x4xf32>
      %242 = vector.shape_cast %241 : vector<25x4xf32> to vector<25x1x1x4xf32>
      %243 = tpu.iota {dimensions = array<i32: 1>} : vector<1x16x1xi32>
      %c2_i32 = arith.constant 2 : i32
      %244 = vector.broadcast %c2_i32 : i32 to vector<1x16x1xi32>
      %245 = arith.cmpi sge, %243, %244 : vector<1x16x1xi32>
      %c18_i32 = arith.constant 18 : i32
      %246 = vector.broadcast %c18_i32 : i32 to vector<1x16x1xi32>
      %247 = arith.cmpi slt, %243, %246 : vector<1x16x1xi32>
      %248 = arith.andi %245, %247 : vector<1x16x1xi1>
      %249 = arith.extui %248 : vector<1x16x1xi1> to vector<1x16x1xi32>
      %250 = arith.sitofp %249 : vector<1x16x1xi32> to vector<1x16x1xf32>
      %c1_i32 = arith.constant 1 : i32
      %251 = vector.broadcast %c1_i32 : i32 to vector<1x16x1xi32>
      %252 = arith.cmpi sge, %243, %251 : vector<1x16x1xi32>
      %c17_i32 = arith.constant 17 : i32
      %253 = vector.broadcast %c17_i32 : i32 to vector<1x16x1xi32>
      %254 = arith.cmpi slt, %243, %253 : vector<1x16x1xi32>
      %255 = arith.andi %252, %254 : vector<1x16x1xi1>
      %256 = arith.extui %255 : vector<1x16x1xi1> to vector<1x16x1xi32>
      %257 = arith.sitofp %256 : vector<1x16x1xi32> to vector<1x16x1xf32>
      %c0_i32_48 = arith.constant 0 : i32
      %258 = vector.broadcast %c0_i32_48 : i32 to vector<1x16x1xi32>
      %259 = arith.cmpi sge, %243, %258 : vector<1x16x1xi32>
      %c16_i32 = arith.constant 16 : i32
      %260 = vector.broadcast %c16_i32 : i32 to vector<1x16x1xi32>
      %261 = arith.cmpi slt, %243, %260 : vector<1x16x1xi32>
      %262 = arith.andi %259, %261 : vector<1x16x1xi1>
      %263 = arith.extui %262 : vector<1x16x1xi1> to vector<1x16x1xi32>
      %264 = arith.sitofp %263 : vector<1x16x1xi32> to vector<1x16x1xf32>
      %c-1_i32 = arith.constant -1 : i32
      %265 = vector.broadcast %c-1_i32 : i32 to vector<1x16x1xi32>
      %266 = arith.cmpi sge, %243, %265 : vector<1x16x1xi32>
      %c15_i32 = arith.constant 15 : i32
      %267 = vector.broadcast %c15_i32 : i32 to vector<1x16x1xi32>
      %268 = arith.cmpi slt, %243, %267 : vector<1x16x1xi32>
      %269 = arith.andi %266, %268 : vector<1x16x1xi1>
      %270 = arith.extui %269 : vector<1x16x1xi1> to vector<1x16x1xi32>
      %271 = arith.sitofp %270 : vector<1x16x1xi32> to vector<1x16x1xf32>
      %c-2_i32 = arith.constant -2 : i32
      %272 = vector.broadcast %c-2_i32 : i32 to vector<1x16x1xi32>
      %273 = arith.cmpi sge, %243, %272 : vector<1x16x1xi32>
      %c14_i32 = arith.constant 14 : i32
      %274 = vector.broadcast %c14_i32 : i32 to vector<1x16x1xi32>
      %275 = arith.cmpi slt, %243, %274 : vector<1x16x1xi32>
      %276 = arith.andi %273, %275 : vector<1x16x1xi1>
      %277 = arith.extui %276 : vector<1x16x1xi1> to vector<1x16x1xi32>
      %278 = arith.sitofp %277 : vector<1x16x1xi32> to vector<1x16x1xf32>
      %cst_49 = arith.constant 0.000000e+00 : f32
      %279 = vector.broadcast %cst_49 : f32 to vector<16x16x4xf32>
      %cst_50 = arith.constant 0.000000e+00 : f32
      %280 = vector.broadcast %cst_50 : f32 to vector<2x16x4xf32>
      %281 = vector.extract_strided_slice %240 {offsets = [0, 0, 0], sizes = [14, 16, 4], strides = [1, 1, 1]} : vector<16x16x4xf32> to vector<14x16x4xf32>
      %282 = tpu.concatenate %280, %281 in 0 : vector<2x16x4xf32>, vector<14x16x4xf32> -> vector<16x16x4xf32>
      %c2_i32_51 = arith.constant 2 : i32
      %283 = tpu.dynamic_rotate %282 by %c2_i32_51 dim 1 : vector<16x16x4xf32>, i32 -> vector<16x16x4xf32>
      %284 = vector.extract_strided_slice %242 {offsets = [0, 0, 0, 0], sizes = [1, 1, 1, 4], strides = [1, 1, 1, 1]} : vector<25x1x1x4xf32> to vector<1x1x1x4xf32>
      %285 = vector.shape_cast %284 : vector<1x1x1x4xf32> to vector<1x1x4xf32>
      %286 = vector.broadcast %285 : vector<1x1x4xf32> to vector<1x16x4xf32>
      %287 = vector.broadcast %250 : vector<1x16x1xf32> to vector<1x16x4xf32>
      %288 = arith.mulf %286, %287 : vector<1x16x4xf32>
      %289 = vector.broadcast %288 : vector<1x16x4xf32> to vector<16x16x4xf32>
      %290 = arith.mulf %283, %289 : vector<16x16x4xf32>
      %291 = arith.addf %279, %290 : vector<16x16x4xf32>
      %c1_i32_52 = arith.constant 1 : i32
      %292 = tpu.dynamic_rotate %282 by %c1_i32_52 dim 1 : vector<16x16x4xf32>, i32 -> vector<16x16x4xf32>
      %293 = vector.extract_strided_slice %242 {offsets = [1, 0, 0, 0], sizes = [1, 1, 1, 4], strides = [1, 1, 1, 1]} : vector<25x1x1x4xf32> to vector<1x1x1x4xf32>
      %294 = vector.shape_cast %293 : vector<1x1x1x4xf32> to vector<1x1x4xf32>
      %295 = vector.broadcast %294 : vector<1x1x4xf32> to vector<1x16x4xf32>
      %296 = vector.broadcast %257 : vector<1x16x1xf32> to vector<1x16x4xf32>
      %297 = arith.mulf %295, %296 : vector<1x16x4xf32>
      %298 = vector.broadcast %297 : vector<1x16x4xf32> to vector<16x16x4xf32>
      %299 = arith.mulf %292, %298 : vector<16x16x4xf32>
      %300 = arith.addf %291, %299 : vector<16x16x4xf32>
      %301 = vector.extract_strided_slice %242 {offsets = [2, 0, 0, 0], sizes = [1, 1, 1, 4], strides = [1, 1, 1, 1]} : vector<25x1x1x4xf32> to vector<1x1x1x4xf32>
      %302 = vector.shape_cast %301 : vector<1x1x1x4xf32> to vector<1x1x4xf32>
      %303 = vector.broadcast %302 : vector<1x1x4xf32> to vector<1x16x4xf32>
      %304 = vector.broadcast %264 : vector<1x16x1xf32> to vector<1x16x4xf32>
      %305 = arith.mulf %303, %304 : vector<1x16x4xf32>
      %306 = vector.broadcast %305 : vector<1x16x4xf32> to vector<16x16x4xf32>
      %307 = arith.mulf %282, %306 : vector<16x16x4xf32>
      %308 = arith.addf %300, %307 : vector<16x16x4xf32>
      %c15_i32_53 = arith.constant 15 : i32
      %309 = tpu.dynamic_rotate %282 by %c15_i32_53 dim 1 : vector<16x16x4xf32>, i32 -> vector<16x16x4xf32>
      %310 = vector.extract_strided_slice %242 {offsets = [3, 0, 0, 0], sizes = [1, 1, 1, 4], strides = [1, 1, 1, 1]} : vector<25x1x1x4xf32> to vector<1x1x1x4xf32>
      %311 = vector.shape_cast %310 : vector<1x1x1x4xf32> to vector<1x1x4xf32>
      %312 = vector.broadcast %311 : vector<1x1x4xf32> to vector<1x16x4xf32>
      %313 = vector.broadcast %271 : vector<1x16x1xf32> to vector<1x16x4xf32>
      %314 = arith.mulf %312, %313 : vector<1x16x4xf32>
      %315 = vector.broadcast %314 : vector<1x16x4xf32> to vector<16x16x4xf32>
      %316 = arith.mulf %309, %315 : vector<16x16x4xf32>
      %317 = arith.addf %308, %316 : vector<16x16x4xf32>
      %c14_i32_54 = arith.constant 14 : i32
      %318 = tpu.dynamic_rotate %282 by %c14_i32_54 dim 1 : vector<16x16x4xf32>, i32 -> vector<16x16x4xf32>
      %319 = vector.extract_strided_slice %242 {offsets = [4, 0, 0, 0], sizes = [1, 1, 1, 4], strides = [1, 1, 1, 1]} : vector<25x1x1x4xf32> to vector<1x1x1x4xf32>
      %320 = vector.shape_cast %319 : vector<1x1x1x4xf32> to vector<1x1x4xf32>
      %321 = vector.broadcast %320 : vector<1x1x4xf32> to vector<1x16x4xf32>
      %322 = vector.broadcast %278 : vector<1x16x1xf32> to vector<1x16x4xf32>
      %323 = arith.mulf %321, %322 : vector<1x16x4xf32>
      %324 = vector.broadcast %323 : vector<1x16x4xf32> to vector<16x16x4xf32>
      %325 = arith.mulf %318, %324 : vector<16x16x4xf32>
      %326 = arith.addf %317, %325 : vector<16x16x4xf32>
      %cst_55 = arith.constant 0.000000e+00 : f32
      %327 = vector.broadcast %cst_55 : f32 to vector<1x16x4xf32>
      %328 = vector.extract_strided_slice %240 {offsets = [0, 0, 0], sizes = [15, 16, 4], strides = [1, 1, 1]} : vector<16x16x4xf32> to vector<15x16x4xf32>
      %329 = tpu.concatenate %327, %328 in 0 : vector<1x16x4xf32>, vector<15x16x4xf32> -> vector<16x16x4xf32>
      %c2_i32_56 = arith.constant 2 : i32
      %330 = tpu.dynamic_rotate %329 by %c2_i32_56 dim 1 : vector<16x16x4xf32>, i32 -> vector<16x16x4xf32>
      %331 = vector.extract_strided_slice %242 {offsets = [5, 0, 0, 0], sizes = [1, 1, 1, 4], strides = [1, 1, 1, 1]} : vector<25x1x1x4xf32> to vector<1x1x1x4xf32>
      %332 = vector.shape_cast %331 : vector<1x1x1x4xf32> to vector<1x1x4xf32>
      %333 = vector.broadcast %332 : vector<1x1x4xf32> to vector<1x16x4xf32>
      %334 = vector.broadcast %250 : vector<1x16x1xf32> to vector<1x16x4xf32>
      %335 = arith.mulf %333, %334 : vector<1x16x4xf32>
      %336 = vector.broadcast %335 : vector<1x16x4xf32> to vector<16x16x4xf32>
      %337 = arith.mulf %330, %336 : vector<16x16x4xf32>
      %338 = arith.addf %326, %337 : vector<16x16x4xf32>
      %c1_i32_57 = arith.constant 1 : i32
      %339 = tpu.dynamic_rotate %329 by %c1_i32_57 dim 1 : vector<16x16x4xf32>, i32 -> vector<16x16x4xf32>
      %340 = vector.extract_strided_slice %242 {offsets = [6, 0, 0, 0], sizes = [1, 1, 1, 4], strides = [1, 1, 1, 1]} : vector<25x1x1x4xf32> to vector<1x1x1x4xf32>
      %341 = vector.shape_cast %340 : vector<1x1x1x4xf32> to vector<1x1x4xf32>
      %342 = vector.broadcast %341 : vector<1x1x4xf32> to vector<1x16x4xf32>
      %343 = vector.broadcast %257 : vector<1x16x1xf32> to vector<1x16x4xf32>
      %344 = arith.mulf %342, %343 : vector<1x16x4xf32>
      %345 = vector.broadcast %344 : vector<1x16x4xf32> to vector<16x16x4xf32>
      %346 = arith.mulf %339, %345 : vector<16x16x4xf32>
      %347 = arith.addf %338, %346 : vector<16x16x4xf32>
      %348 = vector.extract_strided_slice %242 {offsets = [7, 0, 0, 0], sizes = [1, 1, 1, 4], strides = [1, 1, 1, 1]} : vector<25x1x1x4xf32> to vector<1x1x1x4xf32>
      %349 = vector.shape_cast %348 : vector<1x1x1x4xf32> to vector<1x1x4xf32>
      %350 = vector.broadcast %349 : vector<1x1x4xf32> to vector<1x16x4xf32>
      %351 = vector.broadcast %264 : vector<1x16x1xf32> to vector<1x16x4xf32>
      %352 = arith.mulf %350, %351 : vector<1x16x4xf32>
      %353 = vector.broadcast %352 : vector<1x16x4xf32> to vector<16x16x4xf32>
      %354 = arith.mulf %329, %353 : vector<16x16x4xf32>
      %355 = arith.addf %347, %354 : vector<16x16x4xf32>
      %c15_i32_58 = arith.constant 15 : i32
      %356 = tpu.dynamic_rotate %329 by %c15_i32_58 dim 1 : vector<16x16x4xf32>, i32 -> vector<16x16x4xf32>
      %357 = vector.extract_strided_slice %242 {offsets = [8, 0, 0, 0], sizes = [1, 1, 1, 4], strides = [1, 1, 1, 1]} : vector<25x1x1x4xf32> to vector<1x1x1x4xf32>
      %358 = vector.shape_cast %357 : vector<1x1x1x4xf32> to vector<1x1x4xf32>
      %359 = vector.broadcast %358 : vector<1x1x4xf32> to vector<1x16x4xf32>
      %360 = vector.broadcast %271 : vector<1x16x1xf32> to vector<1x16x4xf32>
      %361 = arith.mulf %359, %360 : vector<1x16x4xf32>
      %362 = vector.broadcast %361 : vector<1x16x4xf32> to vector<16x16x4xf32>
      %363 = arith.mulf %356, %362 : vector<16x16x4xf32>
      %364 = arith.addf %355, %363 : vector<16x16x4xf32>
      %c14_i32_59 = arith.constant 14 : i32
      %365 = tpu.dynamic_rotate %329 by %c14_i32_59 dim 1 : vector<16x16x4xf32>, i32 -> vector<16x16x4xf32>
      %366 = vector.extract_strided_slice %242 {offsets = [9, 0, 0, 0], sizes = [1, 1, 1, 4], strides = [1, 1, 1, 1]} : vector<25x1x1x4xf32> to vector<1x1x1x4xf32>
      %367 = vector.shape_cast %366 : vector<1x1x1x4xf32> to vector<1x1x4xf32>
      %368 = vector.broadcast %367 : vector<1x1x4xf32> to vector<1x16x4xf32>
      %369 = vector.broadcast %278 : vector<1x16x1xf32> to vector<1x16x4xf32>
      %370 = arith.mulf %368, %369 : vector<1x16x4xf32>
      %371 = vector.broadcast %370 : vector<1x16x4xf32> to vector<16x16x4xf32>
      %372 = arith.mulf %365, %371 : vector<16x16x4xf32>
      %373 = arith.addf %364, %372 : vector<16x16x4xf32>
      %c2_i32_60 = arith.constant 2 : i32
      %374 = tpu.dynamic_rotate %240 by %c2_i32_60 dim 1 : vector<16x16x4xf32>, i32 -> vector<16x16x4xf32>
      %375 = vector.extract_strided_slice %242 {offsets = [10, 0, 0, 0], sizes = [1, 1, 1, 4], strides = [1, 1, 1, 1]} : vector<25x1x1x4xf32> to vector<1x1x1x4xf32>
      %376 = vector.shape_cast %375 : vector<1x1x1x4xf32> to vector<1x1x4xf32>
      %377 = vector.broadcast %376 : vector<1x1x4xf32> to vector<1x16x4xf32>
      %378 = vector.broadcast %250 : vector<1x16x1xf32> to vector<1x16x4xf32>
      %379 = arith.mulf %377, %378 : vector<1x16x4xf32>
      %380 = vector.broadcast %379 : vector<1x16x4xf32> to vector<16x16x4xf32>
      %381 = arith.mulf %374, %380 : vector<16x16x4xf32>
      %382 = arith.addf %373, %381 : vector<16x16x4xf32>
      %c1_i32_61 = arith.constant 1 : i32
      %383 = tpu.dynamic_rotate %240 by %c1_i32_61 dim 1 : vector<16x16x4xf32>, i32 -> vector<16x16x4xf32>
      %384 = vector.extract_strided_slice %242 {offsets = [11, 0, 0, 0], sizes = [1, 1, 1, 4], strides = [1, 1, 1, 1]} : vector<25x1x1x4xf32> to vector<1x1x1x4xf32>
      %385 = vector.shape_cast %384 : vector<1x1x1x4xf32> to vector<1x1x4xf32>
      %386 = vector.broadcast %385 : vector<1x1x4xf32> to vector<1x16x4xf32>
      %387 = vector.broadcast %257 : vector<1x16x1xf32> to vector<1x16x4xf32>
      %388 = arith.mulf %386, %387 : vector<1x16x4xf32>
      %389 = vector.broadcast %388 : vector<1x16x4xf32> to vector<16x16x4xf32>
      %390 = arith.mulf %383, %389 : vector<16x16x4xf32>
      %391 = arith.addf %382, %390 : vector<16x16x4xf32>
      %392 = vector.extract_strided_slice %242 {offsets = [12, 0, 0, 0], sizes = [1, 1, 1, 4], strides = [1, 1, 1, 1]} : vector<25x1x1x4xf32> to vector<1x1x1x4xf32>
      %393 = vector.shape_cast %392 : vector<1x1x1x4xf32> to vector<1x1x4xf32>
      %394 = vector.broadcast %393 : vector<1x1x4xf32> to vector<1x16x4xf32>
      %395 = vector.broadcast %264 : vector<1x16x1xf32> to vector<1x16x4xf32>
      %396 = arith.mulf %394, %395 : vector<1x16x4xf32>
      %397 = vector.broadcast %396 : vector<1x16x4xf32> to vector<16x16x4xf32>
      %398 = arith.mulf %240, %397 : vector<16x16x4xf32>
      %399 = arith.addf %391, %398 : vector<16x16x4xf32>
      %c15_i32_62 = arith.constant 15 : i32
      %400 = tpu.dynamic_rotate %240 by %c15_i32_62 dim 1 : vector<16x16x4xf32>, i32 -> vector<16x16x4xf32>
      %401 = vector.extract_strided_slice %242 {offsets = [13, 0, 0, 0], sizes = [1, 1, 1, 4], strides = [1, 1, 1, 1]} : vector<25x1x1x4xf32> to vector<1x1x1x4xf32>
      %402 = vector.shape_cast %401 : vector<1x1x1x4xf32> to vector<1x1x4xf32>
      %403 = vector.broadcast %402 : vector<1x1x4xf32> to vector<1x16x4xf32>
      %404 = vector.broadcast %271 : vector<1x16x1xf32> to vector<1x16x4xf32>
      %405 = arith.mulf %403, %404 : vector<1x16x4xf32>
      %406 = vector.broadcast %405 : vector<1x16x4xf32> to vector<16x16x4xf32>
      %407 = arith.mulf %400, %406 : vector<16x16x4xf32>
      %408 = arith.addf %399, %407 : vector<16x16x4xf32>
      %c14_i32_63 = arith.constant 14 : i32
      %409 = tpu.dynamic_rotate %240 by %c14_i32_63 dim 1 : vector<16x16x4xf32>, i32 -> vector<16x16x4xf32>
      %410 = vector.extract_strided_slice %242 {offsets = [14, 0, 0, 0], sizes = [1, 1, 1, 4], strides = [1, 1, 1, 1]} : vector<25x1x1x4xf32> to vector<1x1x1x4xf32>
      %411 = vector.shape_cast %410 : vector<1x1x1x4xf32> to vector<1x1x4xf32>
      %412 = vector.broadcast %411 : vector<1x1x4xf32> to vector<1x16x4xf32>
      %413 = vector.broadcast %278 : vector<1x16x1xf32> to vector<1x16x4xf32>
      %414 = arith.mulf %412, %413 : vector<1x16x4xf32>
      %415 = vector.broadcast %414 : vector<1x16x4xf32> to vector<16x16x4xf32>
      %416 = arith.mulf %409, %415 : vector<16x16x4xf32>
      %417 = arith.addf %408, %416 : vector<16x16x4xf32>
      %418 = vector.extract_strided_slice %240 {offsets = [1, 0, 0], sizes = [15, 16, 4], strides = [1, 1, 1]} : vector<16x16x4xf32> to vector<15x16x4xf32>
      %cst_64 = arith.constant 0.000000e+00 : f32
      %419 = vector.broadcast %cst_64 : f32 to vector<1x16x4xf32>
      %420 = tpu.concatenate %418, %419 in 0 : vector<15x16x4xf32>, vector<1x16x4xf32> -> vector<16x16x4xf32>
      %c2_i32_65 = arith.constant 2 : i32
      %421 = tpu.dynamic_rotate %420 by %c2_i32_65 dim 1 : vector<16x16x4xf32>, i32 -> vector<16x16x4xf32>
      %422 = vector.extract_strided_slice %242 {offsets = [15, 0, 0, 0], sizes = [1, 1, 1, 4], strides = [1, 1, 1, 1]} : vector<25x1x1x4xf32> to vector<1x1x1x4xf32>
      %423 = vector.shape_cast %422 : vector<1x1x1x4xf32> to vector<1x1x4xf32>
      %424 = vector.broadcast %423 : vector<1x1x4xf32> to vector<1x16x4xf32>
      %425 = vector.broadcast %250 : vector<1x16x1xf32> to vector<1x16x4xf32>
      %426 = arith.mulf %424, %425 : vector<1x16x4xf32>
      %427 = vector.broadcast %426 : vector<1x16x4xf32> to vector<16x16x4xf32>
      %428 = arith.mulf %421, %427 : vector<16x16x4xf32>
      %429 = arith.addf %417, %428 : vector<16x16x4xf32>
      %c1_i32_66 = arith.constant 1 : i32
      %430 = tpu.dynamic_rotate %420 by %c1_i32_66 dim 1 : vector<16x16x4xf32>, i32 -> vector<16x16x4xf32>
      %431 = vector.extract_strided_slice %242 {offsets = [16, 0, 0, 0], sizes = [1, 1, 1, 4], strides = [1, 1, 1, 1]} : vector<25x1x1x4xf32> to vector<1x1x1x4xf32>
      %432 = vector.shape_cast %431 : vector<1x1x1x4xf32> to vector<1x1x4xf32>
      %433 = vector.broadcast %432 : vector<1x1x4xf32> to vector<1x16x4xf32>
      %434 = vector.broadcast %257 : vector<1x16x1xf32> to vector<1x16x4xf32>
      %435 = arith.mulf %433, %434 : vector<1x16x4xf32>
      %436 = vector.broadcast %435 : vector<1x16x4xf32> to vector<16x16x4xf32>
      %437 = arith.mulf %430, %436 : vector<16x16x4xf32>
      %438 = arith.addf %429, %437 : vector<16x16x4xf32>
      %439 = vector.extract_strided_slice %242 {offsets = [17, 0, 0, 0], sizes = [1, 1, 1, 4], strides = [1, 1, 1, 1]} : vector<25x1x1x4xf32> to vector<1x1x1x4xf32>
      %440 = vector.shape_cast %439 : vector<1x1x1x4xf32> to vector<1x1x4xf32>
      %441 = vector.broadcast %440 : vector<1x1x4xf32> to vector<1x16x4xf32>
      %442 = vector.broadcast %264 : vector<1x16x1xf32> to vector<1x16x4xf32>
      %443 = arith.mulf %441, %442 : vector<1x16x4xf32>
      %444 = vector.broadcast %443 : vector<1x16x4xf32> to vector<16x16x4xf32>
      %445 = arith.mulf %420, %444 : vector<16x16x4xf32>
      %446 = arith.addf %438, %445 : vector<16x16x4xf32>
      %c15_i32_67 = arith.constant 15 : i32
      %447 = tpu.dynamic_rotate %420 by %c15_i32_67 dim 1 : vector<16x16x4xf32>, i32 -> vector<16x16x4xf32>
      %448 = vector.extract_strided_slice %242 {offsets = [18, 0, 0, 0], sizes = [1, 1, 1, 4], strides = [1, 1, 1, 1]} : vector<25x1x1x4xf32> to vector<1x1x1x4xf32>
      %449 = vector.shape_cast %448 : vector<1x1x1x4xf32> to vector<1x1x4xf32>
      %450 = vector.broadcast %449 : vector<1x1x4xf32> to vector<1x16x4xf32>
      %451 = vector.broadcast %271 : vector<1x16x1xf32> to vector<1x16x4xf32>
      %452 = arith.mulf %450, %451 : vector<1x16x4xf32>
      %453 = vector.broadcast %452 : vector<1x16x4xf32> to vector<16x16x4xf32>
      %454 = arith.mulf %447, %453 : vector<16x16x4xf32>
      %455 = arith.addf %446, %454 : vector<16x16x4xf32>
      %c14_i32_68 = arith.constant 14 : i32
      %456 = tpu.dynamic_rotate %420 by %c14_i32_68 dim 1 : vector<16x16x4xf32>, i32 -> vector<16x16x4xf32>
      %457 = vector.extract_strided_slice %242 {offsets = [19, 0, 0, 0], sizes = [1, 1, 1, 4], strides = [1, 1, 1, 1]} : vector<25x1x1x4xf32> to vector<1x1x1x4xf32>
      %458 = vector.shape_cast %457 : vector<1x1x1x4xf32> to vector<1x1x4xf32>
      %459 = vector.broadcast %458 : vector<1x1x4xf32> to vector<1x16x4xf32>
      %460 = vector.broadcast %278 : vector<1x16x1xf32> to vector<1x16x4xf32>
      %461 = arith.mulf %459, %460 : vector<1x16x4xf32>
      %462 = vector.broadcast %461 : vector<1x16x4xf32> to vector<16x16x4xf32>
      %463 = arith.mulf %456, %462 : vector<16x16x4xf32>
      %464 = arith.addf %455, %463 : vector<16x16x4xf32>
      %465 = vector.extract_strided_slice %240 {offsets = [2, 0, 0], sizes = [14, 16, 4], strides = [1, 1, 1]} : vector<16x16x4xf32> to vector<14x16x4xf32>
      %cst_69 = arith.constant 0.000000e+00 : f32
      %466 = vector.broadcast %cst_69 : f32 to vector<2x16x4xf32>
      %467 = tpu.concatenate %465, %466 in 0 : vector<14x16x4xf32>, vector<2x16x4xf32> -> vector<16x16x4xf32>
      %c2_i32_70 = arith.constant 2 : i32
      %468 = tpu.dynamic_rotate %467 by %c2_i32_70 dim 1 : vector<16x16x4xf32>, i32 -> vector<16x16x4xf32>
      %469 = vector.extract_strided_slice %242 {offsets = [20, 0, 0, 0], sizes = [1, 1, 1, 4], strides = [1, 1, 1, 1]} : vector<25x1x1x4xf32> to vector<1x1x1x4xf32>
      %470 = vector.shape_cast %469 : vector<1x1x1x4xf32> to vector<1x1x4xf32>
      %471 = vector.broadcast %470 : vector<1x1x4xf32> to vector<1x16x4xf32>
      %472 = vector.broadcast %250 : vector<1x16x1xf32> to vector<1x16x4xf32>
      %473 = arith.mulf %471, %472 : vector<1x16x4xf32>
      %474 = vector.broadcast %473 : vector<1x16x4xf32> to vector<16x16x4xf32>
      %475 = arith.mulf %468, %474 : vector<16x16x4xf32>
      %476 = arith.addf %464, %475 : vector<16x16x4xf32>
      %c1_i32_71 = arith.constant 1 : i32
      %477 = tpu.dynamic_rotate %467 by %c1_i32_71 dim 1 : vector<16x16x4xf32>, i32 -> vector<16x16x4xf32>
      %478 = vector.extract_strided_slice %242 {offsets = [21, 0, 0, 0], sizes = [1, 1, 1, 4], strides = [1, 1, 1, 1]} : vector<25x1x1x4xf32> to vector<1x1x1x4xf32>
      %479 = vector.shape_cast %478 : vector<1x1x1x4xf32> to vector<1x1x4xf32>
      %480 = vector.broadcast %479 : vector<1x1x4xf32> to vector<1x16x4xf32>
      %481 = vector.broadcast %257 : vector<1x16x1xf32> to vector<1x16x4xf32>
      %482 = arith.mulf %480, %481 : vector<1x16x4xf32>
      %483 = vector.broadcast %482 : vector<1x16x4xf32> to vector<16x16x4xf32>
      %484 = arith.mulf %477, %483 : vector<16x16x4xf32>
      %485 = arith.addf %476, %484 : vector<16x16x4xf32>
      %486 = vector.extract_strided_slice %242 {offsets = [22, 0, 0, 0], sizes = [1, 1, 1, 4], strides = [1, 1, 1, 1]} : vector<25x1x1x4xf32> to vector<1x1x1x4xf32>
      %487 = vector.shape_cast %486 : vector<1x1x1x4xf32> to vector<1x1x4xf32>
      %488 = vector.broadcast %487 : vector<1x1x4xf32> to vector<1x16x4xf32>
      %489 = vector.broadcast %264 : vector<1x16x1xf32> to vector<1x16x4xf32>
      %490 = arith.mulf %488, %489 : vector<1x16x4xf32>
      %491 = vector.broadcast %490 : vector<1x16x4xf32> to vector<16x16x4xf32>
      %492 = arith.mulf %467, %491 : vector<16x16x4xf32>
      %493 = arith.addf %485, %492 : vector<16x16x4xf32>
      %c15_i32_72 = arith.constant 15 : i32
      %494 = tpu.dynamic_rotate %467 by %c15_i32_72 dim 1 : vector<16x16x4xf32>, i32 -> vector<16x16x4xf32>
      %495 = vector.extract_strided_slice %242 {offsets = [23, 0, 0, 0], sizes = [1, 1, 1, 4], strides = [1, 1, 1, 1]} : vector<25x1x1x4xf32> to vector<1x1x1x4xf32>
      %496 = vector.shape_cast %495 : vector<1x1x1x4xf32> to vector<1x1x4xf32>
      %497 = vector.broadcast %496 : vector<1x1x4xf32> to vector<1x16x4xf32>
      %498 = vector.broadcast %271 : vector<1x16x1xf32> to vector<1x16x4xf32>
      %499 = arith.mulf %497, %498 : vector<1x16x4xf32>
      %500 = vector.broadcast %499 : vector<1x16x4xf32> to vector<16x16x4xf32>
      %501 = arith.mulf %494, %500 : vector<16x16x4xf32>
      %502 = arith.addf %493, %501 : vector<16x16x4xf32>
      %c14_i32_73 = arith.constant 14 : i32
      %503 = tpu.dynamic_rotate %467 by %c14_i32_73 dim 1 : vector<16x16x4xf32>, i32 -> vector<16x16x4xf32>
      %504 = vector.extract_strided_slice %242 {offsets = [24, 0, 0, 0], sizes = [1, 1, 1, 4], strides = [1, 1, 1, 1]} : vector<25x1x1x4xf32> to vector<1x1x1x4xf32>
      %505 = vector.shape_cast %504 : vector<1x1x1x4xf32> to vector<1x1x4xf32>
      %506 = vector.broadcast %505 : vector<1x1x4xf32> to vector<1x16x4xf32>
      %507 = vector.broadcast %278 : vector<1x16x1xf32> to vector<1x16x4xf32>
      %508 = arith.mulf %506, %507 : vector<1x16x4xf32>
      %509 = vector.broadcast %508 : vector<1x16x4xf32> to vector<16x16x4xf32>
      %510 = arith.mulf %503, %509 : vector<16x16x4xf32>
      %511 = arith.addf %502, %510 : vector<16x16x4xf32>
      %c0_74 = arith.constant 0 : index
      %c0_75 = arith.constant 0 : index
      %512 = vector.load %arg8[%c0_74, %c0_75] : memref<1x4xf32, #tpu.memory_space<vmem>>, vector<1x4xf32>
      %513 = vector.shape_cast %512 : vector<1x4xf32> to vector<1x1x4xf32>
      %514 = vector.broadcast %513 : vector<1x1x4xf32> to vector<16x16x4xf32>
      %515 = arith.addf %511, %514 : vector<16x16x4xf32>
      %516 = vector.shape_cast %515 : vector<16x16x4xf32> to vector<256x4xf32>
      %c0_76 = arith.constant 0 : index
      %c0_77 = arith.constant 0 : index
      %517 = vector.load %arg9[%c0_76, %c0_77] : memref<4x4xf32, #tpu.memory_space<vmem>>, vector<4x4xf32>
      %c0_78 = arith.constant 0 : index
      %c0_79 = arith.constant 0 : index
      %518 = vector.load %arg10[%c0_78, %c0_79] : memref<1x4xf32, #tpu.memory_space<vmem>>, vector<1x4xf32>
      %cst_80 = arith.constant 0.000000e+00 : f32
      %519 = vector.broadcast %cst_80 : f32 to vector<256x4xf32>
      %520 = vector.broadcast %518 : vector<1x4xf32> to vector<256x4xf32>
      %521 = arith.addf %519, %520 : vector<256x4xf32>
      %522 = vector.extract_strided_slice %516 {offsets = [0, 0], sizes = [256, 1], strides = [1, 1]} : vector<256x4xf32> to vector<256x1xf32>
      %523 = vector.extract_strided_slice %517 {offsets = [0, 0], sizes = [1, 4], strides = [1, 1]} : vector<4x4xf32> to vector<1x4xf32>
      %524 = vector.broadcast %522 : vector<256x1xf32> to vector<256x4xf32>
      %525 = vector.broadcast %523 : vector<1x4xf32> to vector<256x4xf32>
      %526 = arith.mulf %524, %525 : vector<256x4xf32>
      %527 = arith.addf %521, %526 : vector<256x4xf32>
      %528 = vector.extract_strided_slice %516 {offsets = [0, 1], sizes = [256, 1], strides = [1, 1]} : vector<256x4xf32> to vector<256x1xf32>
      %529 = vector.extract_strided_slice %517 {offsets = [1, 0], sizes = [1, 4], strides = [1, 1]} : vector<4x4xf32> to vector<1x4xf32>
      %530 = vector.broadcast %528 : vector<256x1xf32> to vector<256x4xf32>
      %531 = vector.broadcast %529 : vector<1x4xf32> to vector<256x4xf32>
      %532 = arith.mulf %530, %531 : vector<256x4xf32>
      %533 = arith.addf %527, %532 : vector<256x4xf32>
      %534 = vector.extract_strided_slice %516 {offsets = [0, 2], sizes = [256, 1], strides = [1, 1]} : vector<256x4xf32> to vector<256x1xf32>
      %535 = vector.extract_strided_slice %517 {offsets = [2, 0], sizes = [1, 4], strides = [1, 1]} : vector<4x4xf32> to vector<1x4xf32>
      %536 = vector.broadcast %534 : vector<256x1xf32> to vector<256x4xf32>
      %537 = vector.broadcast %535 : vector<1x4xf32> to vector<256x4xf32>
      %538 = arith.mulf %536, %537 : vector<256x4xf32>
      %539 = arith.addf %533, %538 : vector<256x4xf32>
      %540 = vector.extract_strided_slice %516 {offsets = [0, 3], sizes = [256, 1], strides = [1, 1]} : vector<256x4xf32> to vector<256x1xf32>
      %541 = vector.extract_strided_slice %517 {offsets = [3, 0], sizes = [1, 4], strides = [1, 1]} : vector<4x4xf32> to vector<1x4xf32>
      %542 = vector.broadcast %540 : vector<256x1xf32> to vector<256x4xf32>
      %543 = vector.broadcast %541 : vector<1x4xf32> to vector<256x4xf32>
      %544 = arith.mulf %542, %543 : vector<256x4xf32>
      %545 = arith.addf %539, %544 : vector<256x4xf32>
      %546 = vector.shape_cast %545 : vector<256x4xf32> to vector<16x16x4xf32>
      %547 = arith.addf %183, %546 : vector<16x16x4xf32>
      %c0_81 = arith.constant 0 : index
      %c0_82 = arith.constant 0 : index
      %c0_83 = arith.constant 0 : index
      %548 = vector.load %arg18[%c0_81, %c0_82, %c0_83] : memref<16x16x4xf32, #tpu.memory_space<vmem>>, vector<16x16x4xf32>
      tpu.vector_store %arg18[%c0_81, %c0_82, %c0_83], %547 {strides = array<i32>} : memref<16x16x4xf32, #tpu.memory_space<vmem>>, vector<16x16x4xf32>,
    } else {
    }
    %c8_i32 = arith.constant 8 : i32
    %3 = arith.muli %arg1, %c8_i32 : i32
    %4 = tpu.assume_multiple %3, 8 : i32
    %5 = arith.index_cast %4 : i32 to index
    %c0 = arith.constant 0 : index
    %c0_1 = arith.constant 0 : index
    %6 = vector.load %arg18[%5, %c0, %c0_1] : memref<16x16x4xf32, #tpu.memory_space<vmem>>, vector<8x16x4xf32>
    %c0_2 = arith.constant 0 : index
    %c0_3 = arith.constant 0 : index
    %7 = vector.load %arg11[%c0_2, %c0_3] : memref<1x4xf32, #tpu.memory_space<vmem>>, vector<1x4xf32>
    %8 = vector.shape_cast %7 : vector<1x4xf32> to vector<1x1x4xf32>
    %c0_4 = arith.constant 0 : index
    %c0_5 = arith.constant 0 : index
    %9 = vector.load %arg12[%c0_4, %c0_5] : memref<1x4xf32, #tpu.memory_space<vmem>>, vector<1x4xf32>
    %10 = vector.shape_cast %9 : vector<1x4xf32> to vector<1x1x4xf32>
    %cst = arith.constant dense<0.000000e+00> : vector<8x16xf32>
    %11 = vector.multi_reduction <add>, %6, %cst [2] : vector<8x16x4xf32> to vector<8x16xf32>
    %12 = vector.shape_cast %11 : vector<8x16xf32> to vector<8x16x1xf32>
    %cst_6 = arith.constant 4.000000e+00 : f32
    %13 = vector.broadcast %cst_6 : f32 to vector<8x16x1xf32>
    %14 = arith.divf %12, %13 : vector<8x16x1xf32>
    %15 = arith.mulf %6, %6 : vector<8x16x4xf32>
    %cst_7 = arith.constant dense<0.000000e+00> : vector<8x16xf32>
    %16 = vector.multi_reduction <add>, %15, %cst_7 [2] : vector<8x16x4xf32> to vector<8x16xf32>
    %17 = vector.shape_cast %16 : vector<8x16xf32> to vector<8x16x1xf32>
    %cst_8 = arith.constant 4.000000e+00 : f32
    %18 = vector.broadcast %cst_8 : f32 to vector<8x16x1xf32>
    %19 = arith.divf %17, %18 : vector<8x16x1xf32>
    %20 = arith.mulf %14, %14 : vector<8x16x1xf32>
    %21 = arith.subf %19, %20 : vector<8x16x1xf32>
    %22 = vector.broadcast %14 : vector<8x16x1xf32> to vector<8x16x4xf32>
    %23 = arith.subf %6, %22 : vector<8x16x4xf32>
    %cst_9 = arith.constant 9.99999974E-6 : f32
    %24 = vector.broadcast %cst_9 : f32 to vector<8x16x1xf32>
    %25 = arith.addf %21, %24 : vector<8x16x1xf32>
    %26 = math.rsqrt %25 : vector<8x16x1xf32>
    %27 = vector.broadcast %26 : vector<8x16x1xf32> to vector<8x16x4xf32>
    %28 = arith.mulf %23, %27 : vector<8x16x4xf32>
    %29 = vector.broadcast %8 : vector<1x1x4xf32> to vector<8x16x4xf32>
    %30 = arith.mulf %28, %29 : vector<8x16x4xf32>
    %31 = vector.broadcast %10 : vector<1x1x4xf32> to vector<8x16x4xf32>
    %32 = arith.addf %30, %31 : vector<8x16x4xf32>
    %33 = vector.shape_cast %32 : vector<8x16x4xf32> to vector<128x4xf32>
    %c0_10 = arith.constant 0 : index
    %c0_11 = arith.constant 0 : index
    %34 = vector.load %arg13[%c0_10, %c0_11] : memref<4x16xf32, #tpu.memory_space<vmem>>, vector<4x16xf32>
    %c0_12 = arith.constant 0 : index
    %c0_13 = arith.constant 0 : index
    %35 = vector.load %arg14[%c0_12, %c0_13] : memref<1x16xf32, #tpu.memory_space<vmem>>, vector<1x16xf32>
    %cst_14 = arith.constant 0.000000e+00 : f32
    %36 = vector.broadcast %cst_14 : f32 to vector<128x16xf32>
    %37 = vector.broadcast %35 : vector<1x16xf32> to vector<128x16xf32>
    %38 = arith.addf %36, %37 : vector<128x16xf32>
    %39 = vector.extract_strided_slice %33 {offsets = [0, 0], sizes = [128, 1], strides = [1, 1]} : vector<128x4xf32> to vector<128x1xf32>
    %40 = vector.extract_strided_slice %34 {offsets = [0, 0], sizes = [1, 16], strides = [1, 1]} : vector<4x16xf32> to vector<1x16xf32>
    %41 = vector.broadcast %39 : vector<128x1xf32> to vector<128x16xf32>
    %42 = vector.broadcast %40 : vector<1x16xf32> to vector<128x16xf32>
    %43 = arith.mulf %41, %42 : vector<128x16xf32>
    %44 = arith.addf %38, %43 : vector<128x16xf32>
    %45 = vector.extract_strided_slice %33 {offsets = [0, 1], sizes = [128, 1], strides = [1, 1]} : vector<128x4xf32> to vector<128x1xf32>
    %46 = vector.extract_strided_slice %34 {offsets = [1, 0], sizes = [1, 16], strides = [1, 1]} : vector<4x16xf32> to vector<1x16xf32>
    %47 = vector.broadcast %45 : vector<128x1xf32> to vector<128x16xf32>
    %48 = vector.broadcast %46 : vector<1x16xf32> to vector<128x16xf32>
    %49 = arith.mulf %47, %48 : vector<128x16xf32>
    %50 = arith.addf %44, %49 : vector<128x16xf32>
    %51 = vector.extract_strided_slice %33 {offsets = [0, 2], sizes = [128, 1], strides = [1, 1]} : vector<128x4xf32> to vector<128x1xf32>
    %52 = vector.extract_strided_slice %34 {offsets = [2, 0], sizes = [1, 16], strides = [1, 1]} : vector<4x16xf32> to vector<1x16xf32>
    %53 = vector.broadcast %51 : vector<128x1xf32> to vector<128x16xf32>
    %54 = vector.broadcast %52 : vector<1x16xf32> to vector<128x16xf32>
    %55 = arith.mulf %53, %54 : vector<128x16xf32>
    %56 = arith.addf %50, %55 : vector<128x16xf32>
    %57 = vector.extract_strided_slice %33 {offsets = [0, 3], sizes = [128, 1], strides = [1, 1]} : vector<128x4xf32> to vector<128x1xf32>
    %58 = vector.extract_strided_slice %34 {offsets = [3, 0], sizes = [1, 16], strides = [1, 1]} : vector<4x16xf32> to vector<1x16xf32>
    %59 = vector.broadcast %57 : vector<128x1xf32> to vector<128x16xf32>
    %60 = vector.broadcast %58 : vector<1x16xf32> to vector<128x16xf32>
    %61 = arith.mulf %59, %60 : vector<128x16xf32>
    %62 = arith.addf %56, %61 : vector<128x16xf32>
    %cst_15 = arith.constant 5.000000e-01 : f32
    %63 = vector.broadcast %cst_15 : f32 to vector<128x16xf32>
    %64 = arith.mulf %63, %62 : vector<128x16xf32>
    %65 = arith.mulf %62, %62 : vector<128x16xf32>
    %66 = arith.mulf %65, %62 : vector<128x16xf32>
    %cst_16 = arith.constant 4.471500e-02 : f32
    %67 = vector.broadcast %cst_16 : f32 to vector<128x16xf32>
    %68 = arith.mulf %67, %66 : vector<128x16xf32>
    %69 = arith.addf %62, %68 : vector<128x16xf32>
    %cst_17 = arith.constant 0.797884583 : f32
    %70 = vector.broadcast %cst_17 : f32 to vector<128x16xf32>
    %71 = arith.mulf %70, %69 : vector<128x16xf32>
    %72 = math.tanh %71 : vector<128x16xf32>
    %cst_18 = arith.constant 1.000000e+00 : f32
    %73 = vector.broadcast %cst_18 : f32 to vector<128x16xf32>
    %74 = arith.addf %73, %72 : vector<128x16xf32>
    %75 = arith.mulf %64, %74 : vector<128x16xf32>
    %c0_19 = arith.constant 0 : index
    %c0_20 = arith.constant 0 : index
    %76 = vector.load %arg15[%c0_19, %c0_20] : memref<16x4xf32, #tpu.memory_space<vmem>>, vector<16x4xf32>
    %c0_21 = arith.constant 0 : index
    %c0_22 = arith.constant 0 : index
    %77 = vector.load %arg16[%c0_21, %c0_22] : memref<1x4xf32, #tpu.memory_space<vmem>>, vector<1x4xf32>
    %cst_23 = arith.constant 0.000000e+00 : f32
    %78 = vector.broadcast %cst_23 : f32 to vector<128x4xf32>
    %79 = vector.broadcast %77 : vector<1x4xf32> to vector<128x4xf32>
    %80 = arith.addf %78, %79 : vector<128x4xf32>
    %81 = vector.extract_strided_slice %75 {offsets = [0, 0], sizes = [128, 1], strides = [1, 1]} : vector<128x16xf32> to vector<128x1xf32>
    %82 = vector.extract_strided_slice %76 {offsets = [0, 0], sizes = [1, 4], strides = [1, 1]} : vector<16x4xf32> to vector<1x4xf32>
    %83 = vector.broadcast %81 : vector<128x1xf32> to vector<128x4xf32>
    %84 = vector.broadcast %82 : vector<1x4xf32> to vector<128x4xf32>
    %85 = arith.mulf %83, %84 : vector<128x4xf32>
    %86 = arith.addf %80, %85 : vector<128x4xf32>
    %87 = vector.extract_strided_slice %75 {offsets = [0, 1], sizes = [128, 1], strides = [1, 1]} : vector<128x16xf32> to vector<128x1xf32>
    %88 = vector.extract_strided_slice %76 {offsets = [1, 0], sizes = [1, 4], strides = [1, 1]} : vector<16x4xf32> to vector<1x4xf32>
    %89 = vector.broadcast %87 : vector<128x1xf32> to vector<128x4xf32>
    %90 = vector.broadcast %88 : vector<1x4xf32> to vector<128x4xf32>
    %91 = arith.mulf %89, %90 : vector<128x4xf32>
    %92 = arith.addf %86, %91 : vector<128x4xf32>
    %93 = vector.extract_strided_slice %75 {offsets = [0, 2], sizes = [128, 1], strides = [1, 1]} : vector<128x16xf32> to vector<128x1xf32>
    %94 = vector.extract_strided_slice %76 {offsets = [2, 0], sizes = [1, 4], strides = [1, 1]} : vector<16x4xf32> to vector<1x4xf32>
    %95 = vector.broadcast %93 : vector<128x1xf32> to vector<128x4xf32>
    %96 = vector.broadcast %94 : vector<1x4xf32> to vector<128x4xf32>
    %97 = arith.mulf %95, %96 : vector<128x4xf32>
    %98 = arith.addf %92, %97 : vector<128x4xf32>
    %99 = vector.extract_strided_slice %75 {offsets = [0, 3], sizes = [128, 1], strides = [1, 1]} : vector<128x16xf32> to vector<128x1xf32>
    %100 = vector.extract_strided_slice %76 {offsets = [3, 0], sizes = [1, 4], strides = [1, 1]} : vector<16x4xf32> to vector<1x4xf32>
    %101 = vector.broadcast %99 : vector<128x1xf32> to vector<128x4xf32>
    %102 = vector.broadcast %100 : vector<1x4xf32> to vector<128x4xf32>
    %103 = arith.mulf %101, %102 : vector<128x4xf32>
    %104 = arith.addf %98, %103 : vector<128x4xf32>
    %105 = vector.extract_strided_slice %75 {offsets = [0, 4], sizes = [128, 1], strides = [1, 1]} : vector<128x16xf32> to vector<128x1xf32>
    %106 = vector.extract_strided_slice %76 {offsets = [4, 0], sizes = [1, 4], strides = [1, 1]} : vector<16x4xf32> to vector<1x4xf32>
    %107 = vector.broadcast %105 : vector<128x1xf32> to vector<128x4xf32>
    %108 = vector.broadcast %106 : vector<1x4xf32> to vector<128x4xf32>
    %109 = arith.mulf %107, %108 : vector<128x4xf32>
    %110 = arith.addf %104, %109 : vector<128x4xf32>
    %111 = vector.extract_strided_slice %75 {offsets = [0, 5], sizes = [128, 1], strides = [1, 1]} : vector<128x16xf32> to vector<128x1xf32>
    %112 = vector.extract_strided_slice %76 {offsets = [5, 0], sizes = [1, 4], strides = [1, 1]} : vector<16x4xf32> to vector<1x4xf32>
    %113 = vector.broadcast %111 : vector<128x1xf32> to vector<128x4xf32>
    %114 = vector.broadcast %112 : vector<1x4xf32> to vector<128x4xf32>
    %115 = arith.mulf %113, %114 : vector<128x4xf32>
    %116 = arith.addf %110, %115 : vector<128x4xf32>
    %117 = vector.extract_strided_slice %75 {offsets = [0, 6], sizes = [128, 1], strides = [1, 1]} : vector<128x16xf32> to vector<128x1xf32>
    %118 = vector.extract_strided_slice %76 {offsets = [6, 0], sizes = [1, 4], strides = [1, 1]} : vector<16x4xf32> to vector<1x4xf32>
    %119 = vector.broadcast %117 : vector<128x1xf32> to vector<128x4xf32>
    %120 = vector.broadcast %118 : vector<1x4xf32> to vector<128x4xf32>
    %121 = arith.mulf %119, %120 : vector<128x4xf32>
    %122 = arith.addf %116, %121 : vector<128x4xf32>
    %123 = vector.extract_strided_slice %75 {offsets = [0, 7], sizes = [128, 1], strides = [1, 1]} : vector<128x16xf32> to vector<128x1xf32>
    %124 = vector.extract_strided_slice %76 {offsets = [7, 0], sizes = [1, 4], strides = [1, 1]} : vector<16x4xf32> to vector<1x4xf32>
    %125 = vector.broadcast %123 : vector<128x1xf32> to vector<128x4xf32>
    %126 = vector.broadcast %124 : vector<1x4xf32> to vector<128x4xf32>
    %127 = arith.mulf %125, %126 : vector<128x4xf32>
    %128 = arith.addf %122, %127 : vector<128x4xf32>
    %129 = vector.extract_strided_slice %75 {offsets = [0, 8], sizes = [128, 1], strides = [1, 1]} : vector<128x16xf32> to vector<128x1xf32>
    %130 = vector.extract_strided_slice %76 {offsets = [8, 0], sizes = [1, 4], strides = [1, 1]} : vector<16x4xf32> to vector<1x4xf32>
    %131 = vector.broadcast %129 : vector<128x1xf32> to vector<128x4xf32>
    %132 = vector.broadcast %130 : vector<1x4xf32> to vector<128x4xf32>
    %133 = arith.mulf %131, %132 : vector<128x4xf32>
    %134 = arith.addf %128, %133 : vector<128x4xf32>
    %135 = vector.extract_strided_slice %75 {offsets = [0, 9], sizes = [128, 1], strides = [1, 1]} : vector<128x16xf32> to vector<128x1xf32>
    %136 = vector.extract_strided_slice %76 {offsets = [9, 0], sizes = [1, 4], strides = [1, 1]} : vector<16x4xf32> to vector<1x4xf32>
    %137 = vector.broadcast %135 : vector<128x1xf32> to vector<128x4xf32>
    %138 = vector.broadcast %136 : vector<1x4xf32> to vector<128x4xf32>
    %139 = arith.mulf %137, %138 : vector<128x4xf32>
    %140 = arith.addf %134, %139 : vector<128x4xf32>
    %141 = vector.extract_strided_slice %75 {offsets = [0, 10], sizes = [128, 1], strides = [1, 1]} : vector<128x16xf32> to vector<128x1xf32>
    %142 = vector.extract_strided_slice %76 {offsets = [10, 0], sizes = [1, 4], strides = [1, 1]} : vector<16x4xf32> to vector<1x4xf32>
    %143 = vector.broadcast %141 : vector<128x1xf32> to vector<128x4xf32>
    %144 = vector.broadcast %142 : vector<1x4xf32> to vector<128x4xf32>
    %145 = arith.mulf %143, %144 : vector<128x4xf32>
    %146 = arith.addf %140, %145 : vector<128x4xf32>
    %147 = vector.extract_strided_slice %75 {offsets = [0, 11], sizes = [128, 1], strides = [1, 1]} : vector<128x16xf32> to vector<128x1xf32>
    %148 = vector.extract_strided_slice %76 {offsets = [11, 0], sizes = [1, 4], strides = [1, 1]} : vector<16x4xf32> to vector<1x4xf32>
    %149 = vector.broadcast %147 : vector<128x1xf32> to vector<128x4xf32>
    %150 = vector.broadcast %148 : vector<1x4xf32> to vector<128x4xf32>
    %151 = arith.mulf %149, %150 : vector<128x4xf32>
    %152 = arith.addf %146, %151 : vector<128x4xf32>
    %153 = vector.extract_strided_slice %75 {offsets = [0, 12], sizes = [128, 1], strides = [1, 1]} : vector<128x16xf32> to vector<128x1xf32>
    %154 = vector.extract_strided_slice %76 {offsets = [12, 0], sizes = [1, 4], strides = [1, 1]} : vector<16x4xf32> to vector<1x4xf32>
    %155 = vector.broadcast %153 : vector<128x1xf32> to vector<128x4xf32>
    %156 = vector.broadcast %154 : vector<1x4xf32> to vector<128x4xf32>
    %157 = arith.mulf %155, %156 : vector<128x4xf32>
    %158 = arith.addf %152, %157 : vector<128x4xf32>
    %159 = vector.extract_strided_slice %75 {offsets = [0, 13], sizes = [128, 1], strides = [1, 1]} : vector<128x16xf32> to vector<128x1xf32>
    %160 = vector.extract_strided_slice %76 {offsets = [13, 0], sizes = [1, 4], strides = [1, 1]} : vector<16x4xf32> to vector<1x4xf32>
    %161 = vector.broadcast %159 : vector<128x1xf32> to vector<128x4xf32>
    %162 = vector.broadcast %160 : vector<1x4xf32> to vector<128x4xf32>
    %163 = arith.mulf %161, %162 : vector<128x4xf32>
    %164 = arith.addf %158, %163 : vector<128x4xf32>
    %165 = vector.extract_strided_slice %75 {offsets = [0, 14], sizes = [128, 1], strides = [1, 1]} : vector<128x16xf32> to vector<128x1xf32>
    %166 = vector.extract_strided_slice %76 {offsets = [14, 0], sizes = [1, 4], strides = [1, 1]} : vector<16x4xf32> to vector<1x4xf32>
    %167 = vector.broadcast %165 : vector<128x1xf32> to vector<128x4xf32>
    %168 = vector.broadcast %166 : vector<1x4xf32> to vector<128x4xf32>
    %169 = arith.mulf %167, %168 : vector<128x4xf32>
    %170 = arith.addf %164, %169 : vector<128x4xf32>
    %171 = vector.extract_strided_slice %75 {offsets = [0, 15], sizes = [128, 1], strides = [1, 1]} : vector<128x16xf32> to vector<128x1xf32>
    %172 = vector.extract_strided_slice %76 {offsets = [15, 0], sizes = [1, 4], strides = [1, 1]} : vector<16x4xf32> to vector<1x4xf32>
    %173 = vector.broadcast %171 : vector<128x1xf32> to vector<128x4xf32>
    %174 = vector.broadcast %172 : vector<1x4xf32> to vector<128x4xf32>
    %175 = arith.mulf %173, %174 : vector<128x4xf32>
    %176 = arith.addf %170, %175 : vector<128x4xf32>
    %177 = vector.shape_cast %176 : vector<128x4xf32> to vector<8x16x4xf32>
    %178 = arith.addf %6, %177 : vector<8x16x4xf32>
    %c0_24 = arith.constant 0 : index
    %c0_25 = arith.constant 0 : index
    %c0_26 = arith.constant 0 : index
    %c0_27 = arith.constant 0 : index
    %179 = vector.load %arg17[%c0_24, %c0_25, %c0_26, %c0_27] : memref<1x8x16x4xf32, #tpu.memory_space<vmem>>, vector<1x8x16x4xf32>
    %180 = vector.shape_cast %179 : vector<1x8x16x4xf32> to vector<8x16x4xf32>
    %181 = vector.shape_cast %178 : vector<8x16x4xf32> to vector<1x8x16x4xf32>
    tpu.vector_store %arg17[%c0_24, %c0_25, %c0_26, %c0_27], %181 {strides = array<i32>} : memref<1x8x16x4xf32, #tpu.memory_space<vmem>>, vector<1x8x16x4xf32>,
    return
  }
  func.func @transform_0(%arg0: i32, %arg1: i32) -> (i32, i32, i32, i32) {
    %c0_i32 = arith.constant 0 : i32
    %c0_i32_0 = arith.constant 0 : i32
    %c0_i32_1 = arith.constant 0 : i32
    %c0_i32_2 = arith.constant 0 : i32
    return %arg0, %c0_i32, %c0_i32_0, %c0_i32_1 : i32, i32, i32, i32
  }
  func.func @transform_1(%arg0: i32, %arg1: i32) -> (i32, i32) {
    %c0_i32 = arith.constant 0 : i32
    %c0_i32_0 = arith.constant 0 : i32
    %c0_i32_1 = arith.constant 0 : i32
    return %c0_i32, %c0_i32_0 : i32, i32
  }
  func.func @transform_2(%arg0: i32, %arg1: i32) -> (i32, i32) {
    %c0_i32 = arith.constant 0 : i32
    %c0_i32_0 = arith.constant 0 : i32
    %c0_i32_1 = arith.constant 0 : i32
    return %c0_i32, %c0_i32_0 : i32, i32
  }
  func.func @transform_3(%arg0: i32, %arg1: i32) -> (i32, i32) {
    %c0_i32 = arith.constant 0 : i32
    %c0_i32_0 = arith.constant 0 : i32
    %c0_i32_1 = arith.constant 0 : i32
    return %c0_i32, %c0_i32_0 : i32, i32
  }
  func.func @transform_4(%arg0: i32, %arg1: i32) -> (i32, i32) {
    %c0_i32 = arith.constant 0 : i32
    %c0_i32_0 = arith.constant 0 : i32
    %c0_i32_1 = arith.constant 0 : i32
    return %c0_i32, %c0_i32_0 : i32, i32
  }
  func.func @transform_5(%arg0: i32, %arg1: i32) -> (i32, i32) {
    %c0_i32 = arith.constant 0 : i32
    %c0_i32_0 = arith.constant 0 : i32
    %c0_i32_1 = arith.constant 0 : i32
    return %c0_i32, %c0_i32_0 : i32, i32
  }
  func.func @transform_6(%arg0: i32, %arg1: i32) -> (i32, i32) {
    %c0_i32 = arith.constant 0 : i32
    %c0_i32_0 = arith.constant 0 : i32
    %c0_i32_1 = arith.constant 0 : i32
    return %c0_i32, %c0_i32_0 : i32, i32
  }
  func.func @transform_7(%arg0: i32, %arg1: i32) -> (i32, i32) {
    %c0_i32 = arith.constant 0 : i32
    %c0_i32_0 = arith.constant 0 : i32
    %c0_i32_1 = arith.constant 0 : i32
    return %c0_i32, %c0_i32_0 : i32, i32
  }
  func.func @transform_8(%arg0: i32, %arg1: i32) -> (i32, i32) {
    %c0_i32 = arith.constant 0 : i32
    %c0_i32_0 = arith.constant 0 : i32
    %c0_i32_1 = arith.constant 0 : i32
    return %c0_i32, %c0_i32_0 : i32, i32
  }
  func.func @transform_9(%arg0: i32, %arg1: i32) -> (i32, i32) {
    %c0_i32 = arith.constant 0 : i32
    %c0_i32_0 = arith.constant 0 : i32
    %c0_i32_1 = arith.constant 0 : i32
    return %c0_i32, %c0_i32_0 : i32, i32
  }
  func.func @transform_10(%arg0: i32, %arg1: i32) -> (i32, i32) {
    %c0_i32 = arith.constant 0 : i32
    %c0_i32_0 = arith.constant 0 : i32
    %c0_i32_1 = arith.constant 0 : i32
    return %c0_i32, %c0_i32_0 : i32, i32
  }
  func.func @transform_11(%arg0: i32, %arg1: i32) -> (i32, i32) {
    %c0_i32 = arith.constant 0 : i32
    %c0_i32_0 = arith.constant 0 : i32
    %c0_i32_1 = arith.constant 0 : i32
    return %c0_i32, %c0_i32_0 : i32, i32
  }
  func.func @transform_12(%arg0: i32, %arg1: i32) -> (i32, i32) {
    %c0_i32 = arith.constant 0 : i32
    %c0_i32_0 = arith.constant 0 : i32
    %c0_i32_1 = arith.constant 0 : i32
    return %c0_i32, %c0_i32_0 : i32, i32
  }
  func.func @transform_13(%arg0: i32, %arg1: i32) -> (i32, i32) {
    %c0_i32 = arith.constant 0 : i32
    %c0_i32_0 = arith.constant 0 : i32
    %c0_i32_1 = arith.constant 0 : i32
    return %c0_i32, %c0_i32_0 : i32, i32
  }
  func.func @transform_14(%arg0: i32, %arg1: i32) -> (i32, i32) {
    %c0_i32 = arith.constant 0 : i32
    %c0_i32_0 = arith.constant 0 : i32
    %c0_i32_1 = arith.constant 0 : i32
    return %c0_i32, %c0_i32_0 : i32, i32
  }
  func.func @transform_15(%arg0: i32, %arg1: i32) -> (i32, i32, i32, i32) {
    %c0_i32 = arith.constant 0 : i32
    %c0_i32_0 = arith.constant 0 : i32
    %c0_i32_1 = arith.constant 0 : i32
    return %arg0, %arg1, %c0_i32, %c0_i32_0 : i32, i32, i32, i32
  }
}

</mosaic_0001>

<llo_original>
// kernel: cblock_forward.1
$region0: #{cblock_forward.1}
  #allocation0 [shape = 'u32[]', space=smem, size = 0x4, offset = 0x4, fixed_abs, tag = 'smem constant byte address 0x4 - core index']
  #allocation1 [shape = 'u32[72,128]{1,0:T(1,128)}', space=vmem, size = 0x9000, scoped, tag = 'internal scratch']
  #allocation2 [shape = 'f32[16,16,4]{2,1,0:T(8,128)}', space=vmem, size = 0x20000, scoped, tag = 'scratch operand']
  %s0 = inlined_call_operand.vmem [shape: f32[2,16,16,4], index: 0, kind: input, shape index: {}, may-alias: {0,15}]
  %s1 = inlined_call_operand.vmem [shape: f32[1,4], index: 1, kind: input, shape index: {}]
  %s2 = inlined_call_operand.vmem [shape: f32[1,4], index: 2, kind: input, shape index: {}]
  %s3 = inlined_call_operand.vmem [shape: f32[4,4], index: 3, kind: input, shape index: {}]
  %s4 = inlined_call_operand.vmem [shape: f32[1,4], index: 4, kind: input, shape index: {}]
  %s5 = inlined_call_operand.vmem [shape: f32[25,4], index: 5, kind: input, shape index: {}]
  %s6 = inlined_call_operand.vmem [shape: f32[1,4], index: 6, kind: input, shape index: {}]
  %s7 = inlined_call_operand.vmem [shape: f32[4,4], index: 7, kind: input, shape index: {}]
  %s8 = inlined_call_operand.vmem [shape: f32[1,4], index: 8, kind: input, shape index: {}]
  %s9 = inlined_call_operand.vmem [shape: f32[1,4], index: 9, kind: input, shape index: {}]
  %s10 = inlined_call_operand.vmem [shape: f32[1,4], index: 10, kind: input, shape index: {}]
  %s11 = inlined_call_operand.vmem [shape: f32[4,16], index: 11, kind: input, shape index: {}]
  %s12 = inlined_call_operand.vmem [shape: f32[1,16], index: 12, kind: input, shape index: {}]
  %s13 = inlined_call_operand.vmem [shape: f32[16,4], index: 13, kind: input, shape index: {}]
  %s14 = inlined_call_operand.vmem [shape: f32[1,4], index: 14, kind: input, shape index: {}]
  %s15 = inlined_call_operand.vmem [shape: f32[2,16,16,4], index: 15, kind: output, shape index: {}, may-alias: {0,15}]
  %s16 = sld [smem:[#allocation0]]
  $region97: #{cblock_forward.1} parent=0
    _
  %s18 = ssub.s32 1, %s16
  %s19 = scalar_select 0, %s18, %s16
  loop: start=0, step=1, limit=6
  $region2: #{cblock_forward.1} parent=0 // loop_pre_header
    _
  $region3: #{cblock_forward.1} parent=0 // loop_header
    %s21 = sphi 0, %s25
    %p22 = scmp.ge.s32.totalorder %s21, 6
    %s28 = sphi 0, %s40
    %s29 = sphi 0, %s36
    %s30 = sphi 0, %s28
    %s31 = sphi 0, %s29
    %s32 = sphi 0, %s30
    %s33 = sphi 0, %s31
    %s43 = sphi 0, %s45
    %s46 = sphi 0, %s43
    %s47 = sphi 0, %s46
    %s63 = sphi 0, %s47
    %s67 = sphi 0, %s67
    %s69 = sphi 0, %s67
    %s70 = sphi 0, %s69
    %s84 = sphi 0, %s70
    %s88 = sphi 0, %s88
    %s90 = sphi 0, %s88
    %s91 = sphi 0, %s90
    %s105 = sphi 0, %s91
    %s109 = sphi 0, %s109
    %s111 = sphi 0, %s109
    %s112 = sphi 0, %s111
    %s126 = sphi 0, %s112
    %s130 = sphi 0, %s130
    %s132 = sphi 0, %s130
    %s133 = sphi 0, %s132
    %s147 = sphi 0, %s133
    %s151 = sphi 0, %s151
    %s153 = sphi 0, %s151
    %s154 = sphi 0, %s153
    %s168 = sphi 0, %s154
    %s172 = sphi 0, %s172
    %s174 = sphi 0, %s172
    %s175 = sphi 0, %s174
    %s189 = sphi 0, %s175
    %s193 = sphi 0, %s193
    %s195 = sphi 0, %s193
    %s196 = sphi 0, %s195
    %s210 = sphi 0, %s196
    %s214 = sphi 0, %s214
    %s216 = sphi 0, %s214
    %s217 = sphi 0, %s216
    %s231 = sphi 0, %s217
    %s235 = sphi 0, %s235
    %s237 = sphi 0, %s235
    %s238 = sphi 0, %s237
    %s252 = sphi 0, %s238
    %s256 = sphi 0, %s256
    %s258 = sphi 0, %s256
    %s259 = sphi 0, %s258
    %s273 = sphi 0, %s259
    %s277 = sphi 0, %s277
    %s279 = sphi 0, %s277
    %s280 = sphi 0, %s279
    %s294 = sphi 0, %s280
    %s298 = sphi 0, %s298
    %s300 = sphi 0, %s298
    %s301 = sphi 0, %s300
    %s315 = sphi 0, %s301
    %s319 = sphi 0, %s319
    %s321 = sphi 0, %s319
    %s322 = sphi 0, %s321
    %s336 = sphi 0, %s322
    %s340 = sphi 0, %s340
    %s342 = sphi 0, %s340
    %s343 = sphi 0, %s342
    %s357 = sphi 0, %s343
    %s365 = sphi 0, %s367
    %s368 = sphi 0, %s365
    %s369 = sphi 0, %s368
    %s385 = sphi 0, %s369
  $region4: #{cblock_forward.1} parent=0 // loop_header_branch
    %24 = sbr.rel (%p22) target = $region8
  $region5: #{cblock_forward.1} parent=0 // loop_body
    %s26 = ssub.s32 %s21, 1
    %s27 = ssub.s32 %s21, 2
    %s34 = sadd.s32 1, %s29
    %p35 = scmp.ge.s32.totalorder %s34, 2
    %s36 = scalar_select %p35, 0, %s34
    %s37 = sadd.s32 1, %s28
    %s38 = scalar_select %p35, %s37, %s28
    %p39 = scmp.ge.s32.totalorder %s38, 2
    %s40 = scalar_select %p39, 0, %s38
    %s41 = ssub.s32 %s28, %s40
    %p42 = scmp.eq.s32.totalorder %s41, 0
    %s44 = sadd.s32 %s43, 1
    %s45 = scalar_select %p42, %s43, %s44
    %p48 = pneg %p42
    %p49 = scmp.eq.s32.totalorder %s21, 3
    %p50 = por %p48, %p49
    %p51 = scmp.ne.s32.totalorder %s43, %s46
    %p52 = scmp.eq.s32.totalorder %s21, 0
    %p53 = por %p51, %p52
    %p54 = scmp.ne.s32.totalorder %s43, %s46
    %p55 = scmp.eq.s32.totalorder %s26, 3
    %p56 = por %p54, %p55
    %p57 = scmp.ne.s32.totalorder %s46, %s47
    %p58 = scmp.eq.s32.totalorder %s26, 0
    %p59 = por %p57, %p58
    %p60 = scmp.ne.s32.totalorder %s46, %s47
    %p61 = scmp.eq.s32.totalorder %s27, 3
    %p62 = por %p60, %p61
    %p64 = scmp.ne.s32.totalorder %s47, %s63
    %p65 = scmp.eq.s32.totalorder %s27, 0
    %p66 = por %p64, %p65
    %s68 = sadd.s32 %s67, 1
    %p71 = scmp.eq.s32.totalorder %s21, 3
    %p72 = scmp.ne.s32.totalorder %s67, %s69
    %p73 = scmp.eq.s32.totalorder %s21, 0
    %p74 = por %p72, %p73
    %p75 = scmp.ne.s32.totalorder %s67, %s69
    %p76 = scmp.eq.s32.totalorder %s26, 3
    %p77 = por %p75, %p76
    %p78 = scmp.ne.s32.totalorder %s69, %s70
    %p79 = scmp.eq.s32.totalorder %s26, 0
    %p80 = por %p78, %p79
    %p81 = scmp.ne.s32.totalorder %s69, %s70
    %p82 = scmp.eq.s32.totalorder %s27, 3
    %p83 = por %p81, %p82
    %p85 = scmp.ne.s32.totalorder %s70, %s84
    %p86 = scmp.eq.s32.totalorder %s27, 0
    %p87 = por %p85, %p86
    %s89 = sadd.s32 %s88, 1
    %p92 = scmp.eq.s32.totalorder %s21, 3
    %p93 = scmp.ne.s32.totalorder %s88, %s90
    %p94 = scmp.eq.s32.totalorder %s21, 0
    %p95 = por %p93, %p94
    %p96 = scmp.ne.s32.totalorder %s88, %s90
    %p97 = scmp.eq.s32.totalorder %s26, 3
    %p98 = por %p96, %p97
    %p99 = scmp.ne.s32.totalorder %s90, %s91
    %p100 = scmp.eq.s32.totalorder %s26, 0
    %p101 = por %p99, %p100
    %p102 = scmp.ne.s32.totalorder %s90, %s91
    %p103 = scmp.eq.s32.totalorder %s27, 3
    %p104 = por %p102, %p103
    %p106 = scmp.ne.s32.totalorder %s91, %s105
    %p107 = scmp.eq.s32.totalorder %s27, 0
    %p108 = por %p106, %p107
    %s110 = sadd.s32 %s109, 1
    %p113 = scmp.eq.s32.totalorder %s21, 3
    %p114 = scmp.ne.s32.totalorder %s109, %s111
    %p115 = scmp.eq.s32.totalorder %s21, 0
    %p116 = por %p114, %p115
    %p117 = scmp.ne.s32.totalorder %s109, %s111
    %p118 = scmp.eq.s32.totalorder %s26, 3
    %p119 = por %p117, %p118
    %p120 = scmp.ne.s32.totalorder %s111, %s112
    %p121 = scmp.eq.s32.totalorder %s26, 0
    %p122 = por %p120, %p121
    %p123 = scmp.ne.s32.totalorder %s111, %s112
    %p124 = scmp.eq.s32.totalorder %s27, 3
    %p125 = por %p123, %p124
    %p127 = scmp.ne.s32.totalorder %s112, %s126
    %p128 = scmp.eq.s32.totalorder %s27, 0
    %p129 = por %p127, %p128
    %s131 = sadd.s32 %s130, 1
    %p134 = scmp.eq.s32.totalorder %s21, 3
    %p135 = scmp.ne.s32.totalorder %s130, %s132
    %p136 = scmp.eq.s32.totalorder %s21, 0
    %p137 = por %p135, %p136
    %p138 = scmp.ne.s32.totalorder %s130, %s132
    %p139 = scmp.eq.s32.totalorder %s26, 3
    %p140 = por %p138, %p139
    %p141 = scmp.ne.s32.totalorder %s132, %s133
    %p142 = scmp.eq.s32.totalorder %s26, 0
    %p143 = por %p141, %p142
    %p144 = scmp.ne.s32.totalorder %s132, %s133
    %p145 = scmp.eq.s32.totalorder %s27, 3
    %p146 = por %p144, %p145
    %p148 = scmp.ne.s32.totalorder %s133, %s147
    %p149 = scmp.eq.s32.totalorder %s27, 0
    %p150 = por %p148, %p149
    %s152 = sadd.s32 %s151, 1
    %p155 = scmp.eq.s32.totalorder %s21, 3
    %p156 = scmp.ne.s32.totalorder %s151, %s153
    %p157 = scmp.eq.s32.totalorder %s21, 0
    %p158 = por %p156, %p157
    %p159 = scmp.ne.s32.totalorder %s151, %s153
    %p160 = scmp.eq.s32.totalorder %s26, 3
    %p161 = por %p159, %p160
    %p162 = scmp.ne.s32.totalorder %s153, %s154
    %p163 = scmp.eq.s32.totalorder %s26, 0
    %p164 = por %p162, %p163
    %p165 = scmp.ne.s32.totalorder %s153, %s154
    %p166 = scmp.eq.s32.totalorder %s27, 3
    %p167 = por %p165, %p166
    %p169 = scmp.ne.s32.totalorder %s154, %s168
    %p170 = scmp.eq.s32.totalorder %s27, 0
    %p171 = por %p169, %p170
    %s173 = sadd.s32 %s172, 1
    %p176 = scmp.eq.s32.totalorder %s21, 3
    %p177 = scmp.ne.s32.totalorder %s172, %s174
    %p178 = scmp.eq.s32.totalorder %s21, 0
    %p179 = por %p177, %p178
    %p180 = scmp.ne.s32.totalorder %s172, %s174
    %p181 = scmp.eq.s32.totalorder %s26, 3
    %p182 = por %p180, %p181
    %p183 = scmp.ne.s32.totalorder %s174, %s175
    %p184 = scmp.eq.s32.totalorder %s26, 0
    %p185 = por %p183, %p184
    %p186 = scmp.ne.s32.totalorder %s174, %s175
    %p187 = scmp.eq.s32.totalorder %s27, 3
    %p188 = por %p186, %p187
    %p190 = scmp.ne.s32.totalorder %s175, %s189
    %p191 = scmp.eq.s32.totalorder %s27, 0
    %p192 = por %p190, %p191
    %s194 = sadd.s32 %s193, 1
    %p197 = scmp.eq.s32.totalorder %s21, 3
    %p198 = scmp.ne.s32.totalorder %s193, %s195
    %p199 = scmp.eq.s32.totalorder %s21, 0
    %p200 = por %p198, %p199
    %p201 = scmp.ne.s32.totalorder %s193, %s195
    %p202 = scmp.eq.s32.totalorder %s26, 3
    %p203 = por %p201, %p202
    %p204 = scmp.ne.s32.totalorder %s195, %s196
    %p205 = scmp.eq.s32.totalorder %s26, 0
    %p206 = por %p204, %p205
    %p207 = scmp.ne.s32.totalorder %s195, %s196
    %p208 = scmp.eq.s32.totalorder %s27, 3
    %p209 = por %p207, %p208
    %p211 = scmp.ne.s32.totalorder %s196, %s210
    %p212 = scmp.eq.s32.totalorder %s27, 0
    %p213 = por %p211, %p212
    %s215 = sadd.s32 %s214, 1
    %p218 = scmp.eq.s32.totalorder %s21, 3
    %p219 = scmp.ne.s32.totalorder %s214, %s216
    %p220 = scmp.eq.s32.totalorder %s21, 0
    %p221 = por %p219, %p220
    %p222 = scmp.ne.s32.totalorder %s214, %s216
    %p223 = scmp.eq.s32.totalorder %s26, 3
    %p224 = por %p222, %p223
    %p225 = scmp.ne.s32.totalorder %s216, %s217
    %p226 = scmp.eq.s32.totalorder %s26, 0
    %p227 = por %p225, %p226
    %p228 = scmp.ne.s32.totalorder %s216, %s217
    %p229 = scmp.eq.s32.totalorder %s27, 3
    %p230 = por %p228, %p229
    %p232 = scmp.ne.s32.totalorder %s217, %s231
    %p233 = scmp.eq.s32.totalorder %s27, 0
    %p234 = por %p232, %p233
    %s236 = sadd.s32 %s235, 1
    %p239 = scmp.eq.s32.totalorder %s21, 3
    %p240 = scmp.ne.s32.totalorder %s235, %s237
    %p241 = scmp.eq.s32.totalorder %s21, 0
    %p242 = por %p240, %p241
    %p243 = scmp.ne.s32.totalorder %s235, %s237
    %p244 = scmp.eq.s32.totalorder %s26, 3
    %p245 = por %p243, %p244
    %p246 = scmp.ne.s32.totalorder %s237, %s238
    %p247 = scmp.eq.s32.totalorder %s26, 0
    %p248 = por %p246, %p247
    %p249 = scmp.ne.s32.totalorder %s237, %s238
    %p250 = scmp.eq.s32.totalorder %s27, 3
    %p251 = por %p249, %p250
    %p253 = scmp.ne.s32.totalorder %s238, %s252
    %p254 = scmp.eq.s32.totalorder %s27, 0
    %p255 = por %p253, %p254
    %s257 = sadd.s32 %s256, 1
    %p260 = scmp.eq.s32.totalorder %s21, 3
    %p261 = scmp.ne.s32.totalorder %s256, %s258
    %p262 = scmp.eq.s32.totalorder %s21, 0
    %p263 = por %p261, %p262
    %p264 = scmp.ne.s32.totalorder %s256, %s258
    %p265 = scmp.eq.s32.totalorder %s26, 3
    %p266 = por %p264, %p265
    %p267 = scmp.ne.s32.totalorder %s258, %s259
    %p268 = scmp.eq.s32.totalorder %s26, 0
    %p269 = por %p267, %p268
    %p270 = scmp.ne.s32.totalorder %s258, %s259
    %p271 = scmp.eq.s32.totalorder %s27, 3
    %p272 = por %p270, %p271
    %p274 = scmp.ne.s32.totalorder %s259, %s273
    %p275 = scmp.eq.s32.totalorder %s27, 0
    %p276 = por %p274, %p275
    %s278 = sadd.s32 %s277, 1
    %p281 = scmp.eq.s32.totalorder %s21, 3
    %p282 = scmp.ne.s32.totalorder %s277, %s279
    %p283 = scmp.eq.s32.totalorder %s21, 0
    %p284 = por %p282, %p283
    %p285 = scmp.ne.s32.totalorder %s277, %s279
    %p286 = scmp.eq.s32.totalorder %s26, 3
    %p287 = por %p285, %p286
    %p288 = scmp.ne.s32.totalorder %s279, %s280
    %p289 = scmp.eq.s32.totalorder %s26, 0
    %p290 = por %p288, %p289
    %p291 = scmp.ne.s32.totalorder %s279, %s280
    %p292 = scmp.eq.s32.totalorder %s27, 3
    %p293 = por %p291, %p292
    %p295 = scmp.ne.s32.totalorder %s280, %s294
    %p296 = scmp.eq.s32.totalorder %s27, 0
    %p297 = por %p295, %p296
    %s299 = sadd.s32 %s298, 1
    %p302 = scmp.eq.s32.totalorder %s21, 3
    %p303 = scmp.ne.s32.totalorder %s298, %s300
    %p304 = scmp.eq.s32.totalorder %s21, 0
    %p305 = por %p303, %p304
    %p306 = scmp.ne.s32.totalorder %s298, %s300
    %p307 = scmp.eq.s32.totalorder %s26, 3
    %p308 = por %p306, %p307
    %p309 = scmp.ne.s32.totalorder %s300, %s301
    %p310 = scmp.eq.s32.totalorder %s26, 0
    %p311 = por %p309, %p310
    %p312 = scmp.ne.s32.totalorder %s300, %s301
    %p313 = scmp.eq.s32.totalorder %s27, 3
    %p314 = por %p312, %p313
    %p316 = scmp.ne.s32.totalorder %s301, %s315
    %p317 = scmp.eq.s32.totalorder %s27, 0
    %p318 = por %p316, %p317
    %s320 = sadd.s32 %s319, 1
    %p323 = scmp.eq.s32.totalorder %s21, 3
    %p324 = scmp.ne.s32.totalorder %s319, %s321
    %p325 = scmp.eq.s32.totalorder %s21, 0
    %p326 = por %p324, %p325
    %p327 = scmp.ne.s32.totalorder %s319, %s321
    %p328 = scmp.eq.s32.totalorder %s26, 3
    %p329 = por %p327, %p328
    %p330 = scmp.ne.s32.totalorder %s321, %s322
    %p331 = scmp.eq.s32.totalorder %s26, 0
    %p332 = por %p330, %p331
    %p333 = scmp.ne.s32.totalorder %s321, %s322
    %p334 = scmp.eq.s32.totalorder %s27, 3
    %p335 = por %p333, %p334
    %p337 = scmp.ne.s32.totalorder %s322, %s336
    %p338 = scmp.eq.s32.totalorder %s27, 0
    %p339 = por %p337, %p338
    %s341 = sadd.s32 %s340, 1
    %p344 = scmp.eq.s32.totalorder %s21, 3
    %p345 = scmp.ne.s32.totalorder %s340, %s342
    %p346 = scmp.eq.s32.totalorder %s21, 0
    %p347 = por %p345, %p346
    %p348 = scmp.ne.s32.totalorder %s340, %s342
    %p349 = scmp.eq.s32.totalorder %s26, 3
    %p350 = por %p348, %p349
    %p351 = scmp.ne.s32.totalorder %s342, %s343
    %p352 = scmp.eq.s32.totalorder %s26, 0
    %p353 = por %p351, %p352
    %p354 = scmp.ne.s32.totalorder %s342, %s343
    %p355 = scmp.eq.s32.totalorder %s27, 3
    %p356 = por %p354, %p355
    %p358 = scmp.ne.s32.totalorder %s343, %s357
    %p359 = scmp.eq.s32.totalorder %s27, 0
    %p360 = por %p358, %p359
    %s361 = ssub.s32 %s28, %s40
    %s362 = ssub.s32 %s29, %s36
    %s363 = sor.u32 %s361, %s362
    %p364 = scmp.eq.s32.totalorder %s363, 0
    %s366 = sadd.s32 %s365, 1
    %s367 = scalar_select %p364, %s365, %s366
    %p370 = pneg %p364
    %p371 = scmp.eq.s32.totalorder %s21, 3
    %p372 = por %p370, %p371
    %p373 = scmp.ne.s32.totalorder %s365, %s368
    %p374 = scmp.eq.s32.totalorder %s21, 0
    %p375 = por %p373, %p374
    %p376 = scmp.ne.s32.totalorder %s365, %s368
    %p377 = scmp.eq.s32.totalorder %s26, 3
    %p378 = por %p376, %p377
    %p379 = scmp.ne.s32.totalorder %s368, %s369
    %p380 = scmp.eq.s32.totalorder %s26, 0
    %p381 = por %p379, %p380
    %p382 = scmp.ne.s32.totalorder %s368, %s369
    %p383 = scmp.eq.s32.totalorder %s27, 3
    %p384 = por %p382, %p383
    %p386 = scmp.ne.s32.totalorder %s369, %s385
    %p387 = scmp.eq.s32.totalorder %s27, 0
    %p388 = por %p386, %p387
    %p389 = scmp.le.s32.totalorder 1, %s21
    %p390 = scmp.lt.s32.totalorder %s21, 5
    %p391 = pnand %p389, %p390
    %p392 = pneg %p391
    // Predicated region
    $region9: #{cblock_forward.1} parent=5 // pred_check
      _
    $region10: #{cblock_forward.1} parent=5 // pred_check_branch
      %394 = sbr.rel (%p391) target = $region12
    $region11: #{cblock_forward.1} parent=5 // pred_region
      %s395 = ssub.s32 %s21, 1
      // Predicated region
      $region13: #{cblock_forward.1} parent=11 // pred_check
        %p396 = pneg %p80
      $region14: #{cblock_forward.1} parent=11 // pred_check_branch
        %398 = sbr.rel (%p396) target = $region16
      $region15: #{cblock_forward.1} parent=11 // pred_region
        _
      $region16: #{cblock_forward.1} parent=11 // pred_fallthru
        _
      // Predicated region
      $region17: #{cblock_forward.1} parent=11 // pred_check
        %p399 = pneg %p101
      $region18: #{cblock_forward.1} parent=11 // pred_check_branch
        %401 = sbr.rel (%p399) target = $region20
      $region19: #{cblock_forward.1} parent=11 // pred_region
        _
      $region20: #{cblock_forward.1} parent=11 // pred_fallthru
        _
      // Predicated region
      $region21: #{cblock_forward.1} parent=11 // pred_check
        %p402 = pneg %p122
      $region22: #{cblock_forward.1} parent=11 // pred_check_branch
        %404 = sbr.rel (%p402) target = $region24
      $region23: #{cblock_forward.1} parent=11 // pred_region
        _
      $region24: #{cblock_forward.1} parent=11 // pred_fallthru
        _
      // Predicated region
      $region25: #{cblock_forward.1} parent=11 // pred_check
        %p405 = pneg %p143
      $region26: #{cblock_forward.1} parent=11 // pred_check_branch
        %407 = sbr.rel (%p405) target = $region28
      $region27: #{cblock_forward.1} parent=11 // pred_region
        _
      $region28: #{cblock_forward.1} parent=11 // pred_fallthru
        _
      // Predicated region
      $region29: #{cblock_forward.1} parent=11 // pred_check
        %p408 = pneg %p164
      $region30: #{cblock_forward.1} parent=11 // pred_check_branch
        %410 = sbr.rel (%p408) target = $region32
      $region31: #{cblock_forward.1} parent=11 // pred_region
        _
      $region32: #{cblock_forward.1} parent=11 // pred_fallthru
        _
      // Predicated region
      $region33: #{cblock_forward.1} parent=11 // pred_check
        %p411 = pneg %p185
      $region34: #{cblock_forward.1} parent=11 // pred_check_branch
        %413 = sbr.rel (%p411) target = $region36
      $region35: #{cblock_forward.1} parent=11 // pred_region
        _
      $region36: #{cblock_forward.1} parent=11 // pred_fallthru
        _
      // Predicated region
      $region37: #{cblock_forward.1} parent=11 // pred_check
        %p414 = pneg %p206
      $region38: #{cblock_forward.1} parent=11 // pred_check_branch
        %416 = sbr.rel (%p414) target = $region40
      $region39: #{cblock_forward.1} parent=11 // pred_region
        _
      $region40: #{cblock_forward.1} parent=11 // pred_fallthru
        _
      // Predicated region
      $region41: #{cblock_forward.1} parent=11 // pred_check
        %p417 = pneg %p227
      $region42: #{cblock_forward.1} parent=11 // pred_check_branch
        %419 = sbr.rel (%p417) target = $region44
      $region43: #{cblock_forward.1} parent=11 // pred_region
        _
      $region44: #{cblock_forward.1} parent=11 // pred_fallthru
        _
      // Predicated region
      $region45: #{cblock_forward.1} parent=11 // pred_check
        %p420 = pneg %p248
      $region46: #{cblock_forward.1} parent=11 // pred_check_branch
        %422 = sbr.rel (%p420) target = $region48
      $region47: #{cblock_forward.1} parent=11 // pred_region
        _
      $region48: #{cblock_forward.1} parent=11 // pred_fallthru
        _
      // Predicated region
      $region49: #{cblock_forward.1} parent=11 // pred_check
        %p423 = pneg %p269
      $region50: #{cblock_forward.1} parent=11 // pred_check_branch
        %425 = sbr.rel (%p423) target = $region52
      $region51: #{cblock_forward.1} parent=11 // pred_region
        _
      $region52: #{cblock_forward.1} parent=11 // pred_fallthru
        _
      // Predicated region
      $region53: #{cblock_forward.1} parent=11 // pred_check
        %p426 = pneg %p290
      $region54: #{cblock_forward.1} parent=11 // pred_check_branch
        %428 = sbr.rel (%p426) target = $region56
      $region55: #{cblock_forward.1} parent=11 // pred_region
        _
      $region56: #{cblock_forward.1} parent=11 // pred_fallthru
        _
      // Predicated region
      $region57: #{cblock_forward.1} parent=11 // pred_check
        %p429 = pneg %p311
      $region58: #{cblock_forward.1} parent=11 // pred_check_branch
        %431 = sbr.rel (%p429) target = $region60
      $region59: #{cblock_forward.1} parent=11 // pred_region
        _
      $region60: #{cblock_forward.1} parent=11 // pred_fallthru
        _
      // Predicated region
      $region61: #{cblock_forward.1} parent=11 // pred_check
        %p432 = pneg %p332
      $region62: #{cblock_forward.1} parent=11 // pred_check_branch
        %434 = sbr.rel (%p432) target = $region64
      $region63: #{cblock_forward.1} parent=11 // pred_region
        _
      $region64: #{cblock_forward.1} parent=11 // pred_fallthru
        _
      // Predicated region
      $region65: #{cblock_forward.1} parent=11 // pred_check
        %p435 = pneg %p353
      $region66: #{cblock_forward.1} parent=11 // pred_check_branch
        %437 = sbr.rel (%p435) target = $region68
      $region67: #{cblock_forward.1} parent=11 // pred_region
        _
      $region68: #{cblock_forward.1} parent=11 // pred_fallthru
        _
    $region12: #{cblock_forward.1} parent=5 // pred_fallthru
      _
    %p438 = scmp.lt.s32.totalorder %s21, 4
    // Predicated region
    $region69: #{cblock_forward.1} parent=5 // pred_check
      %p439 = pneg %p438
    $region70: #{cblock_forward.1} parent=5 // pred_check_branch
      %441 = sbr.rel (%p439) target = $region72
    $region71: #{cblock_forward.1} parent=5 // pred_region
      // Predicated region
      $region73: #{cblock_forward.1} parent=71 // pred_check
        %p442 = pneg %p53
      $region74: #{cblock_forward.1} parent=71 // pred_check_branch
        %444 = sbr.rel (%p442) target = $region76
      $region75: #{cblock_forward.1} parent=71 // pred_region
        %p445 = scmp.lt.s32.totalorder %s28, 1
        %s446 = scalar_select %p445, %s28, 1
        %s447 = smul.addr %s446, 32
        %s448 = smul.addr %s447, 8
        %s449 = scalar_lea.vmem %s0, %s448
      $region76: #{cblock_forward.1} parent=71 // pred_fallthru
        _
    $region72: #{cblock_forward.1} parent=5 // pred_fallthru
      _
    %p450 = scmp.le.s32.totalorder 1, %s21
    %p451 = scmp.lt.s32.totalorder %s21, 5
    %p452 = pnand %p450, %p451
    %p453 = pneg %p452
    // Predicated region
    $region77: #{cblock_forward.1} parent=5 // pred_check
      _
    $region78: #{cblock_forward.1} parent=5 // pred_check_branch
      %455 = sbr.rel (%p452) target = $region80
    $region79: #{cblock_forward.1} parent=5 // pred_region
      %s456 = ssub.s32 %s21, 1
      %p457 = scmp.lt.s32.totalorder %s30, 1
      %s458 = scalar_select %p457, %s30, 1
      %s459 = smul.addr %s458, 32
      %s460 = smul.addr %s459, 8
      %s461 = scalar_lea.vmem %s0, %s460
      %p462 = pneg %p59
      %p463 = pneg %p56
      %p464 = pneg %p80
      %p465 = pneg %p77
      %p466 = pneg %p101
      %p467 = pneg %p98
      %p468 = pneg %p122
      %p469 = pneg %p119
      %p470 = pneg %p143
      %p471 = pneg %p140
      %p472 = pneg %p164
      %p473 = pneg %p161
      %p474 = pneg %p185
      %p475 = pneg %p182
      %p476 = pneg %p206
      %p477 = pneg %p203
      %p478 = pneg %p227
      %p479 = pneg %p224
      %p480 = pneg %p248
      %p481 = pneg %p245
      %p482 = pneg %p269
      %p483 = pneg %p266
      %p484 = pneg %p290
      %p485 = pneg %p287
      %p486 = pneg %p311
      %p487 = pneg %p308
      %p488 = pneg %p332
      %p489 = pneg %p329
      %p490 = pneg %p353
      %p491 = pneg %p350
      %p492 = pneg %p381
      %p493 = pneg %p378
      %s494 = smul.u32 8, %s31
      %p495 = scmp.lt.s32.totalorder %s30, 1
      %s496 = scalar_select %p495, %s30, 1
      %p497 = scmp.lt.s32.totalorder %s494, 15
      %s498 = scalar_select %p497, %s494, 15
      %s499 = smul.addr %s498, 2
      %s500 = smul.addr %s496, 32
      %s501 = sadd.s32 %s499, %s500
      %s502 = smul.addr %s501, 8
      %s503 = scalar_lea.vmem %s15, %s502
      %p504 = scmp.lt.s32.totalorder %s30, 1
      %s505 = scalar_select %p504, %s30, 1
      %s506 = smul.addr %s505, 32
      %s507 = smul.addr %s506, 8
      %s508 = scalar_lea.vmem %s0, %s507
      %s509 = smul.u32 8, %s31
      %p510 = scmp.lt.s32.totalorder %s30, 1
      %s511 = scalar_select %p510, %s30, 1
      %p512 = scmp.lt.s32.totalorder %s509, 15
      %s513 = scalar_select %p512, %s509, 15
      %s514 = smul.addr %s513, 2
      %s515 = smul.addr %s511, 32
      %s516 = sadd.s32 %s514, %s515
      %s517 = smul.addr %s516, 8
      %s518 = scalar_lea.vmem %s15, %s517
      %s519 = smul.u32 8, %s31
      %p520 = scmp.eq.s32.totalorder %s31, 0
      // Predicated region
      $region81: #{cblock_forward.1} parent=79 // pred_check
        %p521 = pneg %p520
      $region82: #{cblock_forward.1} parent=79 // pred_check_branch
        %523 = sbr.rel (%p521) target = $region84
      $region83: #{cblock_forward.1} parent=79 // pred_region
        %v524 = vld [vmem:[%s508] sm:$0xff]
        %v525 = vld [vmem:[%s508 + $0x8] sm:$0xff]
        %v526 = vld [vmem:[%s508 + $0x10] sm:$0xff]
        %v527 = vld [vmem:[%s508 + $0x18] sm:$0xff]
        %v528 = vld [vmem:[%s508 + $0x20] sm:$0xff]
        %v529 = vld [vmem:[%s508 + $0x28] sm:$0xff]
        %v530 = vld [vmem:[%s508 + $0x30] sm:$0xff]
        %v531 = vld [vmem:[%s508 + $0x38] sm:$0xff]
        %v532 = vld [vmem:[%s508 + $0x40] sm:$0xff]
        %v533 = vld [vmem:[%s508 + $0x48] sm:$0xff]
        %v534 = vld [vmem:[%s508 + $0x50] sm:$0xff]
        %v535 = vld [vmem:[%s508 + $0x58] sm:$0xff]
        %v536 = vld [vmem:[%s508 + $0x60] sm:$0xff]
        %v537 = vld [vmem:[%s508 + $0x68] sm:$0xff]
        %v538 = vld [vmem:[%s508 + $0x70] sm:$0xff]
        %v539 = vld [vmem:[%s508 + $0x78] sm:$0xff]
        %v540 = vld [vmem:[%s508 + $0x80] sm:$0xff]
        %v541 = vld [vmem:[%s508 + $0x88] sm:$0xff]
        %v542 = vld [vmem:[%s508 + $0x90] sm:$0xff]
        %v543 = vld [vmem:[%s508 + $0x98] sm:$0xff]
        %v544 = vld [vmem:[%s508 + $0xa0] sm:$0xff]
        %v545 = vld [vmem:[%s508 + $0xa8] sm:$0xff]
        %v546 = vld [vmem:[%s508 + $0xb0] sm:$0xff]
        %v547 = vld [vmem:[%s508 + $0xb8] sm:$0xff]
        %v548 = vld [vmem:[%s508 + $0xc0] sm:$0xff]
        %v549 = vld [vmem:[%s508 + $0xc8] sm:$0xff]
        %v550 = vld [vmem:[%s508 + $0xd0] sm:$0xff]
        %v551 = vld [vmem:[%s508 + $0xd8] sm:$0xff]
        %v552 = vld [vmem:[%s508 + $0xe0] sm:$0xff]
        %v553 = vld [vmem:[%s508 + $0xe8] sm:$0xff]
        %v554 = vld [vmem:[%s508 + $0xf0] sm:$0xff]
        %v555 = vld [vmem:[%s508 + $0xf8] sm:$0xff]
        %v556 = vld [vmem:[%s1] sm:$0x1]
        %v557 = vld [vmem:[%s2] sm:$0x1]
        %vm558 = vcmask 31744
        %v559 = vsel %vm558, %v524, 0.0
        %560 = vadd.xlane.f32.xlu0 %v559
        %v561 = vpop.xlane.xlu0 %560
        %v562 = vsel %vm558, %v525, 0.0
        %563 = vadd.xlane.f32.xlu0 %v562
        %v564 = vpop.xlane.xlu0 %563
        %v565 = vsel %vm558, %v526, 0.0
        %566 = vadd.xlane.f32.xlu0 %v565
        %v567 = vpop.xlane.xlu0 %566
        %v568 = vsel %vm558, %v527, 0.0
        %569 = vadd.xlane.f32.xlu0 %v568
        %v570 = vpop.xlane.xlu0 %569
        %v571 = vsel %vm558, %v528, 0.0
        %572 = vadd.xlane.f32.xlu0 %v571
        %v573 = vpop.xlane.xlu0 %572
        %v574 = vsel %vm558, %v529, 0.0
        %575 = vadd.xlane.f32.xlu0 %v574
        %v576 = vpop.xlane.xlu0 %575
        %v577 = vsel %vm558, %v530, 0.0
        %578 = vadd.xlane.f32.xlu0 %v577
        %v579 = vpop.xlane.xlu0 %578
        %v580 = vsel %vm558, %v531, 0.0
        %581 = vadd.xlane.f32.xlu0 %v580
        %v582 = vpop.xlane.xlu0 %581
        %v583 = vsel %vm558, %v532, 0.0
        %584 = vadd.xlane.f32.xlu0 %v583
        %v585 = vpop.xlane.xlu0 %584
        %v586 = vsel %vm558, %v533, 0.0
        %587 = vadd.xlane.f32.xlu0 %v586
        %v588 = vpop.xlane.xlu0 %587
        %v589 = vsel %vm558, %v534, 0.0
        %590 = vadd.xlane.f32.xlu0 %v589
        %v591 = vpop.xlane.xlu0 %590
        %v592 = vsel %vm558, %v535, 0.0
        %593 = vadd.xlane.f32.xlu0 %v592
        %v594 = vpop.xlane.xlu0 %593
        %v595 = vsel %vm558, %v536, 0.0
        %596 = vadd.xlane.f32.xlu0 %v595
        %v597 = vpop.xlane.xlu0 %596
        %v598 = vsel %vm558, %v537, 0.0
        %599 = vadd.xlane.f32.xlu0 %v598
        %v600 = vpop.xlane.xlu0 %599
        %v601 = vsel %vm558, %v538, 0.0
        %602 = vadd.xlane.f32.xlu0 %v601
        %v603 = vpop.xlane.xlu0 %602
        %v604 = vsel %vm558, %v539, 0.0
        %605 = vadd.xlane.f32.xlu0 %v604
        %v606 = vpop.xlane.xlu0 %605
        %v607 = vsel %vm558, %v540, 0.0
        %608 = vadd.xlane.f32.xlu0 %v607
        %v609 = vpop.xlane.xlu0 %608
        %v610 = vsel %vm558, %v541, 0.0
        %611 = vadd.xlane.f32.xlu0 %v610
        %v612 = vpop.xlane.xlu0 %611
        %v613 = vsel %vm558, %v542, 0.0
        %614 = vadd.xlane.f32.xlu0 %v613
        %v615 = vpop.xlane.xlu0 %614
        %v616 = vsel %vm558, %v543, 0.0
        %617 = vadd.xlane.f32.xlu0 %v616
        %v618 = vpop.xlane.xlu0 %617
        %v619 = vsel %vm558, %v544, 0.0
        %620 = vadd.xlane.f32.xlu0 %v619
        %v621 = vpop.xlane.xlu0 %620
        %v622 = vsel %vm558, %v545, 0.0
        %623 = vadd.xlane.f32.xlu0 %v622
        %v624 = vpop.xlane.xlu0 %623
        %v625 = vsel %vm558, %v546, 0.0
        %626 = vadd.xlane.f32.xlu0 %v625
        %v627 = vpop.xlane.xlu0 %626
        %v628 = vsel %vm558, %v547, 0.0
        %629 = vadd.xlane.f32.xlu0 %v628
        %v630 = vpop.xlane.xlu0 %629
        %v631 = vsel %vm558, %v548, 0.0
        %632 = vadd.xlane.f32.xlu0 %v631
        %v633 = vpop.xlane.xlu0 %632
        %v634 = vsel %vm558, %v549, 0.0
        %635 = vadd.xlane.f32.xlu0 %v634
        %v636 = vpop.xlane.xlu0 %635
        %v637 = vsel %vm558, %v550, 0.0
        %638 = vadd.xlane.f32.xlu0 %v637
        %v639 = vpop.xlane.xlu0 %638
        %v640 = vsel %vm558, %v551, 0.0
        %641 = vadd.xlane.f32.xlu0 %v640
        %v642 = vpop.xlane.xlu0 %641
        %v643 = vsel %vm558, %v552, 0.0
        %644 = vadd.xlane.f32.xlu0 %v643
        %v645 = vpop.xlane.xlu0 %644
        %v646 = vsel %vm558, %v553, 0.0
        %647 = vadd.xlane.f32.xlu0 %v646
        %v648 = vpop.xlane.xlu0 %647
        %v649 = vsel %vm558, %v554, 0.0
        %650 = vadd.xlane.f32.xlu0 %v649
        %v651 = vpop.xlane.xlu0 %650
        %v652 = vsel %vm558, %v555, 0.0
        %653 = vadd.xlane.f32.xlu0 %v652
        %v654 = vpop.xlane.xlu0 %653
        %v655 = vrcp.pop 4.0
        %v656 = vmul.f32 4.0, %v655
        %v657 = vsub.f32 1.0, %v656
        %v658 = vmul.f32 %v655, %v657
        %v659 = vadd.f32 %v655, %v658
        %vm660 = vweird.f32 %v655
        %v661 = vsel %vm660, %v655, %v659
        %v662 = vmul.f32 %v561, %v661
        %v663 = vmul.f32 %v564, %v661
        %v664 = vmul.f32 %v567, %v661
        %v665 = vmul.f32 %v570, %v661
        %v666 = vmul.f32 %v573, %v661
        %v667 = vmul.f32 %v576, %v661
        %v668 = vmul.f32 %v579, %v661
        %v669 = vmul.f32 %v582, %v661
        %v670 = vmul.f32 %v585, %v661
        %v671 = vmul.f32 %v588, %v661
        %v672 = vmul.f32 %v591, %v661
        %v673 = vmul.f32 %v594, %v661
        %v674 = vmul.f32 %v597, %v661
        %v675 = vmul.f32 %v600, %v661
        %v676 = vmul.f32 %v603, %v661
        %v677 = vmul.f32 %v606, %v661
        %v678 = vmul.f32 %v609, %v661
        %v679 = vmul.f32 %v612, %v661
        %v680 = vmul.f32 %v615, %v661
        %v681 = vmul.f32 %v618, %v661
        %v682 = vmul.f32 %v621, %v661
        %v683 = vmul.f32 %v624, %v661
        %v684 = vmul.f32 %v627, %v661
        %v685 = vmul.f32 %v630, %v661
        %v686 = vmul.f32 %v633, %v661
        %v687 = vmul.f32 %v636, %v661
        %v688 = vmul.f32 %v639, %v661
        %v689 = vmul.f32 %v642, %v661
        %v690 = vmul.f32 %v645, %v661
        %v691 = vmul.f32 %v648, %v661
        %v692 = vmul.f32 %v651, %v661
        %v693 = vmul.f32 %v654, %v661
        %v694 = vmul.f32 %v524, %v524
        %v695 = vmul.f32 %v525, %v525
        %v696 = vmul.f32 %v526, %v526
        %v697 = vmul.f32 %v527, %v527
        %v698 = vmul.f32 %v528, %v528
        %v699 = vmul.f32 %v529, %v529
        %v700 = vmul.f32 %v530, %v530
        %v701 = vmul.f32 %v531, %v531
        %v702 = vmul.f32 %v532, %v532
        %v703 = vmul.f32 %v533, %v533
        %v704 = vmul.f32 %v534, %v534
        %v705 = vmul.f32 %v535, %v535
        %v706 = vmul.f32 %v536, %v536
        %v707 = vmul.f32 %v537, %v537
        %v708 = vmul.f32 %v538, %v538
        %v709 = vmul.f32 %v539, %v539
        %v710 = vmul.f32 %v540, %v540
        %v711 = vmul.f32 %v541, %v541
        %v712 = vmul.f32 %v542, %v542
        %v713 = vmul.f32 %v543, %v543
        %v714 = vmul.f32 %v544, %v544
        %v715 = vmul.f32 %v545, %v545
        %v716 = vmul.f32 %v546, %v546
        %v717 = vmul.f32 %v547, %v547
        %v718 = vmul.f32 %v548, %v548
        %v719 = vmul.f32 %v549, %v549
        %v720 = vmul.f32 %v550, %v550
        %v721 = vmul.f32 %v551, %v551
        %v722 = vmul.f32 %v552, %v552
        %v723 = vmul.f32 %v553, %v553
        %v724 = vmul.f32 %v554, %v554
        %v725 = vmul.f32 %v555, %v555
        %v726 = vsel %vm558, %v694, 0.0
        %727 = vadd.xlane.f32.xlu0 %v726
        %v728 = vpop.xlane.xlu0 %727
        %v729 = vsel %vm558, %v695, 0.0
        %730 = vadd.xlane.f32.xlu0 %v729
        %v731 = vpop.xlane.xlu0 %730
        %v732 = vsel %vm558, %v696, 0.0
        %733 = vadd.xlane.f32.xlu0 %v732
        %v734 = vpop.xlane.xlu0 %733
        %v735 = vsel %vm558, %v697, 0.0
        %736 = vadd.xlane.f32.xlu0 %v735
        %v737 = vpop.xlane.xlu0 %736
        %v738 = vsel %vm558, %v698, 0.0
        %739 = vadd.xlane.f32.xlu0 %v738
        %v740 = vpop.xlane.xlu0 %739
        %v741 = vsel %vm558, %v699, 0.0
        %742 = vadd.xlane.f32.xlu0 %v741
        %v743 = vpop.xlane.xlu0 %742
        %v744 = vsel %vm558, %v700, 0.0
        %745 = vadd.xlane.f32.xlu0 %v744
        %v746 = vpop.xlane.xlu0 %745
        %v747 = vsel %vm558, %v701, 0.0
        %748 = vadd.xlane.f32.xlu0 %v747
        %v749 = vpop.xlane.xlu0 %748
        %v750 = vsel %vm558, %v702, 0.0
        %751 = vadd.xlane.f32.xlu0 %v750
        %v752 = vpop.xlane.xlu0 %751
        %v753 = vsel %vm558, %v703, 0.0
        %754 = vadd.xlane.f32.xlu0 %v753
        %v755 = vpop.xlane.xlu0 %754
        %v756 = vsel %vm558, %v704, 0.0
        %757 = vadd.xlane.f32.xlu0 %v756
        %v758 = vpop.xlane.xlu0 %757
        %v759 = vsel %vm558, %v705, 0.0
        %760 = vadd.xlane.f32.xlu0 %v759
        %v761 = vpop.xlane.xlu0 %760
        %v762 = vsel %vm558, %v706, 0.0
        %763 = vadd.xlane.f32.xlu0 %v762
        %v764 = vpop.xlane.xlu0 %763
        %v765 = vsel %vm558, %v707, 0.0
        %766 = vadd.xlane.f32.xlu0 %v765
        %v767 = vpop.xlane.xlu0 %766
        %v768 = vsel %vm558, %v708, 0.0
        %769 = vadd.xlane.f32.xlu0 %v768
        %v770 = vpop.xlane.xlu0 %769
        %v771 = vsel %vm558, %v709, 0.0
        %772 = vadd.xlane.f32.xlu0 %v771
        %v773 = vpop.xlane.xlu0 %772
        %v774 = vsel %vm558, %v710, 0.0
        %775 = vadd.xlane.f32.xlu0 %v774
        %v776 = vpop.xlane.xlu0 %775
        %v777 = vsel %vm558, %v711, 0.0
        %778 = vadd.xlane.f32.xlu0 %v777
        %v779 = vpop.xlane.xlu0 %778
        %v780 = vsel %vm558, %v712, 0.0
        %781 = vadd.xlane.f32.xlu0 %v780
        %v782 = vpop.xlane.xlu0 %781
        %v783 = vsel %vm558, %v713, 0.0
        %784 = vadd.xlane.f32.xlu0 %v783
        %v785 = vpop.xlane.xlu0 %784
        %v786 = vsel %vm558, %v714, 0.0
        %787 = vadd.xlane.f32.xlu0 %v786
        %v788 = vpop.xlane.xlu0 %787
        %v789 = vsel %vm558, %v715, 0.0
        %790 = vadd.xlane.f32.xlu0 %v789
        %v791 = vpop.xlane.xlu0 %790
        %v792 = vsel %vm558, %v716, 0.0
        %793 = vadd.xlane.f32.xlu0 %v792
        %v794 = vpop.xlane.xlu0 %793
        %v795 = vsel %vm558, %v717, 0.0
        %796 = vadd.xlane.f32.xlu0 %v795
        %v797 = vpop.xlane.xlu0 %796
        %v798 = vsel %vm558, %v718, 0.0
        %799 = vadd.xlane.f32.xlu0 %v798
        %v800 = vpop.xlane.xlu0 %799
        %v801 = vsel %vm558, %v719, 0.0
        %802 = vadd.xlane.f32.xlu0 %v801
        %v803 = vpop.xlane.xlu0 %802
        %v804 = vsel %vm558, %v720, 0.0
        %805 = vadd.xlane.f32.xlu0 %v804
        %v806 = vpop.xlane.xlu0 %805
        %v807 = vsel %vm558, %v721, 0.0
        %808 = vadd.xlane.f32.xlu0 %v807
        %v809 = vpop.xlane.xlu0 %808
        %v810 = vsel %vm558, %v722, 0.0
        %811 = vadd.xlane.f32.xlu0 %v810
        %v812 = vpop.xlane.xlu0 %811
        %v813 = vsel %vm558, %v723, 0.0
        %814 = vadd.xlane.f32.xlu0 %v813
        %v815 = vpop.xlane.xlu0 %814
        %v816 = vsel %vm558, %v724, 0.0
        %817 = vadd.xlane.f32.xlu0 %v816
        %v818 = vpop.xlane.xlu0 %817
        %v819 = vsel %vm558, %v725, 0.0
        %820 = vadd.xlane.f32.xlu0 %v819
        %v821 = vpop.xlane.xlu0 %820
        %v822 = vmul.f32 %v728, %v661
        %v823 = vmul.f32 %v731, %v661
        %v824 = vmul.f32 %v734, %v661
        %v825 = vmul.f32 %v737, %v661
        %v826 = vmul.f32 %v740, %v661
        %v827 = vmul.f32 %v743, %v661
        %v828 = vmul.f32 %v746, %v661
        %v829 = vmul.f32 %v749, %v661
        %v830 = vmul.f32 %v752, %v661
        %v831 = vmul.f32 %v755, %v661
        %v832 = vmul.f32 %v758, %v661
        %v833 = vmul.f32 %v761, %v661
        %v834 = vmul.f32 %v764, %v661
        %v835 = vmul.f32 %v767, %v661
        %v836 = vmul.f32 %v770, %v661
        %v837 = vmul.f32 %v773, %v661
        %v838 = vmul.f32 %v776, %v661
        %v839 = vmul.f32 %v779, %v661
        %v840 = vmul.f32 %v782, %v661
        %v841 = vmul.f32 %v785, %v661
        %v842 = vmul.f32 %v788, %v661
        %v843 = vmul.f32 %v791, %v661
        %v844 = vmul.f32 %v794, %v661
        %v845 = vmul.f32 %v797, %v661
        %v846 = vmul.f32 %v800, %v661
        %v847 = vmul.f32 %v803, %v661
        %v848 = vmul.f32 %v806, %v661
        %v849 = vmul.f32 %v809, %v661
        %v850 = vmul.f32 %v812, %v661
        %v851 = vmul.f32 %v815, %v661
        %v852 = vmul.f32 %v818, %v661
        %v853 = vmul.f32 %v821, %v661
        %v854 = vmul.f32 %v662, %v662
        %v855 = vmul.f32 %v663, %v663
        %v856 = vmul.f32 %v664, %v664
        %v857 = vmul.f32 %v665, %v665
        %v858 = vmul.f32 %v666, %v666
        %v859 = vmul.f32 %v667, %v667
        %v860 = vmul.f32 %v668, %v668
        %v861 = vmul.f32 %v669, %v669
        %v862 = vmul.f32 %v670, %v670
        %v863 = vmul.f32 %v671, %v671
        %v864 = vmul.f32 %v672, %v672
        %v865 = vmul.f32 %v673, %v673
        %v866 = vmul.f32 %v674, %v674
        %v867 = vmul.f32 %v675, %v675
        %v868 = vmul.f32 %v676, %v676
        %v869 = vmul.f32 %v677, %v677
        %v870 = vmul.f32 %v678, %v678
        %v871 = vmul.f32 %v679, %v679
        %v872 = vmul.f32 %v680, %v680
        %v873 = vmul.f32 %v681, %v681
        %v874 = vmul.f32 %v682, %v682
        %v875 = vmul.f32 %v683, %v683
        %v876 = vmul.f32 %v684, %v684
        %v877 = vmul.f32 %v685, %v685
        %v878 = vmul.f32 %v686, %v686
        %v879 = vmul.f32 %v687, %v687
        %v880 = vmul.f32 %v688, %v688
        %v881 = vmul.f32 %v689, %v689
        %v882 = vmul.f32 %v690, %v690
        %v883 = vmul.f32 %v691, %v691
        %v884 = vmul.f32 %v692, %v692
        %v885 = vmul.f32 %v693, %v693
        %v886 = vsub.f32 %v822, %v854
        %v887 = vsub.f32 %v823, %v855
        %v888 = vsub.f32 %v824, %v856
        %v889 = vsub.f32 %v825, %v857
        %v890 = vsub.f32 %v826, %v858
        %v891 = vsub.f32 %v827, %v859
        %v892 = vsub.f32 %v828, %v860
        %v893 = vsub.f32 %v829, %v861
        %v894 = vsub.f32 %v830, %v862
        %v895 = vsub.f32 %v831, %v863
        %v896 = vsub.f32 %v832, %v864
        %v897 = vsub.f32 %v833, %v865
        %v898 = vsub.f32 %v834, %v866
        %v899 = vsub.f32 %v835, %v867
        %v900 = vsub.f32 %v836, %v868
        %v901 = vsub.f32 %v837, %v869
        %v902 = vsub.f32 %v838, %v870
        %v903 = vsub.f32 %v839, %v871
        %v904 = vsub.f32 %v840, %v872
        %v905 = vsub.f32 %v841, %v873
        %v906 = vsub.f32 %v842, %v874
        %v907 = vsub.f32 %v843, %v875
        %v908 = vsub.f32 %v844, %v876
        %v909 = vsub.f32 %v845, %v877
        %v910 = vsub.f32 %v846, %v878
        %v911 = vsub.f32 %v847, %v879
        %v912 = vsub.f32 %v848, %v880
        %v913 = vsub.f32 %v849, %v881
        %v914 = vsub.f32 %v850, %v882
        %v915 = vsub.f32 %v851, %v883
        %v916 = vsub.f32 %v852, %v884
        %v917 = vsub.f32 %v853, %v885
        %v918 = vsub.f32 %v524, %v662
        %v919 = vsub.f32 %v525, %v663
        %v920 = vsub.f32 %v526, %v664
        %v921 = vsub.f32 %v527, %v665
        %v922 = vsub.f32 %v528, %v666
        %v923 = vsub.f32 %v529, %v667
        %v924 = vsub.f32 %v530, %v668
        %v925 = vsub.f32 %v531, %v669
        %v926 = vsub.f32 %v532, %v670
        %v927 = vsub.f32 %v533, %v671
        %v928 = vsub.f32 %v534, %v672
        %v929 = vsub.f32 %v535, %v673
        %v930 = vsub.f32 %v536, %v674
        %v931 = vsub.f32 %v537, %v675
        %v932 = vsub.f32 %v538, %v676
        %v933 = vsub.f32 %v539, %v677
        %v934 = vsub.f32 %v540, %v678
        %v935 = vsub.f32 %v541, %v679
        %v936 = vsub.f32 %v542, %v680
        %v937 = vsub.f32 %v543, %v681
        %v938 = vsub.f32 %v544, %v682
        %v939 = vsub.f32 %v545, %v683
        %v940 = vsub.f32 %v546, %v684
        %v941 = vsub.f32 %v547, %v685
        %v942 = vsub.f32 %v548, %v686
        %v943 = vsub.f32 %v549, %v687
        %v944 = vsub.f32 %v550, %v688
        %v945 = vsub.f32 %v551, %v689
        %v946 = vsub.f32 %v552, %v690
        %v947 = vsub.f32 %v553, %v691
        %v948 = vsub.f32 %v554, %v692
        %v949 = vsub.f32 %v555, %v693
        %v950 = vadd.f32 %v886, 1e-05
        %v951 = vadd.f32 %v887, 1e-05
        %v952 = vadd.f32 %v888, 1e-05
        %v953 = vadd.f32 %v889, 1e-05
        %v954 = vadd.f32 %v890, 1e-05
        %v955 = vadd.f32 %v891, 1e-05
        %v956 = vadd.f32 %v892, 1e-05
        %v957 = vadd.f32 %v893, 1e-05
        %v958 = vadd.f32 %v894, 1e-05
        %v959 = vadd.f32 %v895, 1e-05
        %v960 = vadd.f32 %v896, 1e-05
        %v961 = vadd.f32 %v897, 1e-05
        %v962 = vadd.f32 %v898, 1e-05
        %v963 = vadd.f32 %v899, 1e-05
        %v964 = vadd.f32 %v900, 1e-05
        %v965 = vadd.f32 %v901, 1e-05
        %v966 = vadd.f32 %v902, 1e-05
        %v967 = vadd.f32 %v903, 1e-05
        %v968 = vadd.f32 %v904, 1e-05
        %v969 = vadd.f32 %v905, 1e-05
        %v970 = vadd.f32 %v906, 1e-05
        %v971 = vadd.f32 %v907, 1e-05
        %v972 = vadd.f32 %v908, 1e-05
        %v973 = vadd.f32 %v909, 1e-05
        %v974 = vadd.f32 %v910, 1e-05
        %v975 = vadd.f32 %v911, 1e-05
        %v976 = vadd.f32 %v912, 1e-05
        %v977 = vadd.f32 %v913, 1e-05
        %v978 = vadd.f32 %v914, 1e-05
        %v979 = vadd.f32 %v915, 1e-05
        %v980 = vadd.f32 %v916, 1e-05
        %v981 = vadd.f32 %v917, 1e-05
        %v982 = vrsqrt.pop %v950
        %v983 = vmul.f32 %v982, %v950
        %v984 = vmul.f32 %v983, %v982
        %v985 = vmul.f32 0.5, %v984
        %v986 = vsub.f32 1.5, %v985
        %v987 = vmul.f32 %v982, %v986
        %vm988 = vweird.f32 %v950
        %vm989 = vweird.f32 %v982
        %vm990 = vmor %vm988, %vm989
        %v991 = vsel %vm990, %v982, %v987
        %v992 = vrsqrt.pop %v951
        %v993 = vmul.f32 %v992, %v951
        %v994 = vmul.f32 %v993, %v992
        %v995 = vmul.f32 0.5, %v994
        %v996 = vsub.f32 1.5, %v995
        %v997 = vmul.f32 %v992, %v996
        %vm998 = vweird.f32 %v951
        %vm999 = vweird.f32 %v992
        %vm1000 = vmor %vm998, %vm999
        %v1001 = vsel %vm1000, %v992, %v997
        %v1002 = vrsqrt.pop %v952
        %v1003 = vmul.f32 %v1002, %v952
        %v1004 = vmul.f32 %v1003, %v1002
        %v1005 = vmul.f32 0.5, %v1004
        %v1006 = vsub.f32 1.5, %v1005
        %v1007 = vmul.f32 %v1002, %v1006
        %vm1008 = vweird.f32 %v952
        %vm1009 = vweird.f32 %v1002
        %vm1010 = vmor %vm1008, %vm1009
        %v1011 = vsel %vm1010, %v1002, %v1007
        %v1012 = vrsqrt.pop %v953
        %v1013 = vmul.f32 %v1012, %v953
        %v1014 = vmul.f32 %v1013, %v1012
        %v1015 = vmul.f32 0.5, %v1014
        %v1016 = vsub.f32 1.5, %v1015
        %v1017 = vmul.f32 %v1012, %v1016
        %vm1018 = vweird.f32 %v953
        %vm1019 = vweird.f32 %v1012
        %vm1020 = vmor %vm1018, %vm1019
        %v1021 = vsel %vm1020, %v1012, %v1017
        %v1022 = vrsqrt.pop %v954
        %v1023 = vmul.f32 %v1022, %v954
        %v1024 = vmul.f32 %v1023, %v1022
        %v1025 = vmul.f32 0.5, %v1024
        %v1026 = vsub.f32 1.5, %v1025
        %v1027 = vmul.f32 %v1022, %v1026
        %vm1028 = vweird.f32 %v954
        %vm1029 = vweird.f32 %v1022
        %vm1030 = vmor %vm1028, %vm1029
        %v1031 = vsel %vm1030, %v1022, %v1027
        %v1032 = vrsqrt.pop %v955
        %v1033 = vmul.f32 %v1032, %v955
        %v1034 = vmul.f32 %v1033, %v1032
        %v1035 = vmul.f32 0.5, %v1034
        %v1036 = vsub.f32 1.5, %v1035
        %v1037 = vmul.f32 %v1032, %v1036
        %vm1038 = vweird.f32 %v955
        %vm1039 = vweird.f32 %v1032
        %vm1040 = vmor %vm1038, %vm1039
        %v1041 = vsel %vm1040, %v1032, %v1037
        %v1042 = vrsqrt.pop %v956
        %v1043 = vmul.f32 %v1042, %v956
        %v1044 = vmul.f32 %v1043, %v1042
        %v1045 = vmul.f32 0.5, %v1044
        %v1046 = vsub.f32 1.5, %v1045
        %v1047 = vmul.f32 %v1042, %v1046
        %vm1048 = vweird.f32 %v956
        %vm1049 = vweird.f32 %v1042
        %vm1050 = vmor %vm1048, %vm1049
        %v1051 = vsel %vm1050, %v1042, %v1047
        %v1052 = vrsqrt.pop %v957
        %v1053 = vmul.f32 %v1052, %v957
        %v1054 = vmul.f32 %v1053, %v1052
        %v1055 = vmul.f32 0.5, %v1054
        %v1056 = vsub.f32 1.5, %v1055
        %v1057 = vmul.f32 %v1052, %v1056
        %vm1058 = vweird.f32 %v957
        %vm1059 = vweird.f32 %v1052
        %vm1060 = vmor %vm1058, %vm1059
        %v1061 = vsel %vm1060, %v1052, %v1057
        %v1062 = vrsqrt.pop %v958
        %v1063 = vmul.f32 %v1062, %v958
        %v1064 = vmul.f32 %v1063, %v1062
        %v1065 = vmul.f32 0.5, %v1064
        %v1066 = vsub.f32 1.5, %v1065
        %v1067 = vmul.f32 %v1062, %v1066
        %vm1068 = vweird.f32 %v958
        %vm1069 = vweird.f32 %v1062
        %vm1070 = vmor %vm1068, %vm1069
        %v1071 = vsel %vm1070, %v1062, %v1067
        %v1072 = vrsqrt.pop %v959
        %v1073 = vmul.f32 %v1072, %v959
        %v1074 = vmul.f32 %v1073, %v1072
        %v1075 = vmul.f32 0.5, %v1074
        %v1076 = vsub.f32 1.5, %v1075
        %v1077 = vmul.f32 %v1072, %v1076
        %vm1078 = vweird.f32 %v959
        %vm1079 = vweird.f32 %v1072
        %vm1080 = vmor %vm1078, %vm1079
        %v1081 = vsel %vm1080, %v1072, %v1077
        %v1082 = vrsqrt.pop %v960
        %v1083 = vmul.f32 %v1082, %v960
        %v1084 = vmul.f32 %v1083, %v1082
        %v1085 = vmul.f32 0.5, %v1084
        %v1086 = vsub.f32 1.5, %v1085
        %v1087 = vmul.f32 %v1082, %v1086
        %vm1088 = vweird.f32 %v960
        %vm1089 = vweird.f32 %v1082
        %vm1090 = vmor %vm1088, %vm1089
        %v1091 = vsel %vm1090, %v1082, %v1087
        %v1092 = vrsqrt.pop %v961
        %v1093 = vmul.f32 %v1092, %v961
        %v1094 = vmul.f32 %v1093, %v1092
        %v1095 = vmul.f32 0.5, %v1094
        %v1096 = vsub.f32 1.5, %v1095
        %v1097 = vmul.f32 %v1092, %v1096
        %vm1098 = vweird.f32 %v961
        %vm1099 = vweird.f32 %v1092
        %vm1100 = vmor %vm1098, %vm1099
        %v1101 = vsel %vm1100, %v1092, %v1097
        %v1102 = vrsqrt.pop %v962
        %v1103 = vmul.f32 %v1102, %v962
        %v1104 = vmul.f32 %v1103, %v1102
        %v1105 = vmul.f32 0.5, %v1104
        %v1106 = vsub.f32 1.5, %v1105
        %v1107 = vmul.f32 %v1102, %v1106
        %vm1108 = vweird.f32 %v962
        %vm1109 = vweird.f32 %v1102
        %vm1110 = vmor %vm1108, %vm1109
        %v1111 = vsel %vm1110, %v1102, %v1107
        %v1112 = vrsqrt.pop %v963
        %v1113 = vmul.f32 %v1112, %v963
        %v1114 = vmul.f32 %v1113, %v1112
        %v1115 = vmul.f32 0.5, %v1114
        %v1116 = vsub.f32 1.5, %v1115
        %v1117 = vmul.f32 %v1112, %v1116
        %vm1118 = vweird.f32 %v963
        %vm1119 = vweird.f32 %v1112
        %vm1120 = vmor %vm1118, %vm1119
        %v1121 = vsel %vm1120, %v1112, %v1117
        %v1122 = vrsqrt.pop %v964
        %v1123 = vmul.f32 %v1122, %v964
        %v1124 = vmul.f32 %v1123, %v1122
        %v1125 = vmul.f32 0.5, %v1124
        %v1126 = vsub.f32 1.5, %v1125
        %v1127 = vmul.f32 %v1122, %v1126
        %vm1128 = vweird.f32 %v964
        %vm1129 = vweird.f32 %v1122
        %vm1130 = vmor %vm1128, %vm1129
        %v1131 = vsel %vm1130, %v1122, %v1127
        %v1132 = vrsqrt.pop %v965
        %v1133 = vmul.f32 %v1132, %v965
        %v1134 = vmul.f32 %v1133, %v1132
        %v1135 = vmul.f32 0.5, %v1134
        %v1136 = vsub.f32 1.5, %v1135
        %v1137 = vmul.f32 %v1132, %v1136
        %vm1138 = vweird.f32 %v965
        %vm1139 = vweird.f32 %v1132
        %vm1140 = vmor %vm1138, %vm1139
        %v1141 = vsel %vm1140, %v1132, %v1137
        %v1142 = vrsqrt.pop %v966
        %v1143 = vmul.f32 %v1142, %v966
        %v1144 = vmul.f32 %v1143, %v1142
        %v1145 = vmul.f32 0.5, %v1144
        %v1146 = vsub.f32 1.5, %v1145
        %v1147 = vmul.f32 %v1142, %v1146
        %vm1148 = vweird.f32 %v966
        %vm1149 = vweird.f32 %v1142
        %vm1150 = vmor %vm1148, %vm1149
        %v1151 = vsel %vm1150, %v1142, %v1147
        %v1152 = vrsqrt.pop %v967
        %v1153 = vmul.f32 %v1152, %v967
        %v1154 = vmul.f32 %v1153, %v1152
        %v1155 = vmul.f32 0.5, %v1154
        %v1156 = vsub.f32 1.5, %v1155
        %v1157 = vmul.f32 %v1152, %v1156
        %vm1158 = vweird.f32 %v967
        %vm1159 = vweird.f32 %v1152
        %vm1160 = vmor %vm1158, %vm1159
        %v1161 = vsel %vm1160, %v1152, %v1157
        %v1162 = vrsqrt.pop %v968
        %v1163 = vmul.f32 %v1162, %v968
        %v1164 = vmul.f32 %v1163, %v1162
        %v1165 = vmul.f32 0.5, %v1164
        %v1166 = vsub.f32 1.5, %v1165
        %v1167 = vmul.f32 %v1162, %v1166
        %vm1168 = vweird.f32 %v968
        %vm1169 = vweird.f32 %v1162
        %vm1170 = vmor %vm1168, %vm1169
        %v1171 = vsel %vm1170, %v1162, %v1167
        %v1172 = vrsqrt.pop %v969
        %v1173 = vmul.f32 %v1172, %v969
        %v1174 = vmul.f32 %v1173, %v1172
        %v1175 = vmul.f32 0.5, %v1174
        %v1176 = vsub.f32 1.5, %v1175
        %v1177 = vmul.f32 %v1172, %v1176
        %vm1178 = vweird.f32 %v969
        %vm1179 = vweird.f32 %v1172
        %vm1180 = vmor %vm1178, %vm1179
        %v1181 = vsel %vm1180, %v1172, %v1177
        %v1182 = vrsqrt.pop %v970
        %v1183 = vmul.f32 %v1182, %v970
        %v1184 = vmul.f32 %v1183, %v1182
        %v1185 = vmul.f32 0.5, %v1184
        %v1186 = vsub.f32 1.5, %v1185
        %v1187 = vmul.f32 %v1182, %v1186
        %vm1188 = vweird.f32 %v970
        %vm1189 = vweird.f32 %v1182
        %vm1190 = vmor %vm1188, %vm1189
        %v1191 = vsel %vm1190, %v1182, %v1187
        %v1192 = vrsqrt.pop %v971
        %v1193 = vmul.f32 %v1192, %v971
        %v1194 = vmul.f32 %v1193, %v1192
        %v1195 = vmul.f32 0.5, %v1194
        %v1196 = vsub.f32 1.5, %v1195
        %v1197 = vmul.f32 %v1192, %v1196
        %vm1198 = vweird.f32 %v971
        %vm1199 = vweird.f32 %v1192
        %vm1200 = vmor %vm1198, %vm1199
        %v1201 = vsel %vm1200, %v1192, %v1197
        %v1202 = vrsqrt.pop %v972
        %v1203 = vmul.f32 %v1202, %v972
        %v1204 = vmul.f32 %v1203, %v1202
        %v1205 = vmul.f32 0.5, %v1204
        %v1206 = vsub.f32 1.5, %v1205
        %v1207 = vmul.f32 %v1202, %v1206
        %vm1208 = vweird.f32 %v972
        %vm1209 = vweird.f32 %v1202
        %vm1210 = vmor %vm1208, %vm1209
        %v1211 = vsel %vm1210, %v1202, %v1207
        %v1212 = vrsqrt.pop %v973
        %v1213 = vmul.f32 %v1212, %v973
        %v1214 = vmul.f32 %v1213, %v1212
        %v1215 = vmul.f32 0.5, %v1214
        %v1216 = vsub.f32 1.5, %v1215
        %v1217 = vmul.f32 %v1212, %v1216
        %vm1218 = vweird.f32 %v973
        %vm1219 = vweird.f32 %v1212
        %vm1220 = vmor %vm1218, %vm1219
        %v1221 = vsel %vm1220, %v1212, %v1217
        %v1222 = vrsqrt.pop %v974
        %v1223 = vmul.f32 %v1222, %v974
        %v1224 = vmul.f32 %v1223, %v1222
        %v1225 = vmul.f32 0.5, %v1224
        %v1226 = vsub.f32 1.5, %v1225
        %v1227 = vmul.f32 %v1222, %v1226
        %vm1228 = vweird.f32 %v974
        %vm1229 = vweird.f32 %v1222
        %vm1230 = vmor %vm1228, %vm1229
        %v1231 = vsel %vm1230, %v1222, %v1227
        %v1232 = vrsqrt.pop %v975
        %v1233 = vmul.f32 %v1232, %v975
        %v1234 = vmul.f32 %v1233, %v1232
        %v1235 = vmul.f32 0.5, %v1234
        %v1236 = vsub.f32 1.5, %v1235
        %v1237 = vmul.f32 %v1232, %v1236
        %vm1238 = vweird.f32 %v975
        %vm1239 = vweird.f32 %v1232
        %vm1240 = vmor %vm1238, %vm1239
        %v1241 = vsel %vm1240, %v1232, %v1237
        %v1242 = vrsqrt.pop %v976
        %v1243 = vmul.f32 %v1242, %v976
        %v1244 = vmul.f32 %v1243, %v1242
        %v1245 = vmul.f32 0.5, %v1244
        %v1246 = vsub.f32 1.5, %v1245
        %v1247 = vmul.f32 %v1242, %v1246
        %vm1248 = vweird.f32 %v976
        %vm1249 = vweird.f32 %v1242
        %vm1250 = vmor %vm1248, %vm1249
        %v1251 = vsel %vm1250, %v1242, %v1247
        %v1252 = vrsqrt.pop %v977
        %v1253 = vmul.f32 %v1252, %v977
        %v1254 = vmul.f32 %v1253, %v1252
        %v1255 = vmul.f32 0.5, %v1254
        %v1256 = vsub.f32 1.5, %v1255
        %v1257 = vmul.f32 %v1252, %v1256
        %vm1258 = vweird.f32 %v977
        %vm1259 = vweird.f32 %v1252
        %vm1260 = vmor %vm1258, %vm1259
        %v1261 = vsel %vm1260, %v1252, %v1257
        %v1262 = vrsqrt.pop %v978
        %v1263 = vmul.f32 %v1262, %v978
        %v1264 = vmul.f32 %v1263, %v1262
        %v1265 = vmul.f32 0.5, %v1264
        %v1266 = vsub.f32 1.5, %v1265
        %v1267 = vmul.f32 %v1262, %v1266
        %vm1268 = vweird.f32 %v978
        %vm1269 = vweird.f32 %v1262
        %vm1270 = vmor %vm1268, %vm1269
        %v1271 = vsel %vm1270, %v1262, %v1267
        %v1272 = vrsqrt.pop %v979
        %v1273 = vmul.f32 %v1272, %v979
        %v1274 = vmul.f32 %v1273, %v1272
        %v1275 = vmul.f32 0.5, %v1274
        %v1276 = vsub.f32 1.5, %v1275
        %v1277 = vmul.f32 %v1272, %v1276
        %vm1278 = vweird.f32 %v979
        %vm1279 = vweird.f32 %v1272
        %vm1280 = vmor %vm1278, %vm1279
        %v1281 = vsel %vm1280, %v1272, %v1277
        %v1282 = vrsqrt.pop %v980
        %v1283 = vmul.f32 %v1282, %v980
        %v1284 = vmul.f32 %v1283, %v1282
        %v1285 = vmul.f32 0.5, %v1284
        %v1286 = vsub.f32 1.5, %v1285
        %v1287 = vmul.f32 %v1282, %v1286
        %vm1288 = vweird.f32 %v980
        %vm1289 = vweird.f32 %v1282
        %vm1290 = vmor %vm1288, %vm1289
        %v1291 = vsel %vm1290, %v1282, %v1287
        %v1292 = vrsqrt.pop %v981
        %v1293 = vmul.f32 %v1292, %v981
        %v1294 = vmul.f32 %v1293, %v1292
        %v1295 = vmul.f32 0.5, %v1294
        %v1296 = vsub.f32 1.5, %v1295
        %v1297 = vmul.f32 %v1292, %v1296
        %vm1298 = vweird.f32 %v981
        %vm1299 = vweird.f32 %v1292
        %vm1300 = vmor %vm1298, %vm1299
        %v1301 = vsel %vm1300, %v1292, %v1297
        %v1302 = vmul.f32 %v918, %v991
        %v1303 = vmul.f32 %v919, %v1001
        %v1304 = vmul.f32 %v920, %v1011
        %v1305 = vmul.f32 %v921, %v1021
        %v1306 = vmul.f32 %v922, %v1031
        %v1307 = vmul.f32 %v923, %v1041
        %v1308 = vmul.f32 %v924, %v1051
        %v1309 = vmul.f32 %v925, %v1061
        %v1310 = vmul.f32 %v926, %v1071
        %v1311 = vmul.f32 %v927, %v1081
        %v1312 = vmul.f32 %v928, %v1091
        %v1313 = vmul.f32 %v929, %v1101
        %v1314 = vmul.f32 %v930, %v1111
        %v1315 = vmul.f32 %v931, %v1121
        %v1316 = vmul.f32 %v932, %v1131
        %v1317 = vmul.f32 %v933, %v1141
        %v1318 = vmul.f32 %v934, %v1151
        %v1319 = vmul.f32 %v935, %v1161
        %v1320 = vmul.f32 %v936, %v1171
        %v1321 = vmul.f32 %v937, %v1181
        %v1322 = vmul.f32 %v938, %v1191
        %v1323 = vmul.f32 %v939, %v1201
        %v1324 = vmul.f32 %v940, %v1211
        %v1325 = vmul.f32 %v941, %v1221
        %v1326 = vmul.f32 %v942, %v1231
        %v1327 = vmul.f32 %v943, %v1241
        %v1328 = vmul.f32 %v944, %v1251
        %v1329 = vmul.f32 %v945, %v1261
        %v1330 = vmul.f32 %v946, %v1271
        %v1331 = vmul.f32 %v947, %v1281
        %v1332 = vmul.f32 %v948, %v1291
        %v1333 = vmul.f32 %v949, %v1301
        %v1335 = vperm.slane %v556, 0
        %v1337 = vmul.f32 %v1302, %v1335
        %v1338 = vmul.f32 %v1303, %v1335
        %v1339 = vmul.f32 %v1304, %v1335
        %v1340 = vmul.f32 %v1305, %v1335
        %v1341 = vmul.f32 %v1306, %v1335
        %v1342 = vmul.f32 %v1307, %v1335
        %v1343 = vmul.f32 %v1308, %v1335
        %v1344 = vmul.f32 %v1309, %v1335
        %v1345 = vmul.f32 %v1310, %v1335
        %v1346 = vmul.f32 %v1311, %v1335
        %v1347 = vmul.f32 %v1312, %v1335
        %v1348 = vmul.f32 %v1313, %v1335
        %v1349 = vmul.f32 %v1314, %v1335
        %v1350 = vmul.f32 %v1315, %v1335
        %v1351 = vmul.f32 %v1316, %v1335
        %v1352 = vmul.f32 %v1317, %v1335
        %v1353 = vmul.f32 %v1318, %v1335
        %v1354 = vmul.f32 %v1319, %v1335
        %v1355 = vmul.f32 %v1320, %v1335
        %v1356 = vmul.f32 %v1321, %v1335
        %v1357 = vmul.f32 %v1322, %v1335
        %v1358 = vmul.f32 %v1323, %v1335
        %v1359 = vmul.f32 %v1324, %v1335
        %v1360 = vmul.f32 %v1325, %v1335
        %v1361 = vmul.f32 %v1326, %v1335
        %v1362 = vmul.f32 %v1327, %v1335
        %v1363 = vmul.f32 %v1328, %v1335
        %v1364 = vmul.f32 %v1329, %v1335
        %v1365 = vmul.f32 %v1330, %v1335
        %v1366 = vmul.f32 %v1331, %v1335
        %v1367 = vmul.f32 %v1332, %v1335
        %v1368 = vmul.f32 %v1333, %v1335
        %v1370 = vperm.slane %v557, 0
        %v1372 = vadd.f32 %v1337, %v1370
        %v1373 = vadd.f32 %v1338, %v1370
        %v1374 = vadd.f32 %v1339, %v1370
        %v1375 = vadd.f32 %v1340, %v1370
        %v1376 = vadd.f32 %v1341, %v1370
        %v1377 = vadd.f32 %v1342, %v1370
        %v1378 = vadd.f32 %v1343, %v1370
        %v1379 = vadd.f32 %v1344, %v1370
        %v1380 = vadd.f32 %v1345, %v1370
        %v1381 = vadd.f32 %v1346, %v1370
        %v1382 = vadd.f32 %v1347, %v1370
        %v1383 = vadd.f32 %v1348, %v1370
        %v1384 = vadd.f32 %v1349, %v1370
        %v1385 = vadd.f32 %v1350, %v1370
        %v1386 = vadd.f32 %v1351, %v1370
        %v1387 = vadd.f32 %v1352, %v1370
        %v1388 = vadd.f32 %v1353, %v1370
        %v1389 = vadd.f32 %v1354, %v1370
        %v1390 = vadd.f32 %v1355, %v1370
        %v1391 = vadd.f32 %v1356, %v1370
        %v1392 = vadd.f32 %v1357, %v1370
        %v1393 = vadd.f32 %v1358, %v1370
        %v1394 = vadd.f32 %v1359, %v1370
        %v1395 = vadd.f32 %v1360, %v1370
        %v1396 = vadd.f32 %v1361, %v1370
        %v1397 = vadd.f32 %v1362, %v1370
        %v1398 = vadd.f32 %v1363, %v1370
        %v1399 = vadd.f32 %v1364, %v1370
        %v1400 = vadd.f32 %v1365, %v1370
        %v1401 = vadd.f32 %v1366, %v1370
        %v1402 = vadd.f32 %v1367, %v1370
        %v1403 = vadd.f32 %v1368, %v1370
        %v1404 = vld [vmem:[%s3] sm:$0xf]
        %v1405 = vld [vmem:[%s4] sm:$0x1]
        %v1407 = vperm.slane %v1405, 0
        %v1409 = vadd.f32 %v1407, 0.0
        %1411 = vset.pattern.permute.xlu0 0
        %1412 = vperm.xlu0 %1411, %v1372
        %v1413 = vpop.permute.xlu0 %1412
        %1416 = vset.pattern.permute.xlu0 0
        %1417 = vperm.xlu0 %1416, %v1373
        %v1418 = vpop.permute.xlu0 %1417
        %1421 = vset.pattern.permute.xlu0 0
        %1422 = vperm.xlu0 %1421, %v1374
        %v1423 = vpop.permute.xlu0 %1422
        %1426 = vset.pattern.permute.xlu0 0
        %1427 = vperm.xlu0 %1426, %v1375
        %v1428 = vpop.permute.xlu0 %1427
        %1431 = vset.pattern.permute.xlu0 0
        %1432 = vperm.xlu0 %1431, %v1376
        %v1433 = vpop.permute.xlu0 %1432
        %1436 = vset.pattern.permute.xlu0 0
        %1437 = vperm.xlu0 %1436, %v1377
        %v1438 = vpop.permute.xlu0 %1437
        %1441 = vset.pattern.permute.xlu0 0
        %1442 = vperm.xlu0 %1441, %v1378
        %v1443 = vpop.permute.xlu0 %1442
        %1446 = vset.pattern.permute.xlu0 0
        %1447 = vperm.xlu0 %1446, %v1379
        %v1448 = vpop.permute.xlu0 %1447
        %1451 = vset.pattern.permute.xlu0 0
        %1452 = vperm.xlu0 %1451, %v1380
        %v1453 = vpop.permute.xlu0 %1452
        %1456 = vset.pattern.permute.xlu0 0
        %1457 = vperm.xlu0 %1456, %v1381
        %v1458 = vpop.permute.xlu0 %1457
        %1461 = vset.pattern.permute.xlu0 0
        %1462 = vperm.xlu0 %1461, %v1382
        %v1463 = vpop.permute.xlu0 %1462
        %1466 = vset.pattern.permute.xlu0 0
        %1467 = vperm.xlu0 %1466, %v1383
        %v1468 = vpop.permute.xlu0 %1467
        %1471 = vset.pattern.permute.xlu0 0
        %1472 = vperm.xlu0 %1471, %v1384
        %v1473 = vpop.permute.xlu0 %1472
        %1476 = vset.pattern.permute.xlu0 0
        %1477 = vperm.xlu0 %1476, %v1385
        %v1478 = vpop.permute.xlu0 %1477
        %1481 = vset.pattern.permute.xlu0 0
        %1482 = vperm.xlu0 %1481, %v1386
        %v1483 = vpop.permute.xlu0 %1482
        %1486 = vset.pattern.permute.xlu0 0
        %1487 = vperm.xlu0 %1486, %v1387
        %v1488 = vpop.permute.xlu0 %1487
        %1491 = vset.pattern.permute.xlu0 0
        %1492 = vperm.xlu0 %1491, %v1388
        %v1493 = vpop.permute.xlu0 %1492
        %1496 = vset.pattern.permute.xlu0 0
        %1497 = vperm.xlu0 %1496, %v1389
        %v1498 = vpop.permute.xlu0 %1497
        %1501 = vset.pattern.permute.xlu0 0
        %1502 = vperm.xlu0 %1501, %v1390
        %v1503 = vpop.permute.xlu0 %1502
        %1506 = vset.pattern.permute.xlu0 0
        %1507 = vperm.xlu0 %1506, %v1391
        %v1508 = vpop.permute.xlu0 %1507
        %1511 = vset.pattern.permute.xlu0 0
        %1512 = vperm.xlu0 %1511, %v1392
        %v1513 = vpop.permute.xlu0 %1512
        %1516 = vset.pattern.permute.xlu0 0
        %1517 = vperm.xlu0 %1516, %v1393
        %v1518 = vpop.permute.xlu0 %1517
        %1521 = vset.pattern.permute.xlu0 0
        %1522 = vperm.xlu0 %1521, %v1394
        %v1523 = vpop.permute.xlu0 %1522
        %1526 = vset.pattern.permute.xlu0 0
        %1527 = vperm.xlu0 %1526, %v1395
        %v1528 = vpop.permute.xlu0 %1527
        %1531 = vset.pattern.permute.xlu0 0
        %1532 = vperm.xlu0 %1531, %v1396
        %v1533 = vpop.permute.xlu0 %1532
        %1536 = vset.pattern.permute.xlu0 0
        %1537 = vperm.xlu0 %1536, %v1397
        %v1538 = vpop.permute.xlu0 %1537
        %1541 = vset.pattern.permute.xlu0 0
        %1542 = vperm.xlu0 %1541, %v1398
        %v1543 = vpop.permute.xlu0 %1542
        %1546 = vset.pattern.permute.xlu0 0
        %1547 = vperm.xlu0 %1546, %v1399
        %v1548 = vpop.permute.xlu0 %1547
        %1551 = vset.pattern.permute.xlu0 0
        %1552 = vperm.xlu0 %1551, %v1400
        %v1553 = vpop.permute.xlu0 %1552
        %1556 = vset.pattern.permute.xlu0 0
        %1557 = vperm.xlu0 %1556, %v1401
        %v1558 = vpop.permute.xlu0 %1557
        %1561 = vset.pattern.permute.xlu0 0
        %1562 = vperm.xlu0 %1561, %v1402
        %v1563 = vpop.permute.xlu0 %1562
        %1566 = vset.pattern.permute.xlu0 0
        %1567 = vperm.xlu0 %1566, %v1403
        %v1568 = vpop.permute.xlu0 %1567
        %v1570 = vperm.slane %v1404, 0
        %v1571 = vmul.f32 %v1413, %v1570
        %v1572 = vmul.f32 %v1418, %v1570
        %v1573 = vmul.f32 %v1423, %v1570
        %v1574 = vmul.f32 %v1428, %v1570
        %v1575 = vmul.f32 %v1433, %v1570
        %v1576 = vmul.f32 %v1438, %v1570
        %v1577 = vmul.f32 %v1443, %v1570
        %v1578 = vmul.f32 %v1448, %v1570
        %v1579 = vmul.f32 %v1453, %v1570
        %v1580 = vmul.f32 %v1458, %v1570
        %v1581 = vmul.f32 %v1463, %v1570
        %v1582 = vmul.f32 %v1468, %v1570
        %v1583 = vmul.f32 %v1473, %v1570
        %v1584 = vmul.f32 %v1478, %v1570
        %v1585 = vmul.f32 %v1483, %v1570
        %v1586 = vmul.f32 %v1488, %v1570
        %v1587 = vmul.f32 %v1493, %v1570
        %v1588 = vmul.f32 %v1498, %v1570
        %v1589 = vmul.f32 %v1503, %v1570
        %v1590 = vmul.f32 %v1508, %v1570
        %v1591 = vmul.f32 %v1513, %v1570
        %v1592 = vmul.f32 %v1518, %v1570
        %v1593 = vmul.f32 %v1523, %v1570
        %v1594 = vmul.f32 %v1528, %v1570
        %v1595 = vmul.f32 %v1533, %v1570
        %v1596 = vmul.f32 %v1538, %v1570
        %v1597 = vmul.f32 %v1543, %v1570
        %v1598 = vmul.f32 %v1548, %v1570
        %v1599 = vmul.f32 %v1553, %v1570
        %v1600 = vmul.f32 %v1558, %v1570
        %v1601 = vmul.f32 %v1563, %v1570
        %v1602 = vmul.f32 %v1568, %v1570
        %v1603 = vadd.f32 %v1409, %v1571
        %v1604 = vadd.f32 %v1409, %v1572
        %v1605 = vadd.f32 %v1409, %v1573
        %v1606 = vadd.f32 %v1409, %v1574
        %v1607 = vadd.f32 %v1409, %v1575
        %v1608 = vadd.f32 %v1409, %v1576
        %v1609 = vadd.f32 %v1409, %v1577
        %v1610 = vadd.f32 %v1409, %v1578
        %v1611 = vadd.f32 %v1409, %v1579
        %v1612 = vadd.f32 %v1409, %v1580
        %v1613 = vadd.f32 %v1409, %v1581
        %v1614 = vadd.f32 %v1409, %v1582
        %v1615 = vadd.f32 %v1409, %v1583
        %v1616 = vadd.f32 %v1409, %v1584
        %v1617 = vadd.f32 %v1409, %v1585
        %v1618 = vadd.f32 %v1409, %v1586
        %v1619 = vadd.f32 %v1409, %v1587
        %v1620 = vadd.f32 %v1409, %v1588
        %v1621 = vadd.f32 %v1409, %v1589
        %v1622 = vadd.f32 %v1409, %v1590
        %v1623 = vadd.f32 %v1409, %v1591
        %v1624 = vadd.f32 %v1409, %v1592
        %v1625 = vadd.f32 %v1409, %v1593
        %v1626 = vadd.f32 %v1409, %v1594
        %v1627 = vadd.f32 %v1409, %v1595
        %v1628 = vadd.f32 %v1409, %v1596
        %v1629 = vadd.f32 %v1409, %v1597
        %v1630 = vadd.f32 %v1409, %v1598
        %v1631 = vadd.f32 %v1409, %v1599
        %v1632 = vadd.f32 %v1409, %v1600
        %v1633 = vadd.f32 %v1409, %v1601
        %v1634 = vadd.f32 %v1409, %v1602
        %1635 = vset.pattern.permute.xlu0 1
        %1636 = vperm.xlu0 %1635, %v1372
        %v1637 = vpop.permute.xlu0 %1636
        %1639 = vset.pattern.permute.xlu0 1
        %1640 = vperm.xlu0 %1639, %v1373
        %v1641 = vpop.permute.xlu0 %1640
        %1643 = vset.pattern.permute.xlu0 1
        %1644 = vperm.xlu0 %1643, %v1374
        %v1645 = vpop.permute.xlu0 %1644
        %1647 = vset.pattern.permute.xlu0 1
        %1648 = vperm.xlu0 %1647, %v1375
        %v1649 = vpop.permute.xlu0 %1648
        %1651 = vset.pattern.permute.xlu0 1
        %1652 = vperm.xlu0 %1651, %v1376
        %v1653 = vpop.permute.xlu0 %1652
        %1655 = vset.pattern.permute.xlu0 1
        %1656 = vperm.xlu0 %1655, %v1377
        %v1657 = vpop.permute.xlu0 %1656
        %1659 = vset.pattern.permute.xlu0 1
        %1660 = vperm.xlu0 %1659, %v1378
        %v1661 = vpop.permute.xlu0 %1660
        %1663 = vset.pattern.permute.xlu0 1
        %1664 = vperm.xlu0 %1663, %v1379
        %v1665 = vpop.permute.xlu0 %1664
        %1667 = vset.pattern.permute.xlu0 1
        %1668 = vperm.xlu0 %1667, %v1380
        %v1669 = vpop.permute.xlu0 %1668
        %1671 = vset.pattern.permute.xlu0 1
        %1672 = vperm.xlu0 %1671, %v1381
        %v1673 = vpop.permute.xlu0 %1672
        %1675 = vset.pattern.permute.xlu0 1
        %1676 = vperm.xlu0 %1675, %v1382
        %v1677 = vpop.permute.xlu0 %1676
        %1679 = vset.pattern.permute.xlu0 1
        %1680 = vperm.xlu0 %1679, %v1383
        %v1681 = vpop.permute.xlu0 %1680
        %1683 = vset.pattern.permute.xlu0 1
        %1684 = vperm.xlu0 %1683, %v1384
        %v1685 = vpop.permute.xlu0 %1684
        %1687 = vset.pattern.permute.xlu0 1
        %1688 = vperm.xlu0 %1687, %v1385
        %v1689 = vpop.permute.xlu0 %1688
        %1691 = vset.pattern.permute.xlu0 1
        %1692 = vperm.xlu0 %1691, %v1386
        %v1693 = vpop.permute.xlu0 %1692
        %1695 = vset.pattern.permute.xlu0 1
        %1696 = vperm.xlu0 %1695, %v1387
        %v1697 = vpop.permute.xlu0 %1696
        %1699 = vset.pattern.permute.xlu0 1
        %1700 = vperm.xlu0 %1699, %v1388
        %v1701 = vpop.permute.xlu0 %1700
        %1703 = vset.pattern.permute.xlu0 1
        %1704 = vperm.xlu0 %1703, %v1389
        %v1705 = vpop.permute.xlu0 %1704
        %1707 = vset.pattern.permute.xlu0 1
        %1708 = vperm.xlu0 %1707, %v1390
        %v1709 = vpop.permute.xlu0 %1708
        %1711 = vset.pattern.permute.xlu0 1
        %1712 = vperm.xlu0 %1711, %v1391
        %v1713 = vpop.permute.xlu0 %1712
        %1715 = vset.pattern.permute.xlu0 1
        %1716 = vperm.xlu0 %1715, %v1392
        %v1717 = vpop.permute.xlu0 %1716
        %1719 = vset.pattern.permute.xlu0 1
        %1720 = vperm.xlu0 %1719, %v1393
        %v1721 = vpop.permute.xlu0 %1720
        %1723 = vset.pattern.permute.xlu0 1
        %1724 = vperm.xlu0 %1723, %v1394
        %v1725 = vpop.permute.xlu0 %1724
        %1727 = vset.pattern.permute.xlu0 1
        %1728 = vperm.xlu0 %1727, %v1395
        %v1729 = vpop.permute.xlu0 %1728
        %1731 = vset.pattern.permute.xlu0 1
        %1732 = vperm.xlu0 %1731, %v1396
        %v1733 = vpop.permute.xlu0 %1732
        %1735 = vset.pattern.permute.xlu0 1
        %1736 = vperm.xlu0 %1735, %v1397
        %v1737 = vpop.permute.xlu0 %1736
        %1739 = vset.pattern.permute.xlu0 1
        %1740 = vperm.xlu0 %1739, %v1398
        %v1741 = vpop.permute.xlu0 %1740
        %1743 = vset.pattern.permute.xlu0 1
        %1744 = vperm.xlu0 %1743, %v1399
        %v1745 = vpop.permute.xlu0 %1744
        %1747 = vset.pattern.permute.xlu0 1
        %1748 = vperm.xlu0 %1747, %v1400
        %v1749 = vpop.permute.xlu0 %1748
        %1751 = vset.pattern.permute.xlu0 1
        %1752 = vperm.xlu0 %1751, %v1401
        %v1753 = vpop.permute.xlu0 %1752
        %1755 = vset.pattern.permute.xlu0 1
        %1756 = vperm.xlu0 %1755, %v1402
        %v1757 = vpop.permute.xlu0 %1756
        %1759 = vset.pattern.permute.xlu0 1
        %1760 = vperm.xlu0 %1759, %v1403
        %v1761 = vpop.permute.xlu0 %1760
        %v1763 = vperm.slane %v1404, 1
        %v1764 = vmul.f32 %v1637, %v1763
        %v1765 = vmul.f32 %v1641, %v1763
        %v1766 = vmul.f32 %v1645, %v1763
        %v1767 = vmul.f32 %v1649, %v1763
        %v1768 = vmul.f32 %v1653, %v1763
        %v1769 = vmul.f32 %v1657, %v1763
        %v1770 = vmul.f32 %v1661, %v1763
        %v1771 = vmul.f32 %v1665, %v1763
        %v1772 = vmul.f32 %v1669, %v1763
        %v1773 = vmul.f32 %v1673, %v1763
        %v1774 = vmul.f32 %v1677, %v1763
        %v1775 = vmul.f32 %v1681, %v1763
        %v1776 = vmul.f32 %v1685, %v1763
        %v1777 = vmul.f32 %v1689, %v1763
        %v1778 = vmul.f32 %v1693, %v1763
        %v1779 = vmul.f32 %v1697, %v1763
        %v1780 = vmul.f32 %v1701, %v1763
        %v1781 = vmul.f32 %v1705, %v1763
        %v1782 = vmul.f32 %v1709, %v1763
        %v1783 = vmul.f32 %v1713, %v1763
        %v1784 = vmul.f32 %v1717, %v1763
        %v1785 = vmul.f32 %v1721, %v1763
        %v1786 = vmul.f32 %v1725, %v1763
        %v1787 = vmul.f32 %v1729, %v1763
        %v1788 = vmul.f32 %v1733, %v1763
        %v1789 = vmul.f32 %v1737, %v1763
        %v1790 = vmul.f32 %v1741, %v1763
        %v1791 = vmul.f32 %v1745, %v1763
        %v1792 = vmul.f32 %v1749, %v1763
        %v1793 = vmul.f32 %v1753, %v1763
        %v1794 = vmul.f32 %v1757, %v1763
        %v1795 = vmul.f32 %v1761, %v1763
        %v1796 = vadd.f32 %v1603, %v1764
        %v1797 = vadd.f32 %v1604, %v1765
        %v1798 = vadd.f32 %v1605, %v1766
        %v1799 = vadd.f32 %v1606, %v1767
        %v1800 = vadd.f32 %v1607, %v1768
        %v1801 = vadd.f32 %v1608, %v1769
        %v1802 = vadd.f32 %v1609, %v1770
        %v1803 = vadd.f32 %v1610, %v1771
        %v1804 = vadd.f32 %v1611, %v1772
        %v1805 = vadd.f32 %v1612, %v1773
        %v1806 = vadd.f32 %v1613, %v1774
        %v1807 = vadd.f32 %v1614, %v1775
        %v1808 = vadd.f32 %v1615, %v1776
        %v1809 = vadd.f32 %v1616, %v1777
        %v1810 = vadd.f32 %v1617, %v1778
        %v1811 = vadd.f32 %v1618, %v1779
        %v1812 = vadd.f32 %v1619, %v1780
        %v1813 = vadd.f32 %v1620, %v1781
        %v1814 = vadd.f32 %v1621, %v1782
        %v1815 = vadd.f32 %v1622, %v1783
        %v1816 = vadd.f32 %v1623, %v1784
        %v1817 = vadd.f32 %v1624, %v1785
        %v1818 = vadd.f32 %v1625, %v1786
        %v1819 = vadd.f32 %v1626, %v1787
        %v1820 = vadd.f32 %v1627, %v1788
        %v1821 = vadd.f32 %v1628, %v1789
        %v1822 = vadd.f32 %v1629, %v1790
        %v1823 = vadd.f32 %v1630, %v1791
        %v1824 = vadd.f32 %v1631, %v1792
        %v1825 = vadd.f32 %v1632, %v1793
        %v1826 = vadd.f32 %v1633, %v1794
        %v1827 = vadd.f32 %v1634, %v1795
        %1828 = vset.pattern.permute.xlu0 2
        %1829 = vperm.xlu0 %1828, %v1372
        %v1830 = vpop.permute.xlu0 %1829
        %1832 = vset.pattern.permute.xlu0 2
        %1833 = vperm.xlu0 %1832, %v1373
        %v1834 = vpop.permute.xlu0 %1833
        %1836 = vset.pattern.permute.xlu0 2
        %1837 = vperm.xlu0 %1836, %v1374
        %v1838 = vpop.permute.xlu0 %1837
        %1840 = vset.pattern.permute.xlu0 2
        %1841 = vperm.xlu0 %1840, %v1375
        %v1842 = vpop.permute.xlu0 %1841
        %1844 = vset.pattern.permute.xlu0 2
        %1845 = vperm.xlu0 %1844, %v1376
        %v1846 = vpop.permute.xlu0 %1845
        %1848 = vset.pattern.permute.xlu0 2
        %1849 = vperm.xlu0 %1848, %v1377
        %v1850 = vpop.permute.xlu0 %1849
        %1852 = vset.pattern.permute.xlu0 2
        %1853 = vperm.xlu0 %1852, %v1378
        %v1854 = vpop.permute.xlu0 %1853
        %1856 = vset.pattern.permute.xlu0 2
        %1857 = vperm.xlu0 %1856, %v1379
        %v1858 = vpop.permute.xlu0 %1857
        %1860 = vset.pattern.permute.xlu0 2
        %1861 = vperm.xlu0 %1860, %v1380
        %v1862 = vpop.permute.xlu0 %1861
        %1864 = vset.pattern.permute.xlu0 2
        %1865 = vperm.xlu0 %1864, %v1381
        %v1866 = vpop.permute.xlu0 %1865
        %1868 = vset.pattern.permute.xlu0 2
        %1869 = vperm.xlu0 %1868, %v1382
        %v1870 = vpop.permute.xlu0 %1869
        %1872 = vset.pattern.permute.xlu0 2
        %1873 = vperm.xlu0 %1872, %v1383
        %v1874 = vpop.permute.xlu0 %1873
        %1876 = vset.pattern.permute.xlu0 2
        %1877 = vperm.xlu0 %1876, %v1384
        %v1878 = vpop.permute.xlu0 %1877
        %1880 = vset.pattern.permute.xlu0 2
        %1881 = vperm.xlu0 %1880, %v1385
        %v1882 = vpop.permute.xlu0 %1881
        %1884 = vset.pattern.permute.xlu0 2
        %1885 = vperm.xlu0 %1884, %v1386
        %v1886 = vpop.permute.xlu0 %1885
        %1888 = vset.pattern.permute.xlu0 2
        %1889 = vperm.xlu0 %1888, %v1387
        %v1890 = vpop.permute.xlu0 %1889
        %1892 = vset.pattern.permute.xlu0 2
        %1893 = vperm.xlu0 %1892, %v1388
        %v1894 = vpop.permute.xlu0 %1893
        %1896 = vset.pattern.permute.xlu0 2
        %1897 = vperm.xlu0 %1896, %v1389
        %v1898 = vpop.permute.xlu0 %1897
        %1900 = vset.pattern.permute.xlu0 2
        %1901 = vperm.xlu0 %1900, %v1390
        %v1902 = vpop.permute.xlu0 %1901
        %1904 = vset.pattern.permute.xlu0 2
        %1905 = vperm.xlu0 %1904, %v1391
        %v1906 = vpop.permute.xlu0 %1905
        %1908 = vset.pattern.permute.xlu0 2
        %1909 = vperm.xlu0 %1908, %v1392
        %v1910 = vpop.permute.xlu0 %1909
        %1912 = vset.pattern.permute.xlu0 2
        %1913 = vperm.xlu0 %1912, %v1393
        %v1914 = vpop.permute.xlu0 %1913
        %1916 = vset.pattern.permute.xlu0 2
        %1917 = vperm.xlu0 %1916, %v1394
        %v1918 = vpop.permute.xlu0 %1917
        %1920 = vset.pattern.permute.xlu0 2
        %1921 = vperm.xlu0 %1920, %v1395
        %v1922 = vpop.permute.xlu0 %1921
        %1924 = vset.pattern.permute.xlu0 2
        %1925 = vperm.xlu0 %1924, %v1396
        %v1926 = vpop.permute.xlu0 %1925
        %1928 = vset.pattern.permute.xlu0 2
        %1929 = vperm.xlu0 %1928, %v1397
        %v1930 = vpop.permute.xlu0 %1929
        %1932 = vset.pattern.permute.xlu0 2
        %1933 = vperm.xlu0 %1932, %v1398
        %v1934 = vpop.permute.xlu0 %1933
        %1936 = vset.pattern.permute.xlu0 2
        %1937 = vperm.xlu0 %1936, %v1399
        %v1938 = vpop.permute.xlu0 %1937
        %1940 = vset.pattern.permute.xlu0 2
        %1941 = vperm.xlu0 %1940, %v1400
        %v1942 = vpop.permute.xlu0 %1941
        %1944 = vset.pattern.permute.xlu0 2
        %1945 = vperm.xlu0 %1944, %v1401
        %v1946 = vpop.permute.xlu0 %1945
        %1948 = vset.pattern.permute.xlu0 2
        %1949 = vperm.xlu0 %1948, %v1402
        %v1950 = vpop.permute.xlu0 %1949
        %1952 = vset.pattern.permute.xlu0 2
        %1953 = vperm.xlu0 %1952, %v1403
        %v1954 = vpop.permute.xlu0 %1953
        %v1956 = vperm.slane %v1404, 2
        %v1957 = vmul.f32 %v1830, %v1956
        %v1958 = vmul.f32 %v1834, %v1956
        %v1959 = vmul.f32 %v1838, %v1956
        %v1960 = vmul.f32 %v1842, %v1956
        %v1961 = vmul.f32 %v1846, %v1956
        %v1962 = vmul.f32 %v1850, %v1956
        %v1963 = vmul.f32 %v1854, %v1956
        %v1964 = vmul.f32 %v1858, %v1956
        %v1965 = vmul.f32 %v1862, %v1956
        %v1966 = vmul.f32 %v1866, %v1956
        %v1967 = vmul.f32 %v1870, %v1956
        %v1968 = vmul.f32 %v1874, %v1956
        %v1969 = vmul.f32 %v1878, %v1956
        %v1970 = vmul.f32 %v1882, %v1956
        %v1971 = vmul.f32 %v1886, %v1956
        %v1972 = vmul.f32 %v1890, %v1956
        %v1973 = vmul.f32 %v1894, %v1956
        %v1974 = vmul.f32 %v1898, %v1956
        %v1975 = vmul.f32 %v1902, %v1956
        %v1976 = vmul.f32 %v1906, %v1956
        %v1977 = vmul.f32 %v1910, %v1956
        %v1978 = vmul.f32 %v1914, %v1956
        %v1979 = vmul.f32 %v1918, %v1956
        %v1980 = vmul.f32 %v1922, %v1956
        %v1981 = vmul.f32 %v1926, %v1956
        %v1982 = vmul.f32 %v1930, %v1956
        %v1983 = vmul.f32 %v1934, %v1956
        %v1984 = vmul.f32 %v1938, %v1956
        %v1985 = vmul.f32 %v1942, %v1956
        %v1986 = vmul.f32 %v1946, %v1956
        %v1987 = vmul.f32 %v1950, %v1956
        %v1988 = vmul.f32 %v1954, %v1956
        %v1989 = vadd.f32 %v1796, %v1957
        %v1990 = vadd.f32 %v1797, %v1958
        %v1991 = vadd.f32 %v1798, %v1959
        %v1992 = vadd.f32 %v1799, %v1960
        %v1993 = vadd.f32 %v1800, %v1961
        %v1994 = vadd.f32 %v1801, %v1962
        %v1995 = vadd.f32 %v1802, %v1963
        %v1996 = vadd.f32 %v1803, %v1964
        %v1997 = vadd.f32 %v1804, %v1965
        %v1998 = vadd.f32 %v1805, %v1966
        %v1999 = vadd.f32 %v1806, %v1967
        %v2000 = vadd.f32 %v1807, %v1968
        %v2001 = vadd.f32 %v1808, %v1969
        %v2002 = vadd.f32 %v1809, %v1970
        %v2003 = vadd.f32 %v1810, %v1971
        %v2004 = vadd.f32 %v1811, %v1972
        %v2005 = vadd.f32 %v1812, %v1973
        %v2006 = vadd.f32 %v1813, %v1974
        %v2007 = vadd.f32 %v1814, %v1975
        %v2008 = vadd.f32 %v1815, %v1976
        %v2009 = vadd.f32 %v1816, %v1977
        %v2010 = vadd.f32 %v1817, %v1978
        %v2011 = vadd.f32 %v1818, %v1979
        %v2012 = vadd.f32 %v1819, %v1980
        %v2013 = vadd.f32 %v1820, %v1981
        %v2014 = vadd.f32 %v1821, %v1982
        %v2015 = vadd.f32 %v1822, %v1983
        %v2016 = vadd.f32 %v1823, %v1984
        %v2017 = vadd.f32 %v1824, %v1985
        %v2018 = vadd.f32 %v1825, %v1986
        %v2019 = vadd.f32 %v1826, %v1987
        %v2020 = vadd.f32 %v1827, %v1988
        %2021 = vset.pattern.permute.xlu0 3
        %2022 = vperm.xlu0 %2021, %v1372
        %v2023 = vpop.permute.xlu0 %2022
        %2025 = vset.pattern.permute.xlu0 3
        %2026 = vperm.xlu0 %2025, %v1373
        %v2027 = vpop.permute.xlu0 %2026
        %2029 = vset.pattern.permute.xlu0 3
        %2030 = vperm.xlu0 %2029, %v1374
        %v2031 = vpop.permute.xlu0 %2030
        %2033 = vset.pattern.permute.xlu0 3
        %2034 = vperm.xlu0 %2033, %v1375
        %v2035 = vpop.permute.xlu0 %2034
        %2037 = vset.pattern.permute.xlu0 3
        %2038 = vperm.xlu0 %2037, %v1376
        %v2039 = vpop.permute.xlu0 %2038
        %2041 = vset.pattern.permute.xlu0 3
        %2042 = vperm.xlu0 %2041, %v1377
        %v2043 = vpop.permute.xlu0 %2042
        %2045 = vset.pattern.permute.xlu0 3
        %2046 = vperm.xlu0 %2045, %v1378
        %v2047 = vpop.permute.xlu0 %2046
        %2049 = vset.pattern.permute.xlu0 3
        %2050 = vperm.xlu0 %2049, %v1379
        %v2051 = vpop.permute.xlu0 %2050
        %2053 = vset.pattern.permute.xlu0 3
        %2054 = vperm.xlu0 %2053, %v1380
        %v2055 = vpop.permute.xlu0 %2054
        %2057 = vset.pattern.permute.xlu0 3
        %2058 = vperm.xlu0 %2057, %v1381
        %v2059 = vpop.permute.xlu0 %2058
        %2061 = vset.pattern.permute.xlu0 3
        %2062 = vperm.xlu0 %2061, %v1382
        %v2063 = vpop.permute.xlu0 %2062
        %2065 = vset.pattern.permute.xlu0 3
        %2066 = vperm.xlu0 %2065, %v1383
        %v2067 = vpop.permute.xlu0 %2066
        %2069 = vset.pattern.permute.xlu0 3
        %2070 = vperm.xlu0 %2069, %v1384
        %v2071 = vpop.permute.xlu0 %2070
        %2073 = vset.pattern.permute.xlu0 3
        %2074 = vperm.xlu0 %2073, %v1385
        %v2075 = vpop.permute.xlu0 %2074
        %2077 = vset.pattern.permute.xlu0 3
        %2078 = vperm.xlu0 %2077, %v1386
        %v2079 = vpop.permute.xlu0 %2078
        %2081 = vset.pattern.permute.xlu0 3
        %2082 = vperm.xlu0 %2081, %v1387
        %v2083 = vpop.permute.xlu0 %2082
        %2085 = vset.pattern.permute.xlu0 3
        %2086 = vperm.xlu0 %2085, %v1388
        %v2087 = vpop.permute.xlu0 %2086
        %2089 = vset.pattern.permute.xlu0 3
        %2090 = vperm.xlu0 %2089, %v1389
        %v2091 = vpop.permute.xlu0 %2090
        %2093 = vset.pattern.permute.xlu0 3
        %2094 = vperm.xlu0 %2093, %v1390
        %v2095 = vpop.permute.xlu0 %2094
        %2097 = vset.pattern.permute.xlu0 3
        %2098 = vperm.xlu0 %2097, %v1391
        %v2099 = vpop.permute.xlu0 %2098
        %2101 = vset.pattern.permute.xlu0 3
        %2102 = vperm.xlu0 %2101, %v1392
        %v2103 = vpop.permute.xlu0 %2102
        %2105 = vset.pattern.permute.xlu0 3
        %2106 = vperm.xlu0 %2105, %v1393
        %v2107 = vpop.permute.xlu0 %2106
        %2109 = vset.pattern.permute.xlu0 3
        %2110 = vperm.xlu0 %2109, %v1394
        %v2111 = vpop.permute.xlu0 %2110
        %2113 = vset.pattern.permute.xlu0 3
        %2114 = vperm.xlu0 %2113, %v1395
        %v2115 = vpop.permute.xlu0 %2114
        %2117 = vset.pattern.permute.xlu0 3
        %2118 = vperm.xlu0 %2117, %v1396
        %v2119 = vpop.permute.xlu0 %2118
        %2121 = vset.pattern.permute.xlu0 3
        %2122 = vperm.xlu0 %2121, %v1397
        %v2123 = vpop.permute.xlu0 %2122
        %2125 = vset.pattern.permute.xlu0 3
        %2126 = vperm.xlu0 %2125, %v1398
        %v2127 = vpop.permute.xlu0 %2126
        %2129 = vset.pattern.permute.xlu0 3
        %2130 = vperm.xlu0 %2129, %v1399
        %v2131 = vpop.permute.xlu0 %2130
        %2133 = vset.pattern.permute.xlu0 3
        %2134 = vperm.xlu0 %2133, %v1400
        %v2135 = vpop.permute.xlu0 %2134
        %2137 = vset.pattern.permute.xlu0 3
        %2138 = vperm.xlu0 %2137, %v1401
        %v2139 = vpop.permute.xlu0 %2138
        %2141 = vset.pattern.permute.xlu0 3
        %2142 = vperm.xlu0 %2141, %v1402
        %v2143 = vpop.permute.xlu0 %2142
        %2145 = vset.pattern.permute.xlu0 3
        %2146 = vperm.xlu0 %2145, %v1403
        %v2147 = vpop.permute.xlu0 %2146
        %v2149 = vperm.slane %v1404, 3
        %v2150 = vmul.f32 %v2023, %v2149
        %v2151 = vmul.f32 %v2027, %v2149
        %v2152 = vmul.f32 %v2031, %v2149
        %v2153 = vmul.f32 %v2035, %v2149
        %v2154 = vmul.f32 %v2039, %v2149
        %v2155 = vmul.f32 %v2043, %v2149
        %v2156 = vmul.f32 %v2047, %v2149
        %v2157 = vmul.f32 %v2051, %v2149
        %v2158 = vmul.f32 %v2055, %v2149
        %v2159 = vmul.f32 %v2059, %v2149
        %v2160 = vmul.f32 %v2063, %v2149
        %v2161 = vmul.f32 %v2067, %v2149
        %v2162 = vmul.f32 %v2071, %v2149
        %v2163 = vmul.f32 %v2075, %v2149
        %v2164 = vmul.f32 %v2079, %v2149
        %v2165 = vmul.f32 %v2083, %v2149
        %v2166 = vmul.f32 %v2087, %v2149
        %v2167 = vmul.f32 %v2091, %v2149
        %v2168 = vmul.f32 %v2095, %v2149
        %v2169 = vmul.f32 %v2099, %v2149
        %v2170 = vmul.f32 %v2103, %v2149
        %v2171 = vmul.f32 %v2107, %v2149
        %v2172 = vmul.f32 %v2111, %v2149
        %v2173 = vmul.f32 %v2115, %v2149
        %v2174 = vmul.f32 %v2119, %v2149
        %v2175 = vmul.f32 %v2123, %v2149
        %v2176 = vmul.f32 %v2127, %v2149
        %v2177 = vmul.f32 %v2131, %v2149
        %v2178 = vmul.f32 %v2135, %v2149
        %v2179 = vmul.f32 %v2139, %v2149
        %v2180 = vmul.f32 %v2143, %v2149
        %v2181 = vmul.f32 %v2147, %v2149
        %v2182 = vadd.f32 %v1989, %v2150
        %v2183 = vadd.f32 %v1990, %v2151
        %v2184 = vadd.f32 %v1991, %v2152
        %v2185 = vadd.f32 %v1992, %v2153
        %v2186 = vadd.f32 %v1993, %v2154
        %v2187 = vadd.f32 %v1994, %v2155
        %v2188 = vadd.f32 %v1995, %v2156
        %v2189 = vadd.f32 %v1996, %v2157
        %v2190 = vadd.f32 %v1997, %v2158
        %v2191 = vadd.f32 %v1998, %v2159
        %v2192 = vadd.f32 %v1999, %v2160
        %v2193 = vadd.f32 %v2000, %v2161
        %v2194 = vadd.f32 %v2001, %v2162
        %v2195 = vadd.f32 %v2002, %v2163
        %v2196 = vadd.f32 %v2003, %v2164
        %v2197 = vadd.f32 %v2004, %v2165
        %v2198 = vadd.f32 %v2005, %v2166
        %v2199 = vadd.f32 %v2006, %v2167
        %v2200 = vadd.f32 %v2007, %v2168
        %v2201 = vadd.f32 %v2008, %v2169
        %v2202 = vadd.f32 %v2009, %v2170
        %v2203 = vadd.f32 %v2010, %v2171
        %v2204 = vadd.f32 %v2011, %v2172
        %v2205 = vadd.f32 %v2012, %v2173
        %v2206 = vadd.f32 %v2013, %v2174
        %v2207 = vadd.f32 %v2014, %v2175
        %v2208 = vadd.f32 %v2015, %v2176
        %v2209 = vadd.f32 %v2016, %v2177
        %v2210 = vadd.f32 %v2017, %v2178
        %v2211 = vadd.f32 %v2018, %v2179
        %v2212 = vadd.f32 %v2019, %v2180
        %v2213 = vadd.f32 %v2020, %v2181
        %v2214 = vld [vmem:[%s5] sm:$0xff]
        %v2215 = vld [vmem:[%s5 + $0x8] sm:$0xff]
        %v2216 = vld [vmem:[%s5 + $0x10] sm:$0xff]
        %v2217 = vld [vmem:[%s5 + $0x18] sm:$0x1]
        %v2218 = vlaneseq
        %v2219 = vshrl.u32 %v2218, 7
        %v2220 = vadd.s32 %v2219, 8
        %vm2221 = vcmp.ge.s32.totalorder %v2219, 2
        %vm2222 = vcmp.ge.s32.totalorder %v2220, 2
        %vm2223 = vcmp.lt.s32.totalorder %v2219, 18
        %vm2224 = vcmp.lt.s32.totalorder %v2220, 18
        %vm2225 = vmand %vm2221, %vm2223
        %vm2226 = vmand %vm2222, %vm2224
        %v2227 = vsel %vm2225, 1, 0
        %v2228 = vsel %vm2226, 1, 0
        %v2229 = vcvt.s32.f32 %v2227
        %v2230 = vcvt.s32.f32 %v2228
        %vm2231 = vcmp.ge.s32.totalorder %v2219, 1
        %vm2232 = vcmp.ge.s32.totalorder %v2220, 1
        %vm2233 = vcmp.lt.s32.totalorder %v2219, 17
        %vm2234 = vcmp.lt.s32.totalorder %v2220, 17
        %vm2235 = vmand %vm2231, %vm2233
        %vm2236 = vmand %vm2232, %vm2234
        %v2237 = vsel %vm2235, 1, 0
        %v2238 = vsel %vm2236, 1, 0
        %v2239 = vcvt.s32.f32 %v2237
        %v2240 = vcvt.s32.f32 %v2238
        %vm2241 = vcmp.ge.s32.totalorder %v2219, 0
        %vm2242 = vcmp.ge.s32.totalorder %v2220, 0
        %vm2243 = vcmp.lt.s32.totalorder %v2219, 16
        %vm2244 = vcmp.lt.s32.totalorder %v2220, 16
        %vm2245 = vmand %vm2241, %vm2243
        %vm2246 = vmand %vm2242, %vm2244
        %v2247 = vsel %vm2245, 1, 0
        %v2248 = vsel %vm2246, 1, 0
        %v2249 = vcvt.s32.f32 %v2247
        %v2250 = vcvt.s32.f32 %v2248
        %vm2251 = vcmp.ge.s32.totalorder %v2219, 4294967295
        %vm2252 = vcmp.ge.s32.totalorder %v2220, 4294967295
        %vm2253 = vcmp.lt.s32.totalorder %v2219, 15
        %vm2254 = vcmp.lt.s32.totalorder %v2220, 15
        %vm2255 = vmand %vm2251, %vm2253
        %vm2256 = vmand %vm2252, %vm2254
        %v2257 = vsel %vm2255, 1, 0
        %v2258 = vsel %vm2256, 1, 0
        %v2259 = vcvt.s32.f32 %v2257
        %v2260 = vcvt.s32.f32 %v2258
        %vm2261 = vcmp.ge.s32.totalorder %v2219, 4294967294
        %vm2262 = vcmp.ge.s32.totalorder %v2220, 4294967294
        %vm2263 = vcmp.lt.s32.totalorder %v2219, 14
        %vm2264 = vcmp.lt.s32.totalorder %v2220, 14
        %vm2265 = vmand %vm2261, %vm2263
        %vm2266 = vmand %vm2262, %vm2264
        %v2267 = vsel %vm2265, 1, 0
        %v2268 = vsel %vm2266, 1, 0
        %v2269 = vcvt.s32.f32 %v2267
        %v2270 = vcvt.s32.f32 %v2268
        %v2271 = vrot.slane %v2182, 6
        %v2272 = vrot.slane %v2184, 6
        %v2273 = vrot.slane %v2186, 6
        %v2274 = vrot.slane %v2188, 6
        %v2275 = vrot.slane %v2190, 6
        %v2276 = vrot.slane %v2192, 6
        %v2277 = vrot.slane %v2194, 6
        %v2278 = vrot.slane %v2196, 6
        %v2279 = vrot.slane %v2198, 6
        %v2280 = vrot.slane %v2200, 6
        %v2281 = vrot.slane %v2202, 6
        %v2282 = vrot.slane %v2204, 6
        %v2283 = vrot.slane %v2206, 6
        %v2284 = vrot.slane %v2208, 6
        %v2285 = vrot.slane %v2183, 6
        %v2286 = vrot.slane %v2185, 6
        %v2287 = vrot.slane %v2187, 6
        %v2288 = vrot.slane %v2189, 6
        %v2289 = vrot.slane %v2191, 6
        %v2290 = vrot.slane %v2193, 6
        %v2291 = vrot.slane %v2195, 6
        %v2292 = vrot.slane %v2197, 6
        %v2293 = vrot.slane %v2199, 6
        %v2294 = vrot.slane %v2201, 6
        %v2295 = vrot.slane %v2203, 6
        %v2296 = vrot.slane %v2205, 6
        %v2297 = vrot.slane %v2207, 6
        %v2298 = vrot.slane %v2209, 6
        %vm2299 = vcmp.lt.s32.totalorder %v2219, 2
        %v2300 = vsel %vm2299, %v2271, %v2285
        %v2301 = vsel %vm2299, %v2272, %v2286
        %v2302 = vsel %vm2299, %v2273, %v2287
        %v2303 = vsel %vm2299, %v2274, %v2288
        %v2304 = vsel %vm2299, %v2275, %v2289
        %v2305 = vsel %vm2299, %v2276, %v2290
        %v2306 = vsel %vm2299, %v2277, %v2291
        %v2307 = vsel %vm2299, %v2278, %v2292
        %v2308 = vsel %vm2299, %v2279, %v2293
        %v2309 = vsel %vm2299, %v2280, %v2294
        %v2310 = vsel %vm2299, %v2281, %v2295
        %v2311 = vsel %vm2299, %v2282, %v2296
        %v2312 = vsel %vm2299, %v2283, %v2297
        %v2313 = vsel %vm2299, %v2284, %v2298
        %v2314 = vsel %vm2299, %v2285, %v2271
        %v2315 = vsel %vm2299, %v2286, %v2272
        %v2316 = vsel %vm2299, %v2287, %v2273
        %v2317 = vsel %vm2299, %v2288, %v2274
        %v2318 = vsel %vm2299, %v2289, %v2275
        %v2319 = vsel %vm2299, %v2290, %v2276
        %v2320 = vsel %vm2299, %v2291, %v2277
        %v2321 = vsel %vm2299, %v2292, %v2278
        %v2322 = vsel %vm2299, %v2293, %v2279
        %v2323 = vsel %vm2299, %v2294, %v2280
        %v2324 = vsel %vm2299, %v2295, %v2281
        %v2325 = vsel %vm2299, %v2296, %v2282
        %v2326 = vsel %vm2299, %v2297, %v2283
        %v2327 = vsel %vm2299, %v2298, %v2284
        %v2328 = vperm.slane %v2214, 0
        %v2329 = vmul.f32 %v2328, %v2229
        %v2330 = vmul.f32 %v2328, %v2230
        %v2331 = vmul.f32 0.0, %v2329
        %v2332 = vmul.f32 0.0, %v2330
        %v2333 = vmul.f32 %v2314, %v2329
        %v2334 = vmul.f32 %v2300, %v2330
        %v2335 = vmul.f32 %v2315, %v2329
        %v2336 = vmul.f32 %v2301, %v2330
        %v2337 = vmul.f32 %v2316, %v2329
        %v2338 = vmul.f32 %v2302, %v2330
        %v2339 = vmul.f32 %v2317, %v2329
        %v2340 = vmul.f32 %v2303, %v2330
        %v2341 = vmul.f32 %v2318, %v2329
        %v2342 = vmul.f32 %v2304, %v2330
        %v2343 = vmul.f32 %v2319, %v2329
        %v2344 = vmul.f32 %v2305, %v2330
        %v2345 = vmul.f32 %v2320, %v2329
        %v2346 = vmul.f32 %v2306, %v2330
        %v2347 = vmul.f32 %v2321, %v2329
        %v2348 = vmul.f32 %v2307, %v2330
        %v2349 = vmul.f32 %v2322, %v2329
        %v2350 = vmul.f32 %v2308, %v2330
        %v2351 = vmul.f32 %v2323, %v2329
        %v2352 = vmul.f32 %v2309, %v2330
        %v2353 = vmul.f32 %v2324, %v2329
        %v2354 = vmul.f32 %v2310, %v2330
        %v2355 = vmul.f32 %v2325, %v2329
        %v2356 = vmul.f32 %v2311, %v2330
        %v2357 = vmul.f32 %v2326, %v2329
        %v2358 = vmul.f32 %v2312, %v2330
        %v2359 = vmul.f32 %v2327, %v2329
        %v2360 = vmul.f32 %v2313, %v2330
        %v2361 = vadd.f32 %v2331, 0.0
        %v2362 = vadd.f32 %v2332, 0.0
        %v2363 = vadd.f32 %v2333, 0.0
        %v2364 = vadd.f32 %v2334, 0.0
        %v2365 = vadd.f32 %v2335, 0.0
        %v2366 = vadd.f32 %v2336, 0.0
        %v2367 = vadd.f32 %v2337, 0.0
        %v2368 = vadd.f32 %v2338, 0.0
        %v2369 = vadd.f32 %v2339, 0.0
        %v2370 = vadd.f32 %v2340, 0.0
        %v2371 = vadd.f32 %v2341, 0.0
        %v2372 = vadd.f32 %v2342, 0.0
        %v2373 = vadd.f32 %v2343, 0.0
        %v2374 = vadd.f32 %v2344, 0.0
        %v2375 = vadd.f32 %v2345, 0.0
        %v2376 = vadd.f32 %v2346, 0.0
        %v2377 = vadd.f32 %v2347, 0.0
        %v2378 = vadd.f32 %v2348, 0.0
        %v2379 = vadd.f32 %v2349, 0.0
        %v2380 = vadd.f32 %v2350, 0.0
        %v2381 = vadd.f32 %v2351, 0.0
        %v2382 = vadd.f32 %v2352, 0.0
        %v2383 = vadd.f32 %v2353, 0.0
        %v2384 = vadd.f32 %v2354, 0.0
        %v2385 = vadd.f32 %v2355, 0.0
        %v2386 = vadd.f32 %v2356, 0.0
        %v2387 = vadd.f32 %v2357, 0.0
        %v2388 = vadd.f32 %v2358, 0.0
        %v2389 = vadd.f32 %v2359, 0.0
        %v2390 = vadd.f32 %v2360, 0.0
        %v2391 = vrot.slane %v2182, 7
        %v2392 = vrot.slane %v2184, 7
        %v2393 = vrot.slane %v2186, 7
        %v2394 = vrot.slane %v2188, 7
        %v2395 = vrot.slane %v2190, 7
        %v2396 = vrot.slane %v2192, 7
        %v2397 = vrot.slane %v2194, 7
        %v2398 = vrot.slane %v2196, 7
        %v2399 = vrot.slane %v2198, 7
        %v2400 = vrot.slane %v2200, 7
        %v2401 = vrot.slane %v2202, 7
        %v2402 = vrot.slane %v2204, 7
        %v2403 = vrot.slane %v2206, 7
        %v2404 = vrot.slane %v2208, 7
        %v2405 = vrot.slane %v2183, 7
        %v2406 = vrot.slane %v2185, 7
        %v2407 = vrot.slane %v2187, 7
        %v2408 = vrot.slane %v2189, 7
        %v2409 = vrot.slane %v2191, 7
        %v2410 = vrot.slane %v2193, 7
        %v2411 = vrot.slane %v2195, 7
        %v2412 = vrot.slane %v2197, 7
        %v2413 = vrot.slane %v2199, 7
        %v2414 = vrot.slane %v2201, 7
        %v2415 = vrot.slane %v2203, 7
        %v2416 = vrot.slane %v2205, 7
        %v2417 = vrot.slane %v2207, 7
        %v2418 = vrot.slane %v2209, 7
        %vm2419 = vcmp.lt.s32.totalorder %v2219, 1
        %v2420 = vsel %vm2419, %v2391, %v2405
        %v2421 = vsel %vm2419, %v2392, %v2406
        %v2422 = vsel %vm2419, %v2393, %v2407
        %v2423 = vsel %vm2419, %v2394, %v2408
        %v2424 = vsel %vm2419, %v2395, %v2409
        %v2425 = vsel %vm2419, %v2396, %v2410
        %v2426 = vsel %vm2419, %v2397, %v2411
        %v2427 = vsel %vm2419, %v2398, %v2412
        %v2428 = vsel %vm2419, %v2399, %v2413
        %v2429 = vsel %vm2419, %v2400, %v2414
        %v2430 = vsel %vm2419, %v2401, %v2415
        %v2431 = vsel %vm2419, %v2402, %v2416
        %v2432 = vsel %vm2419, %v2403, %v2417
        %v2433 = vsel %vm2419, %v2404, %v2418
        %v2434 = vsel %vm2419, %v2405, %v2391
        %v2435 = vsel %vm2419, %v2406, %v2392
        %v2436 = vsel %vm2419, %v2407, %v2393
        %v2437 = vsel %vm2419, %v2408, %v2394
        %v2438 = vsel %vm2419, %v2409, %v2395
        %v2439 = vsel %vm2419, %v2410, %v2396
        %v2440 = vsel %vm2419, %v2411, %v2397
        %v2441 = vsel %vm2419, %v2412, %v2398
        %v2442 = vsel %vm2419, %v2413, %v2399
        %v2443 = vsel %vm2419, %v2414, %v2400
        %v2444 = vsel %vm2419, %v2415, %v2401
        %v2445 = vsel %vm2419, %v2416, %v2402
        %v2446 = vsel %vm2419, %v2417, %v2403
        %v2447 = vsel %vm2419, %v2418, %v2404
        %v2448 = vperm.slane %v2214, 1
        %v2449 = vmul.f32 %v2448, %v2239
        %v2450 = vmul.f32 %v2448, %v2240
        %v2451 = vmul.f32 0.0, %v2449
        %v2452 = vmul.f32 0.0, %v2450
        %v2453 = vmul.f32 %v2434, %v2449
        %v2454 = vmul.f32 %v2420, %v2450
        %v2455 = vmul.f32 %v2435, %v2449
        %v2456 = vmul.f32 %v2421, %v2450
        %v2457 = vmul.f32 %v2436, %v2449
        %v2458 = vmul.f32 %v2422, %v2450
        %v2459 = vmul.f32 %v2437, %v2449
        %v2460 = vmul.f32 %v2423, %v2450
        %v2461 = vmul.f32 %v2438, %v2449
        %v2462 = vmul.f32 %v2424, %v2450
        %v2463 = vmul.f32 %v2439, %v2449
        %v2464 = vmul.f32 %v2425, %v2450
        %v2465 = vmul.f32 %v2440, %v2449
        %v2466 = vmul.f32 %v2426, %v2450
        %v2467 = vmul.f32 %v2441, %v2449
        %v2468 = vmul.f32 %v2427, %v2450
        %v2469 = vmul.f32 %v2442, %v2449
        %v2470 = vmul.f32 %v2428, %v2450
        %v2471 = vmul.f32 %v2443, %v2449
        %v2472 = vmul.f32 %v2429, %v2450
        %v2473 = vmul.f32 %v2444, %v2449
        %v2474 = vmul.f32 %v2430, %v2450
        %v2475 = vmul.f32 %v2445, %v2449
        %v2476 = vmul.f32 %v2431, %v2450
        %v2477 = vmul.f32 %v2446, %v2449
        %v2478 = vmul.f32 %v2432, %v2450
        %v2479 = vmul.f32 %v2447, %v2449
        %v2480 = vmul.f32 %v2433, %v2450
        %v2481 = vadd.f32 %v2361, %v2451
        %v2482 = vadd.f32 %v2362, %v2452
        %v2483 = vadd.f32 %v2363, %v2453
        %v2484 = vadd.f32 %v2364, %v2454
        %v2485 = vadd.f32 %v2365, %v2455
        %v2486 = vadd.f32 %v2366, %v2456
        %v2487 = vadd.f32 %v2367, %v2457
        %v2488 = vadd.f32 %v2368, %v2458
        %v2489 = vadd.f32 %v2369, %v2459
        %v2490 = vadd.f32 %v2370, %v2460
        %v2491 = vadd.f32 %v2371, %v2461
        %v2492 = vadd.f32 %v2372, %v2462
        %v2493 = vadd.f32 %v2373, %v2463
        %v2494 = vadd.f32 %v2374, %v2464
        %v2495 = vadd.f32 %v2375, %v2465
        %v2496 = vadd.f32 %v2376, %v2466
        %v2497 = vadd.f32 %v2377, %v2467
        %v2498 = vadd.f32 %v2378, %v2468
        %v2499 = vadd.f32 %v2379, %v2469
        %v2500 = vadd.f32 %v2380, %v2470
        %v2501 = vadd.f32 %v2381, %v2471
        %v2502 = vadd.f32 %v2382, %v2472
        %v2503 = vadd.f32 %v2383, %v2473
        %v2504 = vadd.f32 %v2384, %v2474
        %v2505 = vadd.f32 %v2385, %v2475
        %v2506 = vadd.f32 %v2386, %v2476
        %v2507 = vadd.f32 %v2387, %v2477
        %v2508 = vadd.f32 %v2388, %v2478
        %v2509 = vadd.f32 %v2389, %v2479
        %v2510 = vadd.f32 %v2390, %v2480
        %v2511 = vperm.slane %v2214, 2
        %v2512 = vmul.f32 %v2511, %v2249
        %v2513 = vmul.f32 %v2511, %v2250
        %v2514 = vmul.f32 %v2512, 0.0
        %v2515 = vmul.f32 %v2513, 0.0
        %v2516 = vmul.f32 %v2182, %v2512
        %v2517 = vmul.f32 %v2183, %v2513
        %v2518 = vmul.f32 %v2184, %v2512
        %v2519 = vmul.f32 %v2185, %v2513
        %v2520 = vmul.f32 %v2186, %v2512
        %v2521 = vmul.f32 %v2187, %v2513
        %v2522 = vmul.f32 %v2188, %v2512
        %v2523 = vmul.f32 %v2189, %v2513
        %v2524 = vmul.f32 %v2190, %v2512
        %v2525 = vmul.f32 %v2191, %v2513
        %v2526 = vmul.f32 %v2192, %v2512
        %v2527 = vmul.f32 %v2193, %v2513
        %v2528 = vmul.f32 %v2194, %v2512
        %v2529 = vmul.f32 %v2195, %v2513
        %v2530 = vmul.f32 %v2196, %v2512
        %v2531 = vmul.f32 %v2197, %v2513
        %v2532 = vmul.f32 %v2198, %v2512
        %v2533 = vmul.f32 %v2199, %v2513
        %v2534 = vmul.f32 %v2200, %v2512
        %v2535 = vmul.f32 %v2201, %v2513
        %v2536 = vmul.f32 %v2202, %v2512
        %v2537 = vmul.f32 %v2203, %v2513
        %v2538 = vmul.f32 %v2204, %v2512
        %v2539 = vmul.f32 %v2205, %v2513
        %v2540 = vmul.f32 %v2206, %v2512
        %v2541 = vmul.f32 %v2207, %v2513
        %v2542 = vmul.f32 %v2208, %v2512
        %v2543 = vmul.f32 %v2209, %v2513
        %v2544 = vadd.f32 %v2481, %v2514
        %v2545 = vadd.f32 %v2482, %v2515
        %v2546 = vadd.f32 %v2483, %v2516
        %v2547 = vadd.f32 %v2484, %v2517
        %v2548 = vadd.f32 %v2485, %v2518
        %v2549 = vadd.f32 %v2486, %v2519
        %v2550 = vadd.f32 %v2487, %v2520
        %v2551 = vadd.f32 %v2488, %v2521
        %v2552 = vadd.f32 %v2489, %v2522
        %v2553 = vadd.f32 %v2490, %v2523
        %v2554 = vadd.f32 %v2491, %v2524
        %v2555 = vadd.f32 %v2492, %v2525
        %v2556 = vadd.f32 %v2493, %v2526
        %v2557 = vadd.f32 %v2494, %v2527
        %v2558 = vadd.f32 %v2495, %v2528
        %v2559 = vadd.f32 %v2496, %v2529
        %v2560 = vadd.f32 %v2497, %v2530
        %v2561 = vadd.f32 %v2498, %v2531
        %v2562 = vadd.f32 %v2499, %v2532
        %v2563 = vadd.f32 %v2500, %v2533
        %v2564 = vadd.f32 %v2501, %v2534
        %v2565 = vadd.f32 %v2502, %v2535
        %v2566 = vadd.f32 %v2503, %v2536
        %v2567 = vadd.f32 %v2504, %v2537
        %v2568 = vadd.f32 %v2505, %v2538
        %v2569 = vadd.f32 %v2506, %v2539
        %v2570 = vadd.f32 %v2507, %v2540
        %v2571 = vadd.f32 %v2508, %v2541
        %v2572 = vadd.f32 %v2509, %v2542
        %v2573 = vadd.f32 %v2510, %v2543
        %v2574 = vrot.slane %v2182, 1
        %v2575 = vrot.slane %v2184, 1
        %v2576 = vrot.slane %v2186, 1
        %v2577 = vrot.slane %v2188, 1
        %v2578 = vrot.slane %v2190, 1
        %v2579 = vrot.slane %v2192, 1
        %v2580 = vrot.slane %v2194, 1
        %v2581 = vrot.slane %v2196, 1
        %v2582 = vrot.slane %v2198, 1
        %v2583 = vrot.slane %v2200, 1
        %v2584 = vrot.slane %v2202, 1
        %v2585 = vrot.slane %v2204, 1
        %v2586 = vrot.slane %v2206, 1
        %v2587 = vrot.slane %v2208, 1
        %v2588 = vrot.slane %v2183, 1
        %v2589 = vrot.slane %v2185, 1
        %v2590 = vrot.slane %v2187, 1
        %v2591 = vrot.slane %v2189, 1
        %v2592 = vrot.slane %v2191, 1
        %v2593 = vrot.slane %v2193, 1
        %v2594 = vrot.slane %v2195, 1
        %v2595 = vrot.slane %v2197, 1
        %v2596 = vrot.slane %v2199, 1
        %v2597 = vrot.slane %v2201, 1
        %v2598 = vrot.slane %v2203, 1
        %v2599 = vrot.slane %v2205, 1
        %v2600 = vrot.slane %v2207, 1
        %v2601 = vrot.slane %v2209, 1
        %vm2602 = vcmp.lt.s32.totalorder %v2219, 7
        %v2603 = vsel %vm2602, %v2574, %v2588
        %v2604 = vsel %vm2602, %v2575, %v2589
        %v2605 = vsel %vm2602, %v2576, %v2590
        %v2606 = vsel %vm2602, %v2577, %v2591
        %v2607 = vsel %vm2602, %v2578, %v2592
        %v2608 = vsel %vm2602, %v2579, %v2593
        %v2609 = vsel %vm2602, %v2580, %v2594
        %v2610 = vsel %vm2602, %v2581, %v2595
        %v2611 = vsel %vm2602, %v2582, %v2596
        %v2612 = vsel %vm2602, %v2583, %v2597
        %v2613 = vsel %vm2602, %v2584, %v2598
        %v2614 = vsel %vm2602, %v2585, %v2599
        %v2615 = vsel %vm2602, %v2586, %v2600
        %v2616 = vsel %vm2602, %v2587, %v2601
        %v2617 = vsel %vm2602, %v2588, %v2574
        %v2618 = vsel %vm2602, %v2589, %v2575
        %v2619 = vsel %vm2602, %v2590, %v2576
        %v2620 = vsel %vm2602, %v2591, %v2577
        %v2621 = vsel %vm2602, %v2592, %v2578
        %v2622 = vsel %vm2602, %v2593, %v2579
        %v2623 = vsel %vm2602, %v2594, %v2580
        %v2624 = vsel %vm2602, %v2595, %v2581
        %v2625 = vsel %vm2602, %v2596, %v2582
        %v2626 = vsel %vm2602, %v2597, %v2583
        %v2627 = vsel %vm2602, %v2598, %v2584
        %v2628 = vsel %vm2602, %v2599, %v2585
        %v2629 = vsel %vm2602, %v2600, %v2586
        %v2630 = vsel %vm2602, %v2601, %v2587
        %v2631 = vperm.slane %v2214, 3
        %v2632 = vmul.f32 %v2631, %v2259
        %v2633 = vmul.f32 %v2631, %v2260
        %v2634 = vmul.f32 0.0, %v2632
        %v2635 = vmul.f32 0.0, %v2633
        %v2636 = vmul.f32 %v2603, %v2632
        %v2637 = vmul.f32 %v2617, %v2633
        %v2638 = vmul.f32 %v2604, %v2632
        %v2639 = vmul.f32 %v2618, %v2633
        %v2640 = vmul.f32 %v2605, %v2632
        %v2641 = vmul.f32 %v2619, %v2633
        %v2642 = vmul.f32 %v2606, %v2632
        %v2643 = vmul.f32 %v2620, %v2633
        %v2644 = vmul.f32 %v2607, %v2632
        %v2645 = vmul.f32 %v2621, %v2633
        %v2646 = vmul.f32 %v2608, %v2632
        %v2647 = vmul.f32 %v2622, %v2633
        %v2648 = vmul.f32 %v2609, %v2632
        %v2649 = vmul.f32 %v2623, %v2633
        %v2650 = vmul.f32 %v2610, %v2632
        %v2651 = vmul.f32 %v2624, %v2633
        %v2652 = vmul.f32 %v2611, %v2632
        %v2653 = vmul.f32 %v2625, %v2633
        %v2654 = vmul.f32 %v2612, %v2632
        %v2655 = vmul.f32 %v2626, %v2633
        %v2656 = vmul.f32 %v2613, %v2632
        %v2657 = vmul.f32 %v2627, %v2633
        %v2658 = vmul.f32 %v2614, %v2632
        %v2659 = vmul.f32 %v2628, %v2633
        %v2660 = vmul.f32 %v2615, %v2632
        %v2661 = vmul.f32 %v2629, %v2633
        %v2662 = vmul.f32 %v2616, %v2632
        %v2663 = vmul.f32 %v2630, %v2633
        %v2664 = vadd.f32 %v2544, %v2634
        %v2665 = vadd.f32 %v2545, %v2635
        %v2666 = vadd.f32 %v2546, %v2636
        %v2667 = vadd.f32 %v2547, %v2637
        %v2668 = vadd.f32 %v2548, %v2638
        %v2669 = vadd.f32 %v2549, %v2639
        %v2670 = vadd.f32 %v2550, %v2640
        %v2671 = vadd.f32 %v2551, %v2641
        %v2672 = vadd.f32 %v2552, %v2642
        %v2673 = vadd.f32 %v2553, %v2643
        %v2674 = vadd.f32 %v2554, %v2644
        %v2675 = vadd.f32 %v2555, %v2645
        %v2676 = vadd.f32 %v2556, %v2646
        %v2677 = vadd.f32 %v2557, %v2647
        %v2678 = vadd.f32 %v2558, %v2648
        %v2679 = vadd.f32 %v2559, %v2649
        %v2680 = vadd.f32 %v2560, %v2650
        %v2681 = vadd.f32 %v2561, %v2651
        %v2682 = vadd.f32 %v2562, %v2652
        %v2683 = vadd.f32 %v2563, %v2653
        %v2684 = vadd.f32 %v2564, %v2654
        %v2685 = vadd.f32 %v2565, %v2655
        %v2686 = vadd.f32 %v2566, %v2656
        %v2687 = vadd.f32 %v2567, %v2657
        %v2688 = vadd.f32 %v2568, %v2658
        %v2689 = vadd.f32 %v2569, %v2659
        %v2690 = vadd.f32 %v2570, %v2660
        %v2691 = vadd.f32 %v2571, %v2661
        %v2692 = vadd.f32 %v2572, %v2662
        %v2693 = vadd.f32 %v2573, %v2663
        %v2694 = vrot.slane %v2182, 2
        %v2695 = vrot.slane %v2184, 2
        %v2696 = vrot.slane %v2186, 2
        %v2697 = vrot.slane %v2188, 2
        %v2698 = vrot.slane %v2190, 2
        %v2699 = vrot.slane %v2192, 2
        %v2700 = vrot.slane %v2194, 2
        %v2701 = vrot.slane %v2196, 2
        %v2702 = vrot.slane %v2198, 2
        %v2703 = vrot.slane %v2200, 2
        %v2704 = vrot.slane %v2202, 2
        %v2705 = vrot.slane %v2204, 2
        %v2706 = vrot.slane %v2206, 2
        %v2707 = vrot.slane %v2208, 2
        %v2708 = vrot.slane %v2183, 2
        %v2709 = vrot.slane %v2185, 2
        %v2710 = vrot.slane %v2187, 2
        %v2711 = vrot.slane %v2189, 2
        %v2712 = vrot.slane %v2191, 2
        %v2713 = vrot.slane %v2193, 2
        %v2714 = vrot.slane %v2195, 2
        %v2715 = vrot.slane %v2197, 2
        %v2716 = vrot.slane %v2199, 2
        %v2717 = vrot.slane %v2201, 2
        %v2718 = vrot.slane %v2203, 2
        %v2719 = vrot.slane %v2205, 2
        %v2720 = vrot.slane %v2207, 2
        %v2721 = vrot.slane %v2209, 2
        %vm2722 = vcmp.lt.s32.totalorder %v2219, 6
        %v2723 = vsel %vm2722, %v2694, %v2708
        %v2724 = vsel %vm2722, %v2695, %v2709
        %v2725 = vsel %vm2722, %v2696, %v2710
        %v2726 = vsel %vm2722, %v2697, %v2711
        %v2727 = vsel %vm2722, %v2698, %v2712
        %v2728 = vsel %vm2722, %v2699, %v2713
        %v2729 = vsel %vm2722, %v2700, %v2714
        %v2730 = vsel %vm2722, %v2701, %v2715
        %v2731 = vsel %vm2722, %v2702, %v2716
        %v2732 = vsel %vm2722, %v2703, %v2717
        %v2733 = vsel %vm2722, %v2704, %v2718
        %v2734 = vsel %vm2722, %v2705, %v2719
        %v2735 = vsel %vm2722, %v2706, %v2720
        %v2736 = vsel %vm2722, %v2707, %v2721
        %v2737 = vsel %vm2722, %v2708, %v2694
        %v2738 = vsel %vm2722, %v2709, %v2695
        %v2739 = vsel %vm2722, %v2710, %v2696
        %v2740 = vsel %vm2722, %v2711, %v2697
        %v2741 = vsel %vm2722, %v2712, %v2698
        %v2742 = vsel %vm2722, %v2713, %v2699
        %v2743 = vsel %vm2722, %v2714, %v2700
        %v2744 = vsel %vm2722, %v2715, %v2701
        %v2745 = vsel %vm2722, %v2716, %v2702
        %v2746 = vsel %vm2722, %v2717, %v2703
        %v2747 = vsel %vm2722, %v2718, %v2704
        %v2748 = vsel %vm2722, %v2719, %v2705
        %v2749 = vsel %vm2722, %v2720, %v2706
        %v2750 = vsel %vm2722, %v2721, %v2707
        %v2751 = vperm.slane %v2214, 4
        %v2752 = vmul.f32 %v2751, %v2269
        %v2753 = vmul.f32 %v2751, %v2270
        %v2754 = vmul.f32 0.0, %v2752
        %v2755 = vmul.f32 0.0, %v2753
        %v2756 = vmul.f32 %v2723, %v2752
        %v2757 = vmul.f32 %v2737, %v2753
        %v2758 = vmul.f32 %v2724, %v2752
        %v2759 = vmul.f32 %v2738, %v2753
        %v2760 = vmul.f32 %v2725, %v2752
        %v2761 = vmul.f32 %v2739, %v2753
        %v2762 = vmul.f32 %v2726, %v2752
        %v2763 = vmul.f32 %v2740, %v2753
        %v2764 = vmul.f32 %v2727, %v2752
        %v2765 = vmul.f32 %v2741, %v2753
        %v2766 = vmul.f32 %v2728, %v2752
        %v2767 = vmul.f32 %v2742, %v2753
        %v2768 = vmul.f32 %v2729, %v2752
        %v2769 = vmul.f32 %v2743, %v2753
        %v2770 = vmul.f32 %v2730, %v2752
        %v2771 = vmul.f32 %v2744, %v2753
        %v2772 = vmul.f32 %v2731, %v2752
        %v2773 = vmul.f32 %v2745, %v2753
        %v2774 = vmul.f32 %v2732, %v2752
        %v2775 = vmul.f32 %v2746, %v2753
        %v2776 = vmul.f32 %v2733, %v2752
        %v2777 = vmul.f32 %v2747, %v2753
        %v2778 = vmul.f32 %v2734, %v2752
        %v2779 = vmul.f32 %v2748, %v2753
        %v2780 = vmul.f32 %v2735, %v2752
        %v2781 = vmul.f32 %v2749, %v2753
        %v2782 = vmul.f32 %v2736, %v2752
        %v2783 = vmul.f32 %v2750, %v2753
        %v2784 = vadd.f32 %v2664, %v2754
        %v2785 = vadd.f32 %v2665, %v2755
        %v2786 = vadd.f32 %v2666, %v2756
        %v2787 = vadd.f32 %v2667, %v2757
        %v2788 = vadd.f32 %v2668, %v2758
        %v2789 = vadd.f32 %v2669, %v2759
        %v2790 = vadd.f32 %v2670, %v2760
        %v2791 = vadd.f32 %v2671, %v2761
        %v2792 = vadd.f32 %v2672, %v2762
        %v2793 = vadd.f32 %v2673, %v2763
        %v2794 = vadd.f32 %v2674, %v2764
        %v2795 = vadd.f32 %v2675, %v2765
        %v2796 = vadd.f32 %v2676, %v2766
        %v2797 = vadd.f32 %v2677, %v2767
        %v2798 = vadd.f32 %v2678, %v2768
        %v2799 = vadd.f32 %v2679, %v2769
        %v2800 = vadd.f32 %v2680, %v2770
        %v2801 = vadd.f32 %v2681, %v2771
        %v2802 = vadd.f32 %v2682, %v2772
        %v2803 = vadd.f32 %v2683, %v2773
        %v2804 = vadd.f32 %v2684, %v2774
        %v2805 = vadd.f32 %v2685, %v2775
        %v2806 = vadd.f32 %v2686, %v2776
        %v2807 = vadd.f32 %v2687, %v2777
        %v2808 = vadd.f32 %v2688, %v2778
        %v2809 = vadd.f32 %v2689, %v2779
        %v2810 = vadd.f32 %v2690, %v2780
        %v2811 = vadd.f32 %v2691, %v2781
        %v2812 = vadd.f32 %v2692, %v2782
        %v2813 = vadd.f32 %v2693, %v2783
        %v2814 = vrot.slane %v2210, 6
        %v2815 = vrot.slane %v2211, 6
        %v2816 = vsel %vm2299, %v2814, %v2815
        %v2817 = vsel %vm2299, %v2815, %v2814
        %v2818 = vperm.slane %v2214, 5
        %v2819 = vmul.f32 %v2818, %v2229
        %v2820 = vmul.f32 %v2818, %v2230
        %v2821 = vmul.f32 0.0, %v2819
        %v2822 = vmul.f32 0.0, %v2820
        %v2823 = vmul.f32 %v2314, %v2819
        %v2824 = vmul.f32 %v2300, %v2820
        %v2825 = vmul.f32 %v2315, %v2819
        %v2826 = vmul.f32 %v2301, %v2820
        %v2827 = vmul.f32 %v2316, %v2819
        %v2828 = vmul.f32 %v2302, %v2820
        %v2829 = vmul.f32 %v2317, %v2819
        %v2830 = vmul.f32 %v2303, %v2820
        %v2831 = vmul.f32 %v2318, %v2819
        %v2832 = vmul.f32 %v2304, %v2820
        %v2833 = vmul.f32 %v2319, %v2819
        %v2834 = vmul.f32 %v2305, %v2820
        %v2835 = vmul.f32 %v2320, %v2819
        %v2836 = vmul.f32 %v2306, %v2820
        %v2837 = vmul.f32 %v2321, %v2819
        %v2838 = vmul.f32 %v2307, %v2820
        %v2839 = vmul.f32 %v2322, %v2819
        %v2840 = vmul.f32 %v2308, %v2820
        %v2841 = vmul.f32 %v2323, %v2819
        %v2842 = vmul.f32 %v2309, %v2820
        %v2843 = vmul.f32 %v2324, %v2819
        %v2844 = vmul.f32 %v2310, %v2820
        %v2845 = vmul.f32 %v2325, %v2819
        %v2846 = vmul.f32 %v2311, %v2820
        %v2847 = vmul.f32 %v2326, %v2819
        %v2848 = vmul.f32 %v2312, %v2820
        %v2849 = vmul.f32 %v2327, %v2819
        %v2850 = vmul.f32 %v2313, %v2820
        %v2851 = vmul.f32 %v2817, %v2819
        %v2852 = vmul.f32 %v2816, %v2820
        %v2853 = vadd.f32 %v2784, %v2821
        %v2854 = vadd.f32 %v2785, %v2822
        %v2855 = vadd.f32 %v2784, %v2823
        %v2856 = vadd.f32 %v2785, %v2824
        %v2857 = vadd.f32 %v2786, %v2825
        %v2858 = vadd.f32 %v2787, %v2826
        %v2859 = vadd.f32 %v2788, %v2827
        %v2860 = vadd.f32 %v2789, %v2828
        %v2861 = vadd.f32 %v2790, %v2829
        %v2862 = vadd.f32 %v2791, %v2830
        %v2863 = vadd.f32 %v2792, %v2831
        %v2864 = vadd.f32 %v2793, %v2832
        %v2865 = vadd.f32 %v2794, %v2833
        %v2866 = vadd.f32 %v2795, %v2834
        %v2867 = vadd.f32 %v2796, %v2835
        %v2868 = vadd.f32 %v2797, %v2836
        %v2869 = vadd.f32 %v2798, %v2837
        %v2870 = vadd.f32 %v2799, %v2838
        %v2871 = vadd.f32 %v2800, %v2839
        %v2872 = vadd.f32 %v2801, %v2840
        %v2873 = vadd.f32 %v2802, %v2841
        %v2874 = vadd.f32 %v2803, %v2842
        %v2875 = vadd.f32 %v2804, %v2843
        %v2876 = vadd.f32 %v2805, %v2844
        %v2877 = vadd.f32 %v2806, %v2845
        %v2878 = vadd.f32 %v2807, %v2846
        %v2879 = vadd.f32 %v2808, %v2847
        %v2880 = vadd.f32 %v2809, %v2848
        %v2881 = vadd.f32 %v2810, %v2849
        %v2882 = vadd.f32 %v2811, %v2850
        %v2883 = vadd.f32 %v2812, %v2851
        %v2884 = vadd.f32 %v2813, %v2852
        %v2885 = vrot.slane %v2210, 7
        %v2886 = vrot.slane %v2211, 7
        %v2887 = vsel %vm2419, %v2885, %v2886
        %v2888 = vsel %vm2419, %v2886, %v2885
        %v2889 = vperm.slane %v2214, 6
        %v2890 = vmul.f32 %v2889, %v2239
        %v2891 = vmul.f32 %v2889, %v2240
        %v2892 = vmul.f32 0.0, %v2890
        %v2893 = vmul.f32 0.0, %v2891
        %v2894 = vmul.f32 %v2434, %v2890
        %v2895 = vmul.f32 %v2420, %v2891
        %v2896 = vmul.f32 %v2435, %v2890
        %v2897 = vmul.f32 %v2421, %v2891
        %v2898 = vmul.f32 %v2436, %v2890
        %v2899 = vmul.f32 %v2422, %v2891
        %v2900 = vmul.f32 %v2437, %v2890
        %v2901 = vmul.f32 %v2423, %v2891
        %v2902 = vmul.f32 %v2438, %v2890
        %v2903 = vmul.f32 %v2424, %v2891
        %v2904 = vmul.f32 %v2439, %v2890
        %v2905 = vmul.f32 %v2425, %v2891
        %v2906 = vmul.f32 %v2440, %v2890
        %v2907 = vmul.f32 %v2426, %v2891
        %v2908 = vmul.f32 %v2441, %v2890
        %v2909 = vmul.f32 %v2427, %v2891
        %v2910 = vmul.f32 %v2442, %v2890
        %v2911 = vmul.f32 %v2428, %v2891
        %v2912 = vmul.f32 %v2443, %v2890
        %v2913 = vmul.f32 %v2429, %v2891
        %v2914 = vmul.f32 %v2444, %v2890
        %v2915 = vmul.f32 %v2430, %v2891
        %v2916 = vmul.f32 %v2445, %v2890
        %v2917 = vmul.f32 %v2431, %v2891
        %v2918 = vmul.f32 %v2446, %v2890
        %v2919 = vmul.f32 %v2432, %v2891
        %v2920 = vmul.f32 %v2447, %v2890
        %v2921 = vmul.f32 %v2433, %v2891
        %v2922 = vmul.f32 %v2888, %v2890
        %v2923 = vmul.f32 %v2887, %v2891
        %v2924 = vadd.f32 %v2853, %v2892
        %v2925 = vadd.f32 %v2854, %v2893
        %v2926 = vadd.f32 %v2855, %v2894
        %v2927 = vadd.f32 %v2856, %v2895
        %v2928 = vadd.f32 %v2857, %v2896
        %v2929 = vadd.f32 %v2858, %v2897
        %v2930 = vadd.f32 %v2859, %v2898
        %v2931 = vadd.f32 %v2860, %v2899
        %v2932 = vadd.f32 %v2861, %v2900
        %v2933 = vadd.f32 %v2862, %v2901
        %v2934 = vadd.f32 %v2863, %v2902
        %v2935 = vadd.f32 %v2864, %v2903
        %v2936 = vadd.f32 %v2865, %v2904
        %v2937 = vadd.f32 %v2866, %v2905
        %v2938 = vadd.f32 %v2867, %v2906
        %v2939 = vadd.f32 %v2868, %v2907
        %v2940 = vadd.f32 %v2869, %v2908
        %v2941 = vadd.f32 %v2870, %v2909
        %v2942 = vadd.f32 %v2871, %v2910
        %v2943 = vadd.f32 %v2872, %v2911
        %v2944 = vadd.f32 %v2873, %v2912
        %v2945 = vadd.f32 %v2874, %v2913
        %v2946 = vadd.f32 %v2875, %v2914
        %v2947 = vadd.f32 %v2876, %v2915
        %v2948 = vadd.f32 %v2877, %v2916
        %v2949 = vadd.f32 %v2878, %v2917
        %v2950 = vadd.f32 %v2879, %v2918
        %v2951 = vadd.f32 %v2880, %v2919
        %v2952 = vadd.f32 %v2881, %v2920
        %v2953 = vadd.f32 %v2882, %v2921
        %v2954 = vadd.f32 %v2883, %v2922
        %v2955 = vadd.f32 %v2884, %v2923
        %v2956 = vperm.slane %v2214, 7
        %v2957 = vmul.f32 %v2956, %v2249
        %v2958 = vmul.f32 %v2956, %v2250
        %v2959 = vmul.f32 %v2957, 0.0
        %v2960 = vmul.f32 %v2958, 0.0
        %v2961 = vmul.f32 %v2182, %v2957
        %v2962 = vmul.f32 %v2183, %v2958
        %v2963 = vmul.f32 %v2184, %v2957
        %v2964 = vmul.f32 %v2185, %v2958
        %v2965 = vmul.f32 %v2186, %v2957
        %v2966 = vmul.f32 %v2187, %v2958
        %v2967 = vmul.f32 %v2188, %v2957
        %v2968 = vmul.f32 %v2189, %v2958
        %v2969 = vmul.f32 %v2190, %v2957
        %v2970 = vmul.f32 %v2191, %v2958
        %v2971 = vmul.f32 %v2192, %v2957
        %v2972 = vmul.f32 %v2193, %v2958
        %v2973 = vmul.f32 %v2194, %v2957
        %v2974 = vmul.f32 %v2195, %v2958
        %v2975 = vmul.f32 %v2196, %v2957
        %v2976 = vmul.f32 %v2197, %v2958
        %v2977 = vmul.f32 %v2198, %v2957
        %v2978 = vmul.f32 %v2199, %v2958
        %v2979 = vmul.f32 %v2200, %v2957
        %v2980 = vmul.f32 %v2201, %v2958
        %v2981 = vmul.f32 %v2202, %v2957
        %v2982 = vmul.f32 %v2203, %v2958
        %v2983 = vmul.f32 %v2204, %v2957
        %v2984 = vmul.f32 %v2205, %v2958
        %v2985 = vmul.f32 %v2206, %v2957
        %v2986 = vmul.f32 %v2207, %v2958
        %v2987 = vmul.f32 %v2208, %v2957
        %v2988 = vmul.f32 %v2209, %v2958
        %v2989 = vmul.f32 %v2210, %v2957
        %v2990 = vmul.f32 %v2211, %v2958
        %v2991 = vadd.f32 %v2924, %v2959
        %v2992 = vadd.f32 %v2925, %v2960
        %v2993 = vadd.f32 %v2926, %v2961
        %v2994 = vadd.f32 %v2927, %v2962
        %v2995 = vadd.f32 %v2928, %v2963
        %v2996 = vadd.f32 %v2929, %v2964
        %v2997 = vadd.f32 %v2930, %v2965
        %v2998 = vadd.f32 %v2931, %v2966
        %v2999 = vadd.f32 %v2932, %v2967
        %v3000 = vadd.f32 %v2933, %v2968
        %v3001 = vadd.f32 %v2934, %v2969
        %v3002 = vadd.f32 %v2935, %v2970
        %v3003 = vadd.f32 %v2936, %v2971
        %v3004 = vadd.f32 %v2937, %v2972
        %v3005 = vadd.f32 %v2938, %v2973
        %v3006 = vadd.f32 %v2939, %v2974
        %v3007 = vadd.f32 %v2940, %v2975
        %v3008 = vadd.f32 %v2941, %v2976
        %v3009 = vadd.f32 %v2942, %v2977
        %v3010 = vadd.f32 %v2943, %v2978
        %v3011 = vadd.f32 %v2944, %v2979
        %v3012 = vadd.f32 %v2945, %v2980
        %v3013 = vadd.f32 %v2946, %v2981
        %v3014 = vadd.f32 %v2947, %v2982
        %v3015 = vadd.f32 %v2948, %v2983
        %v3016 = vadd.f32 %v2949, %v2984
        %v3017 = vadd.f32 %v2950, %v2985
        %v3018 = vadd.f32 %v2951, %v2986
        %v3019 = vadd.f32 %v2952, %v2987
        %v3020 = vadd.f32 %v2953, %v2988
        %v3021 = vadd.f32 %v2954, %v2989
        %v3022 = vadd.f32 %v2955, %v2990
        %v3023 = vrot.slane %v2210, 1
        %v3024 = vrot.slane %v2211, 1
        %v3025 = vsel %vm2602, %v3023, %v3024
        %v3026 = vsel %vm2602, %v3024, %v3023
        %v3027 = vperm.slane %v2215, 0
        %v3028 = vmul.f32 %v3027, %v2259
        %v3029 = vmul.f32 %v3027, %v2260
        %v3030 = vmul.f32 0.0, %v3028
        %v3031 = vmul.f32 0.0, %v3029
        %v3032 = vmul.f32 %v2603, %v3028
        %v3033 = vmul.f32 %v2617, %v3029
        %v3034 = vmul.f32 %v2604, %v3028
        %v3035 = vmul.f32 %v2618, %v3029
        %v3036 = vmul.f32 %v2605, %v3028
        %v3037 = vmul.f32 %v2619, %v3029
        %v3038 = vmul.f32 %v2606, %v3028
        %v3039 = vmul.f32 %v2620, %v3029
        %v3040 = vmul.f32 %v2607, %v3028
        %v3041 = vmul.f32 %v2621, %v3029
        %v3042 = vmul.f32 %v2608, %v3028
        %v3043 = vmul.f32 %v2622, %v3029
        %v3044 = vmul.f32 %v2609, %v3028
        %v3045 = vmul.f32 %v2623, %v3029
        %v3046 = vmul.f32 %v2610, %v3028
        %v3047 = vmul.f32 %v2624, %v3029
        %v3048 = vmul.f32 %v2611, %v3028
        %v3049 = vmul.f32 %v2625, %v3029
        %v3050 = vmul.f32 %v2612, %v3028
        %v3051 = vmul.f32 %v2626, %v3029
        %v3052 = vmul.f32 %v2613, %v3028
        %v3053 = vmul.f32 %v2627, %v3029
        %v3054 = vmul.f32 %v2614, %v3028
        %v3055 = vmul.f32 %v2628, %v3029
        %v3056 = vmul.f32 %v2615, %v3028
        %v3057 = vmul.f32 %v2629, %v3029
        %v3058 = vmul.f32 %v2616, %v3028
        %v3059 = vmul.f32 %v2630, %v3029
        %v3060 = vmul.f32 %v3025, %v3028
        %v3061 = vmul.f32 %v3026, %v3029
        %v3062 = vadd.f32 %v2991, %v3030
        %v3063 = vadd.f32 %v2992, %v3031
        %v3064 = vadd.f32 %v2993, %v3032
        %v3065 = vadd.f32 %v2994, %v3033
        %v3066 = vadd.f32 %v2995, %v3034
        %v3067 = vadd.f32 %v2996, %v3035
        %v3068 = vadd.f32 %v2997, %v3036
        %v3069 = vadd.f32 %v2998, %v3037
        %v3070 = vadd.f32 %v2999, %v3038
        %v3071 = vadd.f32 %v3000, %v3039
        %v3072 = vadd.f32 %v3001, %v3040
        %v3073 = vadd.f32 %v3002, %v3041
        %v3074 = vadd.f32 %v3003, %v3042
        %v3075 = vadd.f32 %v3004, %v3043
        %v3076 = vadd.f32 %v3005, %v3044
        %v3077 = vadd.f32 %v3006, %v3045
        %v3078 = vadd.f32 %v3007, %v3046
        %v3079 = vadd.f32 %v3008, %v3047
        %v3080 = vadd.f32 %v3009, %v3048
        %v3081 = vadd.f32 %v3010, %v3049
        %v3082 = vadd.f32 %v3011, %v3050
        %v3083 = vadd.f32 %v3012, %v3051
        %v3084 = vadd.f32 %v3013, %v3052
        %v3085 = vadd.f32 %v3014, %v3053
        %v3086 = vadd.f32 %v3015, %v3054
        %v3087 = vadd.f32 %v3016, %v3055
        %v3088 = vadd.f32 %v3017, %v3056
        %v3089 = vadd.f32 %v3018, %v3057
        %v3090 = vadd.f32 %v3019, %v3058
        %v3091 = vadd.f32 %v3020, %v3059
        %v3092 = vadd.f32 %v3021, %v3060
        %v3093 = vadd.f32 %v3022, %v3061
        %v3094 = vrot.slane %v2210, 2
        %v3095 = vrot.slane %v2211, 2
        %v3096 = vsel %vm2722, %v3094, %v3095
        %v3097 = vsel %vm2722, %v3095, %v3094
        %v3098 = vperm.slane %v2215, 1
        %v3099 = vmul.f32 %v3098, %v2269
        %v3100 = vmul.f32 %v3098, %v2270
        %v3101 = vmul.f32 0.0, %v3099
        %v3102 = vmul.f32 0.0, %v3100
        %v3103 = vmul.f32 %v2723, %v3099
        %v3104 = vmul.f32 %v2737, %v3100
        %v3105 = vmul.f32 %v2724, %v3099
        %v3106 = vmul.f32 %v2738, %v3100
        %v3107 = vmul.f32 %v2725, %v3099
        %v3108 = vmul.f32 %v2739, %v3100
        %v3109 = vmul.f32 %v2726, %v3099
        %v3110 = vmul.f32 %v2740, %v3100
        %v3111 = vmul.f32 %v2727, %v3099
        %v3112 = vmul.f32 %v2741, %v3100
        %v3113 = vmul.f32 %v2728, %v3099
        %v3114 = vmul.f32 %v2742, %v3100
        %v3115 = vmul.f32 %v2729, %v3099
        %v3116 = vmul.f32 %v2743, %v3100
        %v3117 = vmul.f32 %v2730, %v3099
        %v3118 = vmul.f32 %v2744, %v3100
        %v3119 = vmul.f32 %v2731, %v3099
        %v3120 = vmul.f32 %v2745, %v3100
        %v3121 = vmul.f32 %v2732, %v3099
        %v3122 = vmul.f32 %v2746, %v3100
        %v3123 = vmul.f32 %v2733, %v3099
        %v3124 = vmul.f32 %v2747, %v3100
        %v3125 = vmul.f32 %v2734, %v3099
        %v3126 = vmul.f32 %v2748, %v3100
        %v3127 = vmul.f32 %v2735, %v3099
        %v3128 = vmul.f32 %v2749, %v3100
        %v3129 = vmul.f32 %v2736, %v3099
        %v3130 = vmul.f32 %v2750, %v3100
        %v3131 = vmul.f32 %v3096, %v3099
        %v3132 = vmul.f32 %v3097, %v3100
        %v3133 = vadd.f32 %v3062, %v3101
        %v3134 = vadd.f32 %v3063, %v3102
        %v3135 = vadd.f32 %v3064, %v3103
        %v3136 = vadd.f32 %v3065, %v3104
        %v3137 = vadd.f32 %v3066, %v3105
        %v3138 = vadd.f32 %v3067, %v3106
        %v3139 = vadd.f32 %v3068, %v3107
        %v3140 = vadd.f32 %v3069, %v3108
        %v3141 = vadd.f32 %v3070, %v3109
        %v3142 = vadd.f32 %v3071, %v3110
        %v3143 = vadd.f32 %v3072, %v3111
        %v3144 = vadd.f32 %v3073, %v3112
        %v3145 = vadd.f32 %v3074, %v3113
        %v3146 = vadd.f32 %v3075, %v3114
        %v3147 = vadd.f32 %v3076, %v3115
        %v3148 = vadd.f32 %v3077, %v3116
        %v3149 = vadd.f32 %v3078, %v3117
        %v3150 = vadd.f32 %v3079, %v3118
        %v3151 = vadd.f32 %v3080, %v3119
        %v3152 = vadd.f32 %v3081, %v3120
        %v3153 = vadd.f32 %v3082, %v3121
        %v3154 = vadd.f32 %v3083, %v3122
        %v3155 = vadd.f32 %v3084, %v3123
        %v3156 = vadd.f32 %v3085, %v3124
        %v3157 = vadd.f32 %v3086, %v3125
        %v3158 = vadd.f32 %v3087, %v3126
        %v3159 = vadd.f32 %v3088, %v3127
        %v3160 = vadd.f32 %v3089, %v3128
        %v3161 = vadd.f32 %v3090, %v3129
        %v3162 = vadd.f32 %v3091, %v3130
        %v3163 = vadd.f32 %v3092, %v3131
        %v3164 = vadd.f32 %v3093, %v3132
        %v3165 = vrot.slane %v2212, 6
        %v3166 = vrot.slane %v2213, 6
        %v3167 = vsel %vm2299, %v3165, %v3166
        %v3168 = vsel %vm2299, %v3166, %v3165
        %v3169 = vperm.slane %v2215, 2
        %v3170 = vmul.f32 %v3169, %v2229
        %v3171 = vmul.f32 %v3169, %v2230
        %v3172 = vmul.f32 %v2314, %v3170
        %v3173 = vmul.f32 %v2300, %v3171
        %v3174 = vmul.f32 %v2315, %v3170
        %v3175 = vmul.f32 %v2301, %v3171
        %v3176 = vmul.f32 %v2316, %v3170
        %v3177 = vmul.f32 %v2302, %v3171
        %v3178 = vmul.f32 %v2317, %v3170
        %v3179 = vmul.f32 %v2303, %v3171
        %v3180 = vmul.f32 %v2318, %v3170
        %v3181 = vmul.f32 %v2304, %v3171
        %v3182 = vmul.f32 %v2319, %v3170
        %v3183 = vmul.f32 %v2305, %v3171
        %v3184 = vmul.f32 %v2320, %v3170
        %v3185 = vmul.f32 %v2306, %v3171
        %v3186 = vmul.f32 %v2321, %v3170
        %v3187 = vmul.f32 %v2307, %v3171
        %v3188 = vmul.f32 %v2322, %v3170
        %v3189 = vmul.f32 %v2308, %v3171
        %v3190 = vmul.f32 %v2323, %v3170
        %v3191 = vmul.f32 %v2309, %v3171
        %v3192 = vmul.f32 %v2324, %v3170
        %v3193 = vmul.f32 %v2310, %v3171
        %v3194 = vmul.f32 %v2325, %v3170
        %v3195 = vmul.f32 %v2311, %v3171
        %v3196 = vmul.f32 %v2326, %v3170
        %v3197 = vmul.f32 %v2312, %v3171
        %v3198 = vmul.f32 %v2327, %v3170
        %v3199 = vmul.f32 %v2313, %v3171
        %v3200 = vmul.f32 %v2817, %v3170
        %v3201 = vmul.f32 %v2816, %v3171
        %v3202 = vmul.f32 %v3168, %v3170
        %v3203 = vmul.f32 %v3167, %v3171
        %v3204 = vadd.f32 %v3133, %v3172
        %v3205 = vadd.f32 %v3134, %v3173
        %v3206 = vadd.f32 %v3135, %v3174
        %v3207 = vadd.f32 %v3136, %v3175
        %v3208 = vadd.f32 %v3137, %v3176
        %v3209 = vadd.f32 %v3138, %v3177
        %v3210 = vadd.f32 %v3139, %v3178
        %v3211 = vadd.f32 %v3140, %v3179
        %v3212 = vadd.f32 %v3141, %v3180
        %v3213 = vadd.f32 %v3142, %v3181
        %v3214 = vadd.f32 %v3143, %v3182
        %v3215 = vadd.f32 %v3144, %v3183
        %v3216 = vadd.f32 %v3145, %v3184
        %v3217 = vadd.f32 %v3146, %v3185
        %v3218 = vadd.f32 %v3147, %v3186
        %v3219 = vadd.f32 %v3148, %v3187
        %v3220 = vadd.f32 %v3149, %v3188
        %v3221 = vadd.f32 %v3150, %v3189
        %v3222 = vadd.f32 %v3151, %v3190
        %v3223 = vadd.f32 %v3152, %v3191
        %v3224 = vadd.f32 %v3153, %v3192
        %v3225 = vadd.f32 %v3154, %v3193
        %v3226 = vadd.f32 %v3155, %v3194
        %v3227 = vadd.f32 %v3156, %v3195
        %v3228 = vadd.f32 %v3157, %v3196
        %v3229 = vadd.f32 %v3158, %v3197
        %v3230 = vadd.f32 %v3159, %v3198
        %v3231 = vadd.f32 %v3160, %v3199
        %v3232 = vadd.f32 %v3161, %v3200
        %v3233 = vadd.f32 %v3162, %v3201
        %v3234 = vadd.f32 %v3163, %v3202
        %v3235 = vadd.f32 %v3164, %v3203
        %v3236 = vrot.slane %v2212, 7
        %v3237 = vrot.slane %v2213, 7
        %v3238 = vsel %vm2419, %v3236, %v3237
        %v3239 = vsel %vm2419, %v3237, %v3236
        %v3240 = vperm.slane %v2215, 3
        %v3241 = vmul.f32 %v3240, %v2239
        %v3242 = vmul.f32 %v3240, %v2240
        %v3243 = vmul.f32 %v2434, %v3241
        %v3244 = vmul.f32 %v2420, %v3242
        %v3245 = vmul.f32 %v2435, %v3241
        %v3246 = vmul.f32 %v2421, %v3242
        %v3247 = vmul.f32 %v2436, %v3241
        %v3248 = vmul.f32 %v2422, %v3242
        %v3249 = vmul.f32 %v2437, %v3241
        %v3250 = vmul.f32 %v2423, %v3242
        %v3251 = vmul.f32 %v2438, %v3241
        %v3252 = vmul.f32 %v2424, %v3242
        %v3253 = vmul.f32 %v2439, %v3241
        %v3254 = vmul.f32 %v2425, %v3242
        %v3255 = vmul.f32 %v2440, %v3241
        %v3256 = vmul.f32 %v2426, %v3242
        %v3257 = vmul.f32 %v2441, %v3241
        %v3258 = vmul.f32 %v2427, %v3242
        %v3259 = vmul.f32 %v2442, %v3241
        %v3260 = vmul.f32 %v2428, %v3242
        %v3261 = vmul.f32 %v2443, %v3241
        %v3262 = vmul.f32 %v2429, %v3242
        %v3263 = vmul.f32 %v2444, %v3241
        %v3264 = vmul.f32 %v2430, %v3242
        %v3265 = vmul.f32 %v2445, %v3241
        %v3266 = vmul.f32 %v2431, %v3242
        %v3267 = vmul.f32 %v2446, %v3241
        %v3268 = vmul.f32 %v2432, %v3242
        %v3269 = vmul.f32 %v2447, %v3241
        %v3270 = vmul.f32 %v2433, %v3242
        %v3271 = vmul.f32 %v2888, %v3241
        %v3272 = vmul.f32 %v2887, %v3242
        %v3273 = vmul.f32 %v3239, %v3241
        %v3274 = vmul.f32 %v3238, %v3242
        %v3275 = vadd.f32 %v3204, %v3243
        %v3276 = vadd.f32 %v3205, %v3244
        %v3277 = vadd.f32 %v3206, %v3245
        %v3278 = vadd.f32 %v3207, %v3246
        %v3279 = vadd.f32 %v3208, %v3247
        %v3280 = vadd.f32 %v3209, %v3248
        %v3281 = vadd.f32 %v3210, %v3249
        %v3282 = vadd.f32 %v3211, %v3250
        %v3283 = vadd.f32 %v3212, %v3251
        %v3284 = vadd.f32 %v3213, %v3252
        %v3285 = vadd.f32 %v3214, %v3253
        %v3286 = vadd.f32 %v3215, %v3254
        %v3287 = vadd.f32 %v3216, %v3255
        %v3288 = vadd.f32 %v3217, %v3256
        %v3289 = vadd.f32 %v3218, %v3257
        %v3290 = vadd.f32 %v3219, %v3258
        %v3291 = vadd.f32 %v3220, %v3259
        %v3292 = vadd.f32 %v3221, %v3260
        %v3293 = vadd.f32 %v3222, %v3261
        %v3294 = vadd.f32 %v3223, %v3262
        %v3295 = vadd.f32 %v3224, %v3263
        %v3296 = vadd.f32 %v3225, %v3264
        %v3297 = vadd.f32 %v3226, %v3265
        %v3298 = vadd.f32 %v3227, %v3266
        %v3299 = vadd.f32 %v3228, %v3267
        %v3300 = vadd.f32 %v3229, %v3268
        %v3301 = vadd.f32 %v3230, %v3269
        %v3302 = vadd.f32 %v3231, %v3270
        %v3303 = vadd.f32 %v3232, %v3271
        %v3304 = vadd.f32 %v3233, %v3272
        %v3305 = vadd.f32 %v3234, %v3273
        %v3306 = vadd.f32 %v3235, %v3274
        %v3307 = vperm.slane %v2215, 4
        %v3308 = vmul.f32 %v3307, %v2249
        %v3309 = vmul.f32 %v3307, %v2250
        %v3310 = vmul.f32 %v2182, %v3308
        %v3311 = vmul.f32 %v2183, %v3309
        %v3312 = vmul.f32 %v2184, %v3308
        %v3313 = vmul.f32 %v2185, %v3309
        %v3314 = vmul.f32 %v2186, %v3308
        %v3315 = vmul.f32 %v2187, %v3309
        %v3316 = vmul.f32 %v2188, %v3308
        %v3317 = vmul.f32 %v2189, %v3309
        %v3318 = vmul.f32 %v2190, %v3308
        %v3319 = vmul.f32 %v2191, %v3309
        %v3320 = vmul.f32 %v2192, %v3308
        %v3321 = vmul.f32 %v2193, %v3309
        %v3322 = vmul.f32 %v2194, %v3308
        %v3323 = vmul.f32 %v2195, %v3309
        %v3324 = vmul.f32 %v2196, %v3308
        %v3325 = vmul.f32 %v2197, %v3309
        %v3326 = vmul.f32 %v2198, %v3308
        %v3327 = vmul.f32 %v2199, %v3309
        %v3328 = vmul.f32 %v2200, %v3308
        %v3329 = vmul.f32 %v2201, %v3309
        %v3330 = vmul.f32 %v2202, %v3308
        %v3331 = vmul.f32 %v2203, %v3309
        %v3332 = vmul.f32 %v2204, %v3308
        %v3333 = vmul.f32 %v2205, %v3309
        %v3334 = vmul.f32 %v2206, %v3308
        %v3335 = vmul.f32 %v2207, %v3309
        %v3336 = vmul.f32 %v2208, %v3308
        %v3337 = vmul.f32 %v2209, %v3309
        %v3338 = vmul.f32 %v2210, %v3308
        %v3339 = vmul.f32 %v2211, %v3309
        %v3340 = vmul.f32 %v2212, %v3308
        %v3341 = vmul.f32 %v2213, %v3309
        %v3342 = vadd.f32 %v3275, %v3310
        %v3343 = vadd.f32 %v3276, %v3311
        %v3344 = vadd.f32 %v3277, %v3312
        %v3345 = vadd.f32 %v3278, %v3313
        %v3346 = vadd.f32 %v3279, %v3314
        %v3347 = vadd.f32 %v3280, %v3315
        %v3348 = vadd.f32 %v3281, %v3316
        %v3349 = vadd.f32 %v3282, %v3317
        %v3350 = vadd.f32 %v3283, %v3318
        %v3351 = vadd.f32 %v3284, %v3319
        %v3352 = vadd.f32 %v3285, %v3320
        %v3353 = vadd.f32 %v3286, %v3321
        %v3354 = vadd.f32 %v3287, %v3322
        %v3355 = vadd.f32 %v3288, %v3323
        %v3356 = vadd.f32 %v3289, %v3324
        %v3357 = vadd.f32 %v3290, %v3325
        %v3358 = vadd.f32 %v3291, %v3326
        %v3359 = vadd.f32 %v3292, %v3327
        %v3360 = vadd.f32 %v3293, %v3328
        %v3361 = vadd.f32 %v3294, %v3329
        %v3362 = vadd.f32 %v3295, %v3330
        %v3363 = vadd.f32 %v3296, %v3331
        %v3364 = vadd.f32 %v3297, %v3332
        %v3365 = vadd.f32 %v3298, %v3333
        %v3366 = vadd.f32 %v3299, %v3334
        %v3367 = vadd.f32 %v3300, %v3335
        %v3368 = vadd.f32 %v3301, %v3336
        %v3369 = vadd.f32 %v3302, %v3337
        %v3370 = vadd.f32 %v3303, %v3338
        %v3371 = vadd.f32 %v3304, %v3339
        %v3372 = vadd.f32 %v3305, %v3340
        %v3373 = vadd.f32 %v3306, %v3341
        %v3374 = vrot.slane %v2212, 1
        %v3375 = vrot.slane %v2213, 1
        %v3376 = vsel %vm2602, %v3374, %v3375
        %v3377 = vsel %vm2602, %v3375, %v3374
        %v3378 = vperm.slane %v2215, 5
        %v3379 = vmul.f32 %v3378, %v2259
        %v3380 = vmul.f32 %v3378, %v2260
        %v3381 = vmul.f32 %v2603, %v3379
        %v3382 = vmul.f32 %v2617, %v3380
        %v3383 = vmul.f32 %v2604, %v3379
        %v3384 = vmul.f32 %v2618, %v3380
        %v3385 = vmul.f32 %v2605, %v3379
        %v3386 = vmul.f32 %v2619, %v3380
        %v3387 = vmul.f32 %v2606, %v3379
        %v3388 = vmul.f32 %v2620, %v3380
        %v3389 = vmul.f32 %v2607, %v3379
        %v3390 = vmul.f32 %v2621, %v3380
        %v3391 = vmul.f32 %v2608, %v3379
        %v3392 = vmul.f32 %v2622, %v3380
        %v3393 = vmul.f32 %v2609, %v3379
        %v3394 = vmul.f32 %v2623, %v3380
        %v3395 = vmul.f32 %v2610, %v3379
        %v3396 = vmul.f32 %v2624, %v3380
        %v3397 = vmul.f32 %v2611, %v3379
        %v3398 = vmul.f32 %v2625, %v3380
        %v3399 = vmul.f32 %v2612, %v3379
        %v3400 = vmul.f32 %v2626, %v3380
        %v3401 = vmul.f32 %v2613, %v3379
        %v3402 = vmul.f32 %v2627, %v3380
        %v3403 = vmul.f32 %v2614, %v3379
        %v3404 = vmul.f32 %v2628, %v3380
        %v3405 = vmul.f32 %v2615, %v3379
        %v3406 = vmul.f32 %v2629, %v3380
        %v3407 = vmul.f32 %v2616, %v3379
        %v3408 = vmul.f32 %v2630, %v3380
        %v3409 = vmul.f32 %v3025, %v3379
        %v3410 = vmul.f32 %v3026, %v3380
        %v3411 = vmul.f32 %v3376, %v3379
        %v3412 = vmul.f32 %v3377, %v3380
        %v3413 = vadd.f32 %v3342, %v3381
        %v3414 = vadd.f32 %v3343, %v3382
        %v3415 = vadd.f32 %v3344, %v3383
        %v3416 = vadd.f32 %v3345, %v3384
        %v3417 = vadd.f32 %v3346, %v3385
        %v3418 = vadd.f32 %v3347, %v3386
        %v3419 = vadd.f32 %v3348, %v3387
        %v3420 = vadd.f32 %v3349, %v3388
        %v3421 = vadd.f32 %v3350, %v3389
        %v3422 = vadd.f32 %v3351, %v3390
        %v3423 = vadd.f32 %v3352, %v3391
        %v3424 = vadd.f32 %v3353, %v3392
        %v3425 = vadd.f32 %v3354, %v3393
        %v3426 = vadd.f32 %v3355, %v3394
        %v3427 = vadd.f32 %v3356, %v3395
        %v3428 = vadd.f32 %v3357, %v3396
        %v3429 = vadd.f32 %v3358, %v3397
        %v3430 = vadd.f32 %v3359, %v3398
        %v3431 = vadd.f32 %v3360, %v3399
        %v3432 = vadd.f32 %v3361, %v3400
        %v3433 = vadd.f32 %v3362, %v3401
        %v3434 = vadd.f32 %v3363, %v3402
        %v3435 = vadd.f32 %v3364, %v3403
        %v3436 = vadd.f32 %v3365, %v3404
        %v3437 = vadd.f32 %v3366, %v3405
        %v3438 = vadd.f32 %v3367, %v3406
        %v3439 = vadd.f32 %v3368, %v3407
        %v3440 = vadd.f32 %v3369, %v3408
        %v3441 = vadd.f32 %v3370, %v3409
        %v3442 = vadd.f32 %v3371, %v3410
        %v3443 = vadd.f32 %v3372, %v3411
        %v3444 = vadd.f32 %v3373, %v3412
        %v3445 = vrot.slane %v2212, 2
        %v3446 = vrot.slane %v2213, 2
        %v3447 = vsel %vm2722, %v3445, %v3446
        %v3448 = vsel %vm2722, %v3446, %v3445
        %v3449 = vperm.slane %v2215, 6
        %v3450 = vmul.f32 %v3449, %v2269
        %v3451 = vmul.f32 %v3449, %v2270
        %v3452 = vmul.f32 %v2723, %v3450
        %v3453 = vmul.f32 %v2737, %v3451
        %v3454 = vmul.f32 %v2724, %v3450
        %v3455 = vmul.f32 %v2738, %v3451
        %v3456 = vmul.f32 %v2725, %v3450
        %v3457 = vmul.f32 %v2739, %v3451
        %v3458 = vmul.f32 %v2726, %v3450
        %v3459 = vmul.f32 %v2740, %v3451
        %v3460 = vmul.f32 %v2727, %v3450
        %v3461 = vmul.f32 %v2741, %v3451
        %v3462 = vmul.f32 %v2728, %v3450
        %v3463 = vmul.f32 %v2742, %v3451
        %v3464 = vmul.f32 %v2729, %v3450
        %v3465 = vmul.f32 %v2743, %v3451
        %v3466 = vmul.f32 %v2730, %v3450
        %v3467 = vmul.f32 %v2744, %v3451
        %v3468 = vmul.f32 %v2731, %v3450
        %v3469 = vmul.f32 %v2745, %v3451
        %v3470 = vmul.f32 %v2732, %v3450
        %v3471 = vmul.f32 %v2746, %v3451
        %v3472 = vmul.f32 %v2733, %v3450
        %v3473 = vmul.f32 %v2747, %v3451
        %v3474 = vmul.f32 %v2734, %v3450
        %v3475 = vmul.f32 %v2748, %v3451
        %v3476 = vmul.f32 %v2735, %v3450
        %v3477 = vmul.f32 %v2749, %v3451
        %v3478 = vmul.f32 %v2736, %v3450
        %v3479 = vmul.f32 %v2750, %v3451
        %v3480 = vmul.f32 %v3096, %v3450
        %v3481 = vmul.f32 %v3097, %v3451
        %v3482 = vmul.f32 %v3447, %v3450
        %v3483 = vmul.f32 %v3448, %v3451
        %v3484 = vadd.f32 %v3413, %v3452
        %v3485 = vadd.f32 %v3414, %v3453
        %v3486 = vadd.f32 %v3415, %v3454
        %v3487 = vadd.f32 %v3416, %v3455
        %v3488 = vadd.f32 %v3417, %v3456
        %v3489 = vadd.f32 %v3418, %v3457
        %v3490 = vadd.f32 %v3419, %v3458
        %v3491 = vadd.f32 %v3420, %v3459
        %v3492 = vadd.f32 %v3421, %v3460
        %v3493 = vadd.f32 %v3422, %v3461
        %v3494 = vadd.f32 %v3423, %v3462
        %v3495 = vadd.f32 %v3424, %v3463
        %v3496 = vadd.f32 %v3425, %v3464
        %v3497 = vadd.f32 %v3426, %v3465
        %v3498 = vadd.f32 %v3427, %v3466
        %v3499 = vadd.f32 %v3428, %v3467
        %v3500 = vadd.f32 %v3429, %v3468
        %v3501 = vadd.f32 %v3430, %v3469
        %v3502 = vadd.f32 %v3431, %v3470
        %v3503 = vadd.f32 %v3432, %v3471
        %v3504 = vadd.f32 %v3433, %v3472
        %v3505 = vadd.f32 %v3434, %v3473
        %v3506 = vadd.f32 %v3435, %v3474
        %v3507 = vadd.f32 %v3436, %v3475
        %v3508 = vadd.f32 %v3437, %v3476
        %v3509 = vadd.f32 %v3438, %v3477
        %v3510 = vadd.f32 %v3439, %v3478
        %v3511 = vadd.f32 %v3440, %v3479
        %v3512 = vadd.f32 %v3441, %v3480
        %v3513 = vadd.f32 %v3442, %v3481
        %v3514 = vadd.f32 %v3443, %v3482
        %v3515 = vadd.f32 %v3444, %v3483
        %v3516 = vperm.slane %v2215, 7
        %v3517 = vmul.f32 %v3516, %v2229
        %v3518 = vmul.f32 %v3516, %v2230
        %v3519 = vmul.f32 %v2315, %v3517
        %v3520 = vmul.f32 %v2301, %v3518
        %v3521 = vmul.f32 %v2316, %v3517
        %v3522 = vmul.f32 %v2302, %v3518
        %v3523 = vmul.f32 %v2317, %v3517
        %v3524 = vmul.f32 %v2303, %v3518
        %v3525 = vmul.f32 %v2318, %v3517
        %v3526 = vmul.f32 %v2304, %v3518
        %v3527 = vmul.f32 %v2319, %v3517
        %v3528 = vmul.f32 %v2305, %v3518
        %v3529 = vmul.f32 %v2320, %v3517
        %v3530 = vmul.f32 %v2306, %v3518
        %v3531 = vmul.f32 %v2321, %v3517
        %v3532 = vmul.f32 %v2307, %v3518
        %v3533 = vmul.f32 %v2322, %v3517
        %v3534 = vmul.f32 %v2308, %v3518
        %v3535 = vmul.f32 %v2323, %v3517
        %v3536 = vmul.f32 %v2309, %v3518
        %v3537 = vmul.f32 %v2324, %v3517
        %v3538 = vmul.f32 %v2310, %v3518
        %v3539 = vmul.f32 %v2325, %v3517
        %v3540 = vmul.f32 %v2311, %v3518
        %v3541 = vmul.f32 %v2326, %v3517
        %v3542 = vmul.f32 %v2312, %v3518
        %v3543 = vmul.f32 %v2327, %v3517
        %v3544 = vmul.f32 %v2313, %v3518
        %v3545 = vmul.f32 %v2817, %v3517
        %v3546 = vmul.f32 %v2816, %v3518
        %v3547 = vmul.f32 %v3168, %v3517
        %v3548 = vmul.f32 %v3167, %v3518
        %v3549 = vmul.f32 0.0, %v3517
        %v3550 = vmul.f32 0.0, %v3518
        %v3551 = vadd.f32 %v3484, %v3519
        %v3552 = vadd.f32 %v3485, %v3520
        %v3553 = vadd.f32 %v3486, %v3521
        %v3554 = vadd.f32 %v3487, %v3522
        %v3555 = vadd.f32 %v3488, %v3523
        %v3556 = vadd.f32 %v3489, %v3524
        %v3557 = vadd.f32 %v3490, %v3525
        %v3558 = vadd.f32 %v3491, %v3526
        %v3559 = vadd.f32 %v3492, %v3527
        %v3560 = vadd.f32 %v3493, %v3528
        %v3561 = vadd.f32 %v3494, %v3529
        %v3562 = vadd.f32 %v3495, %v3530
        %v3563 = vadd.f32 %v3496, %v3531
        %v3564 = vadd.f32 %v3497, %v3532
        %v3565 = vadd.f32 %v3498, %v3533
        %v3566 = vadd.f32 %v3499, %v3534
        %v3567 = vadd.f32 %v3500, %v3535
        %v3568 = vadd.f32 %v3501, %v3536
        %v3569 = vadd.f32 %v3502, %v3537
        %v3570 = vadd.f32 %v3503, %v3538
        %v3571 = vadd.f32 %v3504, %v3539
        %v3572 = vadd.f32 %v3505, %v3540
        %v3573 = vadd.f32 %v3506, %v3541
        %v3574 = vadd.f32 %v3507, %v3542
        %v3575 = vadd.f32 %v3508, %v3543
        %v3576 = vadd.f32 %v3509, %v3544
        %v3577 = vadd.f32 %v3510, %v3545
        %v3578 = vadd.f32 %v3511, %v3546
        %v3579 = vadd.f32 %v3512, %v3547
        %v3580 = vadd.f32 %v3513, %v3548
        %v3581 = vadd.f32 %v3514, %v3549
        %v3582 = vadd.f32 %v3515, %v3550
        %v3583 = vperm.slane %v2216, 0
        %v3584 = vmul.f32 %v3583, %v2239
        %v3585 = vmul.f32 %v3583, %v2240
        %v3586 = vmul.f32 %v2435, %v3584
        %v3587 = vmul.f32 %v2421, %v3585
        %v3588 = vmul.f32 %v2436, %v3584
        %v3589 = vmul.f32 %v2422, %v3585
        %v3590 = vmul.f32 %v2437, %v3584
        %v3591 = vmul.f32 %v2423, %v3585
        %v3592 = vmul.f32 %v2438, %v3584
        %v3593 = vmul.f32 %v2424, %v3585
        %v3594 = vmul.f32 %v2439, %v3584
        %v3595 = vmul.f32 %v2425, %v3585
        %v3596 = vmul.f32 %v2440, %v3584
        %v3597 = vmul.f32 %v2426, %v3585
        %v3598 = vmul.f32 %v2441, %v3584
        %v3599 = vmul.f32 %v2427, %v3585
        %v3600 = vmul.f32 %v2442, %v3584
        %v3601 = vmul.f32 %v2428, %v3585
        %v3602 = vmul.f32 %v2443, %v3584
        %v3603 = vmul.f32 %v2429, %v3585
        %v3604 = vmul.f32 %v2444, %v3584
        %v3605 = vmul.f32 %v2430, %v3585
        %v3606 = vmul.f32 %v2445, %v3584
        %v3607 = vmul.f32 %v2431, %v3585
        %v3608 = vmul.f32 %v2446, %v3584
        %v3609 = vmul.f32 %v2432, %v3585
        %v3610 = vmul.f32 %v2447, %v3584
        %v3611 = vmul.f32 %v2433, %v3585
        %v3612 = vmul.f32 %v2888, %v3584
        %v3613 = vmul.f32 %v2887, %v3585
        %v3614 = vmul.f32 %v3239, %v3584
        %v3615 = vmul.f32 %v3238, %v3585
        %v3616 = vmul.f32 0.0, %v3584
        %v3617 = vmul.f32 0.0, %v3585
        %v3618 = vadd.f32 %v3551, %v3586
        %v3619 = vadd.f32 %v3552, %v3587
        %v3620 = vadd.f32 %v3553, %v3588
        %v3621 = vadd.f32 %v3554, %v3589
        %v3622 = vadd.f32 %v3555, %v3590
        %v3623 = vadd.f32 %v3556, %v3591
        %v3624 = vadd.f32 %v3557, %v3592
        %v3625 = vadd.f32 %v3558, %v3593
        %v3626 = vadd.f32 %v3559, %v3594
        %v3627 = vadd.f32 %v3560, %v3595
        %v3628 = vadd.f32 %v3561, %v3596
        %v3629 = vadd.f32 %v3562, %v3597
        %v3630 = vadd.f32 %v3563, %v3598
        %v3631 = vadd.f32 %v3564, %v3599
        %v3632 = vadd.f32 %v3565, %v3600
        %v3633 = vadd.f32 %v3566, %v3601
        %v3634 = vadd.f32 %v3567, %v3602
        %v3635 = vadd.f32 %v3568, %v3603
        %v3636 = vadd.f32 %v3569, %v3604
        %v3637 = vadd.f32 %v3570, %v3605
        %v3638 = vadd.f32 %v3571, %v3606
        %v3639 = vadd.f32 %v3572, %v3607
        %v3640 = vadd.f32 %v3573, %v3608
        %v3641 = vadd.f32 %v3574, %v3609
        %v3642 = vadd.f32 %v3575, %v3610
        %v3643 = vadd.f32 %v3576, %v3611
        %v3644 = vadd.f32 %v3577, %v3612
        %v3645 = vadd.f32 %v3578, %v3613
        %v3646 = vadd.f32 %v3579, %v3614
        %v3647 = vadd.f32 %v3580, %v3615
        %v3648 = vadd.f32 %v3581, %v3616
        %v3649 = vadd.f32 %v3582, %v3617
        %v3650 = vperm.slane %v2216, 1
        %v3651 = vmul.f32 %v3650, %v2249
        %v3652 = vmul.f32 %v3650, %v2250
        %v3653 = vmul.f32 %v2184, %v3651
        %v3654 = vmul.f32 %v2185, %v3652
        %v3655 = vmul.f32 %v2186, %v3651
        %v3656 = vmul.f32 %v2187, %v3652
        %v3657 = vmul.f32 %v2188, %v3651
        %v3658 = vmul.f32 %v2189, %v3652
        %v3659 = vmul.f32 %v2190, %v3651
        %v3660 = vmul.f32 %v2191, %v3652
        %v3661 = vmul.f32 %v2192, %v3651
        %v3662 = vmul.f32 %v2193, %v3652
        %v3663 = vmul.f32 %v2194, %v3651
        %v3664 = vmul.f32 %v2195, %v3652
        %v3665 = vmul.f32 %v2196, %v3651
        %v3666 = vmul.f32 %v2197, %v3652
        %v3667 = vmul.f32 %v2198, %v3651
        %v3668 = vmul.f32 %v2199, %v3652
        %v3669 = vmul.f32 %v2200, %v3651
        %v3670 = vmul.f32 %v2201, %v3652
        %v3671 = vmul.f32 %v2202, %v3651
        %v3672 = vmul.f32 %v2203, %v3652
        %v3673 = vmul.f32 %v2204, %v3651
        %v3674 = vmul.f32 %v2205, %v3652
        %v3675 = vmul.f32 %v2206, %v3651
        %v3676 = vmul.f32 %v2207, %v3652
        %v3677 = vmul.f32 %v2208, %v3651
        %v3678 = vmul.f32 %v2209, %v3652
        %v3679 = vmul.f32 %v2210, %v3651
        %v3680 = vmul.f32 %v2211, %v3652
        %v3681 = vmul.f32 %v2212, %v3651
        %v3682 = vmul.f32 %v2213, %v3652
        %v3683 = vmul.f32 %v3651, 0.0
        %v3684 = vmul.f32 %v3652, 0.0
        %v3685 = vadd.f32 %v3618, %v3653
        %v3686 = vadd.f32 %v3619, %v3654
        %v3687 = vadd.f32 %v3620, %v3655
        %v3688 = vadd.f32 %v3621, %v3656
        %v3689 = vadd.f32 %v3622, %v3657
        %v3690 = vadd.f32 %v3623, %v3658
        %v3691 = vadd.f32 %v3624, %v3659
        %v3692 = vadd.f32 %v3625, %v3660
        %v3693 = vadd.f32 %v3626, %v3661
        %v3694 = vadd.f32 %v3627, %v3662
        %v3695 = vadd.f32 %v3628, %v3663
        %v3696 = vadd.f32 %v3629, %v3664
        %v3697 = vadd.f32 %v3630, %v3665
        %v3698 = vadd.f32 %v3631, %v3666
        %v3699 = vadd.f32 %v3632, %v3667
        %v3700 = vadd.f32 %v3633, %v3668
        %v3701 = vadd.f32 %v3634, %v3669
        %v3702 = vadd.f32 %v3635, %v3670
        %v3703 = vadd.f32 %v3636, %v3671
        %v3704 = vadd.f32 %v3637, %v3672
        %v3705 = vadd.f32 %v3638, %v3673
        %v3706 = vadd.f32 %v3639, %v3674
        %v3707 = vadd.f32 %v3640, %v3675
        %v3708 = vadd.f32 %v3641, %v3676
        %v3709 = vadd.f32 %v3642, %v3677
        %v3710 = vadd.f32 %v3643, %v3678
        %v3711 = vadd.f32 %v3644, %v3679
        %v3712 = vadd.f32 %v3645, %v3680
        %v3713 = vadd.f32 %v3646, %v3681
        %v3714 = vadd.f32 %v3647, %v3682
        %v3715 = vadd.f32 %v3648, %v3683
        %v3716 = vadd.f32 %v3649, %v3684
        %v3717 = vperm.slane %v2216, 2
        %v3718 = vmul.f32 %v3717, %v2259
        %v3719 = vmul.f32 %v3717, %v2260
        %v3720 = vmul.f32 %v2604, %v3718
        %v3721 = vmul.f32 %v2618, %v3719
        %v3722 = vmul.f32 %v2605, %v3718
        %v3723 = vmul.f32 %v2619, %v3719
        %v3724 = vmul.f32 %v2606, %v3718
        %v3725 = vmul.f32 %v2620, %v3719
        %v3726 = vmul.f32 %v2607, %v3718
        %v3727 = vmul.f32 %v2621, %v3719
        %v3728 = vmul.f32 %v2608, %v3718
        %v3729 = vmul.f32 %v2622, %v3719
        %v3730 = vmul.f32 %v2609, %v3718
        %v3731 = vmul.f32 %v2623, %v3719
        %v3732 = vmul.f32 %v2610, %v3718
        %v3733 = vmul.f32 %v2624, %v3719
        %v3734 = vmul.f32 %v2611, %v3718
        %v3735 = vmul.f32 %v2625, %v3719
        %v3736 = vmul.f32 %v2612, %v3718
        %v3737 = vmul.f32 %v2626, %v3719
        %v3738 = vmul.f32 %v2613, %v3718
        %v3739 = vmul.f32 %v2627, %v3719
        %v3740 = vmul.f32 %v2614, %v3718
        %v3741 = vmul.f32 %v2628, %v3719
        %v3742 = vmul.f32 %v2615, %v3718
        %v3743 = vmul.f32 %v2629, %v3719
        %v3744 = vmul.f32 %v2616, %v3718
        %v3745 = vmul.f32 %v2630, %v3719
        %v3746 = vmul.f32 %v3025, %v3718
        %v3747 = vmul.f32 %v3026, %v3719
        %v3748 = vmul.f32 %v3376, %v3718
        %v3749 = vmul.f32 %v3377, %v3719
        %v3750 = vmul.f32 0.0, %v3718
        %v3751 = vmul.f32 0.0, %v3719
        %v3752 = vadd.f32 %v3685, %v3720
        %v3753 = vadd.f32 %v3686, %v3721
        %v3754 = vadd.f32 %v3687, %v3722
        %v3755 = vadd.f32 %v3688, %v3723
        %v3756 = vadd.f32 %v3689, %v3724
        %v3757 = vadd.f32 %v3690, %v3725
        %v3758 = vadd.f32 %v3691, %v3726
        %v3759 = vadd.f32 %v3692, %v3727
        %v3760 = vadd.f32 %v3693, %v3728
        %v3761 = vadd.f32 %v3694, %v3729
        %v3762 = vadd.f32 %v3695, %v3730
        %v3763 = vadd.f32 %v3696, %v3731
        %v3764 = vadd.f32 %v3697, %v3732
        %v3765 = vadd.f32 %v3698, %v3733
        %v3766 = vadd.f32 %v3699, %v3734
        %v3767 = vadd.f32 %v3700, %v3735
        %v3768 = vadd.f32 %v3701, %v3736
        %v3769 = vadd.f32 %v3702, %v3737
        %v3770 = vadd.f32 %v3703, %v3738
        %v3771 = vadd.f32 %v3704, %v3739
        %v3772 = vadd.f32 %v3705, %v3740
        %v3773 = vadd.f32 %v3706, %v3741
        %v3774 = vadd.f32 %v3707, %v3742
        %v3775 = vadd.f32 %v3708, %v3743
        %v3776 = vadd.f32 %v3709, %v3744
        %v3777 = vadd.f32 %v3710, %v3745
        %v3778 = vadd.f32 %v3711, %v3746
        %v3779 = vadd.f32 %v3712, %v3747
        %v3780 = vadd.f32 %v3713, %v3748
        %v3781 = vadd.f32 %v3714, %v3749
        %v3782 = vadd.f32 %v3715, %v3750
        %v3783 = vadd.f32 %v3716, %v3751
        %v3784 = vperm.slane %v2216, 3
        %v3785 = vmul.f32 %v3784, %v2269
        %v3786 = vmul.f32 %v3784, %v2270
        %v3787 = vmul.f32 %v2724, %v3785
        %v3788 = vmul.f32 %v2738, %v3786
        %v3789 = vmul.f32 %v2725, %v3785
        %v3790 = vmul.f32 %v2739, %v3786
        %v3791 = vmul.f32 %v2726, %v3785
        %v3792 = vmul.f32 %v2740, %v3786
        %v3793 = vmul.f32 %v2727, %v3785
        %v3794 = vmul.f32 %v2741, %v3786
        %v3795 = vmul.f32 %v2728, %v3785
        %v3796 = vmul.f32 %v2742, %v3786
        %v3797 = vmul.f32 %v2729, %v3785
        %v3798 = vmul.f32 %v2743, %v3786
        %v3799 = vmul.f32 %v2730, %v3785
        %v3800 = vmul.f32 %v2744, %v3786
        %v3801 = vmul.f32 %v2731, %v3785
        %v3802 = vmul.f32 %v2745, %v3786
        %v3803 = vmul.f32 %v2732, %v3785
        %v3804 = vmul.f32 %v2746, %v3786
        %v3805 = vmul.f32 %v2733, %v3785
        %v3806 = vmul.f32 %v2747, %v3786
        %v3807 = vmul.f32 %v2734, %v3785
        %v3808 = vmul.f32 %v2748, %v3786
        %v3809 = vmul.f32 %v2735, %v3785
        %v3810 = vmul.f32 %v2749, %v3786
        %v3811 = vmul.f32 %v2736, %v3785
        %v3812 = vmul.f32 %v2750, %v3786
        %v3813 = vmul.f32 %v3096, %v3785
        %v3814 = vmul.f32 %v3097, %v3786
        %v3815 = vmul.f32 %v3447, %v3785
        %v3816 = vmul.f32 %v3448, %v3786
        %v3817 = vmul.f32 0.0, %v3785
        %v3818 = vmul.f32 0.0, %v3786
        %v3819 = vadd.f32 %v3752, %v3787
        %v3820 = vadd.f32 %v3753, %v3788
        %v3821 = vadd.f32 %v3754, %v3789
        %v3822 = vadd.f32 %v3755, %v3790
        %v3823 = vadd.f32 %v3756, %v3791
        %v3824 = vadd.f32 %v3757, %v3792
        %v3825 = vadd.f32 %v3758, %v3793
        %v3826 = vadd.f32 %v3759, %v3794
        %v3827 = vadd.f32 %v3760, %v3795
        %v3828 = vadd.f32 %v3761, %v3796
        %v3829 = vadd.f32 %v3762, %v3797
        %v3830 = vadd.f32 %v3763, %v3798
        %v3831 = vadd.f32 %v3764, %v3799
        %v3832 = vadd.f32 %v3765, %v3800
        %v3833 = vadd.f32 %v3766, %v3801
        %v3834 = vadd.f32 %v3767, %v3802
        %v3835 = vadd.f32 %v3768, %v3803
        %v3836 = vadd.f32 %v3769, %v3804
        %v3837 = vadd.f32 %v3770, %v3805
        %v3838 = vadd.f32 %v3771, %v3806
        %v3839 = vadd.f32 %v3772, %v3807
        %v3840 = vadd.f32 %v3773, %v3808
        %v3841 = vadd.f32 %v3774, %v3809
        %v3842 = vadd.f32 %v3775, %v3810
        %v3843 = vadd.f32 %v3776, %v3811
        %v3844 = vadd.f32 %v3777, %v3812
        %v3845 = vadd.f32 %v3778, %v3813
        %v3846 = vadd.f32 %v3779, %v3814
        %v3847 = vadd.f32 %v3780, %v3815
        %v3848 = vadd.f32 %v3781, %v3816
        %v3849 = vadd.f32 %v3782, %v3817
        %v3850 = vadd.f32 %v3783, %v3818
        %v3851 = vperm.slane %v2216, 4
        %v3852 = vmul.f32 %v3851, %v2229
        %v3853 = vmul.f32 %v3851, %v2230
        %v3854 = vmul.f32 %v2316, %v3852
        %v3855 = vmul.f32 %v2302, %v3853
        %v3856 = vmul.f32 %v2317, %v3852
        %v3857 = vmul.f32 %v2303, %v3853
        %v3858 = vmul.f32 %v2318, %v3852
        %v3859 = vmul.f32 %v2304, %v3853
        %v3860 = vmul.f32 %v2319, %v3852
        %v3861 = vmul.f32 %v2305, %v3853
        %v3862 = vmul.f32 %v2320, %v3852
        %v3863 = vmul.f32 %v2306, %v3853
        %v3864 = vmul.f32 %v2321, %v3852
        %v3865 = vmul.f32 %v2307, %v3853
        %v3866 = vmul.f32 %v2322, %v3852
        %v3867 = vmul.f32 %v2308, %v3853
        %v3868 = vmul.f32 %v2323, %v3852
        %v3869 = vmul.f32 %v2309, %v3853
        %v3870 = vmul.f32 %v2324, %v3852
        %v3871 = vmul.f32 %v2310, %v3853
        %v3872 = vmul.f32 %v2325, %v3852
        %v3873 = vmul.f32 %v2311, %v3853
        %v3874 = vmul.f32 %v2326, %v3852
        %v3875 = vmul.f32 %v2312, %v3853
        %v3876 = vmul.f32 %v2327, %v3852
        %v3877 = vmul.f32 %v2313, %v3853
        %v3878 = vmul.f32 %v2817, %v3852
        %v3879 = vmul.f32 %v2816, %v3853
        %v3880 = vmul.f32 %v3168, %v3852
        %v3881 = vmul.f32 %v3167, %v3853
        %v3882 = vmul.f32 0.0, %v3852
        %v3883 = vmul.f32 0.0, %v3853
        %v3884 = vadd.f32 %v3819, %v3854
        %v3885 = vadd.f32 %v3820, %v3855
        %v3886 = vadd.f32 %v3821, %v3856
        %v3887 = vadd.f32 %v3822, %v3857
        %v3888 = vadd.f32 %v3823, %v3858
        %v3889 = vadd.f32 %v3824, %v3859
        %v3890 = vadd.f32 %v3825, %v3860
        %v3891 = vadd.f32 %v3826, %v3861
        %v3892 = vadd.f32 %v3827, %v3862
        %v3893 = vadd.f32 %v3828, %v3863
        %v3894 = vadd.f32 %v3829, %v3864
        %v3895 = vadd.f32 %v3830, %v3865
        %v3896 = vadd.f32 %v3831, %v3866
        %v3897 = vadd.f32 %v3832, %v3867
        %v3898 = vadd.f32 %v3833, %v3868
        %v3899 = vadd.f32 %v3834, %v3869
        %v3900 = vadd.f32 %v3835, %v3870
        %v3901 = vadd.f32 %v3836, %v3871
        %v3902 = vadd.f32 %v3837, %v3872
        %v3903 = vadd.f32 %v3838, %v3873
        %v3904 = vadd.f32 %v3839, %v3874
        %v3905 = vadd.f32 %v3840, %v3875
        %v3906 = vadd.f32 %v3841, %v3876
        %v3907 = vadd.f32 %v3842, %v3877
        %v3908 = vadd.f32 %v3843, %v3878
        %v3909 = vadd.f32 %v3844, %v3879
        %v3910 = vadd.f32 %v3845, %v3880
        %v3911 = vadd.f32 %v3846, %v3881
        %v3912 = vadd.f32 %v3847, %v3882
        %v3913 = vadd.f32 %v3848, %v3883
        %v3914 = vadd.f32 %v3849, %v3882
        %v3915 = vadd.f32 %v3850, %v3883
        %v3916 = vperm.slane %v2216, 5
        %v3917 = vmul.f32 %v3916, %v2239
        %v3918 = vmul.f32 %v3916, %v2240
        %v3919 = vmul.f32 %v2436, %v3917
        %v3920 = vmul.f32 %v2422, %v3918
        %v3921 = vmul.f32 %v2437, %v3917
        %v3922 = vmul.f32 %v2423, %v3918
        %v3923 = vmul.f32 %v2438, %v3917
        %v3924 = vmul.f32 %v2424, %v3918
        %v3925 = vmul.f32 %v2439, %v3917
        %v3926 = vmul.f32 %v2425, %v3918
        %v3927 = vmul.f32 %v2440, %v3917
        %v3928 = vmul.f32 %v2426, %v3918
        %v3929 = vmul.f32 %v2441, %v3917
        %v3930 = vmul.f32 %v2427, %v3918
        %v3931 = vmul.f32 %v2442, %v3917
        %v3932 = vmul.f32 %v2428, %v3918
        %v3933 = vmul.f32 %v2443, %v3917
        %v3934 = vmul.f32 %v2429, %v3918
        %v3935 = vmul.f32 %v2444, %v3917
        %v3936 = vmul.f32 %v2430, %v3918
        %v3937 = vmul.f32 %v2445, %v3917
        %v3938 = vmul.f32 %v2431, %v3918
        %v3939 = vmul.f32 %v2446, %v3917
        %v3940 = vmul.f32 %v2432, %v3918
        %v3941 = vmul.f32 %v2447, %v3917
        %v3942 = vmul.f32 %v2433, %v3918
        %v3943 = vmul.f32 %v2888, %v3917
        %v3944 = vmul.f32 %v2887, %v3918
        %v3945 = vmul.f32 %v3239, %v3917
        %v3946 = vmul.f32 %v3238, %v3918
        %v3947 = vmul.f32 0.0, %v3917
        %v3948 = vmul.f32 0.0, %v3918
        %v3949 = vadd.f32 %v3884, %v3919
        %v3950 = vadd.f32 %v3885, %v3920
        %v3951 = vadd.f32 %v3886, %v3921
        %v3952 = vadd.f32 %v3887, %v3922
        %v3953 = vadd.f32 %v3888, %v3923
        %v3954 = vadd.f32 %v3889, %v3924
        %v3955 = vadd.f32 %v3890, %v3925
        %v3956 = vadd.f32 %v3891, %v3926
        %v3957 = vadd.f32 %v3892, %v3927
        %v3958 = vadd.f32 %v3893, %v3928
        %v3959 = vadd.f32 %v3894, %v3929
        %v3960 = vadd.f32 %v3895, %v3930
        %v3961 = vadd.f32 %v3896, %v3931
        %v3962 = vadd.f32 %v3897, %v3932
        %v3963 = vadd.f32 %v3898, %v3933
        %v3964 = vadd.f32 %v3899, %v3934
        %v3965 = vadd.f32 %v3900, %v3935
        %v3966 = vadd.f32 %v3901, %v3936
        %v3967 = vadd.f32 %v3902, %v3937
        %v3968 = vadd.f32 %v3903, %v3938
        %v3969 = vadd.f32 %v3904, %v3939
        %v3970 = vadd.f32 %v3905, %v3940
        %v3971 = vadd.f32 %v3906, %v3941
        %v3972 = vadd.f32 %v3907, %v3942
        %v3973 = vadd.f32 %v3908, %v3943
        %v3974 = vadd.f32 %v3909, %v3944
        %v3975 = vadd.f32 %v3910, %v3945
        %v3976 = vadd.f32 %v3911, %v3946
        %v3977 = vadd.f32 %v3912, %v3947
        %v3978 = vadd.f32 %v3913, %v3948
        %v3979 = vadd.f32 %v3914, %v3947
        %v3980 = vadd.f32 %v3915, %v3948
        %v3981 = vperm.slane %v2216, 6
        %v3982 = vmul.f32 %v3981, %v2249
        %v3983 = vmul.f32 %v3981, %v2250
        %v3984 = vmul.f32 %v2186, %v3982
        %v3985 = vmul.f32 %v2187, %v3983
        %v3986 = vmul.f32 %v2188, %v3982
        %v3987 = vmul.f32 %v2189, %v3983
        %v3988 = vmul.f32 %v2190, %v3982
        %v3989 = vmul.f32 %v2191, %v3983
        %v3990 = vmul.f32 %v2192, %v3982
        %v3991 = vmul.f32 %v2193, %v3983
        %v3992 = vmul.f32 %v2194, %v3982
        %v3993 = vmul.f32 %v2195, %v3983
        %v3994 = vmul.f32 %v2196, %v3982
        %v3995 = vmul.f32 %v2197, %v3983
        %v3996 = vmul.f32 %v2198, %v3982
        %v3997 = vmul.f32 %v2199, %v3983
        %v3998 = vmul.f32 %v2200, %v3982
        %v3999 = vmul.f32 %v2201, %v3983
        %v4000 = vmul.f32 %v2202, %v3982
        %v4001 = vmul.f32 %v2203, %v3983
        %v4002 = vmul.f32 %v2204, %v3982
        %v4003 = vmul.f32 %v2205, %v3983
        %v4004 = vmul.f32 %v2206, %v3982
        %v4005 = vmul.f32 %v2207, %v3983
        %v4006 = vmul.f32 %v2208, %v3982
        %v4007 = vmul.f32 %v2209, %v3983
        %v4008 = vmul.f32 %v2210, %v3982
        %v4009 = vmul.f32 %v2211, %v3983
        %v4010 = vmul.f32 %v2212, %v3982
        %v4011 = vmul.f32 %v2213, %v3983
        %v4012 = vmul.f32 %v3982, 0.0
        %v4013 = vmul.f32 %v3983, 0.0
        %v4014 = vadd.f32 %v3949, %v3984
        %v4015 = vadd.f32 %v3950, %v3985
        %v4016 = vadd.f32 %v3951, %v3986
        %v4017 = vadd.f32 %v3952, %v3987
        %v4018 = vadd.f32 %v3953, %v3988
        %v4019 = vadd.f32 %v3954, %v3989
        %v4020 = vadd.f32 %v3955, %v3990
        %v4021 = vadd.f32 %v3956, %v3991
        %v4022 = vadd.f32 %v3957, %v3992
        %v4023 = vadd.f32 %v3958, %v3993
        %v4024 = vadd.f32 %v3959, %v3994
        %v4025 = vadd.f32 %v3960, %v3995
        %v4026 = vadd.f32 %v3961, %v3996
        %v4027 = vadd.f32 %v3962, %v3997
        %v4028 = vadd.f32 %v3963, %v3998
        %v4029 = vadd.f32 %v3964, %v3999
        %v4030 = vadd.f32 %v3965, %v4000
        %v4031 = vadd.f32 %v3966, %v4001
        %v4032 = vadd.f32 %v3967, %v4002
        %v4033 = vadd.f32 %v3968, %v4003
        %v4034 = vadd.f32 %v3969, %v4004
        %v4035 = vadd.f32 %v3970, %v4005
        %v4036 = vadd.f32 %v3971, %v4006
        %v4037 = vadd.f32 %v3972, %v4007
        %v4038 = vadd.f32 %v3973, %v4008
        %v4039 = vadd.f32 %v3974, %v4009
        %v4040 = vadd.f32 %v3975, %v4010
        %v4041 = vadd.f32 %v3976, %v4011
        %v4042 = vadd.f32 %v3977, %v4012
        %v4043 = vadd.f32 %v3978, %v4013
        %v4044 = vadd.f32 %v3979, %v4012
        %v4045 = vadd.f32 %v3980, %v4013
        %v4046 = vperm.slane %v2216, 7
        %v4047 = vmul.f32 %v4046, %v2259
        %v4048 = vmul.f32 %v4046, %v2260
        %v4049 = vmul.f32 %v2605, %v4047
        %v4050 = vmul.f32 %v2619, %v4048
        %v4051 = vmul.f32 %v2606, %v4047
        %v4052 = vmul.f32 %v2620, %v4048
        %v4053 = vmul.f32 %v2607, %v4047
        %v4054 = vmul.f32 %v2621, %v4048
        %v4055 = vmul.f32 %v2608, %v4047
        %v4056 = vmul.f32 %v2622, %v4048
        %v4057 = vmul.f32 %v2609, %v4047
        %v4058 = vmul.f32 %v2623, %v4048
        %v4059 = vmul.f32 %v2610, %v4047
        %v4060 = vmul.f32 %v2624, %v4048
        %v4061 = vmul.f32 %v2611, %v4047
        %v4062 = vmul.f32 %v2625, %v4048
        %v4063 = vmul.f32 %v2612, %v4047
        %v4064 = vmul.f32 %v2626, %v4048
        %v4065 = vmul.f32 %v2613, %v4047
        %v4066 = vmul.f32 %v2627, %v4048
        %v4067 = vmul.f32 %v2614, %v4047
        %v4068 = vmul.f32 %v2628, %v4048
        %v4069 = vmul.f32 %v2615, %v4047
        %v4070 = vmul.f32 %v2629, %v4048
        %v4071 = vmul.f32 %v2616, %v4047
        %v4072 = vmul.f32 %v2630, %v4048
        %v4073 = vmul.f32 %v3025, %v4047
        %v4074 = vmul.f32 %v3026, %v4048
        %v4075 = vmul.f32 %v3376, %v4047
        %v4076 = vmul.f32 %v3377, %v4048
        %v4077 = vmul.f32 0.0, %v4047
        %v4078 = vmul.f32 0.0, %v4048
        %v4079 = vadd.f32 %v4014, %v4049
        %v4080 = vadd.f32 %v4015, %v4050
        %v4081 = vadd.f32 %v4016, %v4051
        %v4082 = vadd.f32 %v4017, %v4052
        %v4083 = vadd.f32 %v4018, %v4053
        %v4084 = vadd.f32 %v4019, %v4054
        %v4085 = vadd.f32 %v4020, %v4055
        %v4086 = vadd.f32 %v4021, %v4056
        %v4087 = vadd.f32 %v4022, %v4057
        %v4088 = vadd.f32 %v4023, %v4058
        %v4089 = vadd.f32 %v4024, %v4059
        %v4090 = vadd.f32 %v4025, %v4060
        %v4091 = vadd.f32 %v4026, %v4061
        %v4092 = vadd.f32 %v4027, %v4062
        %v4093 = vadd.f32 %v4028, %v4063
        %v4094 = vadd.f32 %v4029, %v4064
        %v4095 = vadd.f32 %v4030, %v4065
        %v4096 = vadd.f32 %v4031, %v4066
        %v4097 = vadd.f32 %v4032, %v4067
        %v4098 = vadd.f32 %v4033, %v4068
        %v4099 = vadd.f32 %v4034, %v4069
        %v4100 = vadd.f32 %v4035, %v4070
        %v4101 = vadd.f32 %v4036, %v4071
        %v4102 = vadd.f32 %v4037, %v4072
        %v4103 = vadd.f32 %v4038, %v4073
        %v4104 = vadd.f32 %v4039, %v4074
        %v4105 = vadd.f32 %v4040, %v4075
        %v4106 = vadd.f32 %v4041, %v4076
        %v4107 = vadd.f32 %v4042, %v4077
        %v4108 = vadd.f32 %v4043, %v4078
        %v4109 = vadd.f32 %v4044, %v4077
        %v4110 = vadd.f32 %v4045, %v4078
        %v4111 = vperm.slane %v2217, 0
        %v4112 = vmul.f32 %v4111, %v2269
        %v4113 = vmul.f32 %v4111, %v2270
        %v4114 = vmul.f32 %v2725, %v4112
        %v4115 = vmul.f32 %v2739, %v4113
        %v4116 = vmul.f32 %v2726, %v4112
        %v4117 = vmul.f32 %v2740, %v4113
        %v4118 = vmul.f32 %v2727, %v4112
        %v4119 = vmul.f32 %v2741, %v4113
        %v4120 = vmul.f32 %v2728, %v4112
        %v4121 = vmul.f32 %v2742, %v4113
        %v4122 = vmul.f32 %v2729, %v4112
        %v4123 = vmul.f32 %v2743, %v4113
        %v4124 = vmul.f32 %v2730, %v4112
        %v4125 = vmul.f32 %v2744, %v4113
        %v4126 = vmul.f32 %v2731, %v4112
        %v4127 = vmul.f32 %v2745, %v4113
        %v4128 = vmul.f32 %v2732, %v4112
        %v4129 = vmul.f32 %v2746, %v4113
        %v4130 = vmul.f32 %v2733, %v4112
        %v4131 = vmul.f32 %v2747, %v4113
        %v4132 = vmul.f32 %v2734, %v4112
        %v4133 = vmul.f32 %v2748, %v4113
        %v4134 = vmul.f32 %v2735, %v4112
        %v4135 = vmul.f32 %v2749, %v4113
        %v4136 = vmul.f32 %v2736, %v4112
        %v4137 = vmul.f32 %v2750, %v4113
        %v4138 = vmul.f32 %v3096, %v4112
        %v4139 = vmul.f32 %v3097, %v4113
        %v4140 = vmul.f32 %v3447, %v4112
        %v4141 = vmul.f32 %v3448, %v4113
        %v4142 = vmul.f32 0.0, %v4112
        %v4143 = vmul.f32 0.0, %v4113
        %v4144 = vadd.f32 %v4079, %v4114
        %v4145 = vadd.f32 %v4080, %v4115
        %v4146 = vadd.f32 %v4081, %v4116
        %v4147 = vadd.f32 %v4082, %v4117
        %v4148 = vadd.f32 %v4083, %v4118
        %v4149 = vadd.f32 %v4084, %v4119
        %v4150 = vadd.f32 %v4085, %v4120
        %v4151 = vadd.f32 %v4086, %v4121
        %v4152 = vadd.f32 %v4087, %v4122
        %v4153 = vadd.f32 %v4088, %v4123
        %v4154 = vadd.f32 %v4089, %v4124
        %v4155 = vadd.f32 %v4090, %v4125
        %v4156 = vadd.f32 %v4091, %v4126
        %v4157 = vadd.f32 %v4092, %v4127
        %v4158 = vadd.f32 %v4093, %v4128
        %v4159 = vadd.f32 %v4094, %v4129
        %v4160 = vadd.f32 %v4095, %v4130
        %v4161 = vadd.f32 %v4096, %v4131
        %v4162 = vadd.f32 %v4097, %v4132
        %v4163 = vadd.f32 %v4098, %v4133
        %v4164 = vadd.f32 %v4099, %v4134
        %v4165 = vadd.f32 %v4100, %v4135
        %v4166 = vadd.f32 %v4101, %v4136
        %v4167 = vadd.f32 %v4102, %v4137
        %v4168 = vadd.f32 %v4103, %v4138
        %v4169 = vadd.f32 %v4104, %v4139
        %v4170 = vadd.f32 %v4105, %v4140
        %v4171 = vadd.f32 %v4106, %v4141
        %v4172 = vadd.f32 %v4107, %v4142
        %v4173 = vadd.f32 %v4108, %v4143
        %v4174 = vadd.f32 %v4109, %v4142
        %v4175 = vadd.f32 %v4110, %v4143
        %v4176 = vld [vmem:[%s6] sm:$0x1]
        %v4178 = vperm.slane %v4176, 0
        %v4180 = vadd.f32 %v4144, %v4178
        %v4181 = vadd.f32 %v4145, %v4178
        %v4182 = vadd.f32 %v4146, %v4178
        %v4183 = vadd.f32 %v4147, %v4178
        %v4184 = vadd.f32 %v4148, %v4178
        %v4185 = vadd.f32 %v4149, %v4178
        %v4186 = vadd.f32 %v4150, %v4178
        %v4187 = vadd.f32 %v4151, %v4178
        %v4188 = vadd.f32 %v4152, %v4178
        %v4189 = vadd.f32 %v4153, %v4178
        %v4190 = vadd.f32 %v4154, %v4178
        %v4191 = vadd.f32 %v4155, %v4178
        %v4192 = vadd.f32 %v4156, %v4178
        %v4193 = vadd.f32 %v4157, %v4178
        %v4194 = vadd.f32 %v4158, %v4178
        %v4195 = vadd.f32 %v4159, %v4178
        %v4196 = vadd.f32 %v4160, %v4178
        %v4197 = vadd.f32 %v4161, %v4178
        %v4198 = vadd.f32 %v4162, %v4178
        %v4199 = vadd.f32 %v4163, %v4178
        %v4200 = vadd.f32 %v4164, %v4178
        %v4201 = vadd.f32 %v4165, %v4178
        %v4202 = vadd.f32 %v4166, %v4178
        %v4203 = vadd.f32 %v4167, %v4178
        %v4204 = vadd.f32 %v4168, %v4178
        %v4205 = vadd.f32 %v4169, %v4178
        %v4206 = vadd.f32 %v4170, %v4178
        %v4207 = vadd.f32 %v4171, %v4178
        %v4208 = vadd.f32 %v4172, %v4178
        %v4209 = vadd.f32 %v4173, %v4178
        %v4210 = vadd.f32 %v4174, %v4178
        %v4211 = vadd.f32 %v4175, %v4178
        %v4212 = vld [vmem:[%s7] sm:$0xf]
        %v4213 = vld [vmem:[%s8] sm:$0x1]
        %v4215 = vperm.slane %v4213, 0
        %v4217 = vadd.f32 %v4215, 0.0
        %4219 = vset.pattern.permute.xlu0 0
        %4220 = vperm.xlu0 %4219, %v4180
        %v4221 = vpop.permute.xlu0 %4220
        %4224 = vset.pattern.permute.xlu0 0
        %4225 = vperm.xlu0 %4224, %v4181
        %v4226 = vpop.permute.xlu0 %4225
        %4229 = vset.pattern.permute.xlu0 0
        %4230 = vperm.xlu0 %4229, %v4182
        %v4231 = vpop.permute.xlu0 %4230
        %4234 = vset.pattern.permute.xlu0 0
        %4235 = vperm.xlu0 %4234, %v4183
        %v4236 = vpop.permute.xlu0 %4235
        %4239 = vset.pattern.permute.xlu0 0
        %4240 = vperm.xlu0 %4239, %v4184
        %v4241 = vpop.permute.xlu0 %4240
        %4244 = vset.pattern.permute.xlu0 0
        %4245 = vperm.xlu0 %4244, %v4185
        %v4246 = vpop.permute.xlu0 %4245
        %4249 = vset.pattern.permute.xlu0 0
        %4250 = vperm.xlu0 %4249, %v4186
        %v4251 = vpop.permute.xlu0 %4250
        %4254 = vset.pattern.permute.xlu0 0
        %4255 = vperm.xlu0 %4254, %v4187
        %v4256 = vpop.permute.xlu0 %4255
        %4259 = vset.pattern.permute.xlu0 0
        %4260 = vperm.xlu0 %4259, %v4188
        %v4261 = vpop.permute.xlu0 %4260
        %4264 = vset.pattern.permute.xlu0 0
        %4265 = vperm.xlu0 %4264, %v4189
        %v4266 = vpop.permute.xlu0 %4265
        %4269 = vset.pattern.permute.xlu0 0
        %4270 = vperm.xlu0 %4269, %v4190
        %v4271 = vpop.permute.xlu0 %4270
        %4274 = vset.pattern.permute.xlu0 0
        %4275 = vperm.xlu0 %4274, %v4191
        %v4276 = vpop.permute.xlu0 %4275
        %4279 = vset.pattern.permute.xlu0 0
        %4280 = vperm.xlu0 %4279, %v4192
        %v4281 = vpop.permute.xlu0 %4280
        %4284 = vset.pattern.permute.xlu0 0
        %4285 = vperm.xlu0 %4284, %v4193
        %v4286 = vpop.permute.xlu0 %4285
        %4289 = vset.pattern.permute.xlu0 0
        %4290 = vperm.xlu0 %4289, %v4194
        %v4291 = vpop.permute.xlu0 %4290
        %4294 = vset.pattern.permute.xlu0 0
        %4295 = vperm.xlu0 %4294, %v4195
        %v4296 = vpop.permute.xlu0 %4295
        %4299 = vset.pattern.permute.xlu0 0
        %4300 = vperm.xlu0 %4299, %v4196
        %v4301 = vpop.permute.xlu0 %4300
        %4304 = vset.pattern.permute.xlu0 0
        %4305 = vperm.xlu0 %4304, %v4197
        %v4306 = vpop.permute.xlu0 %4305
        %4309 = vset.pattern.permute.xlu0 0
        %4310 = vperm.xlu0 %4309, %v4198
        %v4311 = vpop.permute.xlu0 %4310
        %4314 = vset.pattern.permute.xlu0 0
        %4315 = vperm.xlu0 %4314, %v4199
        %v4316 = vpop.permute.xlu0 %4315
        %4319 = vset.pattern.permute.xlu0 0
        %4320 = vperm.xlu0 %4319, %v4200
        %v4321 = vpop.permute.xlu0 %4320
        %4324 = vset.pattern.permute.xlu0 0
        %4325 = vperm.xlu0 %4324, %v4201
        %v4326 = vpop.permute.xlu0 %4325
        %4329 = vset.pattern.permute.xlu0 0
        %4330 = vperm.xlu0 %4329, %v4202
        %v4331 = vpop.permute.xlu0 %4330
        %4334 = vset.pattern.permute.xlu0 0
        %4335 = vperm.xlu0 %4334, %v4203
        %v4336 = vpop.permute.xlu0 %4335
        %4339 = vset.pattern.permute.xlu0 0
        %4340 = vperm.xlu0 %4339, %v4204
        %v4341 = vpop.permute.xlu0 %4340
        %4344 = vset.pattern.permute.xlu0 0
        %4345 = vperm.xlu0 %4344, %v4205
        %v4346 = vpop.permute.xlu0 %4345
        %4349 = vset.pattern.permute.xlu0 0
        %4350 = vperm.xlu0 %4349, %v4206
        %v4351 = vpop.permute.xlu0 %4350
        %4354 = vset.pattern.permute.xlu0 0
        %4355 = vperm.xlu0 %4354, %v4207
        %v4356 = vpop.permute.xlu0 %4355
        %4359 = vset.pattern.permute.xlu0 0
        %4360 = vperm.xlu0 %4359, %v4208
        %v4361 = vpop.permute.xlu0 %4360
        %4364 = vset.pattern.permute.xlu0 0
        %4365 = vperm.xlu0 %4364, %v4209
        %v4366 = vpop.permute.xlu0 %4365
        %4369 = vset.pattern.permute.xlu0 0
        %4370 = vperm.xlu0 %4369, %v4210
        %v4371 = vpop.permute.xlu0 %4370
        %4374 = vset.pattern.permute.xlu0 0
        %4375 = vperm.xlu0 %4374, %v4211
        %v4376 = vpop.permute.xlu0 %4375
        %v4378 = vperm.slane %v4212, 0
        %v4379 = vmul.f32 %v4221, %v4378
        %v4380 = vmul.f32 %v4226, %v4378
        %v4381 = vmul.f32 %v4231, %v4378
        %v4382 = vmul.f32 %v4236, %v4378
        %v4383 = vmul.f32 %v4241, %v4378
        %v4384 = vmul.f32 %v4246, %v4378
        %v4385 = vmul.f32 %v4251, %v4378
        %v4386 = vmul.f32 %v4256, %v4378
        %v4387 = vmul.f32 %v4261, %v4378
        %v4388 = vmul.f32 %v4266, %v4378
        %v4389 = vmul.f32 %v4271, %v4378
        %v4390 = vmul.f32 %v4276, %v4378
        %v4391 = vmul.f32 %v4281, %v4378
        %v4392 = vmul.f32 %v4286, %v4378
        %v4393 = vmul.f32 %v4291, %v4378
        %v4394 = vmul.f32 %v4296, %v4378
        %v4395 = vmul.f32 %v4301, %v4378
        %v4396 = vmul.f32 %v4306, %v4378
        %v4397 = vmul.f32 %v4311, %v4378
        %v4398 = vmul.f32 %v4316, %v4378
        %v4399 = vmul.f32 %v4321, %v4378
        %v4400 = vmul.f32 %v4326, %v4378
        %v4401 = vmul.f32 %v4331, %v4378
        %v4402 = vmul.f32 %v4336, %v4378
        %v4403 = vmul.f32 %v4341, %v4378
        %v4404 = vmul.f32 %v4346, %v4378
        %v4405 = vmul.f32 %v4351, %v4378
        %v4406 = vmul.f32 %v4356, %v4378
        %v4407 = vmul.f32 %v4361, %v4378
        %v4408 = vmul.f32 %v4366, %v4378
        %v4409 = vmul.f32 %v4371, %v4378
        %v4410 = vmul.f32 %v4376, %v4378
        %v4411 = vadd.f32 %v4217, %v4379
        %v4412 = vadd.f32 %v4217, %v4380
        %v4413 = vadd.f32 %v4217, %v4381
        %v4414 = vadd.f32 %v4217, %v4382
        %v4415 = vadd.f32 %v4217, %v4383
        %v4416 = vadd.f32 %v4217, %v4384
        %v4417 = vadd.f32 %v4217, %v4385
        %v4418 = vadd.f32 %v4217, %v4386
        %v4419 = vadd.f32 %v4217, %v4387
        %v4420 = vadd.f32 %v4217, %v4388
        %v4421 = vadd.f32 %v4217, %v4389
        %v4422 = vadd.f32 %v4217, %v4390
        %v4423 = vadd.f32 %v4217, %v4391
        %v4424 = vadd.f32 %v4217, %v4392
        %v4425 = vadd.f32 %v4217, %v4393
        %v4426 = vadd.f32 %v4217, %v4394
        %v4427 = vadd.f32 %v4217, %v4395
        %v4428 = vadd.f32 %v4217, %v4396
        %v4429 = vadd.f32 %v4217, %v4397
        %v4430 = vadd.f32 %v4217, %v4398
        %v4431 = vadd.f32 %v4217, %v4399
        %v4432 = vadd.f32 %v4217, %v4400
        %v4433 = vadd.f32 %v4217, %v4401
        %v4434 = vadd.f32 %v4217, %v4402
        %v4435 = vadd.f32 %v4217, %v4403
        %v4436 = vadd.f32 %v4217, %v4404
        %v4437 = vadd.f32 %v4217, %v4405
        %v4438 = vadd.f32 %v4217, %v4406
        %v4439 = vadd.f32 %v4217, %v4407
        %v4440 = vadd.f32 %v4217, %v4408
        %v4441 = vadd.f32 %v4217, %v4409
        %v4442 = vadd.f32 %v4217, %v4410
        %4443 = vset.pattern.permute.xlu0 1
        %4444 = vperm.xlu0 %4443, %v4180
        %v4445 = vpop.permute.xlu0 %4444
        %4447 = vset.pattern.permute.xlu0 1
        %4448 = vperm.xlu0 %4447, %v4181
        %v4449 = vpop.permute.xlu0 %4448
        %4451 = vset.pattern.permute.xlu0 1
        %4452 = vperm.xlu0 %4451, %v4182
        %v4453 = vpop.permute.xlu0 %4452
        %4455 = vset.pattern.permute.xlu0 1
        %4456 = vperm.xlu0 %4455, %v4183
        %v4457 = vpop.permute.xlu0 %4456
        %4459 = vset.pattern.permute.xlu0 1
        %4460 = vperm.xlu0 %4459, %v4184
        %v4461 = vpop.permute.xlu0 %4460
        %4463 = vset.pattern.permute.xlu0 1
        %4464 = vperm.xlu0 %4463, %v4185
        %v4465 = vpop.permute.xlu0 %4464
        %4467 = vset.pattern.permute.xlu0 1
        %4468 = vperm.xlu0 %4467, %v4186
        %v4469 = vpop.permute.xlu0 %4468
        %4471 = vset.pattern.permute.xlu0 1
        %4472 = vperm.xlu0 %4471, %v4187
        %v4473 = vpop.permute.xlu0 %4472
        %4475 = vset.pattern.permute.xlu0 1
        %4476 = vperm.xlu0 %4475, %v4188
        %v4477 = vpop.permute.xlu0 %4476
        %4479 = vset.pattern.permute.xlu0 1
        %4480 = vperm.xlu0 %4479, %v4189
        %v4481 = vpop.permute.xlu0 %4480
        %4483 = vset.pattern.permute.xlu0 1
        %4484 = vperm.xlu0 %4483, %v4190
        %v4485 = vpop.permute.xlu0 %4484
        %4487 = vset.pattern.permute.xlu0 1
        %4488 = vperm.xlu0 %4487, %v4191
        %v4489 = vpop.permute.xlu0 %4488
        %4491 = vset.pattern.permute.xlu0 1
        %4492 = vperm.xlu0 %4491, %v4192
        %v4493 = vpop.permute.xlu0 %4492
        %4495 = vset.pattern.permute.xlu0 1
        %4496 = vperm.xlu0 %4495, %v4193
        %v4497 = vpop.permute.xlu0 %4496
        %4499 = vset.pattern.permute.xlu0 1
        %4500 = vperm.xlu0 %4499, %v4194
        %v4501 = vpop.permute.xlu0 %4500
        %4503 = vset.pattern.permute.xlu0 1
        %4504 = vperm.xlu0 %4503, %v4195
        %v4505 = vpop.permute.xlu0 %4504
        %4507 = vset.pattern.permute.xlu0 1
        %4508 = vperm.xlu0 %4507, %v4196
        %v4509 = vpop.permute.xlu0 %4508
        %4511 = vset.pattern.permute.xlu0 1
        %4512 = vperm.xlu0 %4511, %v4197
        %v4513 = vpop.permute.xlu0 %4512
        %4515 = vset.pattern.permute.xlu0 1
        %4516 = vperm.xlu0 %4515, %v4198
        %v4517 = vpop.permute.xlu0 %4516
        %4519 = vset.pattern.permute.xlu0 1
        %4520 = vperm.xlu0 %4519, %v4199
        %v4521 = vpop.permute.xlu0 %4520
        %4523 = vset.pattern.permute.xlu0 1
        %4524 = vperm.xlu0 %4523, %v4200
        %v4525 = vpop.permute.xlu0 %4524
        %4527 = vset.pattern.permute.xlu0 1
        %4528 = vperm.xlu0 %4527, %v4201
        %v4529 = vpop.permute.xlu0 %4528
        %4531 = vset.pattern.permute.xlu0 1
        %4532 = vperm.xlu0 %4531, %v4202
        %v4533 = vpop.permute.xlu0 %4532
        %4535 = vset.pattern.permute.xlu0 1
        %4536 = vperm.xlu0 %4535, %v4203
        %v4537 = vpop.permute.xlu0 %4536
        %4539 = vset.pattern.permute.xlu0 1
        %4540 = vperm.xlu0 %4539, %v4204
        %v4541 = vpop.permute.xlu0 %4540
        %4543 = vset.pattern.permute.xlu0 1
        %4544 = vperm.xlu0 %4543, %v4205
        %v4545 = vpop.permute.xlu0 %4544
        %4547 = vset.pattern.permute.xlu0 1
        %4548 = vperm.xlu0 %4547, %v4206
        %v4549 = vpop.permute.xlu0 %4548
        %4551 = vset.pattern.permute.xlu0 1
        %4552 = vperm.xlu0 %4551, %v4207
        %v4553 = vpop.permute.xlu0 %4552
        %4555 = vset.pattern.permute.xlu0 1
        %4556 = vperm.xlu0 %4555, %v4208
        %v4557 = vpop.permute.xlu0 %4556
        %4559 = vset.pattern.permute.xlu0 1
        %4560 = vperm.xlu0 %4559, %v4209
        %v4561 = vpop.permute.xlu0 %4560
        %4563 = vset.pattern.permute.xlu0 1
        %4564 = vperm.xlu0 %4563, %v4210
        %v4565 = vpop.permute.xlu0 %4564
        %4567 = vset.pattern.permute.xlu0 1
        %4568 = vperm.xlu0 %4567, %v4211
        %v4569 = vpop.permute.xlu0 %4568
        %v4571 = vperm.slane %v4212, 1
        %v4572 = vmul.f32 %v4445, %v4571
        %v4573 = vmul.f32 %v4449, %v4571
        %v4574 = vmul.f32 %v4453, %v4571
        %v4575 = vmul.f32 %v4457, %v4571
        %v4576 = vmul.f32 %v4461, %v4571
        %v4577 = vmul.f32 %v4465, %v4571
        %v4578 = vmul.f32 %v4469, %v4571
        %v4579 = vmul.f32 %v4473, %v4571
        %v4580 = vmul.f32 %v4477, %v4571
        %v4581 = vmul.f32 %v4481, %v4571
        %v4582 = vmul.f32 %v4485, %v4571
        %v4583 = vmul.f32 %v4489, %v4571
        %v4584 = vmul.f32 %v4493, %v4571
        %v4585 = vmul.f32 %v4497, %v4571
        %v4586 = vmul.f32 %v4501, %v4571
        %v4587 = vmul.f32 %v4505, %v4571
        %v4588 = vmul.f32 %v4509, %v4571
        %v4589 = vmul.f32 %v4513, %v4571
        %v4590 = vmul.f32 %v4517, %v4571
        %v4591 = vmul.f32 %v4521, %v4571
        %v4592 = vmul.f32 %v4525, %v4571
        %v4593 = vmul.f32 %v4529, %v4571
        %v4594 = vmul.f32 %v4533, %v4571
        %v4595 = vmul.f32 %v4537, %v4571
        %v4596 = vmul.f32 %v4541, %v4571
        %v4597 = vmul.f32 %v4545, %v4571
        %v4598 = vmul.f32 %v4549, %v4571
        %v4599 = vmul.f32 %v4553, %v4571
        %v4600 = vmul.f32 %v4557, %v4571
        %v4601 = vmul.f32 %v4561, %v4571
        %v4602 = vmul.f32 %v4565, %v4571
        %v4603 = vmul.f32 %v4569, %v4571
        %v4604 = vadd.f32 %v4411, %v4572
        %v4605 = vadd.f32 %v4412, %v4573
        %v4606 = vadd.f32 %v4413, %v4574
        %v4607 = vadd.f32 %v4414, %v4575
        %v4608 = vadd.f32 %v4415, %v4576
        %v4609 = vadd.f32 %v4416, %v4577
        %v4610 = vadd.f32 %v4417, %v4578
        %v4611 = vadd.f32 %v4418, %v4579
        %v4612 = vadd.f32 %v4419, %v4580
        %v4613 = vadd.f32 %v4420, %v4581
        %v4614 = vadd.f32 %v4421, %v4582
        %v4615 = vadd.f32 %v4422, %v4583
        %v4616 = vadd.f32 %v4423, %v4584
        %v4617 = vadd.f32 %v4424, %v4585
        %v4618 = vadd.f32 %v4425, %v4586
        %v4619 = vadd.f32 %v4426, %v4587
        %v4620 = vadd.f32 %v4427, %v4588
        %v4621 = vadd.f32 %v4428, %v4589
        %v4622 = vadd.f32 %v4429, %v4590
        %v4623 = vadd.f32 %v4430, %v4591
        %v4624 = vadd.f32 %v4431, %v4592
        %v4625 = vadd.f32 %v4432, %v4593
        %v4626 = vadd.f32 %v4433, %v4594
        %v4627 = vadd.f32 %v4434, %v4595
        %v4628 = vadd.f32 %v4435, %v4596
        %v4629 = vadd.f32 %v4436, %v4597
        %v4630 = vadd.f32 %v4437, %v4598
        %v4631 = vadd.f32 %v4438, %v4599
        %v4632 = vadd.f32 %v4439, %v4600
        %v4633 = vadd.f32 %v4440, %v4601
        %v4634 = vadd.f32 %v4441, %v4602
        %v4635 = vadd.f32 %v4442, %v4603
        %4636 = vset.pattern.permute.xlu0 2
        %4637 = vperm.xlu0 %4636, %v4180
        %v4638 = vpop.permute.xlu0 %4637
        %4640 = vset.pattern.permute.xlu0 2
        %4641 = vperm.xlu0 %4640, %v4181
        %v4642 = vpop.permute.xlu0 %4641
        %4644 = vset.pattern.permute.xlu0 2
        %4645 = vperm.xlu0 %4644, %v4182
        %v4646 = vpop.permute.xlu0 %4645
        %4648 = vset.pattern.permute.xlu0 2
        %4649 = vperm.xlu0 %4648, %v4183
        %v4650 = vpop.permute.xlu0 %4649
        %4652 = vset.pattern.permute.xlu0 2
        %4653 = vperm.xlu0 %4652, %v4184
        %v4654 = vpop.permute.xlu0 %4653
        %4656 = vset.pattern.permute.xlu0 2
        %4657 = vperm.xlu0 %4656, %v4185
        %v4658 = vpop.permute.xlu0 %4657
        %4660 = vset.pattern.permute.xlu0 2
        %4661 = vperm.xlu0 %4660, %v4186
        %v4662 = vpop.permute.xlu0 %4661
        %4664 = vset.pattern.permute.xlu0 2
        %4665 = vperm.xlu0 %4664, %v4187
        %v4666 = vpop.permute.xlu0 %4665
        %4668 = vset.pattern.permute.xlu0 2
        %4669 = vperm.xlu0 %4668, %v4188
        %v4670 = vpop.permute.xlu0 %4669
        %4672 = vset.pattern.permute.xlu0 2
        %4673 = vperm.xlu0 %4672, %v4189
        %v4674 = vpop.permute.xlu0 %4673
        %4676 = vset.pattern.permute.xlu0 2
        %4677 = vperm.xlu0 %4676, %v4190
        %v4678 = vpop.permute.xlu0 %4677
        %4680 = vset.pattern.permute.xlu0 2
        %4681 = vperm.xlu0 %4680, %v4191
        %v4682 = vpop.permute.xlu0 %4681
        %4684 = vset.pattern.permute.xlu0 2
        %4685 = vperm.xlu0 %4684, %v4192
        %v4686 = vpop.permute.xlu0 %4685
        %4688 = vset.pattern.permute.xlu0 2
        %4689 = vperm.xlu0 %4688, %v4193
        %v4690 = vpop.permute.xlu0 %4689
        %4692 = vset.pattern.permute.xlu0 2
        %4693 = vperm.xlu0 %4692, %v4194
        %v4694 = vpop.permute.xlu0 %4693
        %4696 = vset.pattern.permute.xlu0 2
        %4697 = vperm.xlu0 %4696, %v4195
        %v4698 = vpop.permute.xlu0 %4697
        %4700 = vset.pattern.permute.xlu0 2
        %4701 = vperm.xlu0 %4700, %v4196
        %v4702 = vpop.permute.xlu0 %4701
        %4704 = vset.pattern.permute.xlu0 2
        %4705 = vperm.xlu0 %4704, %v4197
        %v4706 = vpop.permute.xlu0 %4705
        %4708 = vset.pattern.permute.xlu0 2
        %4709 = vperm.xlu0 %4708, %v4198
        %v4710 = vpop.permute.xlu0 %4709
        %4712 = vset.pattern.permute.xlu0 2
        %4713 = vperm.xlu0 %4712, %v4199
        %v4714 = vpop.permute.xlu0 %4713
        %4716 = vset.pattern.permute.xlu0 2
        %4717 = vperm.xlu0 %4716, %v4200
        %v4718 = vpop.permute.xlu0 %4717
        %4720 = vset.pattern.permute.xlu0 2
        %4721 = vperm.xlu0 %4720, %v4201
        %v4722 = vpop.permute.xlu0 %4721
        %4724 = vset.pattern.permute.xlu0 2
        %4725 = vperm.xlu0 %4724, %v4202
        %v4726 = vpop.permute.xlu0 %4725
        %4728 = vset.pattern.permute.xlu0 2
        %4729 = vperm.xlu0 %4728, %v4203
        %v4730 = vpop.permute.xlu0 %4729
        %4732 = vset.pattern.permute.xlu0 2
        %4733 = vperm.xlu0 %4732, %v4204
        %v4734 = vpop.permute.xlu0 %4733
        %4736 = vset.pattern.permute.xlu0 2
        %4737 = vperm.xlu0 %4736, %v4205
        %v4738 = vpop.permute.xlu0 %4737
        %4740 = vset.pattern.permute.xlu0 2
        %4741 = vperm.xlu0 %4740, %v4206
        %v4742 = vpop.permute.xlu0 %4741
        %4744 = vset.pattern.permute.xlu0 2
        %4745 = vperm.xlu0 %4744, %v4207
        %v4746 = vpop.permute.xlu0 %4745
        %4748 = vset.pattern.permute.xlu0 2
        %4749 = vperm.xlu0 %4748, %v4208
        %v4750 = vpop.permute.xlu0 %4749
        %4752 = vset.pattern.permute.xlu0 2
        %4753 = vperm.xlu0 %4752, %v4209
        %v4754 = vpop.permute.xlu0 %4753
        %4756 = vset.pattern.permute.xlu0 2
        %4757 = vperm.xlu0 %4756, %v4210
        %v4758 = vpop.permute.xlu0 %4757
        %4760 = vset.pattern.permute.xlu0 2
        %4761 = vperm.xlu0 %4760, %v4211
        %v4762 = vpop.permute.xlu0 %4761
        %v4764 = vperm.slane %v4212, 2
        %v4765 = vmul.f32 %v4638, %v4764
        %v4766 = vmul.f32 %v4642, %v4764
        %v4767 = vmul.f32 %v4646, %v4764
        %v4768 = vmul.f32 %v4650, %v4764
        %v4769 = vmul.f32 %v4654, %v4764
        %v4770 = vmul.f32 %v4658, %v4764
        %v4771 = vmul.f32 %v4662, %v4764
        %v4772 = vmul.f32 %v4666, %v4764
        %v4773 = vmul.f32 %v4670, %v4764
        %v4774 = vmul.f32 %v4674, %v4764
        %v4775 = vmul.f32 %v4678, %v4764
        %v4776 = vmul.f32 %v4682, %v4764
        %v4777 = vmul.f32 %v4686, %v4764
        %v4778 = vmul.f32 %v4690, %v4764
        %v4779 = vmul.f32 %v4694, %v4764
        %v4780 = vmul.f32 %v4698, %v4764
        %v4781 = vmul.f32 %v4702, %v4764
        %v4782 = vmul.f32 %v4706, %v4764
        %v4783 = vmul.f32 %v4710, %v4764
        %v4784 = vmul.f32 %v4714, %v4764
        %v4785 = vmul.f32 %v4718, %v4764
        %v4786 = vmul.f32 %v4722, %v4764
        %v4787 = vmul.f32 %v4726, %v4764
        %v4788 = vmul.f32 %v4730, %v4764
        %v4789 = vmul.f32 %v4734, %v4764
        %v4790 = vmul.f32 %v4738, %v4764
        %v4791 = vmul.f32 %v4742, %v4764
        %v4792 = vmul.f32 %v4746, %v4764
        %v4793 = vmul.f32 %v4750, %v4764
        %v4794 = vmul.f32 %v4754, %v4764
        %v4795 = vmul.f32 %v4758, %v4764
        %v4796 = vmul.f32 %v4762, %v4764
        %v4797 = vadd.f32 %v4604, %v4765
        %v4798 = vadd.f32 %v4605, %v4766
        %v4799 = vadd.f32 %v4606, %v4767
        %v4800 = vadd.f32 %v4607, %v4768
        %v4801 = vadd.f32 %v4608, %v4769
        %v4802 = vadd.f32 %v4609, %v4770
        %v4803 = vadd.f32 %v4610, %v4771
        %v4804 = vadd.f32 %v4611, %v4772
        %v4805 = vadd.f32 %v4612, %v4773
        %v4806 = vadd.f32 %v4613, %v4774
        %v4807 = vadd.f32 %v4614, %v4775
        %v4808 = vadd.f32 %v4615, %v4776
        %v4809 = vadd.f32 %v4616, %v4777
        %v4810 = vadd.f32 %v4617, %v4778
        %v4811 = vadd.f32 %v4618, %v4779
        %v4812 = vadd.f32 %v4619, %v4780
        %v4813 = vadd.f32 %v4620, %v4781
        %v4814 = vadd.f32 %v4621, %v4782
        %v4815 = vadd.f32 %v4622, %v4783
        %v4816 = vadd.f32 %v4623, %v4784
        %v4817 = vadd.f32 %v4624, %v4785
        %v4818 = vadd.f32 %v4625, %v4786
        %v4819 = vadd.f32 %v4626, %v4787
        %v4820 = vadd.f32 %v4627, %v4788
        %v4821 = vadd.f32 %v4628, %v4789
        %v4822 = vadd.f32 %v4629, %v4790
        %v4823 = vadd.f32 %v4630, %v4791
        %v4824 = vadd.f32 %v4631, %v4792
        %v4825 = vadd.f32 %v4632, %v4793
        %v4826 = vadd.f32 %v4633, %v4794
        %v4827 = vadd.f32 %v4634, %v4795
        %v4828 = vadd.f32 %v4635, %v4796
        %4829 = vset.pattern.permute.xlu0 3
        %4830 = vperm.xlu0 %4829, %v4180
        %v4831 = vpop.permute.xlu0 %4830
        %4833 = vset.pattern.permute.xlu0 3
        %4834 = vperm.xlu0 %4833, %v4181
        %v4835 = vpop.permute.xlu0 %4834
        %4837 = vset.pattern.permute.xlu0 3
        %4838 = vperm.xlu0 %4837, %v4182
        %v4839 = vpop.permute.xlu0 %4838
        %4841 = vset.pattern.permute.xlu0 3
        %4842 = vperm.xlu0 %4841, %v4183
        %v4843 = vpop.permute.xlu0 %4842
        %4845 = vset.pattern.permute.xlu0 3
        %4846 = vperm.xlu0 %4845, %v4184
        %v4847 = vpop.permute.xlu0 %4846
        %4849 = vset.pattern.permute.xlu0 3
        %4850 = vperm.xlu0 %4849, %v4185
        %v4851 = vpop.permute.xlu0 %4850
        %4853 = vset.pattern.permute.xlu0 3
        %4854 = vperm.xlu0 %4853, %v4186
        %v4855 = vpop.permute.xlu0 %4854
        %4857 = vset.pattern.permute.xlu0 3
        %4858 = vperm.xlu0 %4857, %v4187
        %v4859 = vpop.permute.xlu0 %4858
        %4861 = vset.pattern.permute.xlu0 3
        %4862 = vperm.xlu0 %4861, %v4188
        %v4863 = vpop.permute.xlu0 %4862
        %4865 = vset.pattern.permute.xlu0 3
        %4866 = vperm.xlu0 %4865, %v4189
        %v4867 = vpop.permute.xlu0 %4866
        %4869 = vset.pattern.permute.xlu0 3
        %4870 = vperm.xlu0 %4869, %v4190
        %v4871 = vpop.permute.xlu0 %4870
        %4873 = vset.pattern.permute.xlu0 3
        %4874 = vperm.xlu0 %4873, %v4191
        %v4875 = vpop.permute.xlu0 %4874
        %4877 = vset.pattern.permute.xlu0 3
        %4878 = vperm.xlu0 %4877, %v4192
        %v4879 = vpop.permute.xlu0 %4878
        %4881 = vset.pattern.permute.xlu0 3
        %4882 = vperm.xlu0 %4881, %v4193
        %v4883 = vpop.permute.xlu0 %4882
        %4885 = vset.pattern.permute.xlu0 3
        %4886 = vperm.xlu0 %4885, %v4194
        %v4887 = vpop.permute.xlu0 %4886
        %4889 = vset.pattern.permute.xlu0 3
        %4890 = vperm.xlu0 %4889, %v4195
        %v4891 = vpop.permute.xlu0 %4890
        %4893 = vset.pattern.permute.xlu0 3
        %4894 = vperm.xlu0 %4893, %v4196
        %v4895 = vpop.permute.xlu0 %4894
        %4897 = vset.pattern.permute.xlu0 3
        %4898 = vperm.xlu0 %4897, %v4197
        %v4899 = vpop.permute.xlu0 %4898
        %4901 = vset.pattern.permute.xlu0 3
        %4902 = vperm.xlu0 %4901, %v4198
        %v4903 = vpop.permute.xlu0 %4902
        %4905 = vset.pattern.permute.xlu0 3
        %4906 = vperm.xlu0 %4905, %v4199
        %v4907 = vpop.permute.xlu0 %4906
        %4909 = vset.pattern.permute.xlu0 3
        %4910 = vperm.xlu0 %4909, %v4200
        %v4911 = vpop.permute.xlu0 %4910
        %4913 = vset.pattern.permute.xlu0 3
        %4914 = vperm.xlu0 %4913, %v4201
        %v4915 = vpop.permute.xlu0 %4914
        %4917 = vset.pattern.permute.xlu0 3
        %4918 = vperm.xlu0 %4917, %v4202
        %v4919 = vpop.permute.xlu0 %4918
        %4921 = vset.pattern.permute.xlu0 3
        %4922 = vperm.xlu0 %4921, %v4203
        %v4923 = vpop.permute.xlu0 %4922
        %4925 = vset.pattern.permute.xlu0 3
        %4926 = vperm.xlu0 %4925, %v4204
        %v4927 = vpop.permute.xlu0 %4926
        %4929 = vset.pattern.permute.xlu0 3
        %4930 = vperm.xlu0 %4929, %v4205
        %v4931 = vpop.permute.xlu0 %4930
        %4933 = vset.pattern.permute.xlu0 3
        %4934 = vperm.xlu0 %4933, %v4206
        %v4935 = vpop.permute.xlu0 %4934
        %4937 = vset.pattern.permute.xlu0 3
        %4938 = vperm.xlu0 %4937, %v4207
        %v4939 = vpop.permute.xlu0 %4938
        %4941 = vset.pattern.permute.xlu0 3
        %4942 = vperm.xlu0 %4941, %v4208
        %v4943 = vpop.permute.xlu0 %4942
        %4945 = vset.pattern.permute.xlu0 3
        %4946 = vperm.xlu0 %4945, %v4209
        %v4947 = vpop.permute.xlu0 %4946
        %4949 = vset.pattern.permute.xlu0 3
        %4950 = vperm.xlu0 %4949, %v4210
        %v4951 = vpop.permute.xlu0 %4950
        %4953 = vset.pattern.permute.xlu0 3
        %4954 = vperm.xlu0 %4953, %v4211
        %v4955 = vpop.permute.xlu0 %4954
        %v4957 = vperm.slane %v4212, 3
        %v4958 = vmul.f32 %v4831, %v4957
        %v4959 = vmul.f32 %v4835, %v4957
        %v4960 = vmul.f32 %v4839, %v4957
        %v4961 = vmul.f32 %v4843, %v4957
        %v4962 = vmul.f32 %v4847, %v4957
        %v4963 = vmul.f32 %v4851, %v4957
        %v4964 = vmul.f32 %v4855, %v4957
        %v4965 = vmul.f32 %v4859, %v4957
        %v4966 = vmul.f32 %v4863, %v4957
        %v4967 = vmul.f32 %v4867, %v4957
        %v4968 = vmul.f32 %v4871, %v4957
        %v4969 = vmul.f32 %v4875, %v4957
        %v4970 = vmul.f32 %v4879, %v4957
        %v4971 = vmul.f32 %v4883, %v4957
        %v4972 = vmul.f32 %v4887, %v4957
        %v4973 = vmul.f32 %v4891, %v4957
        %v4974 = vmul.f32 %v4895, %v4957
        %v4975 = vmul.f32 %v4899, %v4957
        %v4976 = vmul.f32 %v4903, %v4957
        %v4977 = vmul.f32 %v4907, %v4957
        %v4978 = vmul.f32 %v4911, %v4957
        %v4979 = vmul.f32 %v4915, %v4957
        %v4980 = vmul.f32 %v4919, %v4957
        %v4981 = vmul.f32 %v4923, %v4957
        %v4982 = vmul.f32 %v4927, %v4957
        %v4983 = vmul.f32 %v4931, %v4957
        %v4984 = vmul.f32 %v4935, %v4957
        %v4985 = vmul.f32 %v4939, %v4957
        %v4986 = vmul.f32 %v4943, %v4957
        %v4987 = vmul.f32 %v4947, %v4957
        %v4988 = vmul.f32 %v4951, %v4957
        %v4989 = vmul.f32 %v4955, %v4957
        %v4990 = vadd.f32 %v4797, %v4958
        %v4991 = vadd.f32 %v4798, %v4959
        %v4992 = vadd.f32 %v4799, %v4960
        %v4993 = vadd.f32 %v4800, %v4961
        %v4994 = vadd.f32 %v4801, %v4962
        %v4995 = vadd.f32 %v4802, %v4963
        %v4996 = vadd.f32 %v4803, %v4964
        %v4997 = vadd.f32 %v4804, %v4965
        %v4998 = vadd.f32 %v4805, %v4966
        %v4999 = vadd.f32 %v4806, %v4967
        %v5000 = vadd.f32 %v4807, %v4968
        %v5001 = vadd.f32 %v4808, %v4969
        %v5002 = vadd.f32 %v4809, %v4970
        %v5003 = vadd.f32 %v4810, %v4971
        %v5004 = vadd.f32 %v4811, %v4972
        %v5005 = vadd.f32 %v4812, %v4973
        %v5006 = vadd.f32 %v4813, %v4974
        %v5007 = vadd.f32 %v4814, %v4975
        %v5008 = vadd.f32 %v4815, %v4976
        %v5009 = vadd.f32 %v4816, %v4977
        %v5010 = vadd.f32 %v4817, %v4978
        %v5011 = vadd.f32 %v4818, %v4979
        %v5012 = vadd.f32 %v4819, %v4980
        %v5013 = vadd.f32 %v4820, %v4981
        %v5014 = vadd.f32 %v4821, %v4982
        %v5015 = vadd.f32 %v4822, %v4983
        %v5016 = vadd.f32 %v4823, %v4984
        %v5017 = vadd.f32 %v4824, %v4985
        %v5018 = vadd.f32 %v4825, %v4986
        %v5019 = vadd.f32 %v4826, %v4987
        %v5020 = vadd.f32 %v4827, %v4988
        %v5021 = vadd.f32 %v4828, %v4989
        %v5022 = vadd.f32 %v524, %v4990
        %v5023 = vadd.f32 %v525, %v4991
        %v5024 = vadd.f32 %v526, %v4992
        %v5025 = vadd.f32 %v527, %v4993
        %v5026 = vadd.f32 %v528, %v4994
        %v5027 = vadd.f32 %v529, %v4995
        %v5028 = vadd.f32 %v530, %v4996
        %v5029 = vadd.f32 %v531, %v4997
        %v5030 = vadd.f32 %v532, %v4998
        %v5031 = vadd.f32 %v533, %v4999
        %v5032 = vadd.f32 %v534, %v5000
        %v5033 = vadd.f32 %v535, %v5001
        %v5034 = vadd.f32 %v536, %v5002
        %v5035 = vadd.f32 %v537, %v5003
        %v5036 = vadd.f32 %v538, %v5004
        %v5037 = vadd.f32 %v539, %v5005
        %v5038 = vadd.f32 %v540, %v5006
        %v5039 = vadd.f32 %v541, %v5007
        %v5040 = vadd.f32 %v542, %v5008
        %v5041 = vadd.f32 %v543, %v5009
        %v5042 = vadd.f32 %v544, %v5010
        %v5043 = vadd.f32 %v545, %v5011
        %v5044 = vadd.f32 %v546, %v5012
        %v5045 = vadd.f32 %v547, %v5013
        %v5046 = vadd.f32 %v548, %v5014
        %v5047 = vadd.f32 %v549, %v5015
        %v5048 = vadd.f32 %v550, %v5016
        %v5049 = vadd.f32 %v551, %v5017
        %v5050 = vadd.f32 %v552, %v5018
        %v5051 = vadd.f32 %v553, %v5019
        %v5052 = vadd.f32 %v554, %v5020
        %v5053 = vadd.f32 %v555, %v5021
        %5054 = vst.msk [vmem:[#allocation2] sm:$0xff] %vm558, %v5022
        %5055 = vst.msk [vmem:[#allocation2 + $0x8] sm:$0xff] %vm558, %v5023
        %5056 = vst.msk [vmem:[#allocation2 + $0x10] sm:$0xff] %vm558, %v5024
        %5057 = vst.msk [vmem:[#allocation2 + $0x18] sm:$0xff] %vm558, %v5025
        %5058 = vst.msk [vmem:[#allocation2 + $0x20] sm:$0xff] %vm558, %v5026
        %5059 = vst.msk [vmem:[#allocation2 + $0x28] sm:$0xff] %vm558, %v5027
        %5060 = vst.msk [vmem:[#allocation2 + $0x30] sm:$0xff] %vm558, %v5028
        %5061 = vst.msk [vmem:[#allocation2 + $0x38] sm:$0xff] %vm558, %v5029
        %5062 = vst.msk [vmem:[#allocation2 + $0x40] sm:$0xff] %vm558, %v5030
        %5063 = vst.msk [vmem:[#allocation2 + $0x48] sm:$0xff] %vm558, %v5031
        %5064 = vst.msk [vmem:[#allocation2 + $0x50] sm:$0xff] %vm558, %v5032
        %5065 = vst.msk [vmem:[#allocation2 + $0x58] sm:$0xff] %vm558, %v5033
        %5066 = vst.msk [vmem:[#allocation2 + $0x60] sm:$0xff] %vm558, %v5034
        %5067 = vst.msk [vmem:[#allocation2 + $0x68] sm:$0xff] %vm558, %v5035
        %5068 = vst.msk [vmem:[#allocation2 + $0x70] sm:$0xff] %vm558, %v5036
        %5069 = vst.msk [vmem:[#allocation2 + $0x78] sm:$0xff] %vm558, %v5037
        %5070 = vst.msk [vmem:[#allocation2 + $0x80] sm:$0xff] %vm558, %v5038
        %5071 = vst.msk [vmem:[#allocation2 + $0x88] sm:$0xff] %vm558, %v5039
        %5072 = vst.msk [vmem:[#allocation2 + $0x90] sm:$0xff] %vm558, %v5040
        %5073 = vst.msk [vmem:[#allocation2 + $0x98] sm:$0xff] %vm558, %v5041
        %5074 = vst.msk [vmem:[#allocation2 + $0xa0] sm:$0xff] %vm558, %v5042
        %5075 = vst.msk [vmem:[#allocation2 + $0xa8] sm:$0xff] %vm558, %v5043
        %5076 = vst.msk [vmem:[#allocation2 + $0xb0] sm:$0xff] %vm558, %v5044
        %5077 = vst.msk [vmem:[#allocation2 + $0xb8] sm:$0xff] %vm558, %v5045
        %5078 = vst.msk [vmem:[#allocation2 + $0xc0] sm:$0xff] %vm558, %v5046
        %5079 = vst.msk [vmem:[#allocation2 + $0xc8] sm:$0xff] %vm558, %v5047
        %5080 = vst.msk [vmem:[#allocation2 + $0xd0] sm:$0xff] %vm558, %v5048
        %5081 = vst.msk [vmem:[#allocation2 + $0xd8] sm:$0xff] %vm558, %v5049
        %5082 = vst.msk [vmem:[#allocation2 + $0xe0] sm:$0xff] %vm558, %v5050
        %5083 = vst.msk [vmem:[#allocation2 + $0xe8] sm:$0xff] %vm558, %v5051
        %5084 = vst.msk [vmem:[#allocation2 + $0xf0] sm:$0xff] %vm558, %v5052
        %5085 = vst.msk [vmem:[#allocation2 + $0xf8] sm:$0xff] %vm558, %v5053
      $region84: #{cblock_forward.1} parent=79 // pred_fallthru
        _
      %s5086 = smul.u32 %s31, 8
      %s5087 = smul.u32 %s5086, 16
      %s5088 = scalar_lea.vmem [#allocation2], %s5087
      %v5089 = vld [vmem:[%s5088] sm:$0xff]
      %v5090 = vld [vmem:[%s5088 + $0x8] sm:$0xff]
      %v5091 = vld [vmem:[%s5088 + $0x10] sm:$0xff]
      %v5092 = vld [vmem:[%s5088 + $0x18] sm:$0xff]
      %v5093 = vld [vmem:[%s5088 + $0x20] sm:$0xff]
      %v5094 = vld [vmem:[%s5088 + $0x28] sm:$0xff]
      %v5095 = vld [vmem:[%s5088 + $0x30] sm:$0xff]
      %v5096 = vld [vmem:[%s5088 + $0x38] sm:$0xff]
      %v5097 = vld [vmem:[%s5088 + $0x40] sm:$0xff]
      %v5098 = vld [vmem:[%s5088 + $0x48] sm:$0xff]
      %v5099 = vld [vmem:[%s5088 + $0x50] sm:$0xff]
      %v5100 = vld [vmem:[%s5088 + $0x58] sm:$0xff]
      %v5101 = vld [vmem:[%s5088 + $0x60] sm:$0xff]
      %v5102 = vld [vmem:[%s5088 + $0x68] sm:$0xff]
      %v5103 = vld [vmem:[%s5088 + $0x70] sm:$0xff]
      %v5104 = vld [vmem:[%s5088 + $0x78] sm:$0xff]
      %v5105 = vld [vmem:[%s9] sm:$0x1]
      %v5106 = vld [vmem:[%s10] sm:$0x1]
      %vm5107 = vcmask 31744
      %v5108 = vsel %vm5107, %v5089, 0.0
      %5109 = vadd.xlane.f32.xlu0 %v5108
      %v5110 = vpop.xlane.xlu0 %5109
      %v5111 = vsel %vm5107, %v5090, 0.0
      %5112 = vadd.xlane.f32.xlu0 %v5111
      %v5113 = vpop.xlane.xlu0 %5112
      %v5114 = vsel %vm5107, %v5091, 0.0
      %5115 = vadd.xlane.f32.xlu0 %v5114
      %v5116 = vpop.xlane.xlu0 %5115
      %v5117 = vsel %vm5107, %v5092, 0.0
      %5118 = vadd.xlane.f32.xlu0 %v5117
      %v5119 = vpop.xlane.xlu0 %5118
      %v5120 = vsel %vm5107, %v5093, 0.0
      %5121 = vadd.xlane.f32.xlu0 %v5120
      %v5122 = vpop.xlane.xlu0 %5121
      %v5123 = vsel %vm5107, %v5094, 0.0
      %5124 = vadd.xlane.f32.xlu0 %v5123
      %v5125 = vpop.xlane.xlu0 %5124
      %v5126 = vsel %vm5107, %v5095, 0.0
      %5127 = vadd.xlane.f32.xlu0 %v5126
      %v5128 = vpop.xlane.xlu0 %5127
      %v5129 = vsel %vm5107, %v5096, 0.0
      %5130 = vadd.xlane.f32.xlu0 %v5129
      %v5131 = vpop.xlane.xlu0 %5130
      %v5132 = vsel %vm5107, %v5097, 0.0
      %5133 = vadd.xlane.f32.xlu0 %v5132
      %v5134 = vpop.xlane.xlu0 %5133
      %v5135 = vsel %vm5107, %v5098, 0.0
      %5136 = vadd.xlane.f32.xlu0 %v5135
      %v5137 = vpop.xlane.xlu0 %5136
      %v5138 = vsel %vm5107, %v5099, 0.0
      %5139 = vadd.xlane.f32.xlu0 %v5138
      %v5140 = vpop.xlane.xlu0 %5139
      %v5141 = vsel %vm5107, %v5100, 0.0
      %5142 = vadd.xlane.f32.xlu0 %v5141
      %v5143 = vpop.xlane.xlu0 %5142
      %v5144 = vsel %vm5107, %v5101, 0.0
      %5145 = vadd.xlane.f32.xlu0 %v5144
      %v5146 = vpop.xlane.xlu0 %5145
      %v5147 = vsel %vm5107, %v5102, 0.0
      %5148 = vadd.xlane.f32.xlu0 %v5147
      %v5149 = vpop.xlane.xlu0 %5148
      %v5150 = vsel %vm5107, %v5103, 0.0
      %5151 = vadd.xlane.f32.xlu0 %v5150
      %v5152 = vpop.xlane.xlu0 %5151
      %v5153 = vsel %vm5107, %v5104, 0.0
      %5154 = vadd.xlane.f32.xlu0 %v5153
      %v5155 = vpop.xlane.xlu0 %5154
      %v5156 = vrcp.pop 4.0
      %v5157 = vmul.f32 4.0, %v5156
      %v5158 = vsub.f32 1.0, %v5157
      %v5159 = vmul.f32 %v5156, %v5158
      %v5160 = vadd.f32 %v5156, %v5159
      %vm5161 = vweird.f32 %v5156
      %v5162 = vsel %vm5161, %v5156, %v5160
      %v5163 = vmul.f32 %v5110, %v5162
      %v5164 = vmul.f32 %v5113, %v5162
      %v5165 = vmul.f32 %v5116, %v5162
      %v5166 = vmul.f32 %v5119, %v5162
      %v5167 = vmul.f32 %v5122, %v5162
      %v5168 = vmul.f32 %v5125, %v5162
      %v5169 = vmul.f32 %v5128, %v5162
      %v5170 = vmul.f32 %v5131, %v5162
      %v5171 = vmul.f32 %v5134, %v5162
      %v5172 = vmul.f32 %v5137, %v5162
      %v5173 = vmul.f32 %v5140, %v5162
      %v5174 = vmul.f32 %v5143, %v5162
      %v5175 = vmul.f32 %v5146, %v5162
      %v5176 = vmul.f32 %v5149, %v5162
      %v5177 = vmul.f32 %v5152, %v5162
      %v5178 = vmul.f32 %v5155, %v5162
      %v5179 = vmul.f32 %v5089, %v5089
      %v5180 = vmul.f32 %v5090, %v5090
      %v5181 = vmul.f32 %v5091, %v5091
      %v5182 = vmul.f32 %v5092, %v5092
      %v5183 = vmul.f32 %v5093, %v5093
      %v5184 = vmul.f32 %v5094, %v5094
      %v5185 = vmul.f32 %v5095, %v5095
      %v5186 = vmul.f32 %v5096, %v5096
      %v5187 = vmul.f32 %v5097, %v5097
      %v5188 = vmul.f32 %v5098, %v5098
      %v5189 = vmul.f32 %v5099, %v5099
      %v5190 = vmul.f32 %v5100, %v5100
      %v5191 = vmul.f32 %v5101, %v5101
      %v5192 = vmul.f32 %v5102, %v5102
      %v5193 = vmul.f32 %v5103, %v5103
      %v5194 = vmul.f32 %v5104, %v5104
      %v5195 = vsel %vm5107, %v5179, 0.0
      %5196 = vadd.xlane.f32.xlu0 %v5195
      %v5197 = vpop.xlane.xlu0 %5196
      %v5198 = vsel %vm5107, %v5180, 0.0
      %5199 = vadd.xlane.f32.xlu0 %v5198
      %v5200 = vpop.xlane.xlu0 %5199
      %v5201 = vsel %vm5107, %v5181, 0.0
      %5202 = vadd.xlane.f32.xlu0 %v5201
      %v5203 = vpop.xlane.xlu0 %5202
      %v5204 = vsel %vm5107, %v5182, 0.0
      %5205 = vadd.xlane.f32.xlu0 %v5204
      %v5206 = vpop.xlane.xlu0 %5205
      %v5207 = vsel %vm5107, %v5183, 0.0
      %5208 = vadd.xlane.f32.xlu0 %v5207
      %v5209 = vpop.xlane.xlu0 %5208
      %v5210 = vsel %vm5107, %v5184, 0.0
      %5211 = vadd.xlane.f32.xlu0 %v5210
      %v5212 = vpop.xlane.xlu0 %5211
      %v5213 = vsel %vm5107, %v5185, 0.0
      %5214 = vadd.xlane.f32.xlu0 %v5213
      %v5215 = vpop.xlane.xlu0 %5214
      %v5216 = vsel %vm5107, %v5186, 0.0
      %5217 = vadd.xlane.f32.xlu0 %v5216
      %v5218 = vpop.xlane.xlu0 %5217
      %v5219 = vsel %vm5107, %v5187, 0.0
      %5220 = vadd.xlane.f32.xlu0 %v5219
      %v5221 = vpop.xlane.xlu0 %5220
      %v5222 = vsel %vm5107, %v5188, 0.0
      %5223 = vadd.xlane.f32.xlu0 %v5222
      %v5224 = vpop.xlane.xlu0 %5223
      %v5225 = vsel %vm5107, %v5189, 0.0
      %5226 = vadd.xlane.f32.xlu0 %v5225
      %v5227 = vpop.xlane.xlu0 %5226
      %v5228 = vsel %vm5107, %v5190, 0.0
      %5229 = vadd.xlane.f32.xlu0 %v5228
      %v5230 = vpop.xlane.xlu0 %5229
      %v5231 = vsel %vm5107, %v5191, 0.0
      %5232 = vadd.xlane.f32.xlu0 %v5231
      %v5233 = vpop.xlane.xlu0 %5232
      %v5234 = vsel %vm5107, %v5192, 0.0
      %5235 = vadd.xlane.f32.xlu0 %v5234
      %v5236 = vpop.xlane.xlu0 %5235
      %v5237 = vsel %vm5107, %v5193, 0.0
      %5238 = vadd.xlane.f32.xlu0 %v5237
      %v5239 = vpop.xlane.xlu0 %5238
      %v5240 = vsel %vm5107, %v5194, 0.0
      %5241 = vadd.xlane.f32.xlu0 %v5240
      %v5242 = vpop.xlane.xlu0 %5241
      %v5243 = vmul.f32 %v5197, %v5162
      %v5244 = vmul.f32 %v5200, %v5162
      %v5245 = vmul.f32 %v5203, %v5162
      %v5246 = vmul.f32 %v5206, %v5162
      %v5247 = vmul.f32 %v5209, %v5162
      %v5248 = vmul.f32 %v5212, %v5162
      %v5249 = vmul.f32 %v5215, %v5162
      %v5250 = vmul.f32 %v5218, %v5162
      %v5251 = vmul.f32 %v5221, %v5162
      %v5252 = vmul.f32 %v5224, %v5162
      %v5253 = vmul.f32 %v5227, %v5162
      %v5254 = vmul.f32 %v5230, %v5162
      %v5255 = vmul.f32 %v5233, %v5162
      %v5256 = vmul.f32 %v5236, %v5162
      %v5257 = vmul.f32 %v5239, %v5162
      %v5258 = vmul.f32 %v5242, %v5162
      %v5259 = vmul.f32 %v5163, %v5163
      %v5260 = vmul.f32 %v5164, %v5164
      %v5261 = vmul.f32 %v5165, %v5165
      %v5262 = vmul.f32 %v5166, %v5166
      %v5263 = vmul.f32 %v5167, %v5167
      %v5264 = vmul.f32 %v5168, %v5168
      %v5265 = vmul.f32 %v5169, %v5169
      %v5266 = vmul.f32 %v5170, %v5170
      %v5267 = vmul.f32 %v5171, %v5171
      %v5268 = vmul.f32 %v5172, %v5172
      %v5269 = vmul.f32 %v5173, %v5173
      %v5270 = vmul.f32 %v5174, %v5174
      %v5271 = vmul.f32 %v5175, %v5175
      %v5272 = vmul.f32 %v5176, %v5176
      %v5273 = vmul.f32 %v5177, %v5177
      %v5274 = vmul.f32 %v5178, %v5178
      %v5275 = vsub.f32 %v5243, %v5259
      %v5276 = vsub.f32 %v5244, %v5260
      %v5277 = vsub.f32 %v5245, %v5261
      %v5278 = vsub.f32 %v5246, %v5262
      %v5279 = vsub.f32 %v5247, %v5263
      %v5280 = vsub.f32 %v5248, %v5264
      %v5281 = vsub.f32 %v5249, %v5265
      %v5282 = vsub.f32 %v5250, %v5266
      %v5283 = vsub.f32 %v5251, %v5267
      %v5284 = vsub.f32 %v5252, %v5268
      %v5285 = vsub.f32 %v5253, %v5269
      %v5286 = vsub.f32 %v5254, %v5270
      %v5287 = vsub.f32 %v5255, %v5271
      %v5288 = vsub.f32 %v5256, %v5272
      %v5289 = vsub.f32 %v5257, %v5273
      %v5290 = vsub.f32 %v5258, %v5274
      %v5291 = vsub.f32 %v5089, %v5163
      %v5292 = vsub.f32 %v5090, %v5164
      %v5293 = vsub.f32 %v5091, %v5165
      %v5294 = vsub.f32 %v5092, %v5166
      %v5295 = vsub.f32 %v5093, %v5167
      %v5296 = vsub.f32 %v5094, %v5168
      %v5297 = vsub.f32 %v5095, %v5169
      %v5298 = vsub.f32 %v5096, %v5170
      %v5299 = vsub.f32 %v5097, %v5171
      %v5300 = vsub.f32 %v5098, %v5172
      %v5301 = vsub.f32 %v5099, %v5173
      %v5302 = vsub.f32 %v5100, %v5174
      %v5303 = vsub.f32 %v5101, %v5175
      %v5304 = vsub.f32 %v5102, %v5176
      %v5305 = vsub.f32 %v5103, %v5177
      %v5306 = vsub.f32 %v5104, %v5178
      %v5307 = vadd.f32 %v5275, 1e-05
      %v5308 = vadd.f32 %v5276, 1e-05
      %v5309 = vadd.f32 %v5277, 1e-05
      %v5310 = vadd.f32 %v5278, 1e-05
      %v5311 = vadd.f32 %v5279, 1e-05
      %v5312 = vadd.f32 %v5280, 1e-05
      %v5313 = vadd.f32 %v5281, 1e-05
      %v5314 = vadd.f32 %v5282, 1e-05
      %v5315 = vadd.f32 %v5283, 1e-05
      %v5316 = vadd.f32 %v5284, 1e-05
      %v5317 = vadd.f32 %v5285, 1e-05
      %v5318 = vadd.f32 %v5286, 1e-05
      %v5319 = vadd.f32 %v5287, 1e-05
      %v5320 = vadd.f32 %v5288, 1e-05
      %v5321 = vadd.f32 %v5289, 1e-05
      %v5322 = vadd.f32 %v5290, 1e-05
      %v5323 = vrsqrt.pop %v5307
      %v5324 = vmul.f32 %v5323, %v5307
      %v5325 = vmul.f32 %v5324, %v5323
      %v5326 = vmul.f32 0.5, %v5325
      %v5327 = vsub.f32 1.5, %v5326
      %v5328 = vmul.f32 %v5323, %v5327
      %vm5329 = vweird.f32 %v5307
      %vm5330 = vweird.f32 %v5323
      %vm5331 = vmor %vm5329, %vm5330
      %v5332 = vsel %vm5331, %v5323, %v5328
      %v5333 = vrsqrt.pop %v5308
      %v5334 = vmul.f32 %v5333, %v5308
      %v5335 = vmul.f32 %v5334, %v5333
      %v5336 = vmul.f32 0.5, %v5335
      %v5337 = vsub.f32 1.5, %v5336
      %v5338 = vmul.f32 %v5333, %v5337
      %vm5339 = vweird.f32 %v5308
      %vm5340 = vweird.f32 %v5333
      %vm5341 = vmor %vm5339, %vm5340
      %v5342 = vsel %vm5341, %v5333, %v5338
      %v5343 = vrsqrt.pop %v5309
      %v5344 = vmul.f32 %v5343, %v5309
      %v5345 = vmul.f32 %v5344, %v5343
      %v5346 = vmul.f32 0.5, %v5345
      %v5347 = vsub.f32 1.5, %v5346
      %v5348 = vmul.f32 %v5343, %v5347
      %vm5349 = vweird.f32 %v5309
      %vm5350 = vweird.f32 %v5343
      %vm5351 = vmor %vm5349, %vm5350
      %v5352 = vsel %vm5351, %v5343, %v5348
      %v5353 = vrsqrt.pop %v5310
      %v5354 = vmul.f32 %v5353, %v5310
      %v5355 = vmul.f32 %v5354, %v5353
      %v5356 = vmul.f32 0.5, %v5355
      %v5357 = vsub.f32 1.5, %v5356
      %v5358 = vmul.f32 %v5353, %v5357
      %vm5359 = vweird.f32 %v5310
      %vm5360 = vweird.f32 %v5353
      %vm5361 = vmor %vm5359, %vm5360
      %v5362 = vsel %vm5361, %v5353, %v5358
      %v5363 = vrsqrt.pop %v5311
      %v5364 = vmul.f32 %v5363, %v5311
      %v5365 = vmul.f32 %v5364, %v5363
      %v5366 = vmul.f32 0.5, %v5365
      %v5367 = vsub.f32 1.5, %v5366
      %v5368 = vmul.f32 %v5363, %v5367
      %vm5369 = vweird.f32 %v5311
      %vm5370 = vweird.f32 %v5363
      %vm5371 = vmor %vm5369, %vm5370
      %v5372 = vsel %vm5371, %v5363, %v5368
      %v5373 = vrsqrt.pop %v5312
      %v5374 = vmul.f32 %v5373, %v5312
      %v5375 = vmul.f32 %v5374, %v5373
      %v5376 = vmul.f32 0.5, %v5375
      %v5377 = vsub.f32 1.5, %v5376
      %v5378 = vmul.f32 %v5373, %v5377
      %vm5379 = vweird.f32 %v5312
      %vm5380 = vweird.f32 %v5373
      %vm5381 = vmor %vm5379, %vm5380
      %v5382 = vsel %vm5381, %v5373, %v5378
      %v5383 = vrsqrt.pop %v5313
      %v5384 = vmul.f32 %v5383, %v5313
      %v5385 = vmul.f32 %v5384, %v5383
      %v5386 = vmul.f32 0.5, %v5385
      %v5387 = vsub.f32 1.5, %v5386
      %v5388 = vmul.f32 %v5383, %v5387
      %vm5389 = vweird.f32 %v5313
      %vm5390 = vweird.f32 %v5383
      %vm5391 = vmor %vm5389, %vm5390
      %v5392 = vsel %vm5391, %v5383, %v5388
      %v5393 = vrsqrt.pop %v5314
      %v5394 = vmul.f32 %v5393, %v5314
      %v5395 = vmul.f32 %v5394, %v5393
      %v5396 = vmul.f32 0.5, %v5395
      %v5397 = vsub.f32 1.5, %v5396
      %v5398 = vmul.f32 %v5393, %v5397
      %vm5399 = vweird.f32 %v5314
      %vm5400 = vweird.f32 %v5393
      %vm5401 = vmor %vm5399, %vm5400
      %v5402 = vsel %vm5401, %v5393, %v5398
      %v5403 = vrsqrt.pop %v5315
      %v5404 = vmul.f32 %v5403, %v5315
      %v5405 = vmul.f32 %v5404, %v5403
      %v5406 = vmul.f32 0.5, %v5405
      %v5407 = vsub.f32 1.5, %v5406
      %v5408 = vmul.f32 %v5403, %v5407
      %vm5409 = vweird.f32 %v5315
      %vm5410 = vweird.f32 %v5403
      %vm5411 = vmor %vm5409, %vm5410
      %v5412 = vsel %vm5411, %v5403, %v5408
      %v5413 = vrsqrt.pop %v5316
      %v5414 = vmul.f32 %v5413, %v5316
      %v5415 = vmul.f32 %v5414, %v5413
      %v5416 = vmul.f32 0.5, %v5415
      %v5417 = vsub.f32 1.5, %v5416
      %v5418 = vmul.f32 %v5413, %v5417
      %vm5419 = vweird.f32 %v5316
      %vm5420 = vweird.f32 %v5413
      %vm5421 = vmor %vm5419, %vm5420
      %v5422 = vsel %vm5421, %v5413, %v5418
      %v5423 = vrsqrt.pop %v5317
      %v5424 = vmul.f32 %v5423, %v5317
      %v5425 = vmul.f32 %v5424, %v5423
      %v5426 = vmul.f32 0.5, %v5425
      %v5427 = vsub.f32 1.5, %v5426
      %v5428 = vmul.f32 %v5423, %v5427
      %vm5429 = vweird.f32 %v5317
      %vm5430 = vweird.f32 %v5423
      %vm5431 = vmor %vm5429, %vm5430
      %v5432 = vsel %vm5431, %v5423, %v5428
      %v5433 = vrsqrt.pop %v5318
      %v5434 = vmul.f32 %v5433, %v5318
      %v5435 = vmul.f32 %v5434, %v5433
      %v5436 = vmul.f32 0.5, %v5435
      %v5437 = vsub.f32 1.5, %v5436
      %v5438 = vmul.f32 %v5433, %v5437
      %vm5439 = vweird.f32 %v5318
      %vm5440 = vweird.f32 %v5433
      %vm5441 = vmor %vm5439, %vm5440
      %v5442 = vsel %vm5441, %v5433, %v5438
      %v5443 = vrsqrt.pop %v5319
      %v5444 = vmul.f32 %v5443, %v5319
      %v5445 = vmul.f32 %v5444, %v5443
      %v5446 = vmul.f32 0.5, %v5445
      %v5447 = vsub.f32 1.5, %v5446
      %v5448 = vmul.f32 %v5443, %v5447
      %vm5449 = vweird.f32 %v5319
      %vm5450 = vweird.f32 %v5443
      %vm5451 = vmor %vm5449, %vm5450
      %v5452 = vsel %vm5451, %v5443, %v5448
      %v5453 = vrsqrt.pop %v5320
      %v5454 = vmul.f32 %v5453, %v5320
      %v5455 = vmul.f32 %v5454, %v5453
      %v5456 = vmul.f32 0.5, %v5455
      %v5457 = vsub.f32 1.5, %v5456
      %v5458 = vmul.f32 %v5453, %v5457
      %vm5459 = vweird.f32 %v5320
      %vm5460 = vweird.f32 %v5453
      %vm5461 = vmor %vm5459, %vm5460
      %v5462 = vsel %vm5461, %v5453, %v5458
      %v5463 = vrsqrt.pop %v5321
      %v5464 = vmul.f32 %v5463, %v5321
      %v5465 = vmul.f32 %v5464, %v5463
      %v5466 = vmul.f32 0.5, %v5465
      %v5467 = vsub.f32 1.5, %v5466
      %v5468 = vmul.f32 %v5463, %v5467
      %vm5469 = vweird.f32 %v5321
      %vm5470 = vweird.f32 %v5463
      %vm5471 = vmor %vm5469, %vm5470
      %v5472 = vsel %vm5471, %v5463, %v5468
      %v5473 = vrsqrt.pop %v5322
      %v5474 = vmul.f32 %v5473, %v5322
      %v5475 = vmul.f32 %v5474, %v5473
      %v5476 = vmul.f32 0.5, %v5475
      %v5477 = vsub.f32 1.5, %v5476
      %v5478 = vmul.f32 %v5473, %v5477
      %vm5479 = vweird.f32 %v5322
      %vm5480 = vweird.f32 %v5473
      %vm5481 = vmor %vm5479, %vm5480
      %v5482 = vsel %vm5481, %v5473, %v5478
      %v5483 = vmul.f32 %v5291, %v5332
      %v5484 = vmul.f32 %v5292, %v5342
      %v5485 = vmul.f32 %v5293, %v5352
      %v5486 = vmul.f32 %v5294, %v5362
      %v5487 = vmul.f32 %v5295, %v5372
      %v5488 = vmul.f32 %v5296, %v5382
      %v5489 = vmul.f32 %v5297, %v5392
      %v5490 = vmul.f32 %v5298, %v5402
      %v5491 = vmul.f32 %v5299, %v5412
      %v5492 = vmul.f32 %v5300, %v5422
      %v5493 = vmul.f32 %v5301, %v5432
      %v5494 = vmul.f32 %v5302, %v5442
      %v5495 = vmul.f32 %v5303, %v5452
      %v5496 = vmul.f32 %v5304, %v5462
      %v5497 = vmul.f32 %v5305, %v5472
      %v5498 = vmul.f32 %v5306, %v5482
      %v5500 = vperm.slane %v5105, 0
      %v5502 = vmul.f32 %v5483, %v5500
      %v5503 = vmul.f32 %v5484, %v5500
      %v5504 = vmul.f32 %v5485, %v5500
      %v5505 = vmul.f32 %v5486, %v5500
      %v5506 = vmul.f32 %v5487, %v5500
      %v5507 = vmul.f32 %v5488, %v5500
      %v5508 = vmul.f32 %v5489, %v5500
      %v5509 = vmul.f32 %v5490, %v5500
      %v5510 = vmul.f32 %v5491, %v5500
      %v5511 = vmul.f32 %v5492, %v5500
      %v5512 = vmul.f32 %v5493, %v5500
      %v5513 = vmul.f32 %v5494, %v5500
      %v5514 = vmul.f32 %v5495, %v5500
      %v5515 = vmul.f32 %v5496, %v5500
      %v5516 = vmul.f32 %v5497, %v5500
      %v5517 = vmul.f32 %v5498, %v5500
      %v5519 = vperm.slane %v5106, 0
      %v5521 = vadd.f32 %v5502, %v5519
      %v5522 = vadd.f32 %v5503, %v5519
      %v5523 = vadd.f32 %v5504, %v5519
      %v5524 = vadd.f32 %v5505, %v5519
      %v5525 = vadd.f32 %v5506, %v5519
      %v5526 = vadd.f32 %v5507, %v5519
      %v5527 = vadd.f32 %v5508, %v5519
      %v5528 = vadd.f32 %v5509, %v5519
      %v5529 = vadd.f32 %v5510, %v5519
      %v5530 = vadd.f32 %v5511, %v5519
      %v5531 = vadd.f32 %v5512, %v5519
      %v5532 = vadd.f32 %v5513, %v5519
      %v5533 = vadd.f32 %v5514, %v5519
      %v5534 = vadd.f32 %v5515, %v5519
      %v5535 = vadd.f32 %v5516, %v5519
      %v5536 = vadd.f32 %v5517, %v5519
      %v5537 = vld [vmem:[%s11] sm:$0xf]
      %v5538 = vld [vmem:[%s12] sm:$0x1]
      %v5540 = vperm.slane %v5538, 0
      %v5542 = vadd.f32 %v5540, 0.0
      %5544 = vset.pattern.permute.xlu0 0
      %5545 = vperm.xlu0 %5544, %v5521
      %v5546 = vpop.permute.xlu0 %5545
      %5549 = vset.pattern.permute.xlu0 0
      %5550 = vperm.xlu0 %5549, %v5522
      %v5551 = vpop.permute.xlu0 %5550
      %5554 = vset.pattern.permute.xlu0 0
      %5555 = vperm.xlu0 %5554, %v5523
      %v5556 = vpop.permute.xlu0 %5555
      %5559 = vset.pattern.permute.xlu0 0
      %5560 = vperm.xlu0 %5559, %v5524
      %v5561 = vpop.permute.xlu0 %5560
      %5564 = vset.pattern.permute.xlu0 0
      %5565 = vperm.xlu0 %5564, %v5525
      %v5566 = vpop.permute.xlu0 %5565
      %5569 = vset.pattern.permute.xlu0 0
      %5570 = vperm.xlu0 %5569, %v5526
      %v5571 = vpop.permute.xlu0 %5570
      %5574 = vset.pattern.permute.xlu0 0
      %5575 = vperm.xlu0 %5574, %v5527
      %v5576 = vpop.permute.xlu0 %5575
      %5579 = vset.pattern.permute.xlu0 0
      %5580 = vperm.xlu0 %5579, %v5528
      %v5581 = vpop.permute.xlu0 %5580
      %5584 = vset.pattern.permute.xlu0 0
      %5585 = vperm.xlu0 %5584, %v5529
      %v5586 = vpop.permute.xlu0 %5585
      %5589 = vset.pattern.permute.xlu0 0
      %5590 = vperm.xlu0 %5589, %v5530
      %v5591 = vpop.permute.xlu0 %5590
      %5594 = vset.pattern.permute.xlu0 0
      %5595 = vperm.xlu0 %5594, %v5531
      %v5596 = vpop.permute.xlu0 %5595
      %5599 = vset.pattern.permute.xlu0 0
      %5600 = vperm.xlu0 %5599, %v5532
      %v5601 = vpop.permute.xlu0 %5600
      %5604 = vset.pattern.permute.xlu0 0
      %5605 = vperm.xlu0 %5604, %v5533
      %v5606 = vpop.permute.xlu0 %5605
      %5609 = vset.pattern.permute.xlu0 0
      %5610 = vperm.xlu0 %5609, %v5534
      %v5611 = vpop.permute.xlu0 %5610
      %5614 = vset.pattern.permute.xlu0 0
      %5615 = vperm.xlu0 %5614, %v5535
      %v5616 = vpop.permute.xlu0 %5615
      %5619 = vset.pattern.permute.xlu0 0
      %5620 = vperm.xlu0 %5619, %v5536
      %v5621 = vpop.permute.xlu0 %5620
      %v5623 = vperm.slane %v5537, 0
      %v5624 = vmul.f32 %v5546, %v5623
      %v5625 = vmul.f32 %v5551, %v5623
      %v5626 = vmul.f32 %v5556, %v5623
      %v5627 = vmul.f32 %v5561, %v5623
      %v5628 = vmul.f32 %v5566, %v5623
      %v5629 = vmul.f32 %v5571, %v5623
      %v5630 = vmul.f32 %v5576, %v5623
      %v5631 = vmul.f32 %v5581, %v5623
      %v5632 = vmul.f32 %v5586, %v5623
      %v5633 = vmul.f32 %v5591, %v5623
      %v5634 = vmul.f32 %v5596, %v5623
      %v5635 = vmul.f32 %v5601, %v5623
      %v5636 = vmul.f32 %v5606, %v5623
      %v5637 = vmul.f32 %v5611, %v5623
      %v5638 = vmul.f32 %v5616, %v5623
      %v5639 = vmul.f32 %v5621, %v5623
      %v5640 = vadd.f32 %v5542, %v5624
      %v5641 = vadd.f32 %v5542, %v5625
      %v5642 = vadd.f32 %v5542, %v5626
      %v5643 = vadd.f32 %v5542, %v5627
      %v5644 = vadd.f32 %v5542, %v5628
      %v5645 = vadd.f32 %v5542, %v5629
      %v5646 = vadd.f32 %v5542, %v5630
      %v5647 = vadd.f32 %v5542, %v5631
      %v5648 = vadd.f32 %v5542, %v5632
      %v5649 = vadd.f32 %v5542, %v5633
      %v5650 = vadd.f32 %v5542, %v5634
      %v5651 = vadd.f32 %v5542, %v5635
      %v5652 = vadd.f32 %v5542, %v5636
      %v5653 = vadd.f32 %v5542, %v5637
      %v5654 = vadd.f32 %v5542, %v5638
      %v5655 = vadd.f32 %v5542, %v5639
      %5656 = vset.pattern.permute.xlu0 1
      %5657 = vperm.xlu0 %5656, %v5521
      %v5658 = vpop.permute.xlu0 %5657
      %5660 = vset.pattern.permute.xlu0 1
      %5661 = vperm.xlu0 %5660, %v5522
      %v5662 = vpop.permute.xlu0 %5661
      %5664 = vset.pattern.permute.xlu0 1
      %5665 = vperm.xlu0 %5664, %v5523
      %v5666 = vpop.permute.xlu0 %5665
      %5668 = vset.pattern.permute.xlu0 1
      %5669 = vperm.xlu0 %5668, %v5524
      %v5670 = vpop.permute.xlu0 %5669
      %5672 = vset.pattern.permute.xlu0 1
      %5673 = vperm.xlu0 %5672, %v5525
      %v5674 = vpop.permute.xlu0 %5673
      %5676 = vset.pattern.permute.xlu0 1
      %5677 = vperm.xlu0 %5676, %v5526
      %v5678 = vpop.permute.xlu0 %5677
      %5680 = vset.pattern.permute.xlu0 1
      %5681 = vperm.xlu0 %5680, %v5527
      %v5682 = vpop.permute.xlu0 %5681
      %5684 = vset.pattern.permute.xlu0 1
      %5685 = vperm.xlu0 %5684, %v5528
      %v5686 = vpop.permute.xlu0 %5685
      %5688 = vset.pattern.permute.xlu0 1
      %5689 = vperm.xlu0 %5688, %v5529
      %v5690 = vpop.permute.xlu0 %5689
      %5692 = vset.pattern.permute.xlu0 1
      %5693 = vperm.xlu0 %5692, %v5530
      %v5694 = vpop.permute.xlu0 %5693
      %5696 = vset.pattern.permute.xlu0 1
      %5697 = vperm.xlu0 %5696, %v5531
      %v5698 = vpop.permute.xlu0 %5697
      %5700 = vset.pattern.permute.xlu0 1
      %5701 = vperm.xlu0 %5700, %v5532
      %v5702 = vpop.permute.xlu0 %5701
      %5704 = vset.pattern.permute.xlu0 1
      %5705 = vperm.xlu0 %5704, %v5533
      %v5706 = vpop.permute.xlu0 %5705
      %5708 = vset.pattern.permute.xlu0 1
      %5709 = vperm.xlu0 %5708, %v5534
      %v5710 = vpop.permute.xlu0 %5709
      %5712 = vset.pattern.permute.xlu0 1
      %5713 = vperm.xlu0 %5712, %v5535
      %v5714 = vpop.permute.xlu0 %5713
      %5716 = vset.pattern.permute.xlu0 1
      %5717 = vperm.xlu0 %5716, %v5536
      %v5718 = vpop.permute.xlu0 %5717
      %v5720 = vperm.slane %v5537, 1
      %v5721 = vmul.f32 %v5658, %v5720
      %v5722 = vmul.f32 %v5662, %v5720
      %v5723 = vmul.f32 %v5666, %v5720
      %v5724 = vmul.f32 %v5670, %v5720
      %v5725 = vmul.f32 %v5674, %v5720
      %v5726 = vmul.f32 %v5678, %v5720
      %v5727 = vmul.f32 %v5682, %v5720
      %v5728 = vmul.f32 %v5686, %v5720
      %v5729 = vmul.f32 %v5690, %v5720
      %v5730 = vmul.f32 %v5694, %v5720
      %v5731 = vmul.f32 %v5698, %v5720
      %v5732 = vmul.f32 %v5702, %v5720
      %v5733 = vmul.f32 %v5706, %v5720
      %v5734 = vmul.f32 %v5710, %v5720
      %v5735 = vmul.f32 %v5714, %v5720
      %v5736 = vmul.f32 %v5718, %v5720
      %v5737 = vadd.f32 %v5640, %v5721
      %v5738 = vadd.f32 %v5641, %v5722
      %v5739 = vadd.f32 %v5642, %v5723
      %v5740 = vadd.f32 %v5643, %v5724
      %v5741 = vadd.f32 %v5644, %v5725
      %v5742 = vadd.f32 %v5645, %v5726
      %v5743 = vadd.f32 %v5646, %v5727
      %v5744 = vadd.f32 %v5647, %v5728
      %v5745 = vadd.f32 %v5648, %v5729
      %v5746 = vadd.f32 %v5649, %v5730
      %v5747 = vadd.f32 %v5650, %v5731
      %v5748 = vadd.f32 %v5651, %v5732
      %v5749 = vadd.f32 %v5652, %v5733
      %v5750 = vadd.f32 %v5653, %v5734
      %v5751 = vadd.f32 %v5654, %v5735
      %v5752 = vadd.f32 %v5655, %v5736
      %5753 = vset.pattern.permute.xlu0 2
      %5754 = vperm.xlu0 %5753, %v5521
      %v5755 = vpop.permute.xlu0 %5754
      %5757 = vset.pattern.permute.xlu0 2
      %5758 = vperm.xlu0 %5757, %v5522
      %v5759 = vpop.permute.xlu0 %5758
      %5761 = vset.pattern.permute.xlu0 2
      %5762 = vperm.xlu0 %5761, %v5523
      %v5763 = vpop.permute.xlu0 %5762
      %5765 = vset.pattern.permute.xlu0 2
      %5766 = vperm.xlu0 %5765, %v5524
      %v5767 = vpop.permute.xlu0 %5766
      %5769 = vset.pattern.permute.xlu0 2
      %5770 = vperm.xlu0 %5769, %v5525
      %v5771 = vpop.permute.xlu0 %5770
      %5773 = vset.pattern.permute.xlu0 2
      %5774 = vperm.xlu0 %5773, %v5526
      %v5775 = vpop.permute.xlu0 %5774
      %5777 = vset.pattern.permute.xlu0 2
      %5778 = vperm.xlu0 %5777, %v5527
      %v5779 = vpop.permute.xlu0 %5778
      %5781 = vset.pattern.permute.xlu0 2
      %5782 = vperm.xlu0 %5781, %v5528
      %v5783 = vpop.permute.xlu0 %5782
      %5785 = vset.pattern.permute.xlu0 2
      %5786 = vperm.xlu0 %5785, %v5529
      %v5787 = vpop.permute.xlu0 %5786
      %5789 = vset.pattern.permute.xlu0 2
      %5790 = vperm.xlu0 %5789, %v5530
      %v5791 = vpop.permute.xlu0 %5790
      %5793 = vset.pattern.permute.xlu0 2
      %5794 = vperm.xlu0 %5793, %v5531
      %v5795 = vpop.permute.xlu0 %5794
      %5797 = vset.pattern.permute.xlu0 2
      %5798 = vperm.xlu0 %5797, %v5532
      %v5799 = vpop.permute.xlu0 %5798
      %5801 = vset.pattern.permute.xlu0 2
      %5802 = vperm.xlu0 %5801, %v5533
      %v5803 = vpop.permute.xlu0 %5802
      %5805 = vset.pattern.permute.xlu0 2
      %5806 = vperm.xlu0 %5805, %v5534
      %v5807 = vpop.permute.xlu0 %5806
      %5809 = vset.pattern.permute.xlu0 2
      %5810 = vperm.xlu0 %5809, %v5535
      %v5811 = vpop.permute.xlu0 %5810
      %5813 = vset.pattern.permute.xlu0 2
      %5814 = vperm.xlu0 %5813, %v5536
      %v5815 = vpop.permute.xlu0 %5814
      %v5817 = vperm.slane %v5537, 2
      %v5818 = vmul.f32 %v5755, %v5817
      %v5819 = vmul.f32 %v5759, %v5817
      %v5820 = vmul.f32 %v5763, %v5817
      %v5821 = vmul.f32 %v5767, %v5817
      %v5822 = vmul.f32 %v5771, %v5817
      %v5823 = vmul.f32 %v5775, %v5817
      %v5824 = vmul.f32 %v5779, %v5817
      %v5825 = vmul.f32 %v5783, %v5817
      %v5826 = vmul.f32 %v5787, %v5817
      %v5827 = vmul.f32 %v5791, %v5817
      %v5828 = vmul.f32 %v5795, %v5817
      %v5829 = vmul.f32 %v5799, %v5817
      %v5830 = vmul.f32 %v5803, %v5817
      %v5831 = vmul.f32 %v5807, %v5817
      %v5832 = vmul.f32 %v5811, %v5817
      %v5833 = vmul.f32 %v5815, %v5817
      %v5834 = vadd.f32 %v5737, %v5818
      %v5835 = vadd.f32 %v5738, %v5819
      %v5836 = vadd.f32 %v5739, %v5820
      %v5837 = vadd.f32 %v5740, %v5821
      %v5838 = vadd.f32 %v5741, %v5822
      %v5839 = vadd.f32 %v5742, %v5823
      %v5840 = vadd.f32 %v5743, %v5824
      %v5841 = vadd.f32 %v5744, %v5825
      %v5842 = vadd.f32 %v5745, %v5826
      %v5843 = vadd.f32 %v5746, %v5827
      %v5844 = vadd.f32 %v5747, %v5828
      %v5845 = vadd.f32 %v5748, %v5829
      %v5846 = vadd.f32 %v5749, %v5830
      %v5847 = vadd.f32 %v5750, %v5831
      %v5848 = vadd.f32 %v5751, %v5832
      %v5849 = vadd.f32 %v5752, %v5833
      %5850 = vset.pattern.permute.xlu0 3
      %5851 = vperm.xlu0 %5850, %v5521
      %v5852 = vpop.permute.xlu0 %5851
      %5854 = vset.pattern.permute.xlu0 3
      %5855 = vperm.xlu0 %5854, %v5522
      %v5856 = vpop.permute.xlu0 %5855
      %5858 = vset.pattern.permute.xlu0 3
      %5859 = vperm.xlu0 %5858, %v5523
      %v5860 = vpop.permute.xlu0 %5859
      %5862 = vset.pattern.permute.xlu0 3
      %5863 = vperm.xlu0 %5862, %v5524
      %v5864 = vpop.permute.xlu0 %5863
      %5866 = vset.pattern.permute.xlu0 3
      %5867 = vperm.xlu0 %5866, %v5525
      %v5868 = vpop.permute.xlu0 %5867
      %5870 = vset.pattern.permute.xlu0 3
      %5871 = vperm.xlu0 %5870, %v5526
      %v5872 = vpop.permute.xlu0 %5871
      %5874 = vset.pattern.permute.xlu0 3
      %5875 = vperm.xlu0 %5874, %v5527
      %v5876 = vpop.permute.xlu0 %5875
      %5878 = vset.pattern.permute.xlu0 3
      %5879 = vperm.xlu0 %5878, %v5528
      %v5880 = vpop.permute.xlu0 %5879
      %5882 = vset.pattern.permute.xlu0 3
      %5883 = vperm.xlu0 %5882, %v5529
      %v5884 = vpop.permute.xlu0 %5883
      %5886 = vset.pattern.permute.xlu0 3
      %5887 = vperm.xlu0 %5886, %v5530
      %v5888 = vpop.permute.xlu0 %5887
      %5890 = vset.pattern.permute.xlu0 3
      %5891 = vperm.xlu0 %5890, %v5531
      %v5892 = vpop.permute.xlu0 %5891
      %5894 = vset.pattern.permute.xlu0 3
      %5895 = vperm.xlu0 %5894, %v5532
      %v5896 = vpop.permute.xlu0 %5895
      %5898 = vset.pattern.permute.xlu0 3
      %5899 = vperm.xlu0 %5898, %v5533
      %v5900 = vpop.permute.xlu0 %5899
      %5902 = vset.pattern.permute.xlu0 3
      %5903 = vperm.xlu0 %5902, %v5534
      %v5904 = vpop.permute.xlu0 %5903
      %5906 = vset.pattern.permute.xlu0 3
      %5907 = vperm.xlu0 %5906, %v5535
      %v5908 = vpop.permute.xlu0 %5907
      %5910 = vset.pattern.permute.xlu0 3
      %5911 = vperm.xlu0 %5910, %v5536
      %v5912 = vpop.permute.xlu0 %5911
      %v5914 = vperm.slane %v5537, 3
      %v5915 = vmul.f32 %v5852, %v5914
      %v5916 = vmul.f32 %v5856, %v5914
      %v5917 = vmul.f32 %v5860, %v5914
      %v5918 = vmul.f32 %v5864, %v5914
      %v5919 = vmul.f32 %v5868, %v5914
      %v5920 = vmul.f32 %v5872, %v5914
      %v5921 = vmul.f32 %v5876, %v5914
      %v5922 = vmul.f32 %v5880, %v5914
      %v5923 = vmul.f32 %v5884, %v5914
      %v5924 = vmul.f32 %v5888, %v5914
      %v5925 = vmul.f32 %v5892, %v5914
      %v5926 = vmul.f32 %v5896, %v5914
      %v5927 = vmul.f32 %v5900, %v5914
      %v5928 = vmul.f32 %v5904, %v5914
      %v5929 = vmul.f32 %v5908, %v5914
      %v5930 = vmul.f32 %v5912, %v5914
      %v5931 = vadd.f32 %v5834, %v5915
      %v5932 = vadd.f32 %v5835, %v5916
      %v5933 = vadd.f32 %v5836, %v5917
      %v5934 = vadd.f32 %v5837, %v5918
      %v5935 = vadd.f32 %v5838, %v5919
      %v5936 = vadd.f32 %v5839, %v5920
      %v5937 = vadd.f32 %v5840, %v5921
      %v5938 = vadd.f32 %v5841, %v5922
      %v5939 = vadd.f32 %v5842, %v5923
      %v5940 = vadd.f32 %v5843, %v5924
      %v5941 = vadd.f32 %v5844, %v5925
      %v5942 = vadd.f32 %v5845, %v5926
      %v5943 = vadd.f32 %v5846, %v5927
      %v5944 = vadd.f32 %v5847, %v5928
      %v5945 = vadd.f32 %v5848, %v5929
      %v5946 = vadd.f32 %v5849, %v5930
      %v5947 = vmul.f32 %v5931, 0.5
      %v5948 = vmul.f32 %v5932, 0.5
      %v5949 = vmul.f32 %v5933, 0.5
      %v5950 = vmul.f32 %v5934, 0.5
      %v5951 = vmul.f32 %v5935, 0.5
      %v5952 = vmul.f32 %v5936, 0.5
      %v5953 = vmul.f32 %v5937, 0.5
      %v5954 = vmul.f32 %v5938, 0.5
      %v5955 = vmul.f32 %v5939, 0.5
      %v5956 = vmul.f32 %v5940, 0.5
      %v5957 = vmul.f32 %v5941, 0.5
      %v5958 = vmul.f32 %v5942, 0.5
      %v5959 = vmul.f32 %v5943, 0.5
      %v5960 = vmul.f32 %v5944, 0.5
      %v5961 = vmul.f32 %v5945, 0.5
      %v5962 = vmul.f32 %v5946, 0.5
      %v5963 = vmul.f32 %v5931, %v5931
      %v5964 = vmul.f32 %v5932, %v5932
      %v5965 = vmul.f32 %v5933, %v5933
      %v5966 = vmul.f32 %v5934, %v5934
      %v5967 = vmul.f32 %v5935, %v5935
      %v5968 = vmul.f32 %v5936, %v5936
      %v5969 = vmul.f32 %v5937, %v5937
      %v5970 = vmul.f32 %v5938, %v5938
      %v5971 = vmul.f32 %v5939, %v5939
      %v5972 = vmul.f32 %v5940, %v5940
      %v5973 = vmul.f32 %v5941, %v5941
      %v5974 = vmul.f32 %v5942, %v5942
      %v5975 = vmul.f32 %v5943, %v5943
      %v5976 = vmul.f32 %v5944, %v5944
      %v5977 = vmul.f32 %v5945, %v5945
      %v5978 = vmul.f32 %v5946, %v5946
      %v5979 = vmul.f32 %v5963, %v5931
      %v5980 = vmul.f32 %v5964, %v5932
      %v5981 = vmul.f32 %v5965, %v5933
      %v5982 = vmul.f32 %v5966, %v5934
      %v5983 = vmul.f32 %v5967, %v5935
      %v5984 = vmul.f32 %v5968, %v5936
      %v5985 = vmul.f32 %v5969, %v5937
      %v5986 = vmul.f32 %v5970, %v5938
      %v5987 = vmul.f32 %v5971, %v5939
      %v5988 = vmul.f32 %v5972, %v5940
      %v5989 = vmul.f32 %v5973, %v5941
      %v5990 = vmul.f32 %v5974, %v5942
      %v5991 = vmul.f32 %v5975, %v5943
      %v5992 = vmul.f32 %v5976, %v5944
      %v5993 = vmul.f32 %v5977, %v5945
      %v5994 = vmul.f32 %v5978, %v5946
      %v5995 = vmul.f32 %v5979, 0.044715
      %v5996 = vmul.f32 %v5980, 0.044715
      %v5997 = vmul.f32 %v5981, 0.044715
      %v5998 = vmul.f32 %v5982, 0.044715
      %v5999 = vmul.f32 %v5983, 0.044715
      %v6000 = vmul.f32 %v5984, 0.044715
      %v6001 = vmul.f32 %v5985, 0.044715
      %v6002 = vmul.f32 %v5986, 0.044715
      %v6003 = vmul.f32 %v5987, 0.044715
      %v6004 = vmul.f32 %v5988, 0.044715
      %v6005 = vmul.f32 %v5989, 0.044715
      %v6006 = vmul.f32 %v5990, 0.044715
      %v6007 = vmul.f32 %v5991, 0.044715
      %v6008 = vmul.f32 %v5992, 0.044715
      %v6009 = vmul.f32 %v5993, 0.044715
      %v6010 = vmul.f32 %v5994, 0.044715
      %v6011 = vadd.f32 %v5931, %v5995
      %v6012 = vadd.f32 %v5932, %v5996
      %v6013 = vadd.f32 %v5933, %v5997
      %v6014 = vadd.f32 %v5934, %v5998
      %v6015 = vadd.f32 %v5935, %v5999
      %v6016 = vadd.f32 %v5936, %v6000
      %v6017 = vadd.f32 %v5937, %v6001
      %v6018 = vadd.f32 %v5938, %v6002
      %v6019 = vadd.f32 %v5939, %v6003
      %v6020 = vadd.f32 %v5940, %v6004
      %v6021 = vadd.f32 %v5941, %v6005
      %v6022 = vadd.f32 %v5942, %v6006
      %v6023 = vadd.f32 %v5943, %v6007
      %v6024 = vadd.f32 %v5944, %v6008
      %v6025 = vadd.f32 %v5945, %v6009
      %v6026 = vadd.f32 %v5946, %v6010
      %v6027 = vmul.f32 %v6011, 0.7978846
      %v6028 = vmul.f32 %v6012, 0.7978846
      %v6029 = vmul.f32 %v6013, 0.7978846
      %v6030 = vmul.f32 %v6014, 0.7978846
      %v6031 = vmul.f32 %v6015, 0.7978846
      %v6032 = vmul.f32 %v6016, 0.7978846
      %v6033 = vmul.f32 %v6017, 0.7978846
      %v6034 = vmul.f32 %v6018, 0.7978846
      %v6035 = vmul.f32 %v6019, 0.7978846
      %v6036 = vmul.f32 %v6020, 0.7978846
      %v6037 = vmul.f32 %v6021, 0.7978846
      %v6038 = vmul.f32 %v6022, 0.7978846
      %v6039 = vmul.f32 %v6023, 0.7978846
      %v6040 = vmul.f32 %v6024, 0.7978846
      %v6041 = vmul.f32 %v6025, 0.7978846
      %v6042 = vmul.f32 %v6026, 0.7978846
      %v6043 = vtanh.pop %v6027
      %v6044 = vtanh.pop %v6028
      %v6045 = vtanh.pop %v6029
      %v6046 = vtanh.pop %v6030
      %v6047 = vtanh.pop %v6031
      %v6048 = vtanh.pop %v6032
      %v6049 = vtanh.pop %v6033
      %v6050 = vtanh.pop %v6034
      %v6051 = vtanh.pop %v6035
      %v6052 = vtanh.pop %v6036
      %v6053 = vtanh.pop %v6037
      %v6054 = vtanh.pop %v6038
      %v6055 = vtanh.pop %v6039
      %v6056 = vtanh.pop %v6040
      %v6057 = vtanh.pop %v6041
      %v6058 = vtanh.pop %v6042
      %v6059 = vadd.f32 %v6043, 1.0
      %v6060 = vadd.f32 %v6044, 1.0
      %v6061 = vadd.f32 %v6045, 1.0
      %v6062 = vadd.f32 %v6046, 1.0
      %v6063 = vadd.f32 %v6047, 1.0
      %v6064 = vadd.f32 %v6048, 1.0
      %v6065 = vadd.f32 %v6049, 1.0
      %v6066 = vadd.f32 %v6050, 1.0
      %v6067 = vadd.f32 %v6051, 1.0
      %v6068 = vadd.f32 %v6052, 1.0
      %v6069 = vadd.f32 %v6053, 1.0
      %v6070 = vadd.f32 %v6054, 1.0
      %v6071 = vadd.f32 %v6055, 1.0
      %v6072 = vadd.f32 %v6056, 1.0
      %v6073 = vadd.f32 %v6057, 1.0
      %v6074 = vadd.f32 %v6058, 1.0
      %v6075 = vmul.f32 %v5947, %v6059
      %v6076 = vmul.f32 %v5948, %v6060
      %v6077 = vmul.f32 %v5949, %v6061
      %v6078 = vmul.f32 %v5950, %v6062
      %v6079 = vmul.f32 %v5951, %v6063
      %v6080 = vmul.f32 %v5952, %v6064
      %v6081 = vmul.f32 %v5953, %v6065
      %v6082 = vmul.f32 %v5954, %v6066
      %v6083 = vmul.f32 %v5955, %v6067
      %v6084 = vmul.f32 %v5956, %v6068
      %v6085 = vmul.f32 %v5957, %v6069
      %v6086 = vmul.f32 %v5958, %v6070
      %v6087 = vmul.f32 %v5959, %v6071
      %v6088 = vmul.f32 %v5960, %v6072
      %v6089 = vmul.f32 %v5961, %v6073
      %v6090 = vmul.f32 %v5962, %v6074
      %v6091 = vld [vmem:[%s13] sm:$0xff]
      %v6092 = vld [vmem:[%s13 + $0x8] sm:$0xff]
      %v6093 = vld [vmem:[%s14] sm:$0x1]
      %v6095 = vperm.slane %v6093, 0
      %v6097 = vadd.f32 %v6095, 0.0
      %6099 = vset.pattern.permute.xlu0 0
      %6100 = vperm.xlu0 %6099, %v6075
      %v6101 = vpop.permute.xlu0 %6100
      %6104 = vset.pattern.permute.xlu0 0
      %6105 = vperm.xlu0 %6104, %v6076
      %v6106 = vpop.permute.xlu0 %6105
      %6109 = vset.pattern.permute.xlu0 0
      %6110 = vperm.xlu0 %6109, %v6077
      %v6111 = vpop.permute.xlu0 %6110
      %6114 = vset.pattern.permute.xlu0 0
      %6115 = vperm.xlu0 %6114, %v6078
      %v6116 = vpop.permute.xlu0 %6115
      %6119 = vset.pattern.permute.xlu0 0
      %6120 = vperm.xlu0 %6119, %v6079
      %v6121 = vpop.permute.xlu0 %6120
      %6124 = vset.pattern.permute.xlu0 0
      %6125 = vperm.xlu0 %6124, %v6080
      %v6126 = vpop.permute.xlu0 %6125
      %6129 = vset.pattern.permute.xlu0 0
      %6130 = vperm.xlu0 %6129, %v6081
      %v6131 = vpop.permute.xlu0 %6130
      %6134 = vset.pattern.permute.xlu0 0
      %6135 = vperm.xlu0 %6134, %v6082
      %v6136 = vpop.permute.xlu0 %6135
      %6139 = vset.pattern.permute.xlu0 0
      %6140 = vperm.xlu0 %6139, %v6083
      %v6141 = vpop.permute.xlu0 %6140
      %6144 = vset.pattern.permute.xlu0 0
      %6145 = vperm.xlu0 %6144, %v6084
      %v6146 = vpop.permute.xlu0 %6145
      %6149 = vset.pattern.permute.xlu0 0
      %6150 = vperm.xlu0 %6149, %v6085
      %v6151 = vpop.permute.xlu0 %6150
      %6154 = vset.pattern.permute.xlu0 0
      %6155 = vperm.xlu0 %6154, %v6086
      %v6156 = vpop.permute.xlu0 %6155
      %6159 = vset.pattern.permute.xlu0 0
      %6160 = vperm.xlu0 %6159, %v6087
      %v6161 = vpop.permute.xlu0 %6160
      %6164 = vset.pattern.permute.xlu0 0
      %6165 = vperm.xlu0 %6164, %v6088
      %v6166 = vpop.permute.xlu0 %6165
      %6169 = vset.pattern.permute.xlu0 0
      %6170 = vperm.xlu0 %6169, %v6089
      %v6171 = vpop.permute.xlu0 %6170
      %6174 = vset.pattern.permute.xlu0 0
      %6175 = vperm.xlu0 %6174, %v6090
      %v6176 = vpop.permute.xlu0 %6175
      %v6178 = vperm.slane %v6091, 0
      %v6179 = vmul.f32 %v6101, %v6178
      %v6180 = vmul.f32 %v6106, %v6178
      %v6181 = vmul.f32 %v6111, %v6178
      %v6182 = vmul.f32 %v6116, %v6178
      %v6183 = vmul.f32 %v6121, %v6178
      %v6184 = vmul.f32 %v6126, %v6178
      %v6185 = vmul.f32 %v6131, %v6178
      %v6186 = vmul.f32 %v6136, %v6178
      %v6187 = vmul.f32 %v6141, %v6178
      %v6188 = vmul.f32 %v6146, %v6178
      %v6189 = vmul.f32 %v6151, %v6178
      %v6190 = vmul.f32 %v6156, %v6178
      %v6191 = vmul.f32 %v6161, %v6178
      %v6192 = vmul.f32 %v6166, %v6178
      %v6193 = vmul.f32 %v6171, %v6178
      %v6194 = vmul.f32 %v6176, %v6178
      %v6195 = vadd.f32 %v6097, %v6179
      %v6196 = vadd.f32 %v6097, %v6180
      %v6197 = vadd.f32 %v6097, %v6181
      %v6198 = vadd.f32 %v6097, %v6182
      %v6199 = vadd.f32 %v6097, %v6183
      %v6200 = vadd.f32 %v6097, %v6184
      %v6201 = vadd.f32 %v6097, %v6185
      %v6202 = vadd.f32 %v6097, %v6186
      %v6203 = vadd.f32 %v6097, %v6187
      %v6204 = vadd.f32 %v6097, %v6188
      %v6205 = vadd.f32 %v6097, %v6189
      %v6206 = vadd.f32 %v6097, %v6190
      %v6207 = vadd.f32 %v6097, %v6191
      %v6208 = vadd.f32 %v6097, %v6192
      %v6209 = vadd.f32 %v6097, %v6193
      %v6210 = vadd.f32 %v6097, %v6194
      %6211 = vset.pattern.permute.xlu0 1
      %6212 = vperm.xlu0 %6211, %v6075
      %v6213 = vpop.permute.xlu0 %6212
      %6215 = vset.pattern.permute.xlu0 1
      %6216 = vperm.xlu0 %6215, %v6076
      %v6217 = vpop.permute.xlu0 %6216
      %6219 = vset.pattern.permute.xlu0 1
      %6220 = vperm.xlu0 %6219, %v6077
      %v6221 = vpop.permute.xlu0 %6220
      %6223 = vset.pattern.permute.xlu0 1
      %6224 = vperm.xlu0 %6223, %v6078
      %v6225 = vpop.permute.xlu0 %6224
      %6227 = vset.pattern.permute.xlu0 1
      %6228 = vperm.xlu0 %6227, %v6079
      %v6229 = vpop.permute.xlu0 %6228
      %6231 = vset.pattern.permute.xlu0 1
      %6232 = vperm.xlu0 %6231, %v6080
      %v6233 = vpop.permute.xlu0 %6232
      %6235 = vset.pattern.permute.xlu0 1
      %6236 = vperm.xlu0 %6235, %v6081
      %v6237 = vpop.permute.xlu0 %6236
      %6239 = vset.pattern.permute.xlu0 1
      %6240 = vperm.xlu0 %6239, %v6082
      %v6241 = vpop.permute.xlu0 %6240
      %6243 = vset.pattern.permute.xlu0 1
      %6244 = vperm.xlu0 %6243, %v6083
      %v6245 = vpop.permute.xlu0 %6244
      %6247 = vset.pattern.permute.xlu0 1
      %6248 = vperm.xlu0 %6247, %v6084
      %v6249 = vpop.permute.xlu0 %6248
      %6251 = vset.pattern.permute.xlu0 1
      %6252 = vperm.xlu0 %6251, %v6085
      %v6253 = vpop.permute.xlu0 %6252
      %6255 = vset.pattern.permute.xlu0 1
      %6256 = vperm.xlu0 %6255, %v6086
      %v6257 = vpop.permute.xlu0 %6256
      %6259 = vset.pattern.permute.xlu0 1
      %6260 = vperm.xlu0 %6259, %v6087
      %v6261 = vpop.permute.xlu0 %6260
      %6263 = vset.pattern.permute.xlu0 1
      %6264 = vperm.xlu0 %6263, %v6088
      %v6265 = vpop.permute.xlu0 %6264
      %6267 = vset.pattern.permute.xlu0 1
      %6268 = vperm.xlu0 %6267, %v6089
      %v6269 = vpop.permute.xlu0 %6268
      %6271 = vset.pattern.permute.xlu0 1
      %6272 = vperm.xlu0 %6271, %v6090
      %v6273 = vpop.permute.xlu0 %6272
      %v6275 = vperm.slane %v6091, 1
      %v6276 = vmul.f32 %v6213, %v6275
      %v6277 = vmul.f32 %v6217, %v6275
      %v6278 = vmul.f32 %v6221, %v6275
      %v6279 = vmul.f32 %v6225, %v6275
      %v6280 = vmul.f32 %v6229, %v6275
      %v6281 = vmul.f32 %v6233, %v6275
      %v6282 = vmul.f32 %v6237, %v6275
      %v6283 = vmul.f32 %v6241, %v6275
      %v6284 = vmul.f32 %v6245, %v6275
      %v6285 = vmul.f32 %v6249, %v6275
      %v6286 = vmul.f32 %v6253, %v6275
      %v6287 = vmul.f32 %v6257, %v6275
      %v6288 = vmul.f32 %v6261, %v6275
      %v6289 = vmul.f32 %v6265, %v6275
      %v6290 = vmul.f32 %v6269, %v6275
      %v6291 = vmul.f32 %v6273, %v6275
      %v6292 = vadd.f32 %v6195, %v6276
      %v6293 = vadd.f32 %v6196, %v6277
      %v6294 = vadd.f32 %v6197, %v6278
      %v6295 = vadd.f32 %v6198, %v6279
      %v6296 = vadd.f32 %v6199, %v6280
      %v6297 = vadd.f32 %v6200, %v6281
      %v6298 = vadd.f32 %v6201, %v6282
      %v6299 = vadd.f32 %v6202, %v6283
      %v6300 = vadd.f32 %v6203, %v6284
      %v6301 = vadd.f32 %v6204, %v6285
      %v6302 = vadd.f32 %v6205, %v6286
      %v6303 = vadd.f32 %v6206, %v6287
      %v6304 = vadd.f32 %v6207, %v6288
      %v6305 = vadd.f32 %v6208, %v6289
      %v6306 = vadd.f32 %v6209, %v6290
      %v6307 = vadd.f32 %v6210, %v6291
      %6308 = vset.pattern.permute.xlu0 2
      %6309 = vperm.xlu0 %6308, %v6075
      %v6310 = vpop.permute.xlu0 %6309
      %6312 = vset.pattern.permute.xlu0 2
      %6313 = vperm.xlu0 %6312, %v6076
      %v6314 = vpop.permute.xlu0 %6313
      %6316 = vset.pattern.permute.xlu0 2
      %6317 = vperm.xlu0 %6316, %v6077
      %v6318 = vpop.permute.xlu0 %6317
      %6320 = vset.pattern.permute.xlu0 2
      %6321 = vperm.xlu0 %6320, %v6078
      %v6322 = vpop.permute.xlu0 %6321
      %6324 = vset.pattern.permute.xlu0 2
      %6325 = vperm.xlu0 %6324, %v6079
      %v6326 = vpop.permute.xlu0 %6325
      %6328 = vset.pattern.permute.xlu0 2
      %6329 = vperm.xlu0 %6328, %v6080
      %v6330 = vpop.permute.xlu0 %6329
      %6332 = vset.pattern.permute.xlu0 2
      %6333 = vperm.xlu0 %6332, %v6081
      %v6334 = vpop.permute.xlu0 %6333
      %6336 = vset.pattern.permute.xlu0 2
      %6337 = vperm.xlu0 %6336, %v6082
      %v6338 = vpop.permute.xlu0 %6337
      %6340 = vset.pattern.permute.xlu0 2
      %6341 = vperm.xlu0 %6340, %v6083
      %v6342 = vpop.permute.xlu0 %6341
      %6344 = vset.pattern.permute.xlu0 2
      %6345 = vperm.xlu0 %6344, %v6084
      %v6346 = vpop.permute.xlu0 %6345
      %6348 = vset.pattern.permute.xlu0 2
      %6349 = vperm.xlu0 %6348, %v6085
      %v6350 = vpop.permute.xlu0 %6349
      %6352 = vset.pattern.permute.xlu0 2
      %6353 = vperm.xlu0 %6352, %v6086
      %v6354 = vpop.permute.xlu0 %6353
      %6356 = vset.pattern.permute.xlu0 2
      %6357 = vperm.xlu0 %6356, %v6087
      %v6358 = vpop.permute.xlu0 %6357
      %6360 = vset.pattern.permute.xlu0 2
      %6361 = vperm.xlu0 %6360, %v6088
      %v6362 = vpop.permute.xlu0 %6361
      %6364 = vset.pattern.permute.xlu0 2
      %6365 = vperm.xlu0 %6364, %v6089
      %v6366 = vpop.permute.xlu0 %6365
      %6368 = vset.pattern.permute.xlu0 2
      %6369 = vperm.xlu0 %6368, %v6090
      %v6370 = vpop.permute.xlu0 %6369
      %v6372 = vperm.slane %v6091, 2
      %v6373 = vmul.f32 %v6310, %v6372
      %v6374 = vmul.f32 %v6314, %v6372
      %v6375 = vmul.f32 %v6318, %v6372
      %v6376 = vmul.f32 %v6322, %v6372
      %v6377 = vmul.f32 %v6326, %v6372
      %v6378 = vmul.f32 %v6330, %v6372
      %v6379 = vmul.f32 %v6334, %v6372
      %v6380 = vmul.f32 %v6338, %v6372
      %v6381 = vmul.f32 %v6342, %v6372
      %v6382 = vmul.f32 %v6346, %v6372
      %v6383 = vmul.f32 %v6350, %v6372
      %v6384 = vmul.f32 %v6354, %v6372
      %v6385 = vmul.f32 %v6358, %v6372
      %v6386 = vmul.f32 %v6362, %v6372
      %v6387 = vmul.f32 %v6366, %v6372
      %v6388 = vmul.f32 %v6370, %v6372
      %v6389 = vadd.f32 %v6292, %v6373
      %v6390 = vadd.f32 %v6293, %v6374
      %v6391 = vadd.f32 %v6294, %v6375
      %v6392 = vadd.f32 %v6295, %v6376
      %v6393 = vadd.f32 %v6296, %v6377
      %v6394 = vadd.f32 %v6297, %v6378
      %v6395 = vadd.f32 %v6298, %v6379
      %v6396 = vadd.f32 %v6299, %v6380
      %v6397 = vadd.f32 %v6300, %v6381
      %v6398 = vadd.f32 %v6301, %v6382
      %v6399 = vadd.f32 %v6302, %v6383
      %v6400 = vadd.f32 %v6303, %v6384
      %v6401 = vadd.f32 %v6304, %v6385
      %v6402 = vadd.f32 %v6305, %v6386
      %v6403 = vadd.f32 %v6306, %v6387
      %v6404 = vadd.f32 %v6307, %v6388
      %6405 = vset.pattern.permute.xlu0 3
      %6406 = vperm.xlu0 %6405, %v6075
      %v6407 = vpop.permute.xlu0 %6406
      %6409 = vset.pattern.permute.xlu0 3
      %6410 = vperm.xlu0 %6409, %v6076
      %v6411 = vpop.permute.xlu0 %6410
      %6413 = vset.pattern.permute.xlu0 3
      %6414 = vperm.xlu0 %6413, %v6077
      %v6415 = vpop.permute.xlu0 %6414
      %6417 = vset.pattern.permute.xlu0 3
      %6418 = vperm.xlu0 %6417, %v6078
      %v6419 = vpop.permute.xlu0 %6418
      %6421 = vset.pattern.permute.xlu0 3
      %6422 = vperm.xlu0 %6421, %v6079
      %v6423 = vpop.permute.xlu0 %6422
      %6425 = vset.pattern.permute.xlu0 3
      %6426 = vperm.xlu0 %6425, %v6080
      %v6427 = vpop.permute.xlu0 %6426
      %6429 = vset.pattern.permute.xlu0 3
      %6430 = vperm.xlu0 %6429, %v6081
      %v6431 = vpop.permute.xlu0 %6430
      %6433 = vset.pattern.permute.xlu0 3
      %6434 = vperm.xlu0 %6433, %v6082
      %v6435 = vpop.permute.xlu0 %6434
      %6437 = vset.pattern.permute.xlu0 3
      %6438 = vperm.xlu0 %6437, %v6083
      %v6439 = vpop.permute.xlu0 %6438
      %6441 = vset.pattern.permute.xlu0 3
      %6442 = vperm.xlu0 %6441, %v6084
      %v6443 = vpop.permute.xlu0 %6442
      %6445 = vset.pattern.permute.xlu0 3
      %6446 = vperm.xlu0 %6445, %v6085
      %v6447 = vpop.permute.xlu0 %6446
      %6449 = vset.pattern.permute.xlu0 3
      %6450 = vperm.xlu0 %6449, %v6086
      %v6451 = vpop.permute.xlu0 %6450
      %6453 = vset.pattern.permute.xlu0 3
      %6454 = vperm.xlu0 %6453, %v6087
      %v6455 = vpop.permute.xlu0 %6454
      %6457 = vset.pattern.permute.xlu0 3
      %6458 = vperm.xlu0 %6457, %v6088
      %v6459 = vpop.permute.xlu0 %6458
      %6461 = vset.pattern.permute.xlu0 3
      %6462 = vperm.xlu0 %6461, %v6089
      %v6463 = vpop.permute.xlu0 %6462
      %6465 = vset.pattern.permute.xlu0 3
      %6466 = vperm.xlu0 %6465, %v6090
      %v6467 = vpop.permute.xlu0 %6466
      %v6469 = vperm.slane %v6091, 3
      %v6470 = vmul.f32 %v6407, %v6469
      %v6471 = vmul.f32 %v6411, %v6469
      %v6472 = vmul.f32 %v6415, %v6469
      %v6473 = vmul.f32 %v6419, %v6469
      %v6474 = vmul.f32 %v6423, %v6469
      %v6475 = vmul.f32 %v6427, %v6469
      %v6476 = vmul.f32 %v6431, %v6469
      %v6477 = vmul.f32 %v6435, %v6469
      %v6478 = vmul.f32 %v6439, %v6469
      %v6479 = vmul.f32 %v6443, %v6469
      %v6480 = vmul.f32 %v6447, %v6469
      %v6481 = vmul.f32 %v6451, %v6469
      %v6482 = vmul.f32 %v6455, %v6469
      %v6483 = vmul.f32 %v6459, %v6469
      %v6484 = vmul.f32 %v6463, %v6469
      %v6485 = vmul.f32 %v6467, %v6469
      %v6486 = vadd.f32 %v6389, %v6470
      %v6487 = vadd.f32 %v6390, %v6471
      %v6488 = vadd.f32 %v6391, %v6472
      %v6489 = vadd.f32 %v6392, %v6473
      %v6490 = vadd.f32 %v6393, %v6474
      %v6491 = vadd.f32 %v6394, %v6475
      %v6492 = vadd.f32 %v6395, %v6476
      %v6493 = vadd.f32 %v6396, %v6477
      %v6494 = vadd.f32 %v6397, %v6478
      %v6495 = vadd.f32 %v6398, %v6479
      %v6496 = vadd.f32 %v6399, %v6480
      %v6497 = vadd.f32 %v6400, %v6481
      %v6498 = vadd.f32 %v6401, %v6482
      %v6499 = vadd.f32 %v6402, %v6483
      %v6500 = vadd.f32 %v6403, %v6484
      %v6501 = vadd.f32 %v6404, %v6485
      %6502 = vset.pattern.permute.xlu0 4
      %6503 = vperm.xlu0 %6502, %v6075
      %v6504 = vpop.permute.xlu0 %6503
      %6506 = vset.pattern.permute.xlu0 4
      %6507 = vperm.xlu0 %6506, %v6076
      %v6508 = vpop.permute.xlu0 %6507
      %6510 = vset.pattern.permute.xlu0 4
      %6511 = vperm.xlu0 %6510, %v6077
      %v6512 = vpop.permute.xlu0 %6511
      %6514 = vset.pattern.permute.xlu0 4
      %6515 = vperm.xlu0 %6514, %v6078
      %v6516 = vpop.permute.xlu0 %6515
      %6518 = vset.pattern.permute.xlu0 4
      %6519 = vperm.xlu0 %6518, %v6079
      %v6520 = vpop.permute.xlu0 %6519
      %6522 = vset.pattern.permute.xlu0 4
      %6523 = vperm.xlu0 %6522, %v6080
      %v6524 = vpop.permute.xlu0 %6523
      %6526 = vset.pattern.permute.xlu0 4
      %6527 = vperm.xlu0 %6526, %v6081
      %v6528 = vpop.permute.xlu0 %6527
      %6530 = vset.pattern.permute.xlu0 4
      %6531 = vperm.xlu0 %6530, %v6082
      %v6532 = vpop.permute.xlu0 %6531
      %6534 = vset.pattern.permute.xlu0 4
      %6535 = vperm.xlu0 %6534, %v6083
      %v6536 = vpop.permute.xlu0 %6535
      %6538 = vset.pattern.permute.xlu0 4
      %6539 = vperm.xlu0 %6538, %v6084
      %v6540 = vpop.permute.xlu0 %6539
      %6542 = vset.pattern.permute.xlu0 4
      %6543 = vperm.xlu0 %6542, %v6085
      %v6544 = vpop.permute.xlu0 %6543
      %6546 = vset.pattern.permute.xlu0 4
      %6547 = vperm.xlu0 %6546, %v6086
      %v6548 = vpop.permute.xlu0 %6547
      %6550 = vset.pattern.permute.xlu0 4
      %6551 = vperm.xlu0 %6550, %v6087
      %v6552 = vpop.permute.xlu0 %6551
      %6554 = vset.pattern.permute.xlu0 4
      %6555 = vperm.xlu0 %6554, %v6088
      %v6556 = vpop.permute.xlu0 %6555
      %6558 = vset.pattern.permute.xlu0 4
      %6559 = vperm.xlu0 %6558, %v6089
      %v6560 = vpop.permute.xlu0 %6559
      %6562 = vset.pattern.permute.xlu0 4
      %6563 = vperm.xlu0 %6562, %v6090
      %v6564 = vpop.permute.xlu0 %6563
      %v6566 = vperm.slane %v6091, 4
      %v6567 = vmul.f32 %v6504, %v6566
      %v6568 = vmul.f32 %v6508, %v6566
      %v6569 = vmul.f32 %v6512, %v6566
      %v6570 = vmul.f32 %v6516, %v6566
      %v6571 = vmul.f32 %v6520, %v6566
      %v6572 = vmul.f32 %v6524, %v6566
      %v6573 = vmul.f32 %v6528, %v6566
      %v6574 = vmul.f32 %v6532, %v6566
      %v6575 = vmul.f32 %v6536, %v6566
      %v6576 = vmul.f32 %v6540, %v6566
      %v6577 = vmul.f32 %v6544, %v6566
      %v6578 = vmul.f32 %v6548, %v6566
      %v6579 = vmul.f32 %v6552, %v6566
      %v6580 = vmul.f32 %v6556, %v6566
      %v6581 = vmul.f32 %v6560, %v6566
      %v6582 = vmul.f32 %v6564, %v6566
      %v6583 = vadd.f32 %v6486, %v6567
      %v6584 = vadd.f32 %v6487, %v6568
      %v6585 = vadd.f32 %v6488, %v6569
      %v6586 = vadd.f32 %v6489, %v6570
      %v6587 = vadd.f32 %v6490, %v6571
      %v6588 = vadd.f32 %v6491, %v6572
      %v6589 = vadd.f32 %v6492, %v6573
      %v6590 = vadd.f32 %v6493, %v6574
      %v6591 = vadd.f32 %v6494, %v6575
      %v6592 = vadd.f32 %v6495, %v6576
      %v6593 = vadd.f32 %v6496, %v6577
      %v6594 = vadd.f32 %v6497, %v6578
      %v6595 = vadd.f32 %v6498, %v6579
      %v6596 = vadd.f32 %v6499, %v6580
      %v6597 = vadd.f32 %v6500, %v6581
      %v6598 = vadd.f32 %v6501, %v6582
      %6599 = vset.pattern.permute.xlu0 5
      %6600 = vperm.xlu0 %6599, %v6075
      %v6601 = vpop.permute.xlu0 %6600
      %6603 = vset.pattern.permute.xlu0 5
      %6604 = vperm.xlu0 %6603, %v6076
      %v6605 = vpop.permute.xlu0 %6604
      %6607 = vset.pattern.permute.xlu0 5
      %6608 = vperm.xlu0 %6607, %v6077
      %v6609 = vpop.permute.xlu0 %6608
      %6611 = vset.pattern.permute.xlu0 5
      %6612 = vperm.xlu0 %6611, %v6078
      %v6613 = vpop.permute.xlu0 %6612
      %6615 = vset.pattern.permute.xlu0 5
      %6616 = vperm.xlu0 %6615, %v6079
      %v6617 = vpop.permute.xlu0 %6616
      %6619 = vset.pattern.permute.xlu0 5
      %6620 = vperm.xlu0 %6619, %v6080
      %v6621 = vpop.permute.xlu0 %6620
      %6623 = vset.pattern.permute.xlu0 5
      %6624 = vperm.xlu0 %6623, %v6081
      %v6625 = vpop.permute.xlu0 %6624
      %6627 = vset.pattern.permute.xlu0 5
      %6628 = vperm.xlu0 %6627, %v6082
      %v6629 = vpop.permute.xlu0 %6628
      %6631 = vset.pattern.permute.xlu0 5
      %6632 = vperm.xlu0 %6631, %v6083
      %v6633 = vpop.permute.xlu0 %6632
      %6635 = vset.pattern.permute.xlu0 5
      %6636 = vperm.xlu0 %6635, %v6084
      %v6637 = vpop.permute.xlu0 %6636
      %6639 = vset.pattern.permute.xlu0 5
      %6640 = vperm.xlu0 %6639, %v6085
      %v6641 = vpop.permute.xlu0 %6640
      %6643 = vset.pattern.permute.xlu0 5
      %6644 = vperm.xlu0 %6643, %v6086
      %v6645 = vpop.permute.xlu0 %6644
      %6647 = vset.pattern.permute.xlu0 5
      %6648 = vperm.xlu0 %6647, %v6087
      %v6649 = vpop.permute.xlu0 %6648
      %6651 = vset.pattern.permute.xlu0 5
      %6652 = vperm.xlu0 %6651, %v6088
      %v6653 = vpop.permute.xlu0 %6652
      %6655 = vset.pattern.permute.xlu0 5
      %6656 = vperm.xlu0 %6655, %v6089
      %v6657 = vpop.permute.xlu0 %6656
      %6659 = vset.pattern.permute.xlu0 5
      %6660 = vperm.xlu0 %6659, %v6090
      %v6661 = vpop.permute.xlu0 %6660
      %v6663 = vperm.slane %v6091, 5
      %v6664 = vmul.f32 %v6601, %v6663
      %v6665 = vmul.f32 %v6605, %v6663
      %v6666 = vmul.f32 %v6609, %v6663
      %v6667 = vmul.f32 %v6613, %v6663
      %v6668 = vmul.f32 %v6617, %v6663
      %v6669 = vmul.f32 %v6621, %v6663
      %v6670 = vmul.f32 %v6625, %v6663
      %v6671 = vmul.f32 %v6629, %v6663
      %v6672 = vmul.f32 %v6633, %v6663
      %v6673 = vmul.f32 %v6637, %v6663
      %v6674 = vmul.f32 %v6641, %v6663
      %v6675 = vmul.f32 %v6645, %v6663
      %v6676 = vmul.f32 %v6649, %v6663
      %v6677 = vmul.f32 %v6653, %v6663
      %v6678 = vmul.f32 %v6657, %v6663
      %v6679 = vmul.f32 %v6661, %v6663
      %v6680 = vadd.f32 %v6583, %v6664
      %v6681 = vadd.f32 %v6584, %v6665
      %v6682 = vadd.f32 %v6585, %v6666
      %v6683 = vadd.f32 %v6586, %v6667
      %v6684 = vadd.f32 %v6587, %v6668
      %v6685 = vadd.f32 %v6588, %v6669
      %v6686 = vadd.f32 %v6589, %v6670
      %v6687 = vadd.f32 %v6590, %v6671
      %v6688 = vadd.f32 %v6591, %v6672
      %v6689 = vadd.f32 %v6592, %v6673
      %v6690 = vadd.f32 %v6593, %v6674
      %v6691 = vadd.f32 %v6594, %v6675
      %v6692 = vadd.f32 %v6595, %v6676
      %v6693 = vadd.f32 %v6596, %v6677
      %v6694 = vadd.f32 %v6597, %v6678
      %v6695 = vadd.f32 %v6598, %v6679
      %6696 = vset.pattern.permute.xlu0 6
      %6697 = vperm.xlu0 %6696, %v6075
      %v6698 = vpop.permute.xlu0 %6697
      %6700 = vset.pattern.permute.xlu0 6
      %6701 = vperm.xlu0 %6700, %v6076
      %v6702 = vpop.permute.xlu0 %6701
      %6704 = vset.pattern.permute.xlu0 6
      %6705 = vperm.xlu0 %6704, %v6077
      %v6706 = vpop.permute.xlu0 %6705
      %6708 = vset.pattern.permute.xlu0 6
      %6709 = vperm.xlu0 %6708, %v6078
      %v6710 = vpop.permute.xlu0 %6709
      %6712 = vset.pattern.permute.xlu0 6
      %6713 = vperm.xlu0 %6712, %v6079
      %v6714 = vpop.permute.xlu0 %6713
      %6716 = vset.pattern.permute.xlu0 6
      %6717 = vperm.xlu0 %6716, %v6080
      %v6718 = vpop.permute.xlu0 %6717
      %6720 = vset.pattern.permute.xlu0 6
      %6721 = vperm.xlu0 %6720, %v6081
      %v6722 = vpop.permute.xlu0 %6721
      %6724 = vset.pattern.permute.xlu0 6
      %6725 = vperm.xlu0 %6724, %v6082
      %v6726 = vpop.permute.xlu0 %6725
      %6728 = vset.pattern.permute.xlu0 6
      %6729 = vperm.xlu0 %6728, %v6083
      %v6730 = vpop.permute.xlu0 %6729
      %6732 = vset.pattern.permute.xlu0 6
      %6733 = vperm.xlu0 %6732, %v6084
      %v6734 = vpop.permute.xlu0 %6733
      %6736 = vset.pattern.permute.xlu0 6
      %6737 = vperm.xlu0 %6736, %v6085
      %v6738 = vpop.permute.xlu0 %6737
      %6740 = vset.pattern.permute.xlu0 6
      %6741 = vperm.xlu0 %6740, %v6086
      %v6742 = vpop.permute.xlu0 %6741
      %6744 = vset.pattern.permute.xlu0 6
      %6745 = vperm.xlu0 %6744, %v6087
      %v6746 = vpop.permute.xlu0 %6745
      %6748 = vset.pattern.permute.xlu0 6
      %6749 = vperm.xlu0 %6748, %v6088
      %v6750 = vpop.permute.xlu0 %6749
      %6752 = vset.pattern.permute.xlu0 6
      %6753 = vperm.xlu0 %6752, %v6089
      %v6754 = vpop.permute.xlu0 %6753
      %6756 = vset.pattern.permute.xlu0 6
      %6757 = vperm.xlu0 %6756, %v6090
      %v6758 = vpop.permute.xlu0 %6757
      %v6760 = vperm.slane %v6091, 6
      %v6761 = vmul.f32 %v6698, %v6760
      %v6762 = vmul.f32 %v6702, %v6760
      %v6763 = vmul.f32 %v6706, %v6760
      %v6764 = vmul.f32 %v6710, %v6760
      %v6765 = vmul.f32 %v6714, %v6760
      %v6766 = vmul.f32 %v6718, %v6760
      %v6767 = vmul.f32 %v6722, %v6760
      %v6768 = vmul.f32 %v6726, %v6760
      %v6769 = vmul.f32 %v6730, %v6760
      %v6770 = vmul.f32 %v6734, %v6760
      %v6771 = vmul.f32 %v6738, %v6760
      %v6772 = vmul.f32 %v6742, %v6760
      %v6773 = vmul.f32 %v6746, %v6760
      %v6774 = vmul.f32 %v6750, %v6760
      %v6775 = vmul.f32 %v6754, %v6760
      %v6776 = vmul.f32 %v6758, %v6760
      %v6777 = vadd.f32 %v6680, %v6761
      %v6778 = vadd.f32 %v6681, %v6762
      %v6779 = vadd.f32 %v6682, %v6763
      %v6780 = vadd.f32 %v6683, %v6764
      %v6781 = vadd.f32 %v6684, %v6765
      %v6782 = vadd.f32 %v6685, %v6766
      %v6783 = vadd.f32 %v6686, %v6767
      %v6784 = vadd.f32 %v6687, %v6768
      %v6785 = vadd.f32 %v6688, %v6769
      %v6786 = vadd.f32 %v6689, %v6770
      %v6787 = vadd.f32 %v6690, %v6771
      %v6788 = vadd.f32 %v6691, %v6772
      %v6789 = vadd.f32 %v6692, %v6773
      %v6790 = vadd.f32 %v6693, %v6774
      %v6791 = vadd.f32 %v6694, %v6775
      %v6792 = vadd.f32 %v6695, %v6776
      %6793 = vset.pattern.permute.xlu0 7
      %6794 = vperm.xlu0 %6793, %v6075
      %v6795 = vpop.permute.xlu0 %6794
      %6797 = vset.pattern.permute.xlu0 7
      %6798 = vperm.xlu0 %6797, %v6076
      %v6799 = vpop.permute.xlu0 %6798
      %6801 = vset.pattern.permute.xlu0 7
      %6802 = vperm.xlu0 %6801, %v6077
      %v6803 = vpop.permute.xlu0 %6802
      %6805 = vset.pattern.permute.xlu0 7
      %6806 = vperm.xlu0 %6805, %v6078
      %v6807 = vpop.permute.xlu0 %6806
      %6809 = vset.pattern.permute.xlu0 7
      %6810 = vperm.xlu0 %6809, %v6079
      %v6811 = vpop.permute.xlu0 %6810
      %6813 = vset.pattern.permute.xlu0 7
      %6814 = vperm.xlu0 %6813, %v6080
      %v6815 = vpop.permute.xlu0 %6814
      %6817 = vset.pattern.permute.xlu0 7
      %6818 = vperm.xlu0 %6817, %v6081
      %v6819 = vpop.permute.xlu0 %6818
      %6821 = vset.pattern.permute.xlu0 7
      %6822 = vperm.xlu0 %6821, %v6082
      %v6823 = vpop.permute.xlu0 %6822
      %6825 = vset.pattern.permute.xlu0 7
      %6826 = vperm.xlu0 %6825, %v6083
      %v6827 = vpop.permute.xlu0 %6826
      %6829 = vset.pattern.permute.xlu0 7
      %6830 = vperm.xlu0 %6829, %v6084
      %v6831 = vpop.permute.xlu0 %6830
      %6833 = vset.pattern.permute.xlu0 7
      %6834 = vperm.xlu0 %6833, %v6085
      %v6835 = vpop.permute.xlu0 %6834
      %6837 = vset.pattern.permute.xlu0 7
      %6838 = vperm.xlu0 %6837, %v6086
      %v6839 = vpop.permute.xlu0 %6838
      %6841 = vset.pattern.permute.xlu0 7
      %6842 = vperm.xlu0 %6841, %v6087
      %v6843 = vpop.permute.xlu0 %6842
      %6845 = vset.pattern.permute.xlu0 7
      %6846 = vperm.xlu0 %6845, %v6088
      %v6847 = vpop.permute.xlu0 %6846
      %6849 = vset.pattern.permute.xlu0 7
      %6850 = vperm.xlu0 %6849, %v6089
      %v6851 = vpop.permute.xlu0 %6850
      %6853 = vset.pattern.permute.xlu0 7
      %6854 = vperm.xlu0 %6853, %v6090
      %v6855 = vpop.permute.xlu0 %6854
      %v6857 = vperm.slane %v6091, 7
      %v6858 = vmul.f32 %v6795, %v6857
      %v6859 = vmul.f32 %v6799, %v6857
      %v6860 = vmul.f32 %v6803, %v6857
      %v6861 = vmul.f32 %v6807, %v6857
      %v6862 = vmul.f32 %v6811, %v6857
      %v6863 = vmul.f32 %v6815, %v6857
      %v6864 = vmul.f32 %v6819, %v6857
      %v6865 = vmul.f32 %v6823, %v6857
      %v6866 = vmul.f32 %v6827, %v6857
      %v6867 = vmul.f32 %v6831, %v6857
      %v6868 = vmul.f32 %v6835, %v6857
      %v6869 = vmul.f32 %v6839, %v6857
      %v6870 = vmul.f32 %v6843, %v6857
      %v6871 = vmul.f32 %v6847, %v6857
      %v6872 = vmul.f32 %v6851, %v6857
      %v6873 = vmul.f32 %v6855, %v6857
      %v6874 = vadd.f32 %v6777, %v6858
      %v6875 = vadd.f32 %v6778, %v6859
      %v6876 = vadd.f32 %v6779, %v6860
      %v6877 = vadd.f32 %v6780, %v6861
      %v6878 = vadd.f32 %v6781, %v6862
      %v6879 = vadd.f32 %v6782, %v6863
      %v6880 = vadd.f32 %v6783, %v6864
      %v6881 = vadd.f32 %v6784, %v6865
      %v6882 = vadd.f32 %v6785, %v6866
      %v6883 = vadd.f32 %v6786, %v6867
      %v6884 = vadd.f32 %v6787, %v6868
      %v6885 = vadd.f32 %v6788, %v6869
      %v6886 = vadd.f32 %v6789, %v6870
      %v6887 = vadd.f32 %v6790, %v6871
      %v6888 = vadd.f32 %v6791, %v6872
      %v6889 = vadd.f32 %v6792, %v6873
      %6890 = vset.pattern.permute.xlu0 8
      %6891 = vperm.xlu0 %6890, %v6075
      %v6892 = vpop.permute.xlu0 %6891
      %6894 = vset.pattern.permute.xlu0 8
      %6895 = vperm.xlu0 %6894, %v6076
      %v6896 = vpop.permute.xlu0 %6895
      %6898 = vset.pattern.permute.xlu0 8
      %6899 = vperm.xlu0 %6898, %v6077
      %v6900 = vpop.permute.xlu0 %6899
      %6902 = vset.pattern.permute.xlu0 8
      %6903 = vperm.xlu0 %6902, %v6078
      %v6904 = vpop.permute.xlu0 %6903
      %6906 = vset.pattern.permute.xlu0 8
      %6907 = vperm.xlu0 %6906, %v6079
      %v6908 = vpop.permute.xlu0 %6907
      %6910 = vset.pattern.permute.xlu0 8
      %6911 = vperm.xlu0 %6910, %v6080
      %v6912 = vpop.permute.xlu0 %6911
      %6914 = vset.pattern.permute.xlu0 8
      %6915 = vperm.xlu0 %6914, %v6081
      %v6916 = vpop.permute.xlu0 %6915
      %6918 = vset.pattern.permute.xlu0 8
      %6919 = vperm.xlu0 %6918, %v6082
      %v6920 = vpop.permute.xlu0 %6919
      %6922 = vset.pattern.permute.xlu0 8
      %6923 = vperm.xlu0 %6922, %v6083
      %v6924 = vpop.permute.xlu0 %6923
      %6926 = vset.pattern.permute.xlu0 8
      %6927 = vperm.xlu0 %6926, %v6084
      %v6928 = vpop.permute.xlu0 %6927
      %6930 = vset.pattern.permute.xlu0 8
      %6931 = vperm.xlu0 %6930, %v6085
      %v6932 = vpop.permute.xlu0 %6931
      %6934 = vset.pattern.permute.xlu0 8
      %6935 = vperm.xlu0 %6934, %v6086
      %v6936 = vpop.permute.xlu0 %6935
      %6938 = vset.pattern.permute.xlu0 8
      %6939 = vperm.xlu0 %6938, %v6087
      %v6940 = vpop.permute.xlu0 %6939
      %6942 = vset.pattern.permute.xlu0 8
      %6943 = vperm.xlu0 %6942, %v6088
      %v6944 = vpop.permute.xlu0 %6943
      %6946 = vset.pattern.permute.xlu0 8
      %6947 = vperm.xlu0 %6946, %v6089
      %v6948 = vpop.permute.xlu0 %6947
      %6950 = vset.pattern.permute.xlu0 8
      %6951 = vperm.xlu0 %6950, %v6090
      %v6952 = vpop.permute.xlu0 %6951
      %v6954 = vperm.slane %v6092, 0
      %v6955 = vmul.f32 %v6892, %v6954
      %v6956 = vmul.f32 %v6896, %v6954
      %v6957 = vmul.f32 %v6900, %v6954
      %v6958 = vmul.f32 %v6904, %v6954
      %v6959 = vmul.f32 %v6908, %v6954
      %v6960 = vmul.f32 %v6912, %v6954
      %v6961 = vmul.f32 %v6916, %v6954
      %v6962 = vmul.f32 %v6920, %v6954
      %v6963 = vmul.f32 %v6924, %v6954
      %v6964 = vmul.f32 %v6928, %v6954
      %v6965 = vmul.f32 %v6932, %v6954
      %v6966 = vmul.f32 %v6936, %v6954
      %v6967 = vmul.f32 %v6940, %v6954
      %v6968 = vmul.f32 %v6944, %v6954
      %v6969 = vmul.f32 %v6948, %v6954
      %v6970 = vmul.f32 %v6952, %v6954
      %v6971 = vadd.f32 %v6874, %v6955
      %v6972 = vadd.f32 %v6875, %v6956
      %v6973 = vadd.f32 %v6876, %v6957
      %v6974 = vadd.f32 %v6877, %v6958
      %v6975 = vadd.f32 %v6878, %v6959
      %v6976 = vadd.f32 %v6879, %v6960
      %v6977 = vadd.f32 %v6880, %v6961
      %v6978 = vadd.f32 %v6881, %v6962
      %v6979 = vadd.f32 %v6882, %v6963
      %v6980 = vadd.f32 %v6883, %v6964
      %v6981 = vadd.f32 %v6884, %v6965
      %v6982 = vadd.f32 %v6885, %v6966
      %v6983 = vadd.f32 %v6886, %v6967
      %v6984 = vadd.f32 %v6887, %v6968
      %v6985 = vadd.f32 %v6888, %v6969
      %v6986 = vadd.f32 %v6889, %v6970
      %6987 = vset.pattern.permute.xlu0 9
      %6988 = vperm.xlu0 %6987, %v6075
      %v6989 = vpop.permute.xlu0 %6988
      %6991 = vset.pattern.permute.xlu0 9
      %6992 = vperm.xlu0 %6991, %v6076
      %v6993 = vpop.permute.xlu0 %6992
      %6995 = vset.pattern.permute.xlu0 9
      %6996 = vperm.xlu0 %6995, %v6077
      %v6997 = vpop.permute.xlu0 %6996
      %6999 = vset.pattern.permute.xlu0 9
      %7000 = vperm.xlu0 %6999, %v6078
      %v7001 = vpop.permute.xlu0 %7000
      %7003 = vset.pattern.permute.xlu0 9
      %7004 = vperm.xlu0 %7003, %v6079
      %v7005 = vpop.permute.xlu0 %7004
      %7007 = vset.pattern.permute.xlu0 9
      %7008 = vperm.xlu0 %7007, %v6080
      %v7009 = vpop.permute.xlu0 %7008
      %7011 = vset.pattern.permute.xlu0 9
      %7012 = vperm.xlu0 %7011, %v6081
      %v7013 = vpop.permute.xlu0 %7012
      %7015 = vset.pattern.permute.xlu0 9
      %7016 = vperm.xlu0 %7015, %v6082
      %v7017 = vpop.permute.xlu0 %7016
      %7019 = vset.pattern.permute.xlu0 9
      %7020 = vperm.xlu0 %7019, %v6083
      %v7021 = vpop.permute.xlu0 %7020
      %7023 = vset.pattern.permute.xlu0 9
      %7024 = vperm.xlu0 %7023, %v6084
      %v7025 = vpop.permute.xlu0 %7024
      %7027 = vset.pattern.permute.xlu0 9
      %7028 = vperm.xlu0 %7027, %v6085
      %v7029 = vpop.permute.xlu0 %7028
      %7031 = vset.pattern.permute.xlu0 9
      %7032 = vperm.xlu0 %7031, %v6086
      %v7033 = vpop.permute.xlu0 %7032
      %7035 = vset.pattern.permute.xlu0 9
      %7036 = vperm.xlu0 %7035, %v6087
      %v7037 = vpop.permute.xlu0 %7036
      %7039 = vset.pattern.permute.xlu0 9
      %7040 = vperm.xlu0 %7039, %v6088
      %v7041 = vpop.permute.xlu0 %7040
      %7043 = vset.pattern.permute.xlu0 9
      %7044 = vperm.xlu0 %7043, %v6089
      %v7045 = vpop.permute.xlu0 %7044
      %7047 = vset.pattern.permute.xlu0 9
      %7048 = vperm.xlu0 %7047, %v6090
      %v7049 = vpop.permute.xlu0 %7048
      %v7051 = vperm.slane %v6092, 1
      %v7052 = vmul.f32 %v6989, %v7051
      %v7053 = vmul.f32 %v6993, %v7051
      %v7054 = vmul.f32 %v6997, %v7051
      %v7055 = vmul.f32 %v7001, %v7051
      %v7056 = vmul.f32 %v7005, %v7051
      %v7057 = vmul.f32 %v7009, %v7051
      %v7058 = vmul.f32 %v7013, %v7051
      %v7059 = vmul.f32 %v7017, %v7051
      %v7060 = vmul.f32 %v7021, %v7051
      %v7061 = vmul.f32 %v7025, %v7051
      %v7062 = vmul.f32 %v7029, %v7051
      %v7063 = vmul.f32 %v7033, %v7051
      %v7064 = vmul.f32 %v7037, %v7051
      %v7065 = vmul.f32 %v7041, %v7051
      %v7066 = vmul.f32 %v7045, %v7051
      %v7067 = vmul.f32 %v7049, %v7051
      %v7068 = vadd.f32 %v6971, %v7052
      %v7069 = vadd.f32 %v6972, %v7053
      %v7070 = vadd.f32 %v6973, %v7054
      %v7071 = vadd.f32 %v6974, %v7055
      %v7072 = vadd.f32 %v6975, %v7056
      %v7073 = vadd.f32 %v6976, %v7057
      %v7074 = vadd.f32 %v6977, %v7058
      %v7075 = vadd.f32 %v6978, %v7059
      %v7076 = vadd.f32 %v6979, %v7060
      %v7077 = vadd.f32 %v6980, %v7061
      %v7078 = vadd.f32 %v6981, %v7062
      %v7079 = vadd.f32 %v6982, %v7063
      %v7080 = vadd.f32 %v6983, %v7064
      %v7081 = vadd.f32 %v6984, %v7065
      %v7082 = vadd.f32 %v6985, %v7066
      %v7083 = vadd.f32 %v6986, %v7067
      %7084 = vset.pattern.permute.xlu0 10
      %7085 = vperm.xlu0 %7084, %v6075
      %v7086 = vpop.permute.xlu0 %7085
      %7088 = vset.pattern.permute.xlu0 10
      %7089 = vperm.xlu0 %7088, %v6076
      %v7090 = vpop.permute.xlu0 %7089
      %7092 = vset.pattern.permute.xlu0 10
      %7093 = vperm.xlu0 %7092, %v6077
      %v7094 = vpop.permute.xlu0 %7093
      %7096 = vset.pattern.permute.xlu0 10
      %7097 = vperm.xlu0 %7096, %v6078
      %v7098 = vpop.permute.xlu0 %7097
      %7100 = vset.pattern.permute.xlu0 10
      %7101 = vperm.xlu0 %7100, %v6079
      %v7102 = vpop.permute.xlu0 %7101
      %7104 = vset.pattern.permute.xlu0 10
      %7105 = vperm.xlu0 %7104, %v6080
      %v7106 = vpop.permute.xlu0 %7105
      %7108 = vset.pattern.permute.xlu0 10
      %7109 = vperm.xlu0 %7108, %v6081
      %v7110 = vpop.permute.xlu0 %7109
      %7112 = vset.pattern.permute.xlu0 10
      %7113 = vperm.xlu0 %7112, %v6082
      %v7114 = vpop.permute.xlu0 %7113
      %7116 = vset.pattern.permute.xlu0 10
      %7117 = vperm.xlu0 %7116, %v6083
      %v7118 = vpop.permute.xlu0 %7117
      %7120 = vset.pattern.permute.xlu0 10
      %7121 = vperm.xlu0 %7120, %v6084
      %v7122 = vpop.permute.xlu0 %7121
      %7124 = vset.pattern.permute.xlu0 10
      %7125 = vperm.xlu0 %7124, %v6085
      %v7126 = vpop.permute.xlu0 %7125
      %7128 = vset.pattern.permute.xlu0 10
      %7129 = vperm.xlu0 %7128, %v6086
      %v7130 = vpop.permute.xlu0 %7129
      %7132 = vset.pattern.permute.xlu0 10
      %7133 = vperm.xlu0 %7132, %v6087
      %v7134 = vpop.permute.xlu0 %7133
      %7136 = vset.pattern.permute.xlu0 10
      %7137 = vperm.xlu0 %7136, %v6088
      %v7138 = vpop.permute.xlu0 %7137
      %7140 = vset.pattern.permute.xlu0 10
      %7141 = vperm.xlu0 %7140, %v6089
      %v7142 = vpop.permute.xlu0 %7141
      %7144 = vset.pattern.permute.xlu0 10
      %7145 = vperm.xlu0 %7144, %v6090
      %v7146 = vpop.permute.xlu0 %7145
      %v7148 = vperm.slane %v6092, 2
      %v7149 = vmul.f32 %v7086, %v7148
      %v7150 = vmul.f32 %v7090, %v7148
      %v7151 = vmul.f32 %v7094, %v7148
      %v7152 = vmul.f32 %v7098, %v7148
      %v7153 = vmul.f32 %v7102, %v7148
      %v7154 = vmul.f32 %v7106, %v7148
      %v7155 = vmul.f32 %v7110, %v7148
      %v7156 = vmul.f32 %v7114, %v7148
      %v7157 = vmul.f32 %v7118, %v7148
      %v7158 = vmul.f32 %v7122, %v7148
      %v7159 = vmul.f32 %v7126, %v7148
      %v7160 = vmul.f32 %v7130, %v7148
      %v7161 = vmul.f32 %v7134, %v7148
      %v7162 = vmul.f32 %v7138, %v7148
      %v7163 = vmul.f32 %v7142, %v7148
      %v7164 = vmul.f32 %v7146, %v7148
      %v7165 = vadd.f32 %v7068, %v7149
      %v7166 = vadd.f32 %v7069, %v7150
      %v7167 = vadd.f32 %v7070, %v7151
      %v7168 = vadd.f32 %v7071, %v7152
      %v7169 = vadd.f32 %v7072, %v7153
      %v7170 = vadd.f32 %v7073, %v7154
      %v7171 = vadd.f32 %v7074, %v7155
      %v7172 = vadd.f32 %v7075, %v7156
      %v7173 = vadd.f32 %v7076, %v7157
      %v7174 = vadd.f32 %v7077, %v7158
      %v7175 = vadd.f32 %v7078, %v7159
      %v7176 = vadd.f32 %v7079, %v7160
      %v7177 = vadd.f32 %v7080, %v7161
      %v7178 = vadd.f32 %v7081, %v7162
      %v7179 = vadd.f32 %v7082, %v7163
      %v7180 = vadd.f32 %v7083, %v7164
      %7181 = vset.pattern.permute.xlu0 11
      %7182 = vperm.xlu0 %7181, %v6075
      %v7183 = vpop.permute.xlu0 %7182
      %7185 = vset.pattern.permute.xlu0 11
      %7186 = vperm.xlu0 %7185, %v6076
      %v7187 = vpop.permute.xlu0 %7186
      %7189 = vset.pattern.permute.xlu0 11
      %7190 = vperm.xlu0 %7189, %v6077
      %v7191 = vpop.permute.xlu0 %7190
      %7193 = vset.pattern.permute.xlu0 11
      %7194 = vperm.xlu0 %7193, %v6078
      %v7195 = vpop.permute.xlu0 %7194
      %7197 = vset.pattern.permute.xlu0 11
      %7198 = vperm.xlu0 %7197, %v6079
      %v7199 = vpop.permute.xlu0 %7198
      %7201 = vset.pattern.permute.xlu0 11
      %7202 = vperm.xlu0 %7201, %v6080
      %v7203 = vpop.permute.xlu0 %7202
      %7205 = vset.pattern.permute.xlu0 11
      %7206 = vperm.xlu0 %7205, %v6081
      %v7207 = vpop.permute.xlu0 %7206
      %7209 = vset.pattern.permute.xlu0 11
      %7210 = vperm.xlu0 %7209, %v6082
      %v7211 = vpop.permute.xlu0 %7210
      %7213 = vset.pattern.permute.xlu0 11
      %7214 = vperm.xlu0 %7213, %v6083
      %v7215 = vpop.permute.xlu0 %7214
      %7217 = vset.pattern.permute.xlu0 11
      %7218 = vperm.xlu0 %7217, %v6084
      %v7219 = vpop.permute.xlu0 %7218
      %7221 = vset.pattern.permute.xlu0 11
      %7222 = vperm.xlu0 %7221, %v6085
      %v7223 = vpop.permute.xlu0 %7222
      %7225 = vset.pattern.permute.xlu0 11
      %7226 = vperm.xlu0 %7225, %v6086
      %v7227 = vpop.permute.xlu0 %7226
      %7229 = vset.pattern.permute.xlu0 11
      %7230 = vperm.xlu0 %7229, %v6087
      %v7231 = vpop.permute.xlu0 %7230
      %7233 = vset.pattern.permute.xlu0 11
      %7234 = vperm.xlu0 %7233, %v6088
      %v7235 = vpop.permute.xlu0 %7234
      %7237 = vset.pattern.permute.xlu0 11
      %7238 = vperm.xlu0 %7237, %v6089
      %v7239 = vpop.permute.xlu0 %7238
      %7241 = vset.pattern.permute.xlu0 11
      %7242 = vperm.xlu0 %7241, %v6090
      %v7243 = vpop.permute.xlu0 %7242
      %v7245 = vperm.slane %v6092, 3
      %v7246 = vmul.f32 %v7183, %v7245
      %v7247 = vmul.f32 %v7187, %v7245
      %v7248 = vmul.f32 %v7191, %v7245
      %v7249 = vmul.f32 %v7195, %v7245
      %v7250 = vmul.f32 %v7199, %v7245
      %v7251 = vmul.f32 %v7203, %v7245
      %v7252 = vmul.f32 %v7207, %v7245
      %v7253 = vmul.f32 %v7211, %v7245
      %v7254 = vmul.f32 %v7215, %v7245
      %v7255 = vmul.f32 %v7219, %v7245
      %v7256 = vmul.f32 %v7223, %v7245
      %v7257 = vmul.f32 %v7227, %v7245
      %v7258 = vmul.f32 %v7231, %v7245
      %v7259 = vmul.f32 %v7235, %v7245
      %v7260 = vmul.f32 %v7239, %v7245
      %v7261 = vmul.f32 %v7243, %v7245
      %v7262 = vadd.f32 %v7165, %v7246
      %v7263 = vadd.f32 %v7166, %v7247
      %v7264 = vadd.f32 %v7167, %v7248
      %v7265 = vadd.f32 %v7168, %v7249
      %v7266 = vadd.f32 %v7169, %v7250
      %v7267 = vadd.f32 %v7170, %v7251
      %v7268 = vadd.f32 %v7171, %v7252
      %v7269 = vadd.f32 %v7172, %v7253
      %v7270 = vadd.f32 %v7173, %v7254
      %v7271 = vadd.f32 %v7174, %v7255
      %v7272 = vadd.f32 %v7175, %v7256
      %v7273 = vadd.f32 %v7176, %v7257
      %v7274 = vadd.f32 %v7177, %v7258
      %v7275 = vadd.f32 %v7178, %v7259
      %v7276 = vadd.f32 %v7179, %v7260
      %v7277 = vadd.f32 %v7180, %v7261
      %7278 = vset.pattern.permute.xlu0 12
      %7279 = vperm.xlu0 %7278, %v6075
      %v7280 = vpop.permute.xlu0 %7279
      %7282 = vset.pattern.permute.xlu0 12
      %7283 = vperm.xlu0 %7282, %v6076
      %v7284 = vpop.permute.xlu0 %7283
      %7286 = vset.pattern.permute.xlu0 12
      %7287 = vperm.xlu0 %7286, %v6077
      %v7288 = vpop.permute.xlu0 %7287
      %7290 = vset.pattern.permute.xlu0 12
      %7291 = vperm.xlu0 %7290, %v6078
      %v7292 = vpop.permute.xlu0 %7291
      %7294 = vset.pattern.permute.xlu0 12
      %7295 = vperm.xlu0 %7294, %v6079
      %v7296 = vpop.permute.xlu0 %7295
      %7298 = vset.pattern.permute.xlu0 12
      %7299 = vperm.xlu0 %7298, %v6080
      %v7300 = vpop.permute.xlu0 %7299
      %7302 = vset.pattern.permute.xlu0 12
      %7303 = vperm.xlu0 %7302, %v6081
      %v7304 = vpop.permute.xlu0 %7303
      %7306 = vset.pattern.permute.xlu0 12
      %7307 = vperm.xlu0 %7306, %v6082
      %v7308 = vpop.permute.xlu0 %7307
      %7310 = vset.pattern.permute.xlu0 12
      %7311 = vperm.xlu0 %7310, %v6083
      %v7312 = vpop.permute.xlu0 %7311
      %7314 = vset.pattern.permute.xlu0 12
      %7315 = vperm.xlu0 %7314, %v6084
      %v7316 = vpop.permute.xlu0 %7315
      %7318 = vset.pattern.permute.xlu0 12
      %7319 = vperm.xlu0 %7318, %v6085
      %v7320 = vpop.permute.xlu0 %7319
      %7322 = vset.pattern.permute.xlu0 12
      %7323 = vperm.xlu0 %7322, %v6086
      %v7324 = vpop.permute.xlu0 %7323
      %7326 = vset.pattern.permute.xlu0 12
      %7327 = vperm.xlu0 %7326, %v6087
      %v7328 = vpop.permute.xlu0 %7327
      %7330 = vset.pattern.permute.xlu0 12
      %7331 = vperm.xlu0 %7330, %v6088
      %v7332 = vpop.permute.xlu0 %7331
      %7334 = vset.pattern.permute.xlu0 12
      %7335 = vperm.xlu0 %7334, %v6089
      %v7336 = vpop.permute.xlu0 %7335
      %7338 = vset.pattern.permute.xlu0 12
      %7339 = vperm.xlu0 %7338, %v6090
      %v7340 = vpop.permute.xlu0 %7339
      %v7342 = vperm.slane %v6092, 4
      %v7343 = vmul.f32 %v7280, %v7342
      %v7344 = vmul.f32 %v7284, %v7342
      %v7345 = vmul.f32 %v7288, %v7342
      %v7346 = vmul.f32 %v7292, %v7342
      %v7347 = vmul.f32 %v7296, %v7342
      %v7348 = vmul.f32 %v7300, %v7342
      %v7349 = vmul.f32 %v7304, %v7342
      %v7350 = vmul.f32 %v7308, %v7342
      %v7351 = vmul.f32 %v7312, %v7342
      %v7352 = vmul.f32 %v7316, %v7342
      %v7353 = vmul.f32 %v7320, %v7342
      %v7354 = vmul.f32 %v7324, %v7342
      %v7355 = vmul.f32 %v7328, %v7342
      %v7356 = vmul.f32 %v7332, %v7342
      %v7357 = vmul.f32 %v7336, %v7342
      %v7358 = vmul.f32 %v7340, %v7342
      %v7359 = vadd.f32 %v7262, %v7343
      %v7360 = vadd.f32 %v7263, %v7344
      %v7361 = vadd.f32 %v7264, %v7345
      %v7362 = vadd.f32 %v7265, %v7346
      %v7363 = vadd.f32 %v7266, %v7347
      %v7364 = vadd.f32 %v7267, %v7348
      %v7365 = vadd.f32 %v7268, %v7349
      %v7366 = vadd.f32 %v7269, %v7350
      %v7367 = vadd.f32 %v7270, %v7351
      %v7368 = vadd.f32 %v7271, %v7352
      %v7369 = vadd.f32 %v7272, %v7353
      %v7370 = vadd.f32 %v7273, %v7354
      %v7371 = vadd.f32 %v7274, %v7355
      %v7372 = vadd.f32 %v7275, %v7356
      %v7373 = vadd.f32 %v7276, %v7357
      %v7374 = vadd.f32 %v7277, %v7358
      %7375 = vset.pattern.permute.xlu0 13
      %7376 = vperm.xlu0 %7375, %v6075
      %v7377 = vpop.permute.xlu0 %7376
      %7379 = vset.pattern.permute.xlu0 13
      %7380 = vperm.xlu0 %7379, %v6076
      %v7381 = vpop.permute.xlu0 %7380
      %7383 = vset.pattern.permute.xlu0 13
      %7384 = vperm.xlu0 %7383, %v6077
      %v7385 = vpop.permute.xlu0 %7384
      %7387 = vset.pattern.permute.xlu0 13
      %7388 = vperm.xlu0 %7387, %v6078
      %v7389 = vpop.permute.xlu0 %7388
      %7391 = vset.pattern.permute.xlu0 13
      %7392 = vperm.xlu0 %7391, %v6079
      %v7393 = vpop.permute.xlu0 %7392
      %7395 = vset.pattern.permute.xlu0 13
      %7396 = vperm.xlu0 %7395, %v6080
      %v7397 = vpop.permute.xlu0 %7396
      %7399 = vset.pattern.permute.xlu0 13
      %7400 = vperm.xlu0 %7399, %v6081
      %v7401 = vpop.permute.xlu0 %7400
      %7403 = vset.pattern.permute.xlu0 13
      %7404 = vperm.xlu0 %7403, %v6082
      %v7405 = vpop.permute.xlu0 %7404
      %7407 = vset.pattern.permute.xlu0 13
      %7408 = vperm.xlu0 %7407, %v6083
      %v7409 = vpop.permute.xlu0 %7408
      %7411 = vset.pattern.permute.xlu0 13
      %7412 = vperm.xlu0 %7411, %v6084
      %v7413 = vpop.permute.xlu0 %7412
      %7415 = vset.pattern.permute.xlu0 13
      %7416 = vperm.xlu0 %7415, %v6085
      %v7417 = vpop.permute.xlu0 %7416
      %7419 = vset.pattern.permute.xlu0 13
      %7420 = vperm.xlu0 %7419, %v6086
      %v7421 = vpop.permute.xlu0 %7420
      %7423 = vset.pattern.permute.xlu0 13
      %7424 = vperm.xlu0 %7423, %v6087
      %v7425 = vpop.permute.xlu0 %7424
      %7427 = vset.pattern.permute.xlu0 13
      %7428 = vperm.xlu0 %7427, %v6088
      %v7429 = vpop.permute.xlu0 %7428
      %7431 = vset.pattern.permute.xlu0 13
      %7432 = vperm.xlu0 %7431, %v6089
      %v7433 = vpop.permute.xlu0 %7432
      %7435 = vset.pattern.permute.xlu0 13
      %7436 = vperm.xlu0 %7435, %v6090
      %v7437 = vpop.permute.xlu0 %7436
      %v7439 = vperm.slane %v6092, 5
      %v7440 = vmul.f32 %v7377, %v7439
      %v7441 = vmul.f32 %v7381, %v7439
      %v7442 = vmul.f32 %v7385, %v7439
      %v7443 = vmul.f32 %v7389, %v7439
      %v7444 = vmul.f32 %v7393, %v7439
      %v7445 = vmul.f32 %v7397, %v7439
      %v7446 = vmul.f32 %v7401, %v7439
      %v7447 = vmul.f32 %v7405, %v7439
      %v7448 = vmul.f32 %v7409, %v7439
      %v7449 = vmul.f32 %v7413, %v7439
      %v7450 = vmul.f32 %v7417, %v7439
      %v7451 = vmul.f32 %v7421, %v7439
      %v7452 = vmul.f32 %v7425, %v7439
      %v7453 = vmul.f32 %v7429, %v7439
      %v7454 = vmul.f32 %v7433, %v7439
      %v7455 = vmul.f32 %v7437, %v7439
      %v7456 = vadd.f32 %v7359, %v7440
      %v7457 = vadd.f32 %v7360, %v7441
      %v7458 = vadd.f32 %v7361, %v7442
      %v7459 = vadd.f32 %v7362, %v7443
      %v7460 = vadd.f32 %v7363, %v7444
      %v7461 = vadd.f32 %v7364, %v7445
      %v7462 = vadd.f32 %v7365, %v7446
      %v7463 = vadd.f32 %v7366, %v7447
      %v7464 = vadd.f32 %v7367, %v7448
      %v7465 = vadd.f32 %v7368, %v7449
      %v7466 = vadd.f32 %v7369, %v7450
      %v7467 = vadd.f32 %v7370, %v7451
      %v7468 = vadd.f32 %v7371, %v7452
      %v7469 = vadd.f32 %v7372, %v7453
      %v7470 = vadd.f32 %v7373, %v7454
      %v7471 = vadd.f32 %v7374, %v7455
      %7472 = vset.pattern.permute.xlu0 14
      %7473 = vperm.xlu0 %7472, %v6075
      %v7474 = vpop.permute.xlu0 %7473
      %7476 = vset.pattern.permute.xlu0 14
      %7477 = vperm.xlu0 %7476, %v6076
      %v7478 = vpop.permute.xlu0 %7477
      %7480 = vset.pattern.permute.xlu0 14
      %7481 = vperm.xlu0 %7480, %v6077
      %v7482 = vpop.permute.xlu0 %7481
      %7484 = vset.pattern.permute.xlu0 14
      %7485 = vperm.xlu0 %7484, %v6078
      %v7486 = vpop.permute.xlu0 %7485
      %7488 = vset.pattern.permute.xlu0 14
      %7489 = vperm.xlu0 %7488, %v6079
      %v7490 = vpop.permute.xlu0 %7489
      %7492 = vset.pattern.permute.xlu0 14
      %7493 = vperm.xlu0 %7492, %v6080
      %v7494 = vpop.permute.xlu0 %7493
      %7496 = vset.pattern.permute.xlu0 14
      %7497 = vperm.xlu0 %7496, %v6081
      %v7498 = vpop.permute.xlu0 %7497
      %7500 = vset.pattern.permute.xlu0 14
      %7501 = vperm.xlu0 %7500, %v6082
      %v7502 = vpop.permute.xlu0 %7501
      %7504 = vset.pattern.permute.xlu0 14
      %7505 = vperm.xlu0 %7504, %v6083
      %v7506 = vpop.permute.xlu0 %7505
      %7508 = vset.pattern.permute.xlu0 14
      %7509 = vperm.xlu0 %7508, %v6084
      %v7510 = vpop.permute.xlu0 %7509
      %7512 = vset.pattern.permute.xlu0 14
      %7513 = vperm.xlu0 %7512, %v6085
      %v7514 = vpop.permute.xlu0 %7513
      %7516 = vset.pattern.permute.xlu0 14
      %7517 = vperm.xlu0 %7516, %v6086
      %v7518 = vpop.permute.xlu0 %7517
      %7520 = vset.pattern.permute.xlu0 14
      %7521 = vperm.xlu0 %7520, %v6087
      %v7522 = vpop.permute.xlu0 %7521
      %7524 = vset.pattern.permute.xlu0 14
      %7525 = vperm.xlu0 %7524, %v6088
      %v7526 = vpop.permute.xlu0 %7525
      %7528 = vset.pattern.permute.xlu0 14
      %7529 = vperm.xlu0 %7528, %v6089
      %v7530 = vpop.permute.xlu0 %7529
      %7532 = vset.pattern.permute.xlu0 14
      %7533 = vperm.xlu0 %7532, %v6090
      %v7534 = vpop.permute.xlu0 %7533
      %v7536 = vperm.slane %v6092, 6
      %v7537 = vmul.f32 %v7474, %v7536
      %v7538 = vmul.f32 %v7478, %v7536
      %v7539 = vmul.f32 %v7482, %v7536
      %v7540 = vmul.f32 %v7486, %v7536
      %v7541 = vmul.f32 %v7490, %v7536
      %v7542 = vmul.f32 %v7494, %v7536
      %v7543 = vmul.f32 %v7498, %v7536
      %v7544 = vmul.f32 %v7502, %v7536
      %v7545 = vmul.f32 %v7506, %v7536
      %v7546 = vmul.f32 %v7510, %v7536
      %v7547 = vmul.f32 %v7514, %v7536
      %v7548 = vmul.f32 %v7518, %v7536
      %v7549 = vmul.f32 %v7522, %v7536
      %v7550 = vmul.f32 %v7526, %v7536
      %v7551 = vmul.f32 %v7530, %v7536
      %v7552 = vmul.f32 %v7534, %v7536
      %v7553 = vadd.f32 %v7456, %v7537
      %v7554 = vadd.f32 %v7457, %v7538
      %v7555 = vadd.f32 %v7458, %v7539
      %v7556 = vadd.f32 %v7459, %v7540
      %v7557 = vadd.f32 %v7460, %v7541
      %v7558 = vadd.f32 %v7461, %v7542
      %v7559 = vadd.f32 %v7462, %v7543
      %v7560 = vadd.f32 %v7463, %v7544
      %v7561 = vadd.f32 %v7464, %v7545
      %v7562 = vadd.f32 %v7465, %v7546
      %v7563 = vadd.f32 %v7466, %v7547
      %v7564 = vadd.f32 %v7467, %v7548
      %v7565 = vadd.f32 %v7468, %v7549
      %v7566 = vadd.f32 %v7469, %v7550
      %v7567 = vadd.f32 %v7470, %v7551
      %v7568 = vadd.f32 %v7471, %v7552
      %7569 = vset.pattern.permute.xlu0 15
      %7570 = vperm.xlu0 %7569, %v6075
      %v7571 = vpop.permute.xlu0 %7570
      %7573 = vset.pattern.permute.xlu0 15
      %7574 = vperm.xlu0 %7573, %v6076
      %v7575 = vpop.permute.xlu0 %7574
      %7577 = vset.pattern.permute.xlu0 15
      %7578 = vperm.xlu0 %7577, %v6077
      %v7579 = vpop.permute.xlu0 %7578
      %7581 = vset.pattern.permute.xlu0 15
      %7582 = vperm.xlu0 %7581, %v6078
      %v7583 = vpop.permute.xlu0 %7582
      %7585 = vset.pattern.permute.xlu0 15
      %7586 = vperm.xlu0 %7585, %v6079
      %v7587 = vpop.permute.xlu0 %7586
      %7589 = vset.pattern.permute.xlu0 15
      %7590 = vperm.xlu0 %7589, %v6080
      %v7591 = vpop.permute.xlu0 %7590
      %7593 = vset.pattern.permute.xlu0 15
      %7594 = vperm.xlu0 %7593, %v6081
      %v7595 = vpop.permute.xlu0 %7594
      %7597 = vset.pattern.permute.xlu0 15
      %7598 = vperm.xlu0 %7597, %v6082
      %v7599 = vpop.permute.xlu0 %7598
      %7601 = vset.pattern.permute.xlu0 15
      %7602 = vperm.xlu0 %7601, %v6083
      %v7603 = vpop.permute.xlu0 %7602
      %7605 = vset.pattern.permute.xlu0 15
      %7606 = vperm.xlu0 %7605, %v6084
      %v7607 = vpop.permute.xlu0 %7606
      %7609 = vset.pattern.permute.xlu0 15
      %7610 = vperm.xlu0 %7609, %v6085
      %v7611 = vpop.permute.xlu0 %7610
      %7613 = vset.pattern.permute.xlu0 15
      %7614 = vperm.xlu0 %7613, %v6086
      %v7615 = vpop.permute.xlu0 %7614
      %7617 = vset.pattern.permute.xlu0 15
      %7618 = vperm.xlu0 %7617, %v6087
      %v7619 = vpop.permute.xlu0 %7618
      %7621 = vset.pattern.permute.xlu0 15
      %7622 = vperm.xlu0 %7621, %v6088
      %v7623 = vpop.permute.xlu0 %7622
      %7625 = vset.pattern.permute.xlu0 15
      %7626 = vperm.xlu0 %7625, %v6089
      %v7627 = vpop.permute.xlu0 %7626
      %7629 = vset.pattern.permute.xlu0 15
      %7630 = vperm.xlu0 %7629, %v6090
      %v7631 = vpop.permute.xlu0 %7630
      %v7633 = vperm.slane %v6092, 7
      %v7634 = vmul.f32 %v7571, %v7633
      %v7635 = vmul.f32 %v7575, %v7633
      %v7636 = vmul.f32 %v7579, %v7633
      %v7637 = vmul.f32 %v7583, %v7633
      %v7638 = vmul.f32 %v7587, %v7633
      %v7639 = vmul.f32 %v7591, %v7633
      %v7640 = vmul.f32 %v7595, %v7633
      %v7641 = vmul.f32 %v7599, %v7633
      %v7642 = vmul.f32 %v7603, %v7633
      %v7643 = vmul.f32 %v7607, %v7633
      %v7644 = vmul.f32 %v7611, %v7633
      %v7645 = vmul.f32 %v7615, %v7633
      %v7646 = vmul.f32 %v7619, %v7633
      %v7647 = vmul.f32 %v7623, %v7633
      %v7648 = vmul.f32 %v7627, %v7633
      %v7649 = vmul.f32 %v7631, %v7633
      %v7650 = vadd.f32 %v7553, %v7634
      %v7651 = vadd.f32 %v7554, %v7635
      %v7652 = vadd.f32 %v7555, %v7636
      %v7653 = vadd.f32 %v7556, %v7637
      %v7654 = vadd.f32 %v7557, %v7638
      %v7655 = vadd.f32 %v7558, %v7639
      %v7656 = vadd.f32 %v7559, %v7640
      %v7657 = vadd.f32 %v7560, %v7641
      %v7658 = vadd.f32 %v7561, %v7642
      %v7659 = vadd.f32 %v7562, %v7643
      %v7660 = vadd.f32 %v7563, %v7644
      %v7661 = vadd.f32 %v7564, %v7645
      %v7662 = vadd.f32 %v7565, %v7646
      %v7663 = vadd.f32 %v7566, %v7647
      %v7664 = vadd.f32 %v7567, %v7648
      %v7665 = vadd.f32 %v7568, %v7649
      %v7666 = vadd.f32 %v5089, %v7650
      %v7667 = vadd.f32 %v5090, %v7651
      %v7668 = vadd.f32 %v5091, %v7652
      %v7669 = vadd.f32 %v5092, %v7653
      %v7670 = vadd.f32 %v5093, %v7654
      %v7671 = vadd.f32 %v5094, %v7655
      %v7672 = vadd.f32 %v5095, %v7656
      %v7673 = vadd.f32 %v5096, %v7657
      %v7674 = vadd.f32 %v5097, %v7658
      %v7675 = vadd.f32 %v5098, %v7659
      %v7676 = vadd.f32 %v5099, %v7660
      %v7677 = vadd.f32 %v5100, %v7661
      %v7678 = vadd.f32 %v5101, %v7662
      %v7679 = vadd.f32 %v5102, %v7663
      %v7680 = vadd.f32 %v5103, %v7664
      %v7681 = vadd.f32 %v5104, %v7665
      %7682 = vst.msk [vmem:[%s518] sm:$0xff] %vm5107, %v7666
      %7683 = vst.msk [vmem:[%s518 + $0x8] sm:$0xff] %vm5107, %v7667
      %7684 = vst.msk [vmem:[%s518 + $0x10] sm:$0xff] %vm5107, %v7668
      %7685 = vst.msk [vmem:[%s518 + $0x18] sm:$0xff] %vm5107, %v7669
      %7686 = vst.msk [vmem:[%s518 + $0x20] sm:$0xff] %vm5107, %v7670
      %7687 = vst.msk [vmem:[%s518 + $0x28] sm:$0xff] %vm5107, %v7671
      %7688 = vst.msk [vmem:[%s518 + $0x30] sm:$0xff] %vm5107, %v7672
      %7689 = vst.msk [vmem:[%s518 + $0x38] sm:$0xff] %vm5107, %v7673
      %7690 = vst.msk [vmem:[%s518 + $0x40] sm:$0xff] %vm5107, %v7674
      %7691 = vst.msk [vmem:[%s518 + $0x48] sm:$0xff] %vm5107, %v7675
      %7692 = vst.msk [vmem:[%s518 + $0x50] sm:$0xff] %vm5107, %v7676
      %7693 = vst.msk [vmem:[%s518 + $0x58] sm:$0xff] %vm5107, %v7677
      %7694 = vst.msk [vmem:[%s518 + $0x60] sm:$0xff] %vm5107, %v7678
      %7695 = vst.msk [vmem:[%s518 + $0x68] sm:$0xff] %vm5107, %v7679
      %7696 = vst.msk [vmem:[%s518 + $0x70] sm:$0xff] %vm5107, %v7680
      %7697 = vst.msk [vmem:[%s518 + $0x78] sm:$0xff] %vm5107, %v7681
      %s7698 = smul.u32 8, %s31
      %p7699 = scmp.lt.s32.totalorder %s30, 1
      %s7700 = scalar_select %p7699, %s30, 1
      %p7701 = scmp.lt.s32.totalorder %s7698, 15
      %s7702 = scalar_select %p7701, %s7698, 15
      %s7703 = smul.addr %s7702, 2
      %s7704 = smul.addr %s7700, 32
      %s7705 = sadd.s32 %s7703, %s7704
      %s7706 = smul.addr %s7705, 8
      %s7707 = scalar_lea.vmem %s15, %s7706
      // Predicated region
      $region85: #{cblock_forward.1} parent=79 // pred_check
        %p7708 = pneg %p378
      $region86: #{cblock_forward.1} parent=79 // pred_check_branch
        %7710 = sbr.rel (%p7708) target = $region88
      $region87: #{cblock_forward.1} parent=79 // pred_region
        %s7711 = smul.u32 8, %s31
      $region88: #{cblock_forward.1} parent=79 // pred_fallthru
        _
    $region80: #{cblock_forward.1} parent=5 // pred_fallthru
      _
    %p7712 = scmp.le.s32.totalorder 2, %s21
    // Predicated region
    $region89: #{cblock_forward.1} parent=5 // pred_check
      %p7713 = pneg %p7712
    $region90: #{cblock_forward.1} parent=5 // pred_check_branch
      %7715 = sbr.rel (%p7713) target = $region92
    $region91: #{cblock_forward.1} parent=5 // pred_region
      %s7716 = ssub.s32 %s21, 2
      // Predicated region
      $region93: #{cblock_forward.1} parent=91 // pred_check
        %p7717 = pneg %p384
      $region94: #{cblock_forward.1} parent=91 // pred_check_branch
        %7719 = sbr.rel (%p7717) target = $region96
      $region95: #{cblock_forward.1} parent=91 // pred_region
        %s7720 = smul.u32 8, %s33
        %p7721 = scmp.lt.s32.totalorder %s32, 1
        %s7722 = scalar_select %p7721, %s32, 1
        %p7723 = scmp.lt.s32.totalorder %s7720, 15
        %s7724 = scalar_select %p7723, %s7720, 15
        %s7725 = smul.addr %s7724, 2
        %s7726 = smul.addr %s7722, 32
        %s7727 = sadd.s32 %s7725, %s7726
        %s7728 = smul.addr %s7727, 8
        %s7729 = scalar_lea.vmem %s15, %s7728
      $region96: #{cblock_forward.1} parent=91 // pred_fallthru
        _
    $region92: #{cblock_forward.1} parent=5 // pred_fallthru
      _
  $region6: #{cblock_forward.1} parent=0 // loop_footer
    %s25 = sadd.s32 1, %s21
  $region7: #{cblock_forward.1} parent=0 // loop_footer_branch
    %20 = sbr.rel target = $region3
  $region8: #{cblock_forward.1} parent=0 // loop_exit
    _

</llo_original>
